<compile_context>
chip_gen: v6e
topology: v6e:2x2x1
jax: 0.10.0
libtpu: 0.0.40
codegen_flags: <defaults>
</compile_context>

<pallas_src>
import jax
import jax.numpy as jnp
from jax import lax
from jax.experimental import pallas as pl
from jax.experimental.pallas import tpu as pltpu


def _downsample_conv_kernel(x_ref, w_ref, b_ref, o_ref):
    # x_ref: (NB, 2, 2, HPH, WPH, C)  2x2 spatial-phase split of the padded
    #                                 NHWC input; resident across row tiles.
    # w_ref: (9*C, C)                 im2col-packed weights [(kh*3+kw)*C+ci, co]
    # b_ref: (1, C)
    # o_ref: (NB, TOH, OW, C)         one tile of output rows for NB images.
    nb, toh, ow, c = o_ref.shape
    r = pl.program_id(1)
    row0 = toh * r                      # first output row of this tile

    # Gather the 9 taps as contiguous windows of the phase images
    # (no strided loads) and fuse them along K on the lane axis.
    taps = []
    for kh in range(3):
        for kw in range(3):
            taps.append(
                x_ref[:, kh % 2, kw % 2,
                      pl.ds(row0 + kh // 2, toh),
                      pl.ds(kw // 2, ow), :])            # (NB, TOH, OW, C)
    lhs = jnp.concatenate(taps, axis=-1)                 # (NB, TOH, OW, 9C)
    lhs = lhs.reshape(nb * toh * ow, 9 * c)              # MXU LHS, M = NB*TOH*OW

    acc = jnp.dot(lhs, w_ref[...],
                  preferred_element_type=jnp.float32,
                  precision=lax.Precision.HIGHEST)       # (M, C) f32
    acc = acc + b_ref[...].astype(jnp.float32)
    o_ref[...] = acc.reshape(nb, toh, ow, c).astype(o_ref.dtype)


def _pick_tiles(n, oh, ow, c, *, max_acc_elems=256 * 1024, target_m=256):
    """Pick (batch fold nb, row tile toh).

    toh: the largest divisor of oh whose f32 accumulator (toh*ow*c) stays
    within max_acc_elems (default ~1 MiB).  nb: if a full image still leaves
    the MXU M dimension short (< target_m), fold batch elements together.
    """
    cap = max(1, max_acc_elems // max(1, ow * c))
    toh = 1
    for d in range(1, oh + 1):
        if oh % d == 0 and d <= cap:
            toh = d

    nb = 1
    if toh == oh and oh * ow < target_m and n > 1:
        for d in range(2, n + 1):
            if n % d != 0:
                continue
            if d * oh * ow * c > max_acc_elems:
                break
            nb = d
            if nb * oh * ow >= target_m:
                break
    return nb, toh


def downsample_conv(x_nchw, weight_oihw, bias):
    """Conv2d(C, C, (3,3), stride=(2,2), padding=(1,1)) on NCHW input."""
    n, c, h, w = x_nchw.shape
    oh = (h - 1) // 2 + 1
    ow = (w - 1) // 2 + 1
    hp, wp = h + 2, w + 2
    hpe, wpe = hp + hp % 2, wp + wp % 2           # round padded dims to even
    hph, wph = hpe // 2, wpe // 2                 # phase-image spatial dims

    nb, toh = _pick_tiles(n, oh, ow, c)
    grid = (n // nb, oh // toh)

    # --- wrapper glue (one fused XLA copy pass): NCHW->NHWC, zero-pad,
    # --- 2x2 phase split;  x_ph[n,a,b,i,j,:] == x_pad[n,2i+a,2j+b,:]
    x_nhwc = jnp.transpose(x_nchw, (0, 2, 3, 1))
    x_pad = jnp.pad(x_nhwc, ((0, 0), (1, hpe - h - 1), (1, wpe - w - 1), (0, 0)))
    x_ph = x_pad.reshape(n, hph, 2, wph, 2, c).transpose(0, 2, 4, 1, 3, 5)

    # OIHW -> (kh, kw, cin, cout) -> im2col-packed (9*cin, cout)
    w_im2col = jnp.transpose(weight_oihw, (2, 3, 1, 0)).reshape(9 * c, c)
    b2 = bias.reshape(1, c)

    itemsize = jnp.dtype(x_nchw.dtype).itemsize
    m = nb * toh * ow
    in_block = nb * 4 * hph * wph * c * itemsize
    par_block = (9 * c * c + c) * itemsize
    out_block = nb * toh * ow * c * itemsize
    temps = m * 9 * c * itemsize + m * c * 4      # im2col LHS + f32 accumulator
    vmem_est = 2 * (in_block + par_block + out_block) + 2 * temps
    # Leave headroom for Mosaic scratch; stay well under v7x's 64 MiB physical.
    vmem_limit = int(min(max(vmem_est + (8 << 20), 16 << 20), 48 << 20))

    flops = 2 * n * oh * ow * 9 * c * c
    bytes_accessed = int((x_ph.size + w_im2col.size + b2.size
                          + n * oh * ow * c) * itemsize)

    # Prefer the megacore split on the batch axis (unique input reads per
    # core); only rely on the row-tile axis when there is a single batch tile.
    dim_sem = ("parallel", "arbitrary") if grid[0] > 1 else ("parallel", "parallel")

    out_nhwc = pl.pallas_call(
        _downsample_conv_kernel,
        out_shape=jax.ShapeDtypeStruct((n, oh, ow, c), x_nchw.dtype),
        grid=grid,
        in_specs=[
            # Phase block index depends only on the batch-tile axis ->
            # stays resident across the row-tile axis.
            pl.BlockSpec((nb, 2, 2, hph, wph, c),
                         lambda i, r: (i, 0, 0, 0, 0, 0)),
            pl.BlockSpec((9 * c, c), lambda i, r: (0, 0)),
            pl.BlockSpec((1, c), lambda i, r: (0, 0)),
        ],
        out_specs=pl.BlockSpec((nb, toh, ow, c), lambda i, r: (i, r, 0, 0)),
        compiler_params=pltpu.CompilerParams(
            dimension_semantics=dim_sem,
            vmem_limit_bytes=vmem_limit,
        ),
        cost_estimate=pl.CostEstimate(
            flops=flops, transcendentals=0, bytes_accessed=bytes_accessed),
    )(x_ph, w_im2col, b2)

    return jnp.transpose(out_nhwc, (0, 3, 1, 2))          # back to NCHW


def downsample_forward(x, t, c, weight, bias):
    """Mirrors Downsample.forward(x, t, c): t and c are ignored."""
    _, _ = (t, c)
    return downsample_conv(x, weight, bias)


downsample_forward = jax.jit(downsample_forward)


def _reference_conv(x_nchw, weight_oihw, bias):
    out = lax.conv_general_dilated(
        x_nchw, weight_oihw,
        window_strides=(2, 2),
        padding=((1, 1), (1, 1)),
        dimension_numbers=("NCHW", "OIHW", "NCHW"),
        precision=lax.Precision.HIGHEST,
    )
    return out + bias.reshape(1, -1, 1, 1)


if __name__ == "__main__":
    key = jax.random.PRNGKey(0)
    k_x, k_w, k_b = jax.random.split(key, 3)

    # UNet-style channel width (keeps the lane axis dense); small spatial dims.
    N, C, H, W = 2, 128, 16, 16
    x = jax.random.normal(k_x, (N, C, H, W), dtype=jnp.float32)
    t_emb = jnp.zeros((N, 8), dtype=jnp.float32)   # ignored by Downsample
    c_emb = jnp.zeros((N, 8), dtype=jnp.float32)   # ignored by Downsample

    # Deterministic synthetic Conv2d params (shapes of nn.Conv2d(C, C, 3, 2, 1)).
    fan_in = C * 3 * 3
    weight = jax.random.normal(k_w, (C, C, 3, 3), dtype=jnp.float32) * (1.0 / fan_in) ** 0.5
    bias = jax.random.normal(k_b, (C,), dtype=jnp.float32) * 0.1

    out = jax.block_until_ready(downsample_forward(x, t_emb, c_emb, weight, bias))

    ref = jax.block_until_ready(_reference_conv(x, weight, bias))
    assert out.shape == (N, C, H // 2, W // 2), out.shape
    max_err = float(jnp.max(jnp.abs(out - ref)))
    assert jnp.allclose(out, ref, atol=5e-3, rtol=1e-3), f"max abs err {max_err}"

    print("KERNEL_OK")
</pallas_src>

<mosaic_0001>
module attributes {stable_mosaic.version = 11 : i64} {
  func.func @_downsample_conv_kernel(%arg0: i32, %arg1: i32, %arg2: memref<2x2x2x9x9x128xf32, #tpu.memory_space<vmem>>, %arg3: memref<1152x128xf32, #tpu.memory_space<vmem>>, %arg4: memref<1x128xf32, #tpu.memory_space<vmem>>, %arg5: memref<2x8x8x128xf32, #tpu.memory_space<vmem>>) attributes {dimension_semantics = [#tpu.dimension_semantics<parallel>, #tpu.dimension_semantics<parallel>], iteration_bounds = array<i64: 1, 1>, scalar_prefetch = 0 : i64, scratch_operands = 0 : i64, tpu.core_type = #tpu.core_type<tc>, window_params = [{transform_indices = @transform_0, window_bounds = array<i64: 2, 2, 2, 9, 9, 128>}, {pipeline_mode = #tpu.pipeline_mode<synchronous>, transform_indices = @transform_1, window_bounds = array<i64: 1152, 128>}, {pipeline_mode = #tpu.pipeline_mode<synchronous>, transform_indices = @transform_2, window_bounds = array<i64: 1, 128>}, {transform_indices = @transform_3, window_bounds = array<i64: 2, 8, 8, 128>}]} {
    %c8_i32 = arith.constant 8 : i32
    %0 = arith.muli %c8_i32, %arg1 : i32
    %c0_i32 = arith.constant 0 : i32
    %1 = arith.addi %0, %c0_i32 : i32
    %c0 = arith.constant 0 : index
    %c0_0 = arith.constant 0 : index
    %c0_1 = arith.constant 0 : index
    %2 = arith.index_cast %1 : i32 to index
    %c0_2 = arith.constant 0 : index
    %c0_3 = arith.constant 0 : index
    %3 = vector.load %arg2[%c0, %c0_0, %c0_1, %2, %c0_2, %c0_3] : memref<2x2x2x9x9x128xf32, #tpu.memory_space<vmem>>, vector<2x1x1x8x8x128xf32>
    %4 = vector.shape_cast %3 : vector<2x1x1x8x8x128xf32> to vector<2x8x8x128xf32>
    %c0_i32_4 = arith.constant 0 : i32
    %5 = arith.addi %0, %c0_i32_4 : i32
    %c0_5 = arith.constant 0 : index
    %c0_6 = arith.constant 0 : index
    %c1 = arith.constant 1 : index
    %6 = arith.index_cast %5 : i32 to index
    %c0_7 = arith.constant 0 : index
    %c0_8 = arith.constant 0 : index
    %7 = vector.load %arg2[%c0_5, %c0_6, %c1, %6, %c0_7, %c0_8] : memref<2x2x2x9x9x128xf32, #tpu.memory_space<vmem>>, vector<2x1x1x8x8x128xf32>
    %8 = vector.shape_cast %7 : vector<2x1x1x8x8x128xf32> to vector<2x8x8x128xf32>
    %c0_i32_9 = arith.constant 0 : i32
    %9 = arith.addi %0, %c0_i32_9 : i32
    %c0_10 = arith.constant 0 : index
    %c0_11 = arith.constant 0 : index
    %c0_12 = arith.constant 0 : index
    %10 = arith.index_cast %9 : i32 to index
    %c1_13 = arith.constant 1 : index
    %c0_14 = arith.constant 0 : index
    %11 = vector.load %arg2[%c0_10, %c0_11, %c0_12, %10, %c1_13, %c0_14] : memref<2x2x2x9x9x128xf32, #tpu.memory_space<vmem>>, vector<2x1x1x8x8x128xf32>
    %12 = vector.shape_cast %11 : vector<2x1x1x8x8x128xf32> to vector<2x8x8x128xf32>
    %c0_i32_15 = arith.constant 0 : i32
    %13 = arith.addi %0, %c0_i32_15 : i32
    %c0_16 = arith.constant 0 : index
    %c1_17 = arith.constant 1 : index
    %c0_18 = arith.constant 0 : index
    %14 = arith.index_cast %13 : i32 to index
    %c0_19 = arith.constant 0 : index
    %c0_20 = arith.constant 0 : index
    %15 = vector.load %arg2[%c0_16, %c1_17, %c0_18, %14, %c0_19, %c0_20] : memref<2x2x2x9x9x128xf32, #tpu.memory_space<vmem>>, vector<2x1x1x8x8x128xf32>
    %16 = vector.shape_cast %15 : vector<2x1x1x8x8x128xf32> to vector<2x8x8x128xf32>
    %c0_i32_21 = arith.constant 0 : i32
    %17 = arith.addi %0, %c0_i32_21 : i32
    %c0_22 = arith.constant 0 : index
    %c1_23 = arith.constant 1 : index
    %c1_24 = arith.constant 1 : index
    %18 = arith.index_cast %17 : i32 to index
    %c0_25 = arith.constant 0 : index
    %c0_26 = arith.constant 0 : index
    %19 = vector.load %arg2[%c0_22, %c1_23, %c1_24, %18, %c0_25, %c0_26] : memref<2x2x2x9x9x128xf32, #tpu.memory_space<vmem>>, vector<2x1x1x8x8x128xf32>
    %20 = vector.shape_cast %19 : vector<2x1x1x8x8x128xf32> to vector<2x8x8x128xf32>
    %c0_i32_27 = arith.constant 0 : i32
    %21 = arith.addi %0, %c0_i32_27 : i32
    %c0_28 = arith.constant 0 : index
    %c1_29 = arith.constant 1 : index
    %c0_30 = arith.constant 0 : index
    %22 = arith.index_cast %21 : i32 to index
    %c1_31 = arith.constant 1 : index
    %c0_32 = arith.constant 0 : index
    %23 = vector.load %arg2[%c0_28, %c1_29, %c0_30, %22, %c1_31, %c0_32] : memref<2x2x2x9x9x128xf32, #tpu.memory_space<vmem>>, vector<2x1x1x8x8x128xf32>
    %24 = vector.shape_cast %23 : vector<2x1x1x8x8x128xf32> to vector<2x8x8x128xf32>
    %c1_i32 = arith.constant 1 : i32
    %25 = arith.addi %0, %c1_i32 : i32
    %c0_33 = arith.constant 0 : index
    %c0_34 = arith.constant 0 : index
    %c0_35 = arith.constant 0 : index
    %26 = arith.index_cast %25 : i32 to index
    %c0_36 = arith.constant 0 : index
    %c0_37 = arith.constant 0 : index
    %27 = vector.load %arg2[%c0_33, %c0_34, %c0_35, %26, %c0_36, %c0_37] : memref<2x2x2x9x9x128xf32, #tpu.memory_space<vmem>>, vector<2x1x1x8x8x128xf32>
    %28 = vector.shape_cast %27 : vector<2x1x1x8x8x128xf32> to vector<2x8x8x128xf32>
    %c1_i32_38 = arith.constant 1 : i32
    %29 = arith.addi %0, %c1_i32_38 : i32
    %c0_39 = arith.constant 0 : index
    %c0_40 = arith.constant 0 : index
    %c1_41 = arith.constant 1 : index
    %30 = arith.index_cast %29 : i32 to index
    %c0_42 = arith.constant 0 : index
    %c0_43 = arith.constant 0 : index
    %31 = vector.load %arg2[%c0_39, %c0_40, %c1_41, %30, %c0_42, %c0_43] : memref<2x2x2x9x9x128xf32, #tpu.memory_space<vmem>>, vector<2x1x1x8x8x128xf32>
    %32 = vector.shape_cast %31 : vector<2x1x1x8x8x128xf32> to vector<2x8x8x128xf32>
    %c1_i32_44 = arith.constant 1 : i32
    %33 = arith.addi %0, %c1_i32_44 : i32
    %c0_45 = arith.constant 0 : index
    %c0_46 = arith.constant 0 : index
    %c0_47 = arith.constant 0 : index
    %34 = arith.index_cast %33 : i32 to index
    %c1_48 = arith.constant 1 : index
    %c0_49 = arith.constant 0 : index
    %35 = vector.load %arg2[%c0_45, %c0_46, %c0_47, %34, %c1_48, %c0_49] : memref<2x2x2x9x9x128xf32, #tpu.memory_space<vmem>>, vector<2x1x1x8x8x128xf32>
    %36 = vector.shape_cast %35 : vector<2x1x1x8x8x128xf32> to vector<2x8x8x128xf32>
    %37 = tpu.concatenate %4, %8, %12, %16, %20, %24, %28, %32, %36 in 3 : vector<2x8x8x128xf32>, vector<2x8x8x128xf32>, vector<2x8x8x128xf32>, vector<2x8x8x128xf32>, vector<2x8x8x128xf32>, vector<2x8x8x128xf32>, vector<2x8x8x128xf32>, vector<2x8x8x128xf32>, vector<2x8x8x128xf32> -> vector<2x8x8x1152xf32>
    %38 = vector.shape_cast %37 : vector<2x8x8x1152xf32> to vector<128x1152xf32>
    %c0_50 = arith.constant 0 : index
    %c0_51 = arith.constant 0 : index
    %39 = vector.load %arg3[%c0_50, %c0_51] : memref<1152x128xf32, #tpu.memory_space<vmem>>, vector<1152x128xf32>
    %cst = arith.constant dense<0.000000e+00> : vector<128x128xf32>
    %40 = tpu.matmul %38, %39, %cst {dimension_numbers = #tpu.dot_dimension_numbers<[1], [0], [0], [1], [0, 0, 1, 1], [], []>, precision = #tpu.contract_precision<fp32>} : vector<128x1152xf32>, vector<1152x128xf32>, vector<128x128xf32> -> vector<128x128xf32>
    %c0_52 = arith.constant 0 : index
    %c0_53 = arith.constant 0 : index
    %41 = vector.load %arg4[%c0_52, %c0_53] : memref<1x128xf32, #tpu.memory_space<vmem>>, vector<1x128xf32>
    %42 = vector.broadcast %41 : vector<1x128xf32> to vector<128x128xf32>
    %43 = arith.addf %40, %42 : vector<128x128xf32>
    %44 = vector.shape_cast %43 : vector<128x128xf32> to vector<2x8x8x128xf32>
    %c0_54 = arith.constant 0 : index
    %c0_55 = arith.constant 0 : index
    %c0_56 = arith.constant 0 : index
    %c0_57 = arith.constant 0 : index
    %45 = vector.load %arg5[%c0_54, %c0_55, %c0_56, %c0_57] : memref<2x8x8x128xf32, #tpu.memory_space<vmem>>, vector<2x8x8x128xf32>
    tpu.vector_store %arg5[%c0_54, %c0_55, %c0_56, %c0_57], %44 {strides = array<i32>} : memref<2x8x8x128xf32, #tpu.memory_space<vmem>>, vector<2x8x8x128xf32>,
    return
  }
  func.func @transform_0(%arg0: i32, %arg1: i32) -> (i32, i32, i32, i32, i32, i32) {
    %c0_i32 = arith.constant 0 : i32
    %c0_i32_0 = arith.constant 0 : i32
    %c0_i32_1 = arith.constant 0 : i32
    %c0_i32_2 = arith.constant 0 : i32
    %c0_i32_3 = arith.constant 0 : i32
    %c0_i32_4 = arith.constant 0 : i32
    return %arg0, %c0_i32, %c0_i32_0, %c0_i32_1, %c0_i32_2, %c0_i32_3 : i32, i32, i32, i32, i32, i32
  }
  func.func @transform_1(%arg0: i32, %arg1: i32) -> (i32, i32) {
    %c0_i32 = arith.constant 0 : i32
    %c0_i32_0 = arith.constant 0 : i32
    %c0_i32_1 = arith.constant 0 : i32
    return %c0_i32, %c0_i32_0 : i32, i32
  }
  func.func @transform_2(%arg0: i32, %arg1: i32) -> (i32, i32) {
    %c0_i32 = arith.constant 0 : i32
    %c0_i32_0 = arith.constant 0 : i32
    %c0_i32_1 = arith.constant 0 : i32
    return %c0_i32, %c0_i32_0 : i32, i32
  }
  func.func @transform_3(%arg0: i32, %arg1: i32) -> (i32, i32, i32, i32) {
    %c0_i32 = arith.constant 0 : i32
    %c0_i32_0 = arith.constant 0 : i32
    %c0_i32_1 = arith.constant 0 : i32
    return %arg0, %arg1, %c0_i32, %c0_i32_0 : i32, i32, i32, i32
  }
}

</mosaic_0001>

<llo_original>
// kernel: downsample_forward.1
$region0: #{downsample_forward.1}
  #allocation0 [shape = 'u32[]', space=smem, size = 0x4, offset = 0x4, fixed_abs, tag = 'smem constant byte address 0x4 - core index']
  #allocation1 [shape = 'u32[144,128]{1,0:T(1,128)}', space=vmem, size = 0x12000, scoped, tag = 'internal scratch']
  %s0 = inlined_call_operand.vmem [shape: f32[2,2,2,9,9,128], index: 0, kind: input, shape index: {}]
  %s1 = inlined_call_operand.vmem [shape: f32[1152,128], index: 1, kind: input, shape index: {}]
  %s2 = inlined_call_operand.vmem [shape: f32[1,128], index: 2, kind: input, shape index: {}]
  %s3 = inlined_call_operand.hbm [shape: f32[2,8,8,128], index: 3, kind: output, shape index: {}]
  %s4 = sld [smem:[#allocation0]]
  $region22: #{downsample_forward.1} parent=0
    _
  %s6 = ssub.s32 1, %s4
  %s7 = scalar_select 0, %s6, %s4
  $region1: #{downsample_forward.1} parent=0
    #allocation2 [shape = 'u8[65536]{0}', space=vmem, size = 0x10000, scoped, tag = 'output window, operand 0, single buffered']
    #allocation3 [shape = 's32[1]{0}', space=sflag, size = 0x4, scoped, tag = 'scoped memory for downsample_forward.1']
    %8 = vsyncpa [#allocation3], 0
    // Predicated region
    $region2: #{downsample_forward.1} parent=1 // pred_check
      _
    $region3: #{downsample_forward.1} parent=1 // pred_check_branch
      %10 = sbr.rel (0) target = $region5
    $region4: #{downsample_forward.1} parent=1 // pred_region
      _
    $region5: #{downsample_forward.1} parent=1 // pred_fallthru
      _
    // Predicated region
    $region6: #{downsample_forward.1} parent=1 // pred_check
      _
    $region7: #{downsample_forward.1} parent=1 // pred_check_branch
      %12 = sbr.rel (0) target = $region9
    $region8: #{downsample_forward.1} parent=1 // pred_region
      _
    $region9: #{downsample_forward.1} parent=1 // pred_fallthru
      _
    // Predicated region
    $region10: #{downsample_forward.1} parent=1 // pred_check
      _
    $region11: #{downsample_forward.1} parent=1 // pred_check_branch
      %14 = sbr.rel (0) target = $region13
    $region12: #{downsample_forward.1} parent=1 // pred_region
      _
    $region13: #{downsample_forward.1} parent=1 // pred_fallthru
      _
    %s15 = smul.u32 0, 8
    %s16 = smul.u32 %s15, 16
    %s17 = scalar_lea.vmem %s0, %s16
    %v18 = vld [vmem:[%s17] sm:$0xff]
    %v19 = vld [vmem:[%s17 + $0x10] sm:$0xff]
    %v20 = vld [vmem:[%s17 + $0x20] sm:$0xff]
    %v21 = vld [vmem:[%s17 + $0x30] sm:$0xff]
    %v22 = vld [vmem:[%s17 + $0x40] sm:$0xff]
    %v23 = vld [vmem:[%s17 + $0x50] sm:$0xff]
    %v24 = vld [vmem:[%s17 + $0x60] sm:$0xff]
    %v25 = vld [vmem:[%s17 + $0x70] sm:$0xff]
    %v26 = vld [vmem:[%s17 + $0x240] sm:$0xff]
    %v27 = vld [vmem:[%s17 + $0x250] sm:$0xff]
    %v28 = vld [vmem:[%s17 + $0x260] sm:$0xff]
    %v29 = vld [vmem:[%s17 + $0x270] sm:$0xff]
    %v30 = vld [vmem:[%s17 + $0x280] sm:$0xff]
    %v31 = vld [vmem:[%s17 + $0x290] sm:$0xff]
    %v32 = vld [vmem:[%s17 + $0x2a0] sm:$0xff]
    %v33 = vld [vmem:[%s17 + $0x2b0] sm:$0xff]
    %s34 = sadd.s32 %s16, 144
    %s35 = scalar_lea.vmem %s0, %s34
    %v36 = vld [vmem:[%s35] sm:$0xff]
    %v37 = vld [vmem:[%s35 + $0x10] sm:$0xff]
    %v38 = vld [vmem:[%s35 + $0x20] sm:$0xff]
    %v39 = vld [vmem:[%s35 + $0x30] sm:$0xff]
    %v40 = vld [vmem:[%s35 + $0x40] sm:$0xff]
    %v41 = vld [vmem:[%s35 + $0x50] sm:$0xff]
    %v42 = vld [vmem:[%s35 + $0x60] sm:$0xff]
    %v43 = vld [vmem:[%s35 + $0x70] sm:$0xff]
    %v44 = vld [vmem:[%s35 + $0x240] sm:$0xff]
    %v45 = vld [vmem:[%s35 + $0x250] sm:$0xff]
    %v46 = vld [vmem:[%s35 + $0x260] sm:$0xff]
    %v47 = vld [vmem:[%s35 + $0x270] sm:$0xff]
    %v48 = vld [vmem:[%s35 + $0x280] sm:$0xff]
    %v49 = vld [vmem:[%s35 + $0x290] sm:$0xff]
    %v50 = vld [vmem:[%s35 + $0x2a0] sm:$0xff]
    %v51 = vld [vmem:[%s35 + $0x2b0] sm:$0xff]
    %v52 = vld [vmem:[%s17 + $0x1] sm:$0xff]
    %v53 = vld [vmem:[%s17 + $0x11] sm:$0xff]
    %v54 = vld [vmem:[%s17 + $0x21] sm:$0xff]
    %v55 = vld [vmem:[%s17 + $0x31] sm:$0xff]
    %v56 = vld [vmem:[%s17 + $0x41] sm:$0xff]
    %v57 = vld [vmem:[%s17 + $0x51] sm:$0xff]
    %v58 = vld [vmem:[%s17 + $0x61] sm:$0xff]
    %v59 = vld [vmem:[%s17 + $0x71] sm:$0xff]
    %v60 = vld [vmem:[%s17 + $0x241] sm:$0xff]
    %v61 = vld [vmem:[%s17 + $0x251] sm:$0xff]
    %v62 = vld [vmem:[%s17 + $0x261] sm:$0xff]
    %v63 = vld [vmem:[%s17 + $0x271] sm:$0xff]
    %v64 = vld [vmem:[%s17 + $0x281] sm:$0xff]
    %v65 = vld [vmem:[%s17 + $0x291] sm:$0xff]
    %v66 = vld [vmem:[%s17 + $0x2a1] sm:$0xff]
    %v67 = vld [vmem:[%s17 + $0x2b1] sm:$0xff]
    %s68 = sadd.s32 %s16, 288
    %s69 = scalar_lea.vmem %s0, %s68
    %v70 = vld [vmem:[%s69] sm:$0xff]
    %v71 = vld [vmem:[%s69 + $0x10] sm:$0xff]
    %v72 = vld [vmem:[%s69 + $0x20] sm:$0xff]
    %v73 = vld [vmem:[%s69 + $0x30] sm:$0xff]
    %v74 = vld [vmem:[%s69 + $0x40] sm:$0xff]
    %v75 = vld [vmem:[%s69 + $0x50] sm:$0xff]
    %v76 = vld [vmem:[%s69 + $0x60] sm:$0xff]
    %v77 = vld [vmem:[%s69 + $0x70] sm:$0xff]
    %v78 = vld [vmem:[%s69 + $0x240] sm:$0xff]
    %v79 = vld [vmem:[%s69 + $0x250] sm:$0xff]
    %v80 = vld [vmem:[%s69 + $0x260] sm:$0xff]
    %v81 = vld [vmem:[%s69 + $0x270] sm:$0xff]
    %v82 = vld [vmem:[%s69 + $0x280] sm:$0xff]
    %v83 = vld [vmem:[%s69 + $0x290] sm:$0xff]
    %v84 = vld [vmem:[%s69 + $0x2a0] sm:$0xff]
    %v85 = vld [vmem:[%s69 + $0x2b0] sm:$0xff]
    %s86 = sadd.s32 %s34, 288
    %s87 = scalar_lea.vmem %s0, %s86
    %v88 = vld [vmem:[%s87] sm:$0xff]
    %v89 = vld [vmem:[%s87 + $0x10] sm:$0xff]
    %v90 = vld [vmem:[%s87 + $0x20] sm:$0xff]
    %v91 = vld [vmem:[%s87 + $0x30] sm:$0xff]
    %v92 = vld [vmem:[%s87 + $0x40] sm:$0xff]
    %v93 = vld [vmem:[%s87 + $0x50] sm:$0xff]
    %v94 = vld [vmem:[%s87 + $0x60] sm:$0xff]
    %v95 = vld [vmem:[%s87 + $0x70] sm:$0xff]
    %v96 = vld [vmem:[%s87 + $0x240] sm:$0xff]
    %v97 = vld [vmem:[%s87 + $0x250] sm:$0xff]
    %v98 = vld [vmem:[%s87 + $0x260] sm:$0xff]
    %v99 = vld [vmem:[%s87 + $0x270] sm:$0xff]
    %v100 = vld [vmem:[%s87 + $0x280] sm:$0xff]
    %v101 = vld [vmem:[%s87 + $0x290] sm:$0xff]
    %v102 = vld [vmem:[%s87 + $0x2a0] sm:$0xff]
    %v103 = vld [vmem:[%s87 + $0x2b0] sm:$0xff]
    %v104 = vld [vmem:[%s69 + $0x1] sm:$0xff]
    %v105 = vld [vmem:[%s69 + $0x11] sm:$0xff]
    %v106 = vld [vmem:[%s69 + $0x21] sm:$0xff]
    %v107 = vld [vmem:[%s69 + $0x31] sm:$0xff]
    %v108 = vld [vmem:[%s69 + $0x41] sm:$0xff]
    %v109 = vld [vmem:[%s69 + $0x51] sm:$0xff]
    %v110 = vld [vmem:[%s69 + $0x61] sm:$0xff]
    %v111 = vld [vmem:[%s69 + $0x71] sm:$0xff]
    %v112 = vld [vmem:[%s69 + $0x241] sm:$0xff]
    %v113 = vld [vmem:[%s69 + $0x251] sm:$0xff]
    %v114 = vld [vmem:[%s69 + $0x261] sm:$0xff]
    %v115 = vld [vmem:[%s69 + $0x271] sm:$0xff]
    %v116 = vld [vmem:[%s69 + $0x281] sm:$0xff]
    %v117 = vld [vmem:[%s69 + $0x291] sm:$0xff]
    %v118 = vld [vmem:[%s69 + $0x2a1] sm:$0xff]
    %v119 = vld [vmem:[%s69 + $0x2b1] sm:$0xff]
    %s120 = sadd.s32 %s15, 1
    %s121 = smul.u32 %s120, 16
    %s122 = scalar_lea.vmem %s0, %s121
    %v123 = vld [vmem:[%s122] sm:$0xff]
    %v124 = vld [vmem:[%s122 + $0x10] sm:$0xff]
    %v125 = vld [vmem:[%s122 + $0x20] sm:$0xff]
    %v126 = vld [vmem:[%s122 + $0x30] sm:$0xff]
    %v127 = vld [vmem:[%s122 + $0x40] sm:$0xff]
    %v128 = vld [vmem:[%s122 + $0x50] sm:$0xff]
    %v129 = vld [vmem:[%s122 + $0x60] sm:$0xff]
    %v130 = vld [vmem:[%s122 + $0x70] sm:$0xff]
    %v131 = vld [vmem:[%s122 + $0x240] sm:$0xff]
    %v132 = vld [vmem:[%s122 + $0x250] sm:$0xff]
    %v133 = vld [vmem:[%s122 + $0x260] sm:$0xff]
    %v134 = vld [vmem:[%s122 + $0x270] sm:$0xff]
    %v135 = vld [vmem:[%s122 + $0x280] sm:$0xff]
    %v136 = vld [vmem:[%s122 + $0x290] sm:$0xff]
    %v137 = vld [vmem:[%s122 + $0x2a0] sm:$0xff]
    %v138 = vld [vmem:[%s122 + $0x2b0] sm:$0xff]
    %s139 = sadd.s32 %s121, 144
    %s140 = scalar_lea.vmem %s0, %s139
    %v141 = vld [vmem:[%s140] sm:$0xff]
    %v142 = vld [vmem:[%s140 + $0x10] sm:$0xff]
    %v143 = vld [vmem:[%s140 + $0x20] sm:$0xff]
    %v144 = vld [vmem:[%s140 + $0x30] sm:$0xff]
    %v145 = vld [vmem:[%s140 + $0x40] sm:$0xff]
    %v146 = vld [vmem:[%s140 + $0x50] sm:$0xff]
    %v147 = vld [vmem:[%s140 + $0x60] sm:$0xff]
    %v148 = vld [vmem:[%s140 + $0x70] sm:$0xff]
    %v149 = vld [vmem:[%s140 + $0x240] sm:$0xff]
    %v150 = vld [vmem:[%s140 + $0x250] sm:$0xff]
    %v151 = vld [vmem:[%s140 + $0x260] sm:$0xff]
    %v152 = vld [vmem:[%s140 + $0x270] sm:$0xff]
    %v153 = vld [vmem:[%s140 + $0x280] sm:$0xff]
    %v154 = vld [vmem:[%s140 + $0x290] sm:$0xff]
    %v155 = vld [vmem:[%s140 + $0x2a0] sm:$0xff]
    %v156 = vld [vmem:[%s140 + $0x2b0] sm:$0xff]
    %v157 = vld [vmem:[%s122 + $0x1] sm:$0xff]
    %v158 = vld [vmem:[%s122 + $0x11] sm:$0xff]
    %v159 = vld [vmem:[%s122 + $0x21] sm:$0xff]
    %v160 = vld [vmem:[%s122 + $0x31] sm:$0xff]
    %v161 = vld [vmem:[%s122 + $0x41] sm:$0xff]
    %v162 = vld [vmem:[%s122 + $0x51] sm:$0xff]
    %v163 = vld [vmem:[%s122 + $0x61] sm:$0xff]
    %v164 = vld [vmem:[%s122 + $0x71] sm:$0xff]
    %v165 = vld [vmem:[%s122 + $0x241] sm:$0xff]
    %v166 = vld [vmem:[%s122 + $0x251] sm:$0xff]
    %v167 = vld [vmem:[%s122 + $0x261] sm:$0xff]
    %v168 = vld [vmem:[%s122 + $0x271] sm:$0xff]
    %v169 = vld [vmem:[%s122 + $0x281] sm:$0xff]
    %v170 = vld [vmem:[%s122 + $0x291] sm:$0xff]
    %v171 = vld [vmem:[%s122 + $0x2a1] sm:$0xff]
    %v172 = vld [vmem:[%s122 + $0x2b1] sm:$0xff]
    %v173 = vld [vmem:[%s1] sm:$0xff]
    %v174 = vld [vmem:[%s1 + $0x8] sm:$0xff]
    %v175 = vld [vmem:[%s1 + $0x10] sm:$0xff]
    %v176 = vld [vmem:[%s1 + $0x18] sm:$0xff]
    %v177 = vld [vmem:[%s1 + $0x20] sm:$0xff]
    %v178 = vld [vmem:[%s1 + $0x28] sm:$0xff]
    %v179 = vld [vmem:[%s1 + $0x30] sm:$0xff]
    %v180 = vld [vmem:[%s1 + $0x38] sm:$0xff]
    %v181 = vld [vmem:[%s1 + $0x40] sm:$0xff]
    %v182 = vld [vmem:[%s1 + $0x48] sm:$0xff]
    %v183 = vld [vmem:[%s1 + $0x50] sm:$0xff]
    %v184 = vld [vmem:[%s1 + $0x58] sm:$0xff]
    %v185 = vld [vmem:[%s1 + $0x60] sm:$0xff]
    %v186 = vld [vmem:[%s1 + $0x68] sm:$0xff]
    %v187 = vld [vmem:[%s1 + $0x70] sm:$0xff]
    %v188 = vld [vmem:[%s1 + $0x78] sm:$0xff]
    %v189 = vld [vmem:[%s1 + $0x80] sm:$0xff]
    %v190 = vld [vmem:[%s1 + $0x88] sm:$0xff]
    %v191 = vld [vmem:[%s1 + $0x90] sm:$0xff]
    %v192 = vld [vmem:[%s1 + $0x98] sm:$0xff]
    %v193 = vld [vmem:[%s1 + $0xa0] sm:$0xff]
    %v194 = vld [vmem:[%s1 + $0xa8] sm:$0xff]
    %v195 = vld [vmem:[%s1 + $0xb0] sm:$0xff]
    %v196 = vld [vmem:[%s1 + $0xb8] sm:$0xff]
    %v197 = vld [vmem:[%s1 + $0xc0] sm:$0xff]
    %v198 = vld [vmem:[%s1 + $0xc8] sm:$0xff]
    %v199 = vld [vmem:[%s1 + $0xd0] sm:$0xff]
    %v200 = vld [vmem:[%s1 + $0xd8] sm:$0xff]
    %v201 = vld [vmem:[%s1 + $0xe0] sm:$0xff]
    %v202 = vld [vmem:[%s1 + $0xe8] sm:$0xff]
    %v203 = vld [vmem:[%s1 + $0xf0] sm:$0xff]
    %v204 = vld [vmem:[%s1 + $0xf8] sm:$0xff]
    %v205 = vld [vmem:[%s1 + $0x100] sm:$0xff]
    %v206 = vld [vmem:[%s1 + $0x108] sm:$0xff]
    %v207 = vld [vmem:[%s1 + $0x110] sm:$0xff]
    %v208 = vld [vmem:[%s1 + $0x118] sm:$0xff]
    %v209 = vld [vmem:[%s1 + $0x120] sm:$0xff]
    %v210 = vld [vmem:[%s1 + $0x128] sm:$0xff]
    %v211 = vld [vmem:[%s1 + $0x130] sm:$0xff]
    %v212 = vld [vmem:[%s1 + $0x138] sm:$0xff]
    %v213 = vld [vmem:[%s1 + $0x140] sm:$0xff]
    %v214 = vld [vmem:[%s1 + $0x148] sm:$0xff]
    %v215 = vld [vmem:[%s1 + $0x150] sm:$0xff]
    %v216 = vld [vmem:[%s1 + $0x158] sm:$0xff]
    %v217 = vld [vmem:[%s1 + $0x160] sm:$0xff]
    %v218 = vld [vmem:[%s1 + $0x168] sm:$0xff]
    %v219 = vld [vmem:[%s1 + $0x170] sm:$0xff]
    %v220 = vld [vmem:[%s1 + $0x178] sm:$0xff]
    %v221 = vld [vmem:[%s1 + $0x180] sm:$0xff]
    %v222 = vld [vmem:[%s1 + $0x188] sm:$0xff]
    %v223 = vld [vmem:[%s1 + $0x190] sm:$0xff]
    %v224 = vld [vmem:[%s1 + $0x198] sm:$0xff]
    %v225 = vld [vmem:[%s1 + $0x1a0] sm:$0xff]
    %v226 = vld [vmem:[%s1 + $0x1a8] sm:$0xff]
    %v227 = vld [vmem:[%s1 + $0x1b0] sm:$0xff]
    %v228 = vld [vmem:[%s1 + $0x1b8] sm:$0xff]
    %v229 = vld [vmem:[%s1 + $0x1c0] sm:$0xff]
    %v230 = vld [vmem:[%s1 + $0x1c8] sm:$0xff]
    %v231 = vld [vmem:[%s1 + $0x1d0] sm:$0xff]
    %v232 = vld [vmem:[%s1 + $0x1d8] sm:$0xff]
    %v233 = vld [vmem:[%s1 + $0x1e0] sm:$0xff]
    %v234 = vld [vmem:[%s1 + $0x1e8] sm:$0xff]
    %v235 = vld [vmem:[%s1 + $0x1f0] sm:$0xff]
    %v236 = vld [vmem:[%s1 + $0x1f8] sm:$0xff]
    %v237 = vld [vmem:[%s1 + $0x200] sm:$0xff]
    %v238 = vld [vmem:[%s1 + $0x208] sm:$0xff]
    %v239 = vld [vmem:[%s1 + $0x210] sm:$0xff]
    %v240 = vld [vmem:[%s1 + $0x218] sm:$0xff]
    %v241 = vld [vmem:[%s1 + $0x220] sm:$0xff]
    %v242 = vld [vmem:[%s1 + $0x228] sm:$0xff]
    %v243 = vld [vmem:[%s1 + $0x230] sm:$0xff]
    %v244 = vld [vmem:[%s1 + $0x238] sm:$0xff]
    %v245 = vld [vmem:[%s1 + $0x240] sm:$0xff]
    %v246 = vld [vmem:[%s1 + $0x248] sm:$0xff]
    %v247 = vld [vmem:[%s1 + $0x250] sm:$0xff]
    %v248 = vld [vmem:[%s1 + $0x258] sm:$0xff]
    %v249 = vld [vmem:[%s1 + $0x260] sm:$0xff]
    %v250 = vld [vmem:[%s1 + $0x268] sm:$0xff]
    %v251 = vld [vmem:[%s1 + $0x270] sm:$0xff]
    %v252 = vld [vmem:[%s1 + $0x278] sm:$0xff]
    %v253 = vld [vmem:[%s1 + $0x280] sm:$0xff]
    %v254 = vld [vmem:[%s1 + $0x288] sm:$0xff]
    %v255 = vld [vmem:[%s1 + $0x290] sm:$0xff]
    %v256 = vld [vmem:[%s1 + $0x298] sm:$0xff]
    %v257 = vld [vmem:[%s1 + $0x2a0] sm:$0xff]
    %v258 = vld [vmem:[%s1 + $0x2a8] sm:$0xff]
    %v259 = vld [vmem:[%s1 + $0x2b0] sm:$0xff]
    %v260 = vld [vmem:[%s1 + $0x2b8] sm:$0xff]
    %v261 = vld [vmem:[%s1 + $0x2c0] sm:$0xff]
    %v262 = vld [vmem:[%s1 + $0x2c8] sm:$0xff]
    %v263 = vld [vmem:[%s1 + $0x2d0] sm:$0xff]
    %v264 = vld [vmem:[%s1 + $0x2d8] sm:$0xff]
    %v265 = vld [vmem:[%s1 + $0x2e0] sm:$0xff]
    %v266 = vld [vmem:[%s1 + $0x2e8] sm:$0xff]
    %v267 = vld [vmem:[%s1 + $0x2f0] sm:$0xff]
    %v268 = vld [vmem:[%s1 + $0x2f8] sm:$0xff]
    %v269 = vld [vmem:[%s1 + $0x300] sm:$0xff]
    %v270 = vld [vmem:[%s1 + $0x308] sm:$0xff]
    %v271 = vld [vmem:[%s1 + $0x310] sm:$0xff]
    %v272 = vld [vmem:[%s1 + $0x318] sm:$0xff]
    %v273 = vld [vmem:[%s1 + $0x320] sm:$0xff]
    %v274 = vld [vmem:[%s1 + $0x328] sm:$0xff]
    %v275 = vld [vmem:[%s1 + $0x330] sm:$0xff]
    %v276 = vld [vmem:[%s1 + $0x338] sm:$0xff]
    %v277 = vld [vmem:[%s1 + $0x340] sm:$0xff]
    %v278 = vld [vmem:[%s1 + $0x348] sm:$0xff]
    %v279 = vld [vmem:[%s1 + $0x350] sm:$0xff]
    %v280 = vld [vmem:[%s1 + $0x358] sm:$0xff]
    %v281 = vld [vmem:[%s1 + $0x360] sm:$0xff]
    %v282 = vld [vmem:[%s1 + $0x368] sm:$0xff]
    %v283 = vld [vmem:[%s1 + $0x370] sm:$0xff]
    %v284 = vld [vmem:[%s1 + $0x378] sm:$0xff]
    %v285 = vld [vmem:[%s1 + $0x380] sm:$0xff]
    %v286 = vld [vmem:[%s1 + $0x388] sm:$0xff]
    %v287 = vld [vmem:[%s1 + $0x390] sm:$0xff]
    %v288 = vld [vmem:[%s1 + $0x398] sm:$0xff]
    %v289 = vld [vmem:[%s1 + $0x3a0] sm:$0xff]
    %v290 = vld [vmem:[%s1 + $0x3a8] sm:$0xff]
    %v291 = vld [vmem:[%s1 + $0x3b0] sm:$0xff]
    %v292 = vld [vmem:[%s1 + $0x3b8] sm:$0xff]
    %v293 = vld [vmem:[%s1 + $0x3c0] sm:$0xff]
    %v294 = vld [vmem:[%s1 + $0x3c8] sm:$0xff]
    %v295 = vld [vmem:[%s1 + $0x3d0] sm:$0xff]
    %v296 = vld [vmem:[%s1 + $0x3d8] sm:$0xff]
    %v297 = vld [vmem:[%s1 + $0x3e0] sm:$0xff]
    %v298 = vld [vmem:[%s1 + $0x3e8] sm:$0xff]
    %v299 = vld [vmem:[%s1 + $0x3f0] sm:$0xff]
    %v300 = vld [vmem:[%s1 + $0x3f8] sm:$0xff]
    %v301 = vld [vmem:[%s1 + $0x400] sm:$0xff]
    %v302 = vld [vmem:[%s1 + $0x408] sm:$0xff]
    %v303 = vld [vmem:[%s1 + $0x410] sm:$0xff]
    %v304 = vld [vmem:[%s1 + $0x418] sm:$0xff]
    %v305 = vld [vmem:[%s1 + $0x420] sm:$0xff]
    %v306 = vld [vmem:[%s1 + $0x428] sm:$0xff]
    %v307 = vld [vmem:[%s1 + $0x430] sm:$0xff]
    %v308 = vld [vmem:[%s1 + $0x438] sm:$0xff]
    %v309 = vld [vmem:[%s1 + $0x440] sm:$0xff]
    %v310 = vld [vmem:[%s1 + $0x448] sm:$0xff]
    %v311 = vld [vmem:[%s1 + $0x450] sm:$0xff]
    %v312 = vld [vmem:[%s1 + $0x458] sm:$0xff]
    %v313 = vld [vmem:[%s1 + $0x460] sm:$0xff]
    %v314 = vld [vmem:[%s1 + $0x468] sm:$0xff]
    %v315 = vld [vmem:[%s1 + $0x470] sm:$0xff]
    %v316 = vld [vmem:[%s1 + $0x478] sm:$0xff]
    %v317 = vld [vmem:[%s2] sm:$0x1]
    %v319 = vlaneseq
    %v320 = vshrl.u32 %v319, 7
    %v321 = vsub.s32 0, %v320
    %v322 = vrot.slane %v317, %v321
    %324 = vmatprep.subr.mxu0 0.0
    %v325 = vand.u32 %v188, 4294901760
    %326 = vmatpush1.msra.mxu0 %v325
    %327 = vmatprep.subr.mxu0 0.0
    %v328 = vand.u32 %v187, 4294901760
    %329 = vmatpush1.msra.mxu0 %v328
    %330 = vmatprep.subr.mxu0 0.0
    %v331 = vand.u32 %v186, 4294901760
    %332 = vmatpush1.msra.mxu0 %v331
    %333 = vmatprep.subr.mxu0 0.0
    %v334 = vand.u32 %v185, 4294901760
    %335 = vmatpush1.msra.mxu0 %v334
    %336 = vmatprep.subr.mxu0 0.0
    %v337 = vand.u32 %v184, 4294901760
    %338 = vmatpush1.msra.mxu0 %v337
    %339 = vmatprep.subr.mxu0 0.0
    %v340 = vand.u32 %v183, 4294901760
    %341 = vmatpush1.msra.mxu0 %v340
    %342 = vmatprep.subr.mxu0 0.0
    %v343 = vand.u32 %v182, 4294901760
    %344 = vmatpush1.msra.mxu0 %v343
    %345 = vmatprep.subr.mxu0 0.0
    %v346 = vand.u32 %v181, 4294901760
    %347 = vmatpush1.msra.mxu0 %v346
    %348 = vmatprep.subr.mxu0 0.0
    %v349 = vand.u32 %v180, 4294901760
    %350 = vmatpush1.msra.mxu0 %v349
    %351 = vmatprep.subr.mxu0 0.0
    %v352 = vand.u32 %v179, 4294901760
    %353 = vmatpush1.msra.mxu0 %v352
    %354 = vmatprep.subr.mxu0 0.0
    %v355 = vand.u32 %v178, 4294901760
    %356 = vmatpush1.msra.mxu0 %v355
    %357 = vmatprep.subr.mxu0 0.0
    %v358 = vand.u32 %v177, 4294901760
    %359 = vmatpush1.msra.mxu0 %v358
    %360 = vmatprep.subr.mxu0 0.0
    %v361 = vand.u32 %v176, 4294901760
    %362 = vmatpush1.msra.mxu0 %v361
    %363 = vmatprep.subr.mxu0 0.0
    %v364 = vand.u32 %v175, 4294901760
    %365 = vmatpush1.msra.mxu0 %v364
    %366 = vmatprep.subr.mxu0 0.0
    %v367 = vand.u32 %v174, 4294901760
    %368 = vmatpush1.msra.mxu0 %v367
    %369 = vmatprep.subr.mxu0 0.0
    %v370 = vand.u32 %v173, 4294901760
    %371 = vmatpush1.msra.mxu0 %v370
    %372 = vmatprep.subr.mxu0 0.0
    %v373 = vand.u32 %v204, 4294901760
    %374 = vmatpush2.msra.mxu0 %v373
    %375 = vmatprep.subr.mxu0 0.0
    %v376 = vand.u32 %v203, 4294901760
    %377 = vmatpush2.msra.mxu0 %v376
    %378 = vmatprep.subr.mxu0 0.0
    %v379 = vand.u32 %v202, 4294901760
    %380 = vmatpush2.msra.mxu0 %v379
    %381 = vmatprep.subr.mxu0 0.0
    %v382 = vand.u32 %v201, 4294901760
    %383 = vmatpush2.msra.mxu0 %v382
    %384 = vmatprep.subr.mxu0 0.0
    %v385 = vand.u32 %v200, 4294901760
    %386 = vmatpush2.msra.mxu0 %v385
    %387 = vmatprep.subr.mxu0 0.0
    %v388 = vand.u32 %v199, 4294901760
    %389 = vmatpush2.msra.mxu0 %v388
    %390 = vmatprep.subr.mxu0 0.0
    %v391 = vand.u32 %v198, 4294901760
    %392 = vmatpush2.msra.mxu0 %v391
    %393 = vmatprep.subr.mxu0 0.0
    %v394 = vand.u32 %v197, 4294901760
    %395 = vmatpush2.msra.mxu0 %v394
    %396 = vmatprep.subr.mxu0 0.0
    %v397 = vand.u32 %v196, 4294901760
    %398 = vmatpush2.msra.mxu0 %v397
    %399 = vmatprep.subr.mxu0 0.0
    %v400 = vand.u32 %v195, 4294901760
    %401 = vmatpush2.msra.mxu0 %v400
    %402 = vmatprep.subr.mxu0 0.0
    %v403 = vand.u32 %v194, 4294901760
    %404 = vmatpush2.msra.mxu0 %v403
    %405 = vmatprep.subr.mxu0 0.0
    %v406 = vand.u32 %v193, 4294901760
    %407 = vmatpush2.msra.mxu0 %v406
    %408 = vmatprep.subr.mxu0 0.0
    %v409 = vand.u32 %v192, 4294901760
    %410 = vmatpush2.msra.mxu0 %v409
    %411 = vmatprep.subr.mxu0 0.0
    %v412 = vand.u32 %v191, 4294901760
    %413 = vmatpush2.msra.mxu0 %v412
    %414 = vmatprep.subr.mxu0 0.0
    %v415 = vand.u32 %v190, 4294901760
    %416 = vmatpush2.msra.mxu0 %v415
    %417 = vmatprep.subr.mxu0 0.0
    %v418 = vand.u32 %v189, 4294901760
    %419 = vmatpush2.msra.mxu0 %v418
    %v420 = vand.u32 %v36, 4294901760
    %v421 = vsub.f32 %v36, %v420
    %v422 = vand.u32 %v421, 4294901760
    %v423 = vsub.f32 %v421, %v422
    %v424 = vand.u32 %v423, 4294901760
    %425 = vmatprep.mubr.f32.mxu0 %v424
    %v426 = vand.u32 %v18, 4294901760
    %v427 = vsub.f32 %v18, %v426
    %v428 = vand.u32 %v427, 4294901760
    %v429 = vsub.f32 %v427, %v428
    %v430 = vand.u32 %v429, 4294901760
    %431 = vmatmul.mubr.f32.gmra.mxu0 %v430
    %v432 = vpop.f32.mrf.mxu0
    %v433 = vadd.f32 %v322, %v432
    %v434 = vpop.f32.mrf.mxu0
    %v435 = vand.u32 %v37, 4294901760
    %v436 = vsub.f32 %v37, %v435
    %v437 = vand.u32 %v436, 4294901760
    %v438 = vsub.f32 %v436, %v437
    %v439 = vand.u32 %v438, 4294901760
    %440 = vmatprep.mubr.f32.mxu0 %v439
    %v441 = vand.u32 %v19, 4294901760
    %v442 = vsub.f32 %v19, %v441
    %v443 = vand.u32 %v442, 4294901760
    %v444 = vsub.f32 %v442, %v443
    %v445 = vand.u32 %v444, 4294901760
    %446 = vmatmul.mubr.f32.gmra.mxu0 %v445
    %v447 = vpop.f32.mrf.mxu0
    %v448 = vadd.f32 %v322, %v447
    %v449 = vpop.f32.mrf.mxu0
    %v450 = vand.u32 %v38, 4294901760
    %v451 = vsub.f32 %v38, %v450
    %v452 = vand.u32 %v451, 4294901760
    %v453 = vsub.f32 %v451, %v452
    %v454 = vand.u32 %v453, 4294901760
    %455 = vmatprep.mubr.f32.mxu0 %v454
    %v456 = vand.u32 %v20, 4294901760
    %v457 = vsub.f32 %v20, %v456
    %v458 = vand.u32 %v457, 4294901760
    %v459 = vsub.f32 %v457, %v458
    %v460 = vand.u32 %v459, 4294901760
    %461 = vmatmul.mubr.f32.gmra.mxu0 %v460
    %v462 = vpop.f32.mrf.mxu0
    %v463 = vadd.f32 %v322, %v462
    %v464 = vpop.f32.mrf.mxu0
    %v465 = vand.u32 %v39, 4294901760
    %v466 = vsub.f32 %v39, %v465
    %v467 = vand.u32 %v466, 4294901760
    %v468 = vsub.f32 %v466, %v467
    %v469 = vand.u32 %v468, 4294901760
    %470 = vmatprep.mubr.f32.mxu0 %v469
    %v471 = vand.u32 %v21, 4294901760
    %v472 = vsub.f32 %v21, %v471
    %v473 = vand.u32 %v472, 4294901760
    %v474 = vsub.f32 %v472, %v473
    %v475 = vand.u32 %v474, 4294901760
    %476 = vmatmul.mubr.f32.gmra.mxu0 %v475
    %v477 = vpop.f32.mrf.mxu0
    %v478 = vadd.f32 %v322, %v477
    %v479 = vpop.f32.mrf.mxu0
    %v480 = vand.u32 %v40, 4294901760
    %v481 = vsub.f32 %v40, %v480
    %v482 = vand.u32 %v481, 4294901760
    %v483 = vsub.f32 %v481, %v482
    %v484 = vand.u32 %v483, 4294901760
    %485 = vmatprep.mubr.f32.mxu0 %v484
    %v486 = vand.u32 %v22, 4294901760
    %v487 = vsub.f32 %v22, %v486
    %v488 = vand.u32 %v487, 4294901760
    %v489 = vsub.f32 %v487, %v488
    %v490 = vand.u32 %v489, 4294901760
    %491 = vmatmul.mubr.f32.gmra.mxu0 %v490
    %v492 = vpop.f32.mrf.mxu0
    %v493 = vadd.f32 %v322, %v492
    %v494 = vpop.f32.mrf.mxu0
    %v495 = vand.u32 %v41, 4294901760
    %v496 = vsub.f32 %v41, %v495
    %v497 = vand.u32 %v496, 4294901760
    %v498 = vsub.f32 %v496, %v497
    %v499 = vand.u32 %v498, 4294901760
    %500 = vmatprep.mubr.f32.mxu0 %v499
    %v501 = vand.u32 %v23, 4294901760
    %v502 = vsub.f32 %v23, %v501
    %v503 = vand.u32 %v502, 4294901760
    %v504 = vsub.f32 %v502, %v503
    %v505 = vand.u32 %v504, 4294901760
    %506 = vmatmul.mubr.f32.gmra.mxu0 %v505
    %v507 = vpop.f32.mrf.mxu0
    %v508 = vadd.f32 %v322, %v507
    %v509 = vpop.f32.mrf.mxu0
    %v510 = vand.u32 %v42, 4294901760
    %v511 = vsub.f32 %v42, %v510
    %v512 = vand.u32 %v511, 4294901760
    %v513 = vsub.f32 %v511, %v512
    %v514 = vand.u32 %v513, 4294901760
    %515 = vmatprep.mubr.f32.mxu0 %v514
    %v516 = vand.u32 %v24, 4294901760
    %v517 = vsub.f32 %v24, %v516
    %v518 = vand.u32 %v517, 4294901760
    %v519 = vsub.f32 %v517, %v518
    %v520 = vand.u32 %v519, 4294901760
    %521 = vmatmul.mubr.f32.gmra.mxu0 %v520
    %v522 = vpop.f32.mrf.mxu0
    %v523 = vadd.f32 %v322, %v522
    %v524 = vpop.f32.mrf.mxu0
    %v525 = vand.u32 %v43, 4294901760
    %v526 = vsub.f32 %v43, %v525
    %v527 = vand.u32 %v526, 4294901760
    %v528 = vsub.f32 %v526, %v527
    %v529 = vand.u32 %v528, 4294901760
    %530 = vmatprep.mubr.f32.mxu0 %v529
    %v531 = vand.u32 %v25, 4294901760
    %v532 = vsub.f32 %v25, %v531
    %v533 = vand.u32 %v532, 4294901760
    %v534 = vsub.f32 %v532, %v533
    %v535 = vand.u32 %v534, 4294901760
    %536 = vmatmul.mubr.f32.gmra.mxu0 %v535
    %v537 = vpop.f32.mrf.mxu0
    %v538 = vadd.f32 %v322, %v537
    %v539 = vpop.f32.mrf.mxu0
    %v540 = vand.u32 %v44, 4294901760
    %v541 = vsub.f32 %v44, %v540
    %v542 = vand.u32 %v541, 4294901760
    %v543 = vsub.f32 %v541, %v542
    %v544 = vand.u32 %v543, 4294901760
    %545 = vmatprep.mubr.f32.mxu0 %v544
    %v546 = vand.u32 %v26, 4294901760
    %v547 = vsub.f32 %v26, %v546
    %v548 = vand.u32 %v547, 4294901760
    %v549 = vsub.f32 %v547, %v548
    %v550 = vand.u32 %v549, 4294901760
    %551 = vmatmul.mubr.f32.gmra.mxu0 %v550
    %v552 = vpop.f32.mrf.mxu0
    %v553 = vadd.f32 %v322, %v552
    %v554 = vpop.f32.mrf.mxu0
    %v555 = vand.u32 %v45, 4294901760
    %v556 = vsub.f32 %v45, %v555
    %v557 = vand.u32 %v556, 4294901760
    %v558 = vsub.f32 %v556, %v557
    %v559 = vand.u32 %v558, 4294901760
    %560 = vmatprep.mubr.f32.mxu0 %v559
    %v561 = vand.u32 %v27, 4294901760
    %v562 = vsub.f32 %v27, %v561
    %v563 = vand.u32 %v562, 4294901760
    %v564 = vsub.f32 %v562, %v563
    %v565 = vand.u32 %v564, 4294901760
    %566 = vmatmul.mubr.f32.gmra.mxu0 %v565
    %v567 = vpop.f32.mrf.mxu0
    %v568 = vadd.f32 %v322, %v567
    %v569 = vpop.f32.mrf.mxu0
    %v570 = vand.u32 %v46, 4294901760
    %v571 = vsub.f32 %v46, %v570
    %v572 = vand.u32 %v571, 4294901760
    %v573 = vsub.f32 %v571, %v572
    %v574 = vand.u32 %v573, 4294901760
    %575 = vmatprep.mubr.f32.mxu0 %v574
    %v576 = vand.u32 %v28, 4294901760
    %v577 = vsub.f32 %v28, %v576
    %v578 = vand.u32 %v577, 4294901760
    %v579 = vsub.f32 %v577, %v578
    %v580 = vand.u32 %v579, 4294901760
    %581 = vmatmul.mubr.f32.gmra.mxu0 %v580
    %v582 = vpop.f32.mrf.mxu0
    %v583 = vadd.f32 %v322, %v582
    %v584 = vpop.f32.mrf.mxu0
    %v585 = vand.u32 %v47, 4294901760
    %v586 = vsub.f32 %v47, %v585
    %v587 = vand.u32 %v586, 4294901760
    %v588 = vsub.f32 %v586, %v587
    %v589 = vand.u32 %v588, 4294901760
    %590 = vmatprep.mubr.f32.mxu0 %v589
    %v591 = vand.u32 %v29, 4294901760
    %v592 = vsub.f32 %v29, %v591
    %v593 = vand.u32 %v592, 4294901760
    %v594 = vsub.f32 %v592, %v593
    %v595 = vand.u32 %v594, 4294901760
    %596 = vmatmul.mubr.f32.gmra.mxu0 %v595
    %v597 = vpop.f32.mrf.mxu0
    %v598 = vadd.f32 %v322, %v597
    %v599 = vpop.f32.mrf.mxu0
    %v600 = vand.u32 %v48, 4294901760
    %v601 = vsub.f32 %v48, %v600
    %v602 = vand.u32 %v601, 4294901760
    %v603 = vsub.f32 %v601, %v602
    %v604 = vand.u32 %v603, 4294901760
    %605 = vmatprep.mubr.f32.mxu0 %v604
    %v606 = vand.u32 %v30, 4294901760
    %v607 = vsub.f32 %v30, %v606
    %v608 = vand.u32 %v607, 4294901760
    %v609 = vsub.f32 %v607, %v608
    %v610 = vand.u32 %v609, 4294901760
    %611 = vmatmul.mubr.f32.gmra.mxu0 %v610
    %v612 = vpop.f32.mrf.mxu0
    %v613 = vadd.f32 %v322, %v612
    %v614 = vpop.f32.mrf.mxu0
    %v615 = vand.u32 %v49, 4294901760
    %v616 = vsub.f32 %v49, %v615
    %v617 = vand.u32 %v616, 4294901760
    %v618 = vsub.f32 %v616, %v617
    %v619 = vand.u32 %v618, 4294901760
    %620 = vmatprep.mubr.f32.mxu0 %v619
    %v621 = vand.u32 %v31, 4294901760
    %v622 = vsub.f32 %v31, %v621
    %v623 = vand.u32 %v622, 4294901760
    %v624 = vsub.f32 %v622, %v623
    %v625 = vand.u32 %v624, 4294901760
    %626 = vmatmul.mubr.f32.gmra.mxu0 %v625
    %v627 = vpop.f32.mrf.mxu0
    %v628 = vadd.f32 %v322, %v627
    %v629 = vpop.f32.mrf.mxu0
    %v630 = vand.u32 %v50, 4294901760
    %v631 = vsub.f32 %v50, %v630
    %v632 = vand.u32 %v631, 4294901760
    %v633 = vsub.f32 %v631, %v632
    %v634 = vand.u32 %v633, 4294901760
    %635 = vmatprep.mubr.f32.mxu0 %v634
    %v636 = vand.u32 %v32, 4294901760
    %v637 = vsub.f32 %v32, %v636
    %v638 = vand.u32 %v637, 4294901760
    %v639 = vsub.f32 %v637, %v638
    %v640 = vand.u32 %v639, 4294901760
    %641 = vmatmul.mubr.f32.gmra.mxu0 %v640
    %v642 = vpop.f32.mrf.mxu0
    %v643 = vadd.f32 %v322, %v642
    %v644 = vpop.f32.mrf.mxu0
    %v645 = vand.u32 %v51, 4294901760
    %v646 = vsub.f32 %v51, %v645
    %v647 = vand.u32 %v646, 4294901760
    %v648 = vsub.f32 %v646, %v647
    %v649 = vand.u32 %v648, 4294901760
    %650 = vmatprep.mubr.f32.mxu0 %v649
    %v651 = vand.u32 %v33, 4294901760
    %v652 = vsub.f32 %v33, %v651
    %v653 = vand.u32 %v652, 4294901760
    %v654 = vsub.f32 %v652, %v653
    %v655 = vand.u32 %v654, 4294901760
    %656 = vmatmul.mubr.f32.gmra.mxu0 %v655
    %v657 = vpop.f32.mrf.mxu0
    %v658 = vadd.f32 %v322, %v657
    %v659 = vpop.f32.mrf.mxu0
    %660 = vdwg.mxu0
    %661 = vmatprep.subr.mxu0 0.0
    %v662 = vand.u32 %v188, 4294901760
    %v663 = vsub.f32 %v188, %v662
    %v664 = vand.u32 %v663, 4294901760
    %v665 = vsub.f32 %v663, %v664
    %v666 = vand.u32 %v665, 4294901760
    %667 = vmatpush1.msra.mxu0 %v666
    %668 = vmatprep.subr.mxu0 0.0
    %v669 = vand.u32 %v187, 4294901760
    %v670 = vsub.f32 %v187, %v669
    %v671 = vand.u32 %v670, 4294901760
    %v672 = vsub.f32 %v670, %v671
    %v673 = vand.u32 %v672, 4294901760
    %674 = vmatpush1.msra.mxu0 %v673
    %675 = vmatprep.subr.mxu0 0.0
    %v676 = vand.u32 %v186, 4294901760
    %v677 = vsub.f32 %v186, %v676
    %v678 = vand.u32 %v677, 4294901760
    %v679 = vsub.f32 %v677, %v678
    %v680 = vand.u32 %v679, 4294901760
    %681 = vmatpush1.msra.mxu0 %v680
    %682 = vmatprep.subr.mxu0 0.0
    %v683 = vand.u32 %v185, 4294901760
    %v684 = vsub.f32 %v185, %v683
    %v685 = vand.u32 %v684, 4294901760
    %v686 = vsub.f32 %v684, %v685
    %v687 = vand.u32 %v686, 4294901760
    %688 = vmatpush1.msra.mxu0 %v687
    %689 = vmatprep.subr.mxu0 0.0
    %v690 = vand.u32 %v184, 4294901760
    %v691 = vsub.f32 %v184, %v690
    %v692 = vand.u32 %v691, 4294901760
    %v693 = vsub.f32 %v691, %v692
    %v694 = vand.u32 %v693, 4294901760
    %695 = vmatpush1.msra.mxu0 %v694
    %696 = vmatprep.subr.mxu0 0.0
    %v697 = vand.u32 %v183, 4294901760
    %v698 = vsub.f32 %v183, %v697
    %v699 = vand.u32 %v698, 4294901760
    %v700 = vsub.f32 %v698, %v699
    %v701 = vand.u32 %v700, 4294901760
    %702 = vmatpush1.msra.mxu0 %v701
    %703 = vmatprep.subr.mxu0 0.0
    %v704 = vand.u32 %v182, 4294901760
    %v705 = vsub.f32 %v182, %v704
    %v706 = vand.u32 %v705, 4294901760
    %v707 = vsub.f32 %v705, %v706
    %v708 = vand.u32 %v707, 4294901760
    %709 = vmatpush1.msra.mxu0 %v708
    %710 = vmatprep.subr.mxu0 0.0
    %v711 = vand.u32 %v181, 4294901760
    %v712 = vsub.f32 %v181, %v711
    %v713 = vand.u32 %v712, 4294901760
    %v714 = vsub.f32 %v712, %v713
    %v715 = vand.u32 %v714, 4294901760
    %716 = vmatpush1.msra.mxu0 %v715
    %717 = vmatprep.subr.mxu0 0.0
    %v718 = vand.u32 %v180, 4294901760
    %v719 = vsub.f32 %v180, %v718
    %v720 = vand.u32 %v719, 4294901760
    %v721 = vsub.f32 %v719, %v720
    %v722 = vand.u32 %v721, 4294901760
    %723 = vmatpush1.msra.mxu0 %v722
    %724 = vmatprep.subr.mxu0 0.0
    %v725 = vand.u32 %v179, 4294901760
    %v726 = vsub.f32 %v179, %v725
    %v727 = vand.u32 %v726, 4294901760
    %v728 = vsub.f32 %v726, %v727
    %v729 = vand.u32 %v728, 4294901760
    %730 = vmatpush1.msra.mxu0 %v729
    %731 = vmatprep.subr.mxu0 0.0
    %v732 = vand.u32 %v178, 4294901760
    %v733 = vsub.f32 %v178, %v732
    %v734 = vand.u32 %v733, 4294901760
    %v735 = vsub.f32 %v733, %v734
    %v736 = vand.u32 %v735, 4294901760
    %737 = vmatpush1.msra.mxu0 %v736
    %738 = vmatprep.subr.mxu0 0.0
    %v739 = vand.u32 %v177, 4294901760
    %v740 = vsub.f32 %v177, %v739
    %v741 = vand.u32 %v740, 4294901760
    %v742 = vsub.f32 %v740, %v741
    %v743 = vand.u32 %v742, 4294901760
    %744 = vmatpush1.msra.mxu0 %v743
    %745 = vmatprep.subr.mxu0 0.0
    %v746 = vand.u32 %v176, 4294901760
    %v747 = vsub.f32 %v176, %v746
    %v748 = vand.u32 %v747, 4294901760
    %v749 = vsub.f32 %v747, %v748
    %v750 = vand.u32 %v749, 4294901760
    %751 = vmatpush1.msra.mxu0 %v750
    %752 = vmatprep.subr.mxu0 0.0
    %v753 = vand.u32 %v175, 4294901760
    %v754 = vsub.f32 %v175, %v753
    %v755 = vand.u32 %v754, 4294901760
    %v756 = vsub.f32 %v754, %v755
    %v757 = vand.u32 %v756, 4294901760
    %758 = vmatpush1.msra.mxu0 %v757
    %759 = vmatprep.subr.mxu0 0.0
    %v760 = vand.u32 %v174, 4294901760
    %v761 = vsub.f32 %v174, %v760
    %v762 = vand.u32 %v761, 4294901760
    %v763 = vsub.f32 %v761, %v762
    %v764 = vand.u32 %v763, 4294901760
    %765 = vmatpush1.msra.mxu0 %v764
    %766 = vmatprep.subr.mxu0 0.0
    %v767 = vand.u32 %v173, 4294901760
    %v768 = vsub.f32 %v173, %v767
    %v769 = vand.u32 %v768, 4294901760
    %v770 = vsub.f32 %v768, %v769
    %v771 = vand.u32 %v770, 4294901760
    %772 = vmatpush1.msra.mxu0 %v771
    %773 = vmatprep.subr.mxu0 0.0
    %v774 = vand.u32 %v204, 4294901760
    %v775 = vsub.f32 %v204, %v774
    %v776 = vand.u32 %v775, 4294901760
    %v777 = vsub.f32 %v775, %v776
    %v778 = vand.u32 %v777, 4294901760
    %779 = vmatpush2.msra.mxu0 %v778
    %780 = vmatprep.subr.mxu0 0.0
    %v781 = vand.u32 %v203, 4294901760
    %v782 = vsub.f32 %v203, %v781
    %v783 = vand.u32 %v782, 4294901760
    %v784 = vsub.f32 %v782, %v783
    %v785 = vand.u32 %v784, 4294901760
    %786 = vmatpush2.msra.mxu0 %v785
    %787 = vmatprep.subr.mxu0 0.0
    %v788 = vand.u32 %v202, 4294901760
    %v789 = vsub.f32 %v202, %v788
    %v790 = vand.u32 %v789, 4294901760
    %v791 = vsub.f32 %v789, %v790
    %v792 = vand.u32 %v791, 4294901760
    %793 = vmatpush2.msra.mxu0 %v792
    %794 = vmatprep.subr.mxu0 0.0
    %v795 = vand.u32 %v201, 4294901760
    %v796 = vsub.f32 %v201, %v795
    %v797 = vand.u32 %v796, 4294901760
    %v798 = vsub.f32 %v796, %v797
    %v799 = vand.u32 %v798, 4294901760
    %800 = vmatpush2.msra.mxu0 %v799
    %801 = vmatprep.subr.mxu0 0.0
    %v802 = vand.u32 %v200, 4294901760
    %v803 = vsub.f32 %v200, %v802
    %v804 = vand.u32 %v803, 4294901760
    %v805 = vsub.f32 %v803, %v804
    %v806 = vand.u32 %v805, 4294901760
    %807 = vmatpush2.msra.mxu0 %v806
    %808 = vmatprep.subr.mxu0 0.0
    %v809 = vand.u32 %v199, 4294901760
    %v810 = vsub.f32 %v199, %v809
    %v811 = vand.u32 %v810, 4294901760
    %v812 = vsub.f32 %v810, %v811
    %v813 = vand.u32 %v812, 4294901760
    %814 = vmatpush2.msra.mxu0 %v813
    %815 = vmatprep.subr.mxu0 0.0
    %v816 = vand.u32 %v198, 4294901760
    %v817 = vsub.f32 %v198, %v816
    %v818 = vand.u32 %v817, 4294901760
    %v819 = vsub.f32 %v817, %v818
    %v820 = vand.u32 %v819, 4294901760
    %821 = vmatpush2.msra.mxu0 %v820
    %822 = vmatprep.subr.mxu0 0.0
    %v823 = vand.u32 %v197, 4294901760
    %v824 = vsub.f32 %v197, %v823
    %v825 = vand.u32 %v824, 4294901760
    %v826 = vsub.f32 %v824, %v825
    %v827 = vand.u32 %v826, 4294901760
    %828 = vmatpush2.msra.mxu0 %v827
    %829 = vmatprep.subr.mxu0 0.0
    %v830 = vand.u32 %v196, 4294901760
    %v831 = vsub.f32 %v196, %v830
    %v832 = vand.u32 %v831, 4294901760
    %v833 = vsub.f32 %v831, %v832
    %v834 = vand.u32 %v833, 4294901760
    %835 = vmatpush2.msra.mxu0 %v834
    %836 = vmatprep.subr.mxu0 0.0
    %v837 = vand.u32 %v195, 4294901760
    %v838 = vsub.f32 %v195, %v837
    %v839 = vand.u32 %v838, 4294901760
    %v840 = vsub.f32 %v838, %v839
    %v841 = vand.u32 %v840, 4294901760
    %842 = vmatpush2.msra.mxu0 %v841
    %843 = vmatprep.subr.mxu0 0.0
    %v844 = vand.u32 %v194, 4294901760
    %v845 = vsub.f32 %v194, %v844
    %v846 = vand.u32 %v845, 4294901760
    %v847 = vsub.f32 %v845, %v846
    %v848 = vand.u32 %v847, 4294901760
    %849 = vmatpush2.msra.mxu0 %v848
    %850 = vmatprep.subr.mxu0 0.0
    %v851 = vand.u32 %v193, 4294901760
    %v852 = vsub.f32 %v193, %v851
    %v853 = vand.u32 %v852, 4294901760
    %v854 = vsub.f32 %v852, %v853
    %v855 = vand.u32 %v854, 4294901760
    %856 = vmatpush2.msra.mxu0 %v855
    %857 = vmatprep.subr.mxu0 0.0
    %v858 = vand.u32 %v192, 4294901760
    %v859 = vsub.f32 %v192, %v858
    %v860 = vand.u32 %v859, 4294901760
    %v861 = vsub.f32 %v859, %v860
    %v862 = vand.u32 %v861, 4294901760
    %863 = vmatpush2.msra.mxu0 %v862
    %864 = vmatprep.subr.mxu0 0.0
    %v865 = vand.u32 %v191, 4294901760
    %v866 = vsub.f32 %v191, %v865
    %v867 = vand.u32 %v866, 4294901760
    %v868 = vsub.f32 %v866, %v867
    %v869 = vand.u32 %v868, 4294901760
    %870 = vmatpush2.msra.mxu0 %v869
    %871 = vmatprep.subr.mxu0 0.0
    %v872 = vand.u32 %v190, 4294901760
    %v873 = vsub.f32 %v190, %v872
    %v874 = vand.u32 %v873, 4294901760
    %v875 = vsub.f32 %v873, %v874
    %v876 = vand.u32 %v875, 4294901760
    %877 = vmatpush2.msra.mxu0 %v876
    %878 = vmatprep.subr.mxu0 0.0
    %v879 = vand.u32 %v189, 4294901760
    %v880 = vsub.f32 %v189, %v879
    %v881 = vand.u32 %v880, 4294901760
    %v882 = vsub.f32 %v880, %v881
    %v883 = vand.u32 %v882, 4294901760
    %884 = vmatpush2.msra.mxu0 %v883
    %v885 = vand.u32 %v36, 4294901760
    %886 = vmatprep.mubr.f32.mxu0 %v885
    %v887 = vand.u32 %v18, 4294901760
    %888 = vmatmul.mubr.f32.gmra.mxu0 %v887
    %v889 = vpop.f32.mrf.mxu0
    %v890 = vadd.f32 %v433, %v889
    %v891 = vpop.f32.mrf.mxu0
    %v892 = vand.u32 %v37, 4294901760
    %893 = vmatprep.mubr.f32.mxu0 %v892
    %v894 = vand.u32 %v19, 4294901760
    %895 = vmatmul.mubr.f32.gmra.mxu0 %v894
    %v896 = vpop.f32.mrf.mxu0
    %v897 = vadd.f32 %v448, %v896
    %v898 = vpop.f32.mrf.mxu0
    %v899 = vand.u32 %v38, 4294901760
    %900 = vmatprep.mubr.f32.mxu0 %v899
    %v901 = vand.u32 %v20, 4294901760
    %902 = vmatmul.mubr.f32.gmra.mxu0 %v901
    %v903 = vpop.f32.mrf.mxu0
    %v904 = vadd.f32 %v463, %v903
    %v905 = vpop.f32.mrf.mxu0
    %v906 = vand.u32 %v39, 4294901760
    %907 = vmatprep.mubr.f32.mxu0 %v906
    %v908 = vand.u32 %v21, 4294901760
    %909 = vmatmul.mubr.f32.gmra.mxu0 %v908
    %v910 = vpop.f32.mrf.mxu0
    %v911 = vadd.f32 %v478, %v910
    %v912 = vpop.f32.mrf.mxu0
    %v913 = vand.u32 %v40, 4294901760
    %914 = vmatprep.mubr.f32.mxu0 %v913
    %v915 = vand.u32 %v22, 4294901760
    %916 = vmatmul.mubr.f32.gmra.mxu0 %v915
    %v917 = vpop.f32.mrf.mxu0
    %v918 = vadd.f32 %v493, %v917
    %v919 = vpop.f32.mrf.mxu0
    %v920 = vand.u32 %v41, 4294901760
    %921 = vmatprep.mubr.f32.mxu0 %v920
    %v922 = vand.u32 %v23, 4294901760
    %923 = vmatmul.mubr.f32.gmra.mxu0 %v922
    %v924 = vpop.f32.mrf.mxu0
    %v925 = vadd.f32 %v508, %v924
    %v926 = vpop.f32.mrf.mxu0
    %v927 = vand.u32 %v42, 4294901760
    %928 = vmatprep.mubr.f32.mxu0 %v927
    %v929 = vand.u32 %v24, 4294901760
    %930 = vmatmul.mubr.f32.gmra.mxu0 %v929
    %v931 = vpop.f32.mrf.mxu0
    %v932 = vadd.f32 %v523, %v931
    %v933 = vpop.f32.mrf.mxu0
    %v934 = vand.u32 %v43, 4294901760
    %935 = vmatprep.mubr.f32.mxu0 %v934
    %v936 = vand.u32 %v25, 4294901760
    %937 = vmatmul.mubr.f32.gmra.mxu0 %v936
    %v938 = vpop.f32.mrf.mxu0
    %v939 = vadd.f32 %v538, %v938
    %v940 = vpop.f32.mrf.mxu0
    %v941 = vand.u32 %v44, 4294901760
    %942 = vmatprep.mubr.f32.mxu0 %v941
    %v943 = vand.u32 %v26, 4294901760
    %944 = vmatmul.mubr.f32.gmra.mxu0 %v943
    %v945 = vpop.f32.mrf.mxu0
    %v946 = vadd.f32 %v553, %v945
    %v947 = vpop.f32.mrf.mxu0
    %v948 = vand.u32 %v45, 4294901760
    %949 = vmatprep.mubr.f32.mxu0 %v948
    %v950 = vand.u32 %v27, 4294901760
    %951 = vmatmul.mubr.f32.gmra.mxu0 %v950
    %v952 = vpop.f32.mrf.mxu0
    %v953 = vadd.f32 %v568, %v952
    %v954 = vpop.f32.mrf.mxu0
    %v955 = vand.u32 %v46, 4294901760
    %956 = vmatprep.mubr.f32.mxu0 %v955
    %v957 = vand.u32 %v28, 4294901760
    %958 = vmatmul.mubr.f32.gmra.mxu0 %v957
    %v959 = vpop.f32.mrf.mxu0
    %v960 = vadd.f32 %v583, %v959
    %v961 = vpop.f32.mrf.mxu0
    %v962 = vand.u32 %v47, 4294901760
    %963 = vmatprep.mubr.f32.mxu0 %v962
    %v964 = vand.u32 %v29, 4294901760
    %965 = vmatmul.mubr.f32.gmra.mxu0 %v964
    %v966 = vpop.f32.mrf.mxu0
    %v967 = vadd.f32 %v598, %v966
    %v968 = vpop.f32.mrf.mxu0
    %v969 = vand.u32 %v48, 4294901760
    %970 = vmatprep.mubr.f32.mxu0 %v969
    %v971 = vand.u32 %v30, 4294901760
    %972 = vmatmul.mubr.f32.gmra.mxu0 %v971
    %v973 = vpop.f32.mrf.mxu0
    %v974 = vadd.f32 %v613, %v973
    %v975 = vpop.f32.mrf.mxu0
    %v976 = vand.u32 %v49, 4294901760
    %977 = vmatprep.mubr.f32.mxu0 %v976
    %v978 = vand.u32 %v31, 4294901760
    %979 = vmatmul.mubr.f32.gmra.mxu0 %v978
    %v980 = vpop.f32.mrf.mxu0
    %v981 = vadd.f32 %v628, %v980
    %v982 = vpop.f32.mrf.mxu0
    %v983 = vand.u32 %v50, 4294901760
    %984 = vmatprep.mubr.f32.mxu0 %v983
    %v985 = vand.u32 %v32, 4294901760
    %986 = vmatmul.mubr.f32.gmra.mxu0 %v985
    %v987 = vpop.f32.mrf.mxu0
    %v988 = vadd.f32 %v643, %v987
    %v989 = vpop.f32.mrf.mxu0
    %v990 = vand.u32 %v51, 4294901760
    %991 = vmatprep.mubr.f32.mxu0 %v990
    %v992 = vand.u32 %v33, 4294901760
    %993 = vmatmul.mubr.f32.gmra.mxu0 %v992
    %v994 = vpop.f32.mrf.mxu0
    %v995 = vadd.f32 %v658, %v994
    %v996 = vpop.f32.mrf.mxu0
    %997 = vdwg.mxu0
    %998 = vmatprep.subr.mxu0 0.0
    %v999 = vand.u32 %v188, 4294901760
    %v1000 = vsub.f32 %v188, %v999
    %1001 = vmatpush1.msra.mxu0 %v1000
    %1002 = vmatprep.subr.mxu0 0.0
    %v1003 = vand.u32 %v187, 4294901760
    %v1004 = vsub.f32 %v187, %v1003
    %1005 = vmatpush1.msra.mxu0 %v1004
    %1006 = vmatprep.subr.mxu0 0.0
    %v1007 = vand.u32 %v186, 4294901760
    %v1008 = vsub.f32 %v186, %v1007
    %1009 = vmatpush1.msra.mxu0 %v1008
    %1010 = vmatprep.subr.mxu0 0.0
    %v1011 = vand.u32 %v185, 4294901760
    %v1012 = vsub.f32 %v185, %v1011
    %1013 = vmatpush1.msra.mxu0 %v1012
    %1014 = vmatprep.subr.mxu0 0.0
    %v1015 = vand.u32 %v184, 4294901760
    %v1016 = vsub.f32 %v184, %v1015
    %1017 = vmatpush1.msra.mxu0 %v1016
    %1018 = vmatprep.subr.mxu0 0.0
    %v1019 = vand.u32 %v183, 4294901760
    %v1020 = vsub.f32 %v183, %v1019
    %1021 = vmatpush1.msra.mxu0 %v1020
    %1022 = vmatprep.subr.mxu0 0.0
    %v1023 = vand.u32 %v182, 4294901760
    %v1024 = vsub.f32 %v182, %v1023
    %1025 = vmatpush1.msra.mxu0 %v1024
    %1026 = vmatprep.subr.mxu0 0.0
    %v1027 = vand.u32 %v181, 4294901760
    %v1028 = vsub.f32 %v181, %v1027
    %1029 = vmatpush1.msra.mxu0 %v1028
    %1030 = vmatprep.subr.mxu0 0.0
    %v1031 = vand.u32 %v180, 4294901760
    %v1032 = vsub.f32 %v180, %v1031
    %1033 = vmatpush1.msra.mxu0 %v1032
    %1034 = vmatprep.subr.mxu0 0.0
    %v1035 = vand.u32 %v179, 4294901760
    %v1036 = vsub.f32 %v179, %v1035
    %1037 = vmatpush1.msra.mxu0 %v1036
    %1038 = vmatprep.subr.mxu0 0.0
    %v1039 = vand.u32 %v178, 4294901760
    %v1040 = vsub.f32 %v178, %v1039
    %1041 = vmatpush1.msra.mxu0 %v1040
    %1042 = vmatprep.subr.mxu0 0.0
    %v1043 = vand.u32 %v177, 4294901760
    %v1044 = vsub.f32 %v177, %v1043
    %1045 = vmatpush1.msra.mxu0 %v1044
    %1046 = vmatprep.subr.mxu0 0.0
    %v1047 = vand.u32 %v176, 4294901760
    %v1048 = vsub.f32 %v176, %v1047
    %1049 = vmatpush1.msra.mxu0 %v1048
    %1050 = vmatprep.subr.mxu0 0.0
    %v1051 = vand.u32 %v175, 4294901760
    %v1052 = vsub.f32 %v175, %v1051
    %1053 = vmatpush1.msra.mxu0 %v1052
    %1054 = vmatprep.subr.mxu0 0.0
    %v1055 = vand.u32 %v174, 4294901760
    %v1056 = vsub.f32 %v174, %v1055
    %1057 = vmatpush1.msra.mxu0 %v1056
    %1058 = vmatprep.subr.mxu0 0.0
    %v1059 = vand.u32 %v173, 4294901760
    %v1060 = vsub.f32 %v173, %v1059
    %1061 = vmatpush1.msra.mxu0 %v1060
    %1062 = vmatprep.subr.mxu0 0.0
    %v1063 = vand.u32 %v204, 4294901760
    %v1064 = vsub.f32 %v204, %v1063
    %1065 = vmatpush2.msra.mxu0 %v1064
    %1066 = vmatprep.subr.mxu0 0.0
    %v1067 = vand.u32 %v203, 4294901760
    %v1068 = vsub.f32 %v203, %v1067
    %1069 = vmatpush2.msra.mxu0 %v1068
    %1070 = vmatprep.subr.mxu0 0.0
    %v1071 = vand.u32 %v202, 4294901760
    %v1072 = vsub.f32 %v202, %v1071
    %1073 = vmatpush2.msra.mxu0 %v1072
    %1074 = vmatprep.subr.mxu0 0.0
    %v1075 = vand.u32 %v201, 4294901760
    %v1076 = vsub.f32 %v201, %v1075
    %1077 = vmatpush2.msra.mxu0 %v1076
    %1078 = vmatprep.subr.mxu0 0.0
    %v1079 = vand.u32 %v200, 4294901760
    %v1080 = vsub.f32 %v200, %v1079
    %1081 = vmatpush2.msra.mxu0 %v1080
    %1082 = vmatprep.subr.mxu0 0.0
    %v1083 = vand.u32 %v199, 4294901760
    %v1084 = vsub.f32 %v199, %v1083
    %1085 = vmatpush2.msra.mxu0 %v1084
    %1086 = vmatprep.subr.mxu0 0.0
    %v1087 = vand.u32 %v198, 4294901760
    %v1088 = vsub.f32 %v198, %v1087
    %1089 = vmatpush2.msra.mxu0 %v1088
    %1090 = vmatprep.subr.mxu0 0.0
    %v1091 = vand.u32 %v197, 4294901760
    %v1092 = vsub.f32 %v197, %v1091
    %1093 = vmatpush2.msra.mxu0 %v1092
    %1094 = vmatprep.subr.mxu0 0.0
    %v1095 = vand.u32 %v196, 4294901760
    %v1096 = vsub.f32 %v196, %v1095
    %1097 = vmatpush2.msra.mxu0 %v1096
    %1098 = vmatprep.subr.mxu0 0.0
    %v1099 = vand.u32 %v195, 4294901760
    %v1100 = vsub.f32 %v195, %v1099
    %1101 = vmatpush2.msra.mxu0 %v1100
    %1102 = vmatprep.subr.mxu0 0.0
    %v1103 = vand.u32 %v194, 4294901760
    %v1104 = vsub.f32 %v194, %v1103
    %1105 = vmatpush2.msra.mxu0 %v1104
    %1106 = vmatprep.subr.mxu0 0.0
    %v1107 = vand.u32 %v193, 4294901760
    %v1108 = vsub.f32 %v193, %v1107
    %1109 = vmatpush2.msra.mxu0 %v1108
    %1110 = vmatprep.subr.mxu0 0.0
    %v1111 = vand.u32 %v192, 4294901760
    %v1112 = vsub.f32 %v192, %v1111
    %1113 = vmatpush2.msra.mxu0 %v1112
    %1114 = vmatprep.subr.mxu0 0.0
    %v1115 = vand.u32 %v191, 4294901760
    %v1116 = vsub.f32 %v191, %v1115
    %1117 = vmatpush2.msra.mxu0 %v1116
    %1118 = vmatprep.subr.mxu0 0.0
    %v1119 = vand.u32 %v190, 4294901760
    %v1120 = vsub.f32 %v190, %v1119
    %1121 = vmatpush2.msra.mxu0 %v1120
    %1122 = vmatprep.subr.mxu0 0.0
    %v1123 = vand.u32 %v189, 4294901760
    %v1124 = vsub.f32 %v189, %v1123
    %1125 = vmatpush2.msra.mxu0 %v1124
    %v1126 = vand.u32 %v36, 4294901760
    %v1127 = vsub.f32 %v36, %v1126
    %1128 = vmatprep.mubr.f32.mxu0 %v1127
    %v1129 = vand.u32 %v18, 4294901760
    %v1130 = vsub.f32 %v18, %v1129
    %1131 = vmatmul.mubr.f32.gmra.mxu0 %v1130
    %v1132 = vpop.f32.mrf.mxu0
    %v1133 = vadd.f32 %v890, %v1132
    %v1134 = vpop.f32.mrf.mxu0
    %v1135 = vand.u32 %v37, 4294901760
    %v1136 = vsub.f32 %v37, %v1135
    %1137 = vmatprep.mubr.f32.mxu0 %v1136
    %v1138 = vand.u32 %v19, 4294901760
    %v1139 = vsub.f32 %v19, %v1138
    %1140 = vmatmul.mubr.f32.gmra.mxu0 %v1139
    %v1141 = vpop.f32.mrf.mxu0
    %v1142 = vadd.f32 %v897, %v1141
    %v1143 = vpop.f32.mrf.mxu0
    %v1144 = vand.u32 %v38, 4294901760
    %v1145 = vsub.f32 %v38, %v1144
    %1146 = vmatprep.mubr.f32.mxu0 %v1145
    %v1147 = vand.u32 %v20, 4294901760
    %v1148 = vsub.f32 %v20, %v1147
    %1149 = vmatmul.mubr.f32.gmra.mxu0 %v1148
    %v1150 = vpop.f32.mrf.mxu0
    %v1151 = vadd.f32 %v904, %v1150
    %v1152 = vpop.f32.mrf.mxu0
    %v1153 = vand.u32 %v39, 4294901760
    %v1154 = vsub.f32 %v39, %v1153
    %1155 = vmatprep.mubr.f32.mxu0 %v1154
    %v1156 = vand.u32 %v21, 4294901760
    %v1157 = vsub.f32 %v21, %v1156
    %1158 = vmatmul.mubr.f32.gmra.mxu0 %v1157
    %v1159 = vpop.f32.mrf.mxu0
    %v1160 = vadd.f32 %v911, %v1159
    %v1161 = vpop.f32.mrf.mxu0
    %v1162 = vand.u32 %v40, 4294901760
    %v1163 = vsub.f32 %v40, %v1162
    %1164 = vmatprep.mubr.f32.mxu0 %v1163
    %v1165 = vand.u32 %v22, 4294901760
    %v1166 = vsub.f32 %v22, %v1165
    %1167 = vmatmul.mubr.f32.gmra.mxu0 %v1166
    %v1168 = vpop.f32.mrf.mxu0
    %v1169 = vadd.f32 %v918, %v1168
    %v1170 = vpop.f32.mrf.mxu0
    %v1171 = vand.u32 %v41, 4294901760
    %v1172 = vsub.f32 %v41, %v1171
    %1173 = vmatprep.mubr.f32.mxu0 %v1172
    %v1174 = vand.u32 %v23, 4294901760
    %v1175 = vsub.f32 %v23, %v1174
    %1176 = vmatmul.mubr.f32.gmra.mxu0 %v1175
    %v1177 = vpop.f32.mrf.mxu0
    %v1178 = vadd.f32 %v925, %v1177
    %v1179 = vpop.f32.mrf.mxu0
    %v1180 = vand.u32 %v42, 4294901760
    %v1181 = vsub.f32 %v42, %v1180
    %1182 = vmatprep.mubr.f32.mxu0 %v1181
    %v1183 = vand.u32 %v24, 4294901760
    %v1184 = vsub.f32 %v24, %v1183
    %1185 = vmatmul.mubr.f32.gmra.mxu0 %v1184
    %v1186 = vpop.f32.mrf.mxu0
    %v1187 = vadd.f32 %v932, %v1186
    %v1188 = vpop.f32.mrf.mxu0
    %v1189 = vand.u32 %v43, 4294901760
    %v1190 = vsub.f32 %v43, %v1189
    %1191 = vmatprep.mubr.f32.mxu0 %v1190
    %v1192 = vand.u32 %v25, 4294901760
    %v1193 = vsub.f32 %v25, %v1192
    %1194 = vmatmul.mubr.f32.gmra.mxu0 %v1193
    %v1195 = vpop.f32.mrf.mxu0
    %v1196 = vadd.f32 %v939, %v1195
    %v1197 = vpop.f32.mrf.mxu0
    %v1198 = vand.u32 %v44, 4294901760
    %v1199 = vsub.f32 %v44, %v1198
    %1200 = vmatprep.mubr.f32.mxu0 %v1199
    %v1201 = vand.u32 %v26, 4294901760
    %v1202 = vsub.f32 %v26, %v1201
    %1203 = vmatmul.mubr.f32.gmra.mxu0 %v1202
    %v1204 = vpop.f32.mrf.mxu0
    %v1205 = vadd.f32 %v946, %v1204
    %v1206 = vpop.f32.mrf.mxu0
    %v1207 = vand.u32 %v45, 4294901760
    %v1208 = vsub.f32 %v45, %v1207
    %1209 = vmatprep.mubr.f32.mxu0 %v1208
    %v1210 = vand.u32 %v27, 4294901760
    %v1211 = vsub.f32 %v27, %v1210
    %1212 = vmatmul.mubr.f32.gmra.mxu0 %v1211
    %v1213 = vpop.f32.mrf.mxu0
    %v1214 = vadd.f32 %v953, %v1213
    %v1215 = vpop.f32.mrf.mxu0
    %v1216 = vand.u32 %v46, 4294901760
    %v1217 = vsub.f32 %v46, %v1216
    %1218 = vmatprep.mubr.f32.mxu0 %v1217
    %v1219 = vand.u32 %v28, 4294901760
    %v1220 = vsub.f32 %v28, %v1219
    %1221 = vmatmul.mubr.f32.gmra.mxu0 %v1220
    %v1222 = vpop.f32.mrf.mxu0
    %v1223 = vadd.f32 %v960, %v1222
    %v1224 = vpop.f32.mrf.mxu0
    %v1225 = vand.u32 %v47, 4294901760
    %v1226 = vsub.f32 %v47, %v1225
    %1227 = vmatprep.mubr.f32.mxu0 %v1226
    %v1228 = vand.u32 %v29, 4294901760
    %v1229 = vsub.f32 %v29, %v1228
    %1230 = vmatmul.mubr.f32.gmra.mxu0 %v1229
    %v1231 = vpop.f32.mrf.mxu0
    %v1232 = vadd.f32 %v967, %v1231
    %v1233 = vpop.f32.mrf.mxu0
    %v1234 = vand.u32 %v48, 4294901760
    %v1235 = vsub.f32 %v48, %v1234
    %1236 = vmatprep.mubr.f32.mxu0 %v1235
    %v1237 = vand.u32 %v30, 4294901760
    %v1238 = vsub.f32 %v30, %v1237
    %1239 = vmatmul.mubr.f32.gmra.mxu0 %v1238
    %v1240 = vpop.f32.mrf.mxu0
    %v1241 = vadd.f32 %v974, %v1240
    %v1242 = vpop.f32.mrf.mxu0
    %v1243 = vand.u32 %v49, 4294901760
    %v1244 = vsub.f32 %v49, %v1243
    %1245 = vmatprep.mubr.f32.mxu0 %v1244
    %v1246 = vand.u32 %v31, 4294901760
    %v1247 = vsub.f32 %v31, %v1246
    %1248 = vmatmul.mubr.f32.gmra.mxu0 %v1247
    %v1249 = vpop.f32.mrf.mxu0
    %v1250 = vadd.f32 %v981, %v1249
    %v1251 = vpop.f32.mrf.mxu0
    %v1252 = vand.u32 %v50, 4294901760
    %v1253 = vsub.f32 %v50, %v1252
    %1254 = vmatprep.mubr.f32.mxu0 %v1253
    %v1255 = vand.u32 %v32, 4294901760
    %v1256 = vsub.f32 %v32, %v1255
    %1257 = vmatmul.mubr.f32.gmra.mxu0 %v1256
    %v1258 = vpop.f32.mrf.mxu0
    %v1259 = vadd.f32 %v988, %v1258
    %v1260 = vpop.f32.mrf.mxu0
    %v1261 = vand.u32 %v51, 4294901760
    %v1262 = vsub.f32 %v51, %v1261
    %1263 = vmatprep.mubr.f32.mxu0 %v1262
    %v1264 = vand.u32 %v33, 4294901760
    %v1265 = vsub.f32 %v33, %v1264
    %1266 = vmatmul.mubr.f32.gmra.mxu0 %v1265
    %v1267 = vpop.f32.mrf.mxu0
    %v1268 = vadd.f32 %v995, %v1267
    %v1269 = vpop.f32.mrf.mxu0
    %1270 = vdwg.mxu0
    %1271 = vmatprep.subr.mxu0 0.0
    %v1272 = vand.u32 %v188, 4294901760
    %1273 = vmatpush1.msra.mxu0 %v1272
    %1274 = vmatprep.subr.mxu0 0.0
    %v1275 = vand.u32 %v187, 4294901760
    %1276 = vmatpush1.msra.mxu0 %v1275
    %1277 = vmatprep.subr.mxu0 0.0
    %v1278 = vand.u32 %v186, 4294901760
    %1279 = vmatpush1.msra.mxu0 %v1278
    %1280 = vmatprep.subr.mxu0 0.0
    %v1281 = vand.u32 %v185, 4294901760
    %1282 = vmatpush1.msra.mxu0 %v1281
    %1283 = vmatprep.subr.mxu0 0.0
    %v1284 = vand.u32 %v184, 4294901760
    %1285 = vmatpush1.msra.mxu0 %v1284
    %1286 = vmatprep.subr.mxu0 0.0
    %v1287 = vand.u32 %v183, 4294901760
    %1288 = vmatpush1.msra.mxu0 %v1287
    %1289 = vmatprep.subr.mxu0 0.0
    %v1290 = vand.u32 %v182, 4294901760
    %1291 = vmatpush1.msra.mxu0 %v1290
    %1292 = vmatprep.subr.mxu0 0.0
    %v1293 = vand.u32 %v181, 4294901760
    %1294 = vmatpush1.msra.mxu0 %v1293
    %1295 = vmatprep.subr.mxu0 0.0
    %v1296 = vand.u32 %v180, 4294901760
    %1297 = vmatpush1.msra.mxu0 %v1296
    %1298 = vmatprep.subr.mxu0 0.0
    %v1299 = vand.u32 %v179, 4294901760
    %1300 = vmatpush1.msra.mxu0 %v1299
    %1301 = vmatprep.subr.mxu0 0.0
    %v1302 = vand.u32 %v178, 4294901760
    %1303 = vmatpush1.msra.mxu0 %v1302
    %1304 = vmatprep.subr.mxu0 0.0
    %v1305 = vand.u32 %v177, 4294901760
    %1306 = vmatpush1.msra.mxu0 %v1305
    %1307 = vmatprep.subr.mxu0 0.0
    %v1308 = vand.u32 %v176, 4294901760
    %1309 = vmatpush1.msra.mxu0 %v1308
    %1310 = vmatprep.subr.mxu0 0.0
    %v1311 = vand.u32 %v175, 4294901760
    %1312 = vmatpush1.msra.mxu0 %v1311
    %1313 = vmatprep.subr.mxu0 0.0
    %v1314 = vand.u32 %v174, 4294901760
    %1315 = vmatpush1.msra.mxu0 %v1314
    %1316 = vmatprep.subr.mxu0 0.0
    %v1317 = vand.u32 %v173, 4294901760
    %1318 = vmatpush1.msra.mxu0 %v1317
    %1319 = vmatprep.subr.mxu0 0.0
    %v1320 = vand.u32 %v204, 4294901760
    %1321 = vmatpush2.msra.mxu0 %v1320
    %1322 = vmatprep.subr.mxu0 0.0
    %v1323 = vand.u32 %v203, 4294901760
    %1324 = vmatpush2.msra.mxu0 %v1323
    %1325 = vmatprep.subr.mxu0 0.0
    %v1326 = vand.u32 %v202, 4294901760
    %1327 = vmatpush2.msra.mxu0 %v1326
    %1328 = vmatprep.subr.mxu0 0.0
    %v1329 = vand.u32 %v201, 4294901760
    %1330 = vmatpush2.msra.mxu0 %v1329
    %1331 = vmatprep.subr.mxu0 0.0
    %v1332 = vand.u32 %v200, 4294901760
    %1333 = vmatpush2.msra.mxu0 %v1332
    %1334 = vmatprep.subr.mxu0 0.0
    %v1335 = vand.u32 %v199, 4294901760
    %1336 = vmatpush2.msra.mxu0 %v1335
    %1337 = vmatprep.subr.mxu0 0.0
    %v1338 = vand.u32 %v198, 4294901760
    %1339 = vmatpush2.msra.mxu0 %v1338
    %1340 = vmatprep.subr.mxu0 0.0
    %v1341 = vand.u32 %v197, 4294901760
    %1342 = vmatpush2.msra.mxu0 %v1341
    %1343 = vmatprep.subr.mxu0 0.0
    %v1344 = vand.u32 %v196, 4294901760
    %1345 = vmatpush2.msra.mxu0 %v1344
    %1346 = vmatprep.subr.mxu0 0.0
    %v1347 = vand.u32 %v195, 4294901760
    %1348 = vmatpush2.msra.mxu0 %v1347
    %1349 = vmatprep.subr.mxu0 0.0
    %v1350 = vand.u32 %v194, 4294901760
    %1351 = vmatpush2.msra.mxu0 %v1350
    %1352 = vmatprep.subr.mxu0 0.0
    %v1353 = vand.u32 %v193, 4294901760
    %1354 = vmatpush2.msra.mxu0 %v1353
    %1355 = vmatprep.subr.mxu0 0.0
    %v1356 = vand.u32 %v192, 4294901760
    %1357 = vmatpush2.msra.mxu0 %v1356
    %1358 = vmatprep.subr.mxu0 0.0
    %v1359 = vand.u32 %v191, 4294901760
    %1360 = vmatpush2.msra.mxu0 %v1359
    %1361 = vmatprep.subr.mxu0 0.0
    %v1362 = vand.u32 %v190, 4294901760
    %1363 = vmatpush2.msra.mxu0 %v1362
    %1364 = vmatprep.subr.mxu0 0.0
    %v1365 = vand.u32 %v189, 4294901760
    %1366 = vmatpush2.msra.mxu0 %v1365
    %v1367 = vand.u32 %v36, 4294901760
    %v1368 = vsub.f32 %v36, %v1367
    %v1369 = vand.u32 %v1368, 4294901760
    %1370 = vmatprep.mubr.f32.mxu0 %v1369
    %v1371 = vand.u32 %v18, 4294901760
    %v1372 = vsub.f32 %v18, %v1371
    %v1373 = vand.u32 %v1372, 4294901760
    %1374 = vmatmul.mubr.f32.gmra.mxu0 %v1373
    %v1375 = vpop.f32.mrf.mxu0
    %v1376 = vadd.f32 %v1133, %v1375
    %v1377 = vpop.f32.mrf.mxu0
    %v1378 = vand.u32 %v37, 4294901760
    %v1379 = vsub.f32 %v37, %v1378
    %v1380 = vand.u32 %v1379, 4294901760
    %1381 = vmatprep.mubr.f32.mxu0 %v1380
    %v1382 = vand.u32 %v19, 4294901760
    %v1383 = vsub.f32 %v19, %v1382
    %v1384 = vand.u32 %v1383, 4294901760
    %1385 = vmatmul.mubr.f32.gmra.mxu0 %v1384
    %v1386 = vpop.f32.mrf.mxu0
    %v1387 = vadd.f32 %v1142, %v1386
    %v1388 = vpop.f32.mrf.mxu0
    %v1389 = vand.u32 %v38, 4294901760
    %v1390 = vsub.f32 %v38, %v1389
    %v1391 = vand.u32 %v1390, 4294901760
    %1392 = vmatprep.mubr.f32.mxu0 %v1391
    %v1393 = vand.u32 %v20, 4294901760
    %v1394 = vsub.f32 %v20, %v1393
    %v1395 = vand.u32 %v1394, 4294901760
    %1396 = vmatmul.mubr.f32.gmra.mxu0 %v1395
    %v1397 = vpop.f32.mrf.mxu0
    %v1398 = vadd.f32 %v1151, %v1397
    %v1399 = vpop.f32.mrf.mxu0
    %v1400 = vand.u32 %v39, 4294901760
    %v1401 = vsub.f32 %v39, %v1400
    %v1402 = vand.u32 %v1401, 4294901760
    %1403 = vmatprep.mubr.f32.mxu0 %v1402
    %v1404 = vand.u32 %v21, 4294901760
    %v1405 = vsub.f32 %v21, %v1404
    %v1406 = vand.u32 %v1405, 4294901760
    %1407 = vmatmul.mubr.f32.gmra.mxu0 %v1406
    %v1408 = vpop.f32.mrf.mxu0
    %v1409 = vadd.f32 %v1160, %v1408
    %v1410 = vpop.f32.mrf.mxu0
    %v1411 = vand.u32 %v40, 4294901760
    %v1412 = vsub.f32 %v40, %v1411
    %v1413 = vand.u32 %v1412, 4294901760
    %1414 = vmatprep.mubr.f32.mxu0 %v1413
    %v1415 = vand.u32 %v22, 4294901760
    %v1416 = vsub.f32 %v22, %v1415
    %v1417 = vand.u32 %v1416, 4294901760
    %1418 = vmatmul.mubr.f32.gmra.mxu0 %v1417
    %v1419 = vpop.f32.mrf.mxu0
    %v1420 = vadd.f32 %v1169, %v1419
    %v1421 = vpop.f32.mrf.mxu0
    %v1422 = vand.u32 %v41, 4294901760
    %v1423 = vsub.f32 %v41, %v1422
    %v1424 = vand.u32 %v1423, 4294901760
    %1425 = vmatprep.mubr.f32.mxu0 %v1424
    %v1426 = vand.u32 %v23, 4294901760
    %v1427 = vsub.f32 %v23, %v1426
    %v1428 = vand.u32 %v1427, 4294901760
    %1429 = vmatmul.mubr.f32.gmra.mxu0 %v1428
    %v1430 = vpop.f32.mrf.mxu0
    %v1431 = vadd.f32 %v1178, %v1430
    %v1432 = vpop.f32.mrf.mxu0
    %v1433 = vand.u32 %v42, 4294901760
    %v1434 = vsub.f32 %v42, %v1433
    %v1435 = vand.u32 %v1434, 4294901760
    %1436 = vmatprep.mubr.f32.mxu0 %v1435
    %v1437 = vand.u32 %v24, 4294901760
    %v1438 = vsub.f32 %v24, %v1437
    %v1439 = vand.u32 %v1438, 4294901760
    %1440 = vmatmul.mubr.f32.gmra.mxu0 %v1439
    %v1441 = vpop.f32.mrf.mxu0
    %v1442 = vadd.f32 %v1187, %v1441
    %v1443 = vpop.f32.mrf.mxu0
    %v1444 = vand.u32 %v43, 4294901760
    %v1445 = vsub.f32 %v43, %v1444
    %v1446 = vand.u32 %v1445, 4294901760
    %1447 = vmatprep.mubr.f32.mxu0 %v1446
    %v1448 = vand.u32 %v25, 4294901760
    %v1449 = vsub.f32 %v25, %v1448
    %v1450 = vand.u32 %v1449, 4294901760
    %1451 = vmatmul.mubr.f32.gmra.mxu0 %v1450
    %v1452 = vpop.f32.mrf.mxu0
    %v1453 = vadd.f32 %v1196, %v1452
    %v1454 = vpop.f32.mrf.mxu0
    %v1455 = vand.u32 %v44, 4294901760
    %v1456 = vsub.f32 %v44, %v1455
    %v1457 = vand.u32 %v1456, 4294901760
    %1458 = vmatprep.mubr.f32.mxu0 %v1457
    %v1459 = vand.u32 %v26, 4294901760
    %v1460 = vsub.f32 %v26, %v1459
    %v1461 = vand.u32 %v1460, 4294901760
    %1462 = vmatmul.mubr.f32.gmra.mxu0 %v1461
    %v1463 = vpop.f32.mrf.mxu0
    %v1464 = vadd.f32 %v1205, %v1463
    %v1465 = vpop.f32.mrf.mxu0
    %v1466 = vand.u32 %v45, 4294901760
    %v1467 = vsub.f32 %v45, %v1466
    %v1468 = vand.u32 %v1467, 4294901760
    %1469 = vmatprep.mubr.f32.mxu0 %v1468
    %v1470 = vand.u32 %v27, 4294901760
    %v1471 = vsub.f32 %v27, %v1470
    %v1472 = vand.u32 %v1471, 4294901760
    %1473 = vmatmul.mubr.f32.gmra.mxu0 %v1472
    %v1474 = vpop.f32.mrf.mxu0
    %v1475 = vadd.f32 %v1214, %v1474
    %v1476 = vpop.f32.mrf.mxu0
    %v1477 = vand.u32 %v46, 4294901760
    %v1478 = vsub.f32 %v46, %v1477
    %v1479 = vand.u32 %v1478, 4294901760
    %1480 = vmatprep.mubr.f32.mxu0 %v1479
    %v1481 = vand.u32 %v28, 4294901760
    %v1482 = vsub.f32 %v28, %v1481
    %v1483 = vand.u32 %v1482, 4294901760
    %1484 = vmatmul.mubr.f32.gmra.mxu0 %v1483
    %v1485 = vpop.f32.mrf.mxu0
    %v1486 = vadd.f32 %v1223, %v1485
    %v1487 = vpop.f32.mrf.mxu0
    %v1488 = vand.u32 %v47, 4294901760
    %v1489 = vsub.f32 %v47, %v1488
    %v1490 = vand.u32 %v1489, 4294901760
    %1491 = vmatprep.mubr.f32.mxu0 %v1490
    %v1492 = vand.u32 %v29, 4294901760
    %v1493 = vsub.f32 %v29, %v1492
    %v1494 = vand.u32 %v1493, 4294901760
    %1495 = vmatmul.mubr.f32.gmra.mxu0 %v1494
    %v1496 = vpop.f32.mrf.mxu0
    %v1497 = vadd.f32 %v1232, %v1496
    %v1498 = vpop.f32.mrf.mxu0
    %v1499 = vand.u32 %v48, 4294901760
    %v1500 = vsub.f32 %v48, %v1499
    %v1501 = vand.u32 %v1500, 4294901760
    %1502 = vmatprep.mubr.f32.mxu0 %v1501
    %v1503 = vand.u32 %v30, 4294901760
    %v1504 = vsub.f32 %v30, %v1503
    %v1505 = vand.u32 %v1504, 4294901760
    %1506 = vmatmul.mubr.f32.gmra.mxu0 %v1505
    %v1507 = vpop.f32.mrf.mxu0
    %v1508 = vadd.f32 %v1241, %v1507
    %v1509 = vpop.f32.mrf.mxu0
    %v1510 = vand.u32 %v49, 4294901760
    %v1511 = vsub.f32 %v49, %v1510
    %v1512 = vand.u32 %v1511, 4294901760
    %1513 = vmatprep.mubr.f32.mxu0 %v1512
    %v1514 = vand.u32 %v31, 4294901760
    %v1515 = vsub.f32 %v31, %v1514
    %v1516 = vand.u32 %v1515, 4294901760
    %1517 = vmatmul.mubr.f32.gmra.mxu0 %v1516
    %v1518 = vpop.f32.mrf.mxu0
    %v1519 = vadd.f32 %v1250, %v1518
    %v1520 = vpop.f32.mrf.mxu0
    %v1521 = vand.u32 %v50, 4294901760
    %v1522 = vsub.f32 %v50, %v1521
    %v1523 = vand.u32 %v1522, 4294901760
    %1524 = vmatprep.mubr.f32.mxu0 %v1523
    %v1525 = vand.u32 %v32, 4294901760
    %v1526 = vsub.f32 %v32, %v1525
    %v1527 = vand.u32 %v1526, 4294901760
    %1528 = vmatmul.mubr.f32.gmra.mxu0 %v1527
    %v1529 = vpop.f32.mrf.mxu0
    %v1530 = vadd.f32 %v1259, %v1529
    %v1531 = vpop.f32.mrf.mxu0
    %v1532 = vand.u32 %v51, 4294901760
    %v1533 = vsub.f32 %v51, %v1532
    %v1534 = vand.u32 %v1533, 4294901760
    %1535 = vmatprep.mubr.f32.mxu0 %v1534
    %v1536 = vand.u32 %v33, 4294901760
    %v1537 = vsub.f32 %v33, %v1536
    %v1538 = vand.u32 %v1537, 4294901760
    %1539 = vmatmul.mubr.f32.gmra.mxu0 %v1538
    %v1540 = vpop.f32.mrf.mxu0
    %v1541 = vadd.f32 %v1268, %v1540
    %v1542 = vpop.f32.mrf.mxu0
    %1543 = vdwg.mxu0
    %1544 = vmatprep.subr.mxu0 0.0
    %v1545 = vand.u32 %v188, 4294901760
    %v1546 = vsub.f32 %v188, %v1545
    %v1547 = vand.u32 %v1546, 4294901760
    %1548 = vmatpush1.msra.mxu0 %v1547
    %1549 = vmatprep.subr.mxu0 0.0
    %v1550 = vand.u32 %v187, 4294901760
    %v1551 = vsub.f32 %v187, %v1550
    %v1552 = vand.u32 %v1551, 4294901760
    %1553 = vmatpush1.msra.mxu0 %v1552
    %1554 = vmatprep.subr.mxu0 0.0
    %v1555 = vand.u32 %v186, 4294901760
    %v1556 = vsub.f32 %v186, %v1555
    %v1557 = vand.u32 %v1556, 4294901760
    %1558 = vmatpush1.msra.mxu0 %v1557
    %1559 = vmatprep.subr.mxu0 0.0
    %v1560 = vand.u32 %v185, 4294901760
    %v1561 = vsub.f32 %v185, %v1560
    %v1562 = vand.u32 %v1561, 4294901760
    %1563 = vmatpush1.msra.mxu0 %v1562
    %1564 = vmatprep.subr.mxu0 0.0
    %v1565 = vand.u32 %v184, 4294901760
    %v1566 = vsub.f32 %v184, %v1565
    %v1567 = vand.u32 %v1566, 4294901760
    %1568 = vmatpush1.msra.mxu0 %v1567
    %1569 = vmatprep.subr.mxu0 0.0
    %v1570 = vand.u32 %v183, 4294901760
    %v1571 = vsub.f32 %v183, %v1570
    %v1572 = vand.u32 %v1571, 4294901760
    %1573 = vmatpush1.msra.mxu0 %v1572
    %1574 = vmatprep.subr.mxu0 0.0
    %v1575 = vand.u32 %v182, 4294901760
    %v1576 = vsub.f32 %v182, %v1575
    %v1577 = vand.u32 %v1576, 4294901760
    %1578 = vmatpush1.msra.mxu0 %v1577
    %1579 = vmatprep.subr.mxu0 0.0
    %v1580 = vand.u32 %v181, 4294901760
    %v1581 = vsub.f32 %v181, %v1580
    %v1582 = vand.u32 %v1581, 4294901760
    %1583 = vmatpush1.msra.mxu0 %v1582
    %1584 = vmatprep.subr.mxu0 0.0
    %v1585 = vand.u32 %v180, 4294901760
    %v1586 = vsub.f32 %v180, %v1585
    %v1587 = vand.u32 %v1586, 4294901760
    %1588 = vmatpush1.msra.mxu0 %v1587
    %1589 = vmatprep.subr.mxu0 0.0
    %v1590 = vand.u32 %v179, 4294901760
    %v1591 = vsub.f32 %v179, %v1590
    %v1592 = vand.u32 %v1591, 4294901760
    %1593 = vmatpush1.msra.mxu0 %v1592
    %1594 = vmatprep.subr.mxu0 0.0
    %v1595 = vand.u32 %v178, 4294901760
    %v1596 = vsub.f32 %v178, %v1595
    %v1597 = vand.u32 %v1596, 4294901760
    %1598 = vmatpush1.msra.mxu0 %v1597
    %1599 = vmatprep.subr.mxu0 0.0
    %v1600 = vand.u32 %v177, 4294901760
    %v1601 = vsub.f32 %v177, %v1600
    %v1602 = vand.u32 %v1601, 4294901760
    %1603 = vmatpush1.msra.mxu0 %v1602
    %1604 = vmatprep.subr.mxu0 0.0
    %v1605 = vand.u32 %v176, 4294901760
    %v1606 = vsub.f32 %v176, %v1605
    %v1607 = vand.u32 %v1606, 4294901760
    %1608 = vmatpush1.msra.mxu0 %v1607
    %1609 = vmatprep.subr.mxu0 0.0
    %v1610 = vand.u32 %v175, 4294901760
    %v1611 = vsub.f32 %v175, %v1610
    %v1612 = vand.u32 %v1611, 4294901760
    %1613 = vmatpush1.msra.mxu0 %v1612
    %1614 = vmatprep.subr.mxu0 0.0
    %v1615 = vand.u32 %v174, 4294901760
    %v1616 = vsub.f32 %v174, %v1615
    %v1617 = vand.u32 %v1616, 4294901760
    %1618 = vmatpush1.msra.mxu0 %v1617
    %1619 = vmatprep.subr.mxu0 0.0
    %v1620 = vand.u32 %v173, 4294901760
    %v1621 = vsub.f32 %v173, %v1620
    %v1622 = vand.u32 %v1621, 4294901760
    %1623 = vmatpush1.msra.mxu0 %v1622
    %1624 = vmatprep.subr.mxu0 0.0
    %v1625 = vand.u32 %v204, 4294901760
    %v1626 = vsub.f32 %v204, %v1625
    %v1627 = vand.u32 %v1626, 4294901760
    %1628 = vmatpush2.msra.mxu0 %v1627
    %1629 = vmatprep.subr.mxu0 0.0
    %v1630 = vand.u32 %v203, 4294901760
    %v1631 = vsub.f32 %v203, %v1630
    %v1632 = vand.u32 %v1631, 4294901760
    %1633 = vmatpush2.msra.mxu0 %v1632
    %1634 = vmatprep.subr.mxu0 0.0
    %v1635 = vand.u32 %v202, 4294901760
    %v1636 = vsub.f32 %v202, %v1635
    %v1637 = vand.u32 %v1636, 4294901760
    %1638 = vmatpush2.msra.mxu0 %v1637
    %1639 = vmatprep.subr.mxu0 0.0
    %v1640 = vand.u32 %v201, 4294901760
    %v1641 = vsub.f32 %v201, %v1640
    %v1642 = vand.u32 %v1641, 4294901760
    %1643 = vmatpush2.msra.mxu0 %v1642
    %1644 = vmatprep.subr.mxu0 0.0
    %v1645 = vand.u32 %v200, 4294901760
    %v1646 = vsub.f32 %v200, %v1645
    %v1647 = vand.u32 %v1646, 4294901760
    %1648 = vmatpush2.msra.mxu0 %v1647
    %1649 = vmatprep.subr.mxu0 0.0
    %v1650 = vand.u32 %v199, 4294901760
    %v1651 = vsub.f32 %v199, %v1650
    %v1652 = vand.u32 %v1651, 4294901760
    %1653 = vmatpush2.msra.mxu0 %v1652
    %1654 = vmatprep.subr.mxu0 0.0
    %v1655 = vand.u32 %v198, 4294901760
    %v1656 = vsub.f32 %v198, %v1655
    %v1657 = vand.u32 %v1656, 4294901760
    %1658 = vmatpush2.msra.mxu0 %v1657
    %1659 = vmatprep.subr.mxu0 0.0
    %v1660 = vand.u32 %v197, 4294901760
    %v1661 = vsub.f32 %v197, %v1660
    %v1662 = vand.u32 %v1661, 4294901760
    %1663 = vmatpush2.msra.mxu0 %v1662
    %1664 = vmatprep.subr.mxu0 0.0
    %v1665 = vand.u32 %v196, 4294901760
    %v1666 = vsub.f32 %v196, %v1665
    %v1667 = vand.u32 %v1666, 4294901760
    %1668 = vmatpush2.msra.mxu0 %v1667
    %1669 = vmatprep.subr.mxu0 0.0
    %v1670 = vand.u32 %v195, 4294901760
    %v1671 = vsub.f32 %v195, %v1670
    %v1672 = vand.u32 %v1671, 4294901760
    %1673 = vmatpush2.msra.mxu0 %v1672
    %1674 = vmatprep.subr.mxu0 0.0
    %v1675 = vand.u32 %v194, 4294901760
    %v1676 = vsub.f32 %v194, %v1675
    %v1677 = vand.u32 %v1676, 4294901760
    %1678 = vmatpush2.msra.mxu0 %v1677
    %1679 = vmatprep.subr.mxu0 0.0
    %v1680 = vand.u32 %v193, 4294901760
    %v1681 = vsub.f32 %v193, %v1680
    %v1682 = vand.u32 %v1681, 4294901760
    %1683 = vmatpush2.msra.mxu0 %v1682
    %1684 = vmatprep.subr.mxu0 0.0
    %v1685 = vand.u32 %v192, 4294901760
    %v1686 = vsub.f32 %v192, %v1685
    %v1687 = vand.u32 %v1686, 4294901760
    %1688 = vmatpush2.msra.mxu0 %v1687
    %1689 = vmatprep.subr.mxu0 0.0
    %v1690 = vand.u32 %v191, 4294901760
    %v1691 = vsub.f32 %v191, %v1690
    %v1692 = vand.u32 %v1691, 4294901760
    %1693 = vmatpush2.msra.mxu0 %v1692
    %1694 = vmatprep.subr.mxu0 0.0
    %v1695 = vand.u32 %v190, 4294901760
    %v1696 = vsub.f32 %v190, %v1695
    %v1697 = vand.u32 %v1696, 4294901760
    %1698 = vmatpush2.msra.mxu0 %v1697
    %1699 = vmatprep.subr.mxu0 0.0
    %v1700 = vand.u32 %v189, 4294901760
    %v1701 = vsub.f32 %v189, %v1700
    %v1702 = vand.u32 %v1701, 4294901760
    %1703 = vmatpush2.msra.mxu0 %v1702
    %v1704 = vand.u32 %v36, 4294901760
    %1705 = vmatprep.mubr.f32.mxu0 %v1704
    %v1706 = vand.u32 %v18, 4294901760
    %1707 = vmatmul.mubr.f32.gmra.mxu0 %v1706
    %v1708 = vpop.f32.mrf.mxu0
    %v1709 = vadd.f32 %v1376, %v1708
    %v1710 = vpop.f32.mrf.mxu0
    %v1711 = vand.u32 %v37, 4294901760
    %1712 = vmatprep.mubr.f32.mxu0 %v1711
    %v1713 = vand.u32 %v19, 4294901760
    %1714 = vmatmul.mubr.f32.gmra.mxu0 %v1713
    %v1715 = vpop.f32.mrf.mxu0
    %v1716 = vadd.f32 %v1387, %v1715
    %v1717 = vpop.f32.mrf.mxu0
    %v1718 = vand.u32 %v38, 4294901760
    %1719 = vmatprep.mubr.f32.mxu0 %v1718
    %v1720 = vand.u32 %v20, 4294901760
    %1721 = vmatmul.mubr.f32.gmra.mxu0 %v1720
    %v1722 = vpop.f32.mrf.mxu0
    %v1723 = vadd.f32 %v1398, %v1722
    %v1724 = vpop.f32.mrf.mxu0
    %v1725 = vand.u32 %v39, 4294901760
    %1726 = vmatprep.mubr.f32.mxu0 %v1725
    %v1727 = vand.u32 %v21, 4294901760
    %1728 = vmatmul.mubr.f32.gmra.mxu0 %v1727
    %v1729 = vpop.f32.mrf.mxu0
    %v1730 = vadd.f32 %v1409, %v1729
    %v1731 = vpop.f32.mrf.mxu0
    %v1732 = vand.u32 %v40, 4294901760
    %1733 = vmatprep.mubr.f32.mxu0 %v1732
    %v1734 = vand.u32 %v22, 4294901760
    %1735 = vmatmul.mubr.f32.gmra.mxu0 %v1734
    %v1736 = vpop.f32.mrf.mxu0
    %v1737 = vadd.f32 %v1420, %v1736
    %v1738 = vpop.f32.mrf.mxu0
    %v1739 = vand.u32 %v41, 4294901760
    %1740 = vmatprep.mubr.f32.mxu0 %v1739
    %v1741 = vand.u32 %v23, 4294901760
    %1742 = vmatmul.mubr.f32.gmra.mxu0 %v1741
    %v1743 = vpop.f32.mrf.mxu0
    %v1744 = vadd.f32 %v1431, %v1743
    %v1745 = vpop.f32.mrf.mxu0
    %v1746 = vand.u32 %v42, 4294901760
    %1747 = vmatprep.mubr.f32.mxu0 %v1746
    %v1748 = vand.u32 %v24, 4294901760
    %1749 = vmatmul.mubr.f32.gmra.mxu0 %v1748
    %v1750 = vpop.f32.mrf.mxu0
    %v1751 = vadd.f32 %v1442, %v1750
    %v1752 = vpop.f32.mrf.mxu0
    %v1753 = vand.u32 %v43, 4294901760
    %1754 = vmatprep.mubr.f32.mxu0 %v1753
    %v1755 = vand.u32 %v25, 4294901760
    %1756 = vmatmul.mubr.f32.gmra.mxu0 %v1755
    %v1757 = vpop.f32.mrf.mxu0
    %v1758 = vadd.f32 %v1453, %v1757
    %v1759 = vpop.f32.mrf.mxu0
    %v1760 = vand.u32 %v44, 4294901760
    %1761 = vmatprep.mubr.f32.mxu0 %v1760
    %v1762 = vand.u32 %v26, 4294901760
    %1763 = vmatmul.mubr.f32.gmra.mxu0 %v1762
    %v1764 = vpop.f32.mrf.mxu0
    %v1765 = vadd.f32 %v1464, %v1764
    %v1766 = vpop.f32.mrf.mxu0
    %v1767 = vand.u32 %v45, 4294901760
    %1768 = vmatprep.mubr.f32.mxu0 %v1767
    %v1769 = vand.u32 %v27, 4294901760
    %1770 = vmatmul.mubr.f32.gmra.mxu0 %v1769
    %v1771 = vpop.f32.mrf.mxu0
    %v1772 = vadd.f32 %v1475, %v1771
    %v1773 = vpop.f32.mrf.mxu0
    %v1774 = vand.u32 %v46, 4294901760
    %1775 = vmatprep.mubr.f32.mxu0 %v1774
    %v1776 = vand.u32 %v28, 4294901760
    %1777 = vmatmul.mubr.f32.gmra.mxu0 %v1776
    %v1778 = vpop.f32.mrf.mxu0
    %v1779 = vadd.f32 %v1486, %v1778
    %v1780 = vpop.f32.mrf.mxu0
    %v1781 = vand.u32 %v47, 4294901760
    %1782 = vmatprep.mubr.f32.mxu0 %v1781
    %v1783 = vand.u32 %v29, 4294901760
    %1784 = vmatmul.mubr.f32.gmra.mxu0 %v1783
    %v1785 = vpop.f32.mrf.mxu0
    %v1786 = vadd.f32 %v1497, %v1785
    %v1787 = vpop.f32.mrf.mxu0
    %v1788 = vand.u32 %v48, 4294901760
    %1789 = vmatprep.mubr.f32.mxu0 %v1788
    %v1790 = vand.u32 %v30, 4294901760
    %1791 = vmatmul.mubr.f32.gmra.mxu0 %v1790
    %v1792 = vpop.f32.mrf.mxu0
    %v1793 = vadd.f32 %v1508, %v1792
    %v1794 = vpop.f32.mrf.mxu0
    %v1795 = vand.u32 %v49, 4294901760
    %1796 = vmatprep.mubr.f32.mxu0 %v1795
    %v1797 = vand.u32 %v31, 4294901760
    %1798 = vmatmul.mubr.f32.gmra.mxu0 %v1797
    %v1799 = vpop.f32.mrf.mxu0
    %v1800 = vadd.f32 %v1519, %v1799
    %v1801 = vpop.f32.mrf.mxu0
    %v1802 = vand.u32 %v50, 4294901760
    %1803 = vmatprep.mubr.f32.mxu0 %v1802
    %v1804 = vand.u32 %v32, 4294901760
    %1805 = vmatmul.mubr.f32.gmra.mxu0 %v1804
    %v1806 = vpop.f32.mrf.mxu0
    %v1807 = vadd.f32 %v1530, %v1806
    %v1808 = vpop.f32.mrf.mxu0
    %v1809 = vand.u32 %v51, 4294901760
    %1810 = vmatprep.mubr.f32.mxu0 %v1809
    %v1811 = vand.u32 %v33, 4294901760
    %1812 = vmatmul.mubr.f32.gmra.mxu0 %v1811
    %v1813 = vpop.f32.mrf.mxu0
    %v1814 = vadd.f32 %v1541, %v1813
    %v1815 = vpop.f32.mrf.mxu0
    %1816 = vdwg.mxu0
    %1817 = vmatprep.subr.mxu0 0.0
    %v1818 = vand.u32 %v188, 4294901760
    %1819 = vmatpush1.msra.mxu0 %v1818
    %1820 = vmatprep.subr.mxu0 0.0
    %v1821 = vand.u32 %v187, 4294901760
    %1822 = vmatpush1.msra.mxu0 %v1821
    %1823 = vmatprep.subr.mxu0 0.0
    %v1824 = vand.u32 %v186, 4294901760
    %1825 = vmatpush1.msra.mxu0 %v1824
    %1826 = vmatprep.subr.mxu0 0.0
    %v1827 = vand.u32 %v185, 4294901760
    %1828 = vmatpush1.msra.mxu0 %v1827
    %1829 = vmatprep.subr.mxu0 0.0
    %v1830 = vand.u32 %v184, 4294901760
    %1831 = vmatpush1.msra.mxu0 %v1830
    %1832 = vmatprep.subr.mxu0 0.0
    %v1833 = vand.u32 %v183, 4294901760
    %1834 = vmatpush1.msra.mxu0 %v1833
    %1835 = vmatprep.subr.mxu0 0.0
    %v1836 = vand.u32 %v182, 4294901760
    %1837 = vmatpush1.msra.mxu0 %v1836
    %1838 = vmatprep.subr.mxu0 0.0
    %v1839 = vand.u32 %v181, 4294901760
    %1840 = vmatpush1.msra.mxu0 %v1839
    %1841 = vmatprep.subr.mxu0 0.0
    %v1842 = vand.u32 %v180, 4294901760
    %1843 = vmatpush1.msra.mxu0 %v1842
    %1844 = vmatprep.subr.mxu0 0.0
    %v1845 = vand.u32 %v179, 4294901760
    %1846 = vmatpush1.msra.mxu0 %v1845
    %1847 = vmatprep.subr.mxu0 0.0
    %v1848 = vand.u32 %v178, 4294901760
    %1849 = vmatpush1.msra.mxu0 %v1848
    %1850 = vmatprep.subr.mxu0 0.0
    %v1851 = vand.u32 %v177, 4294901760
    %1852 = vmatpush1.msra.mxu0 %v1851
    %1853 = vmatprep.subr.mxu0 0.0
    %v1854 = vand.u32 %v176, 4294901760
    %1855 = vmatpush1.msra.mxu0 %v1854
    %1856 = vmatprep.subr.mxu0 0.0
    %v1857 = vand.u32 %v175, 4294901760
    %1858 = vmatpush1.msra.mxu0 %v1857
    %1859 = vmatprep.subr.mxu0 0.0
    %v1860 = vand.u32 %v174, 4294901760
    %1861 = vmatpush1.msra.mxu0 %v1860
    %1862 = vmatprep.subr.mxu0 0.0
    %v1863 = vand.u32 %v173, 4294901760
    %1864 = vmatpush1.msra.mxu0 %v1863
    %1865 = vmatprep.subr.mxu0 0.0
    %v1866 = vand.u32 %v204, 4294901760
    %1867 = vmatpush2.msra.mxu0 %v1866
    %1868 = vmatprep.subr.mxu0 0.0
    %v1869 = vand.u32 %v203, 4294901760
    %1870 = vmatpush2.msra.mxu0 %v1869
    %1871 = vmatprep.subr.mxu0 0.0
    %v1872 = vand.u32 %v202, 4294901760
    %1873 = vmatpush2.msra.mxu0 %v1872
    %1874 = vmatprep.subr.mxu0 0.0
    %v1875 = vand.u32 %v201, 4294901760
    %1876 = vmatpush2.msra.mxu0 %v1875
    %1877 = vmatprep.subr.mxu0 0.0
    %v1878 = vand.u32 %v200, 4294901760
    %1879 = vmatpush2.msra.mxu0 %v1878
    %1880 = vmatprep.subr.mxu0 0.0
    %v1881 = vand.u32 %v199, 4294901760
    %1882 = vmatpush2.msra.mxu0 %v1881
    %1883 = vmatprep.subr.mxu0 0.0
    %v1884 = vand.u32 %v198, 4294901760
    %1885 = vmatpush2.msra.mxu0 %v1884
    %1886 = vmatprep.subr.mxu0 0.0
    %v1887 = vand.u32 %v197, 4294901760
    %1888 = vmatpush2.msra.mxu0 %v1887
    %1889 = vmatprep.subr.mxu0 0.0
    %v1890 = vand.u32 %v196, 4294901760
    %1891 = vmatpush2.msra.mxu0 %v1890
    %1892 = vmatprep.subr.mxu0 0.0
    %v1893 = vand.u32 %v195, 4294901760
    %1894 = vmatpush2.msra.mxu0 %v1893
    %1895 = vmatprep.subr.mxu0 0.0
    %v1896 = vand.u32 %v194, 4294901760
    %1897 = vmatpush2.msra.mxu0 %v1896
    %1898 = vmatprep.subr.mxu0 0.0
    %v1899 = vand.u32 %v193, 4294901760
    %1900 = vmatpush2.msra.mxu0 %v1899
    %1901 = vmatprep.subr.mxu0 0.0
    %v1902 = vand.u32 %v192, 4294901760
    %1903 = vmatpush2.msra.mxu0 %v1902
    %1904 = vmatprep.subr.mxu0 0.0
    %v1905 = vand.u32 %v191, 4294901760
    %1906 = vmatpush2.msra.mxu0 %v1905
    %1907 = vmatprep.subr.mxu0 0.0
    %v1908 = vand.u32 %v190, 4294901760
    %1909 = vmatpush2.msra.mxu0 %v1908
    %1910 = vmatprep.subr.mxu0 0.0
    %v1911 = vand.u32 %v189, 4294901760
    %1912 = vmatpush2.msra.mxu0 %v1911
    %v1913 = vand.u32 %v36, 4294901760
    %1914 = vmatprep.mubr.f32.mxu0 %v1913
    %v1915 = vand.u32 %v18, 4294901760
    %1916 = vmatmul.mubr.f32.gmra.mxu0 %v1915
    %v1917 = vpop.f32.mrf.mxu0
    %v1918 = vadd.f32 %v1709, %v1917
    %v1919 = vpop.f32.mrf.mxu0
    %v1920 = vand.u32 %v37, 4294901760
    %1921 = vmatprep.mubr.f32.mxu0 %v1920
    %v1922 = vand.u32 %v19, 4294901760
    %1923 = vmatmul.mubr.f32.gmra.mxu0 %v1922
    %v1924 = vpop.f32.mrf.mxu0
    %v1925 = vadd.f32 %v1716, %v1924
    %v1926 = vpop.f32.mrf.mxu0
    %v1927 = vand.u32 %v38, 4294901760
    %1928 = vmatprep.mubr.f32.mxu0 %v1927
    %v1929 = vand.u32 %v20, 4294901760
    %1930 = vmatmul.mubr.f32.gmra.mxu0 %v1929
    %v1931 = vpop.f32.mrf.mxu0
    %v1932 = vadd.f32 %v1723, %v1931
    %v1933 = vpop.f32.mrf.mxu0
    %v1934 = vand.u32 %v39, 4294901760
    %1935 = vmatprep.mubr.f32.mxu0 %v1934
    %v1936 = vand.u32 %v21, 4294901760
    %1937 = vmatmul.mubr.f32.gmra.mxu0 %v1936
    %v1938 = vpop.f32.mrf.mxu0
    %v1939 = vadd.f32 %v1730, %v1938
    %v1940 = vpop.f32.mrf.mxu0
    %v1941 = vand.u32 %v40, 4294901760
    %1942 = vmatprep.mubr.f32.mxu0 %v1941
    %v1943 = vand.u32 %v22, 4294901760
    %1944 = vmatmul.mubr.f32.gmra.mxu0 %v1943
    %v1945 = vpop.f32.mrf.mxu0
    %v1946 = vadd.f32 %v1737, %v1945
    %v1947 = vpop.f32.mrf.mxu0
    %v1948 = vand.u32 %v41, 4294901760
    %1949 = vmatprep.mubr.f32.mxu0 %v1948
    %v1950 = vand.u32 %v23, 4294901760
    %1951 = vmatmul.mubr.f32.gmra.mxu0 %v1950
    %v1952 = vpop.f32.mrf.mxu0
    %v1953 = vadd.f32 %v1744, %v1952
    %v1954 = vpop.f32.mrf.mxu0
    %v1955 = vand.u32 %v42, 4294901760
    %1956 = vmatprep.mubr.f32.mxu0 %v1955
    %v1957 = vand.u32 %v24, 4294901760
    %1958 = vmatmul.mubr.f32.gmra.mxu0 %v1957
    %v1959 = vpop.f32.mrf.mxu0
    %v1960 = vadd.f32 %v1751, %v1959
    %v1961 = vpop.f32.mrf.mxu0
    %v1962 = vand.u32 %v43, 4294901760
    %1963 = vmatprep.mubr.f32.mxu0 %v1962
    %v1964 = vand.u32 %v25, 4294901760
    %1965 = vmatmul.mubr.f32.gmra.mxu0 %v1964
    %v1966 = vpop.f32.mrf.mxu0
    %v1967 = vadd.f32 %v1758, %v1966
    %v1968 = vpop.f32.mrf.mxu0
    %v1969 = vand.u32 %v44, 4294901760
    %1970 = vmatprep.mubr.f32.mxu0 %v1969
    %v1971 = vand.u32 %v26, 4294901760
    %1972 = vmatmul.mubr.f32.gmra.mxu0 %v1971
    %v1973 = vpop.f32.mrf.mxu0
    %v1974 = vadd.f32 %v1765, %v1973
    %v1975 = vpop.f32.mrf.mxu0
    %v1976 = vand.u32 %v45, 4294901760
    %1977 = vmatprep.mubr.f32.mxu0 %v1976
    %v1978 = vand.u32 %v27, 4294901760
    %1979 = vmatmul.mubr.f32.gmra.mxu0 %v1978
    %v1980 = vpop.f32.mrf.mxu0
    %v1981 = vadd.f32 %v1772, %v1980
    %v1982 = vpop.f32.mrf.mxu0
    %v1983 = vand.u32 %v46, 4294901760
    %1984 = vmatprep.mubr.f32.mxu0 %v1983
    %v1985 = vand.u32 %v28, 4294901760
    %1986 = vmatmul.mubr.f32.gmra.mxu0 %v1985
    %v1987 = vpop.f32.mrf.mxu0
    %v1988 = vadd.f32 %v1779, %v1987
    %v1989 = vpop.f32.mrf.mxu0
    %v1990 = vand.u32 %v47, 4294901760
    %1991 = vmatprep.mubr.f32.mxu0 %v1990
    %v1992 = vand.u32 %v29, 4294901760
    %1993 = vmatmul.mubr.f32.gmra.mxu0 %v1992
    %v1994 = vpop.f32.mrf.mxu0
    %v1995 = vadd.f32 %v1786, %v1994
    %v1996 = vpop.f32.mrf.mxu0
    %v1997 = vand.u32 %v48, 4294901760
    %1998 = vmatprep.mubr.f32.mxu0 %v1997
    %v1999 = vand.u32 %v30, 4294901760
    %2000 = vmatmul.mubr.f32.gmra.mxu0 %v1999
    %v2001 = vpop.f32.mrf.mxu0
    %v2002 = vadd.f32 %v1793, %v2001
    %v2003 = vpop.f32.mrf.mxu0
    %v2004 = vand.u32 %v49, 4294901760
    %2005 = vmatprep.mubr.f32.mxu0 %v2004
    %v2006 = vand.u32 %v31, 4294901760
    %2007 = vmatmul.mubr.f32.gmra.mxu0 %v2006
    %v2008 = vpop.f32.mrf.mxu0
    %v2009 = vadd.f32 %v1800, %v2008
    %v2010 = vpop.f32.mrf.mxu0
    %v2011 = vand.u32 %v50, 4294901760
    %2012 = vmatprep.mubr.f32.mxu0 %v2011
    %v2013 = vand.u32 %v32, 4294901760
    %2014 = vmatmul.mubr.f32.gmra.mxu0 %v2013
    %v2015 = vpop.f32.mrf.mxu0
    %v2016 = vadd.f32 %v1807, %v2015
    %v2017 = vpop.f32.mrf.mxu0
    %v2018 = vand.u32 %v51, 4294901760
    %2019 = vmatprep.mubr.f32.mxu0 %v2018
    %v2020 = vand.u32 %v33, 4294901760
    %2021 = vmatmul.mubr.f32.gmra.mxu0 %v2020
    %v2022 = vpop.f32.mrf.mxu0
    %v2023 = vadd.f32 %v1814, %v2022
    %v2024 = vpop.f32.mrf.mxu0
    %2025 = vdwg.mxu0
    %2026 = vmatprep.subr.mxu0 0.0
    %v2027 = vand.u32 %v220, 4294901760
    %2028 = vmatpush1.msra.mxu0 %v2027
    %2029 = vmatprep.subr.mxu0 0.0
    %v2030 = vand.u32 %v219, 4294901760
    %2031 = vmatpush1.msra.mxu0 %v2030
    %2032 = vmatprep.subr.mxu0 0.0
    %v2033 = vand.u32 %v218, 4294901760
    %2034 = vmatpush1.msra.mxu0 %v2033
    %2035 = vmatprep.subr.mxu0 0.0
    %v2036 = vand.u32 %v217, 4294901760
    %2037 = vmatpush1.msra.mxu0 %v2036
    %2038 = vmatprep.subr.mxu0 0.0
    %v2039 = vand.u32 %v216, 4294901760
    %2040 = vmatpush1.msra.mxu0 %v2039
    %2041 = vmatprep.subr.mxu0 0.0
    %v2042 = vand.u32 %v215, 4294901760
    %2043 = vmatpush1.msra.mxu0 %v2042
    %2044 = vmatprep.subr.mxu0 0.0
    %v2045 = vand.u32 %v214, 4294901760
    %2046 = vmatpush1.msra.mxu0 %v2045
    %2047 = vmatprep.subr.mxu0 0.0
    %v2048 = vand.u32 %v213, 4294901760
    %2049 = vmatpush1.msra.mxu0 %v2048
    %2050 = vmatprep.subr.mxu0 0.0
    %v2051 = vand.u32 %v212, 4294901760
    %2052 = vmatpush1.msra.mxu0 %v2051
    %2053 = vmatprep.subr.mxu0 0.0
    %v2054 = vand.u32 %v211, 4294901760
    %2055 = vmatpush1.msra.mxu0 %v2054
    %2056 = vmatprep.subr.mxu0 0.0
    %v2057 = vand.u32 %v210, 4294901760
    %2058 = vmatpush1.msra.mxu0 %v2057
    %2059 = vmatprep.subr.mxu0 0.0
    %v2060 = vand.u32 %v209, 4294901760
    %2061 = vmatpush1.msra.mxu0 %v2060
    %2062 = vmatprep.subr.mxu0 0.0
    %v2063 = vand.u32 %v208, 4294901760
    %2064 = vmatpush1.msra.mxu0 %v2063
    %2065 = vmatprep.subr.mxu0 0.0
    %v2066 = vand.u32 %v207, 4294901760
    %2067 = vmatpush1.msra.mxu0 %v2066
    %2068 = vmatprep.subr.mxu0 0.0
    %v2069 = vand.u32 %v206, 4294901760
    %2070 = vmatpush1.msra.mxu0 %v2069
    %2071 = vmatprep.subr.mxu0 0.0
    %v2072 = vand.u32 %v205, 4294901760
    %2073 = vmatpush1.msra.mxu0 %v2072
    %2074 = vmatprep.subr.mxu0 0.0
    %v2075 = vand.u32 %v236, 4294901760
    %2076 = vmatpush2.msra.mxu0 %v2075
    %2077 = vmatprep.subr.mxu0 0.0
    %v2078 = vand.u32 %v235, 4294901760
    %2079 = vmatpush2.msra.mxu0 %v2078
    %2080 = vmatprep.subr.mxu0 0.0
    %v2081 = vand.u32 %v234, 4294901760
    %2082 = vmatpush2.msra.mxu0 %v2081
    %2083 = vmatprep.subr.mxu0 0.0
    %v2084 = vand.u32 %v233, 4294901760
    %2085 = vmatpush2.msra.mxu0 %v2084
    %2086 = vmatprep.subr.mxu0 0.0
    %v2087 = vand.u32 %v232, 4294901760
    %2088 = vmatpush2.msra.mxu0 %v2087
    %2089 = vmatprep.subr.mxu0 0.0
    %v2090 = vand.u32 %v231, 4294901760
    %2091 = vmatpush2.msra.mxu0 %v2090
    %2092 = vmatprep.subr.mxu0 0.0
    %v2093 = vand.u32 %v230, 4294901760
    %2094 = vmatpush2.msra.mxu0 %v2093
    %2095 = vmatprep.subr.mxu0 0.0
    %v2096 = vand.u32 %v229, 4294901760
    %2097 = vmatpush2.msra.mxu0 %v2096
    %2098 = vmatprep.subr.mxu0 0.0
    %v2099 = vand.u32 %v228, 4294901760
    %2100 = vmatpush2.msra.mxu0 %v2099
    %2101 = vmatprep.subr.mxu0 0.0
    %v2102 = vand.u32 %v227, 4294901760
    %2103 = vmatpush2.msra.mxu0 %v2102
    %2104 = vmatprep.subr.mxu0 0.0
    %v2105 = vand.u32 %v226, 4294901760
    %2106 = vmatpush2.msra.mxu0 %v2105
    %2107 = vmatprep.subr.mxu0 0.0
    %v2108 = vand.u32 %v225, 4294901760
    %2109 = vmatpush2.msra.mxu0 %v2108
    %2110 = vmatprep.subr.mxu0 0.0
    %v2111 = vand.u32 %v224, 4294901760
    %2112 = vmatpush2.msra.mxu0 %v2111
    %2113 = vmatprep.subr.mxu0 0.0
    %v2114 = vand.u32 %v223, 4294901760
    %2115 = vmatpush2.msra.mxu0 %v2114
    %2116 = vmatprep.subr.mxu0 0.0
    %v2117 = vand.u32 %v222, 4294901760
    %2118 = vmatpush2.msra.mxu0 %v2117
    %2119 = vmatprep.subr.mxu0 0.0
    %v2120 = vand.u32 %v221, 4294901760
    %2121 = vmatpush2.msra.mxu0 %v2120
    %v2122 = vand.u32 %v70, 4294901760
    %v2123 = vsub.f32 %v70, %v2122
    %v2124 = vand.u32 %v2123, 4294901760
    %v2125 = vsub.f32 %v2123, %v2124
    %v2126 = vand.u32 %v2125, 4294901760
    %2127 = vmatprep.mubr.f32.mxu0 %v2126
    %v2128 = vand.u32 %v52, 4294901760
    %v2129 = vsub.f32 %v52, %v2128
    %v2130 = vand.u32 %v2129, 4294901760
    %v2131 = vsub.f32 %v2129, %v2130
    %v2132 = vand.u32 %v2131, 4294901760
    %2133 = vmatmul.mubr.f32.gmra.mxu0 %v2132
    %v2134 = vpop.f32.mrf.mxu0
    %v2135 = vadd.f32 %v1918, %v2134
    %v2136 = vpop.f32.mrf.mxu0
    %v2137 = vand.u32 %v71, 4294901760
    %v2138 = vsub.f32 %v71, %v2137
    %v2139 = vand.u32 %v2138, 4294901760
    %v2140 = vsub.f32 %v2138, %v2139
    %v2141 = vand.u32 %v2140, 4294901760
    %2142 = vmatprep.mubr.f32.mxu0 %v2141
    %v2143 = vand.u32 %v53, 4294901760
    %v2144 = vsub.f32 %v53, %v2143
    %v2145 = vand.u32 %v2144, 4294901760
    %v2146 = vsub.f32 %v2144, %v2145
    %v2147 = vand.u32 %v2146, 4294901760
    %2148 = vmatmul.mubr.f32.gmra.mxu0 %v2147
    %v2149 = vpop.f32.mrf.mxu0
    %v2150 = vadd.f32 %v1925, %v2149
    %v2151 = vpop.f32.mrf.mxu0
    %v2152 = vand.u32 %v72, 4294901760
    %v2153 = vsub.f32 %v72, %v2152
    %v2154 = vand.u32 %v2153, 4294901760
    %v2155 = vsub.f32 %v2153, %v2154
    %v2156 = vand.u32 %v2155, 4294901760
    %2157 = vmatprep.mubr.f32.mxu0 %v2156
    %v2158 = vand.u32 %v54, 4294901760
    %v2159 = vsub.f32 %v54, %v2158
    %v2160 = vand.u32 %v2159, 4294901760
    %v2161 = vsub.f32 %v2159, %v2160
    %v2162 = vand.u32 %v2161, 4294901760
    %2163 = vmatmul.mubr.f32.gmra.mxu0 %v2162
    %v2164 = vpop.f32.mrf.mxu0
    %v2165 = vadd.f32 %v1932, %v2164
    %v2166 = vpop.f32.mrf.mxu0
    %v2167 = vand.u32 %v73, 4294901760
    %v2168 = vsub.f32 %v73, %v2167
    %v2169 = vand.u32 %v2168, 4294901760
    %v2170 = vsub.f32 %v2168, %v2169
    %v2171 = vand.u32 %v2170, 4294901760
    %2172 = vmatprep.mubr.f32.mxu0 %v2171
    %v2173 = vand.u32 %v55, 4294901760
    %v2174 = vsub.f32 %v55, %v2173
    %v2175 = vand.u32 %v2174, 4294901760
    %v2176 = vsub.f32 %v2174, %v2175
    %v2177 = vand.u32 %v2176, 4294901760
    %2178 = vmatmul.mubr.f32.gmra.mxu0 %v2177
    %v2179 = vpop.f32.mrf.mxu0
    %v2180 = vadd.f32 %v1939, %v2179
    %v2181 = vpop.f32.mrf.mxu0
    %v2182 = vand.u32 %v74, 4294901760
    %v2183 = vsub.f32 %v74, %v2182
    %v2184 = vand.u32 %v2183, 4294901760
    %v2185 = vsub.f32 %v2183, %v2184
    %v2186 = vand.u32 %v2185, 4294901760
    %2187 = vmatprep.mubr.f32.mxu0 %v2186
    %v2188 = vand.u32 %v56, 4294901760
    %v2189 = vsub.f32 %v56, %v2188
    %v2190 = vand.u32 %v2189, 4294901760
    %v2191 = vsub.f32 %v2189, %v2190
    %v2192 = vand.u32 %v2191, 4294901760
    %2193 = vmatmul.mubr.f32.gmra.mxu0 %v2192
    %v2194 = vpop.f32.mrf.mxu0
    %v2195 = vadd.f32 %v1946, %v2194
    %v2196 = vpop.f32.mrf.mxu0
    %v2197 = vand.u32 %v75, 4294901760
    %v2198 = vsub.f32 %v75, %v2197
    %v2199 = vand.u32 %v2198, 4294901760
    %v2200 = vsub.f32 %v2198, %v2199
    %v2201 = vand.u32 %v2200, 4294901760
    %2202 = vmatprep.mubr.f32.mxu0 %v2201
    %v2203 = vand.u32 %v57, 4294901760
    %v2204 = vsub.f32 %v57, %v2203
    %v2205 = vand.u32 %v2204, 4294901760
    %v2206 = vsub.f32 %v2204, %v2205
    %v2207 = vand.u32 %v2206, 4294901760
    %2208 = vmatmul.mubr.f32.gmra.mxu0 %v2207
    %v2209 = vpop.f32.mrf.mxu0
    %v2210 = vadd.f32 %v1953, %v2209
    %v2211 = vpop.f32.mrf.mxu0
    %v2212 = vand.u32 %v76, 4294901760
    %v2213 = vsub.f32 %v76, %v2212
    %v2214 = vand.u32 %v2213, 4294901760
    %v2215 = vsub.f32 %v2213, %v2214
    %v2216 = vand.u32 %v2215, 4294901760
    %2217 = vmatprep.mubr.f32.mxu0 %v2216
    %v2218 = vand.u32 %v58, 4294901760
    %v2219 = vsub.f32 %v58, %v2218
    %v2220 = vand.u32 %v2219, 4294901760
    %v2221 = vsub.f32 %v2219, %v2220
    %v2222 = vand.u32 %v2221, 4294901760
    %2223 = vmatmul.mubr.f32.gmra.mxu0 %v2222
    %v2224 = vpop.f32.mrf.mxu0
    %v2225 = vadd.f32 %v1960, %v2224
    %v2226 = vpop.f32.mrf.mxu0
    %v2227 = vand.u32 %v77, 4294901760
    %v2228 = vsub.f32 %v77, %v2227
    %v2229 = vand.u32 %v2228, 4294901760
    %v2230 = vsub.f32 %v2228, %v2229
    %v2231 = vand.u32 %v2230, 4294901760
    %2232 = vmatprep.mubr.f32.mxu0 %v2231
    %v2233 = vand.u32 %v59, 4294901760
    %v2234 = vsub.f32 %v59, %v2233
    %v2235 = vand.u32 %v2234, 4294901760
    %v2236 = vsub.f32 %v2234, %v2235
    %v2237 = vand.u32 %v2236, 4294901760
    %2238 = vmatmul.mubr.f32.gmra.mxu0 %v2237
    %v2239 = vpop.f32.mrf.mxu0
    %v2240 = vadd.f32 %v1967, %v2239
    %v2241 = vpop.f32.mrf.mxu0
    %v2242 = vand.u32 %v78, 4294901760
    %v2243 = vsub.f32 %v78, %v2242
    %v2244 = vand.u32 %v2243, 4294901760
    %v2245 = vsub.f32 %v2243, %v2244
    %v2246 = vand.u32 %v2245, 4294901760
    %2247 = vmatprep.mubr.f32.mxu0 %v2246
    %v2248 = vand.u32 %v60, 4294901760
    %v2249 = vsub.f32 %v60, %v2248
    %v2250 = vand.u32 %v2249, 4294901760
    %v2251 = vsub.f32 %v2249, %v2250
    %v2252 = vand.u32 %v2251, 4294901760
    %2253 = vmatmul.mubr.f32.gmra.mxu0 %v2252
    %v2254 = vpop.f32.mrf.mxu0
    %v2255 = vadd.f32 %v1974, %v2254
    %v2256 = vpop.f32.mrf.mxu0
    %v2257 = vand.u32 %v79, 4294901760
    %v2258 = vsub.f32 %v79, %v2257
    %v2259 = vand.u32 %v2258, 4294901760
    %v2260 = vsub.f32 %v2258, %v2259
    %v2261 = vand.u32 %v2260, 4294901760
    %2262 = vmatprep.mubr.f32.mxu0 %v2261
    %v2263 = vand.u32 %v61, 4294901760
    %v2264 = vsub.f32 %v61, %v2263
    %v2265 = vand.u32 %v2264, 4294901760
    %v2266 = vsub.f32 %v2264, %v2265
    %v2267 = vand.u32 %v2266, 4294901760
    %2268 = vmatmul.mubr.f32.gmra.mxu0 %v2267
    %v2269 = vpop.f32.mrf.mxu0
    %v2270 = vadd.f32 %v1981, %v2269
    %v2271 = vpop.f32.mrf.mxu0
    %v2272 = vand.u32 %v80, 4294901760
    %v2273 = vsub.f32 %v80, %v2272
    %v2274 = vand.u32 %v2273, 4294901760
    %v2275 = vsub.f32 %v2273, %v2274
    %v2276 = vand.u32 %v2275, 4294901760
    %2277 = vmatprep.mubr.f32.mxu0 %v2276
    %v2278 = vand.u32 %v62, 4294901760
    %v2279 = vsub.f32 %v62, %v2278
    %v2280 = vand.u32 %v2279, 4294901760
    %v2281 = vsub.f32 %v2279, %v2280
    %v2282 = vand.u32 %v2281, 4294901760
    %2283 = vmatmul.mubr.f32.gmra.mxu0 %v2282
    %v2284 = vpop.f32.mrf.mxu0
    %v2285 = vadd.f32 %v1988, %v2284
    %v2286 = vpop.f32.mrf.mxu0
    %v2287 = vand.u32 %v81, 4294901760
    %v2288 = vsub.f32 %v81, %v2287
    %v2289 = vand.u32 %v2288, 4294901760
    %v2290 = vsub.f32 %v2288, %v2289
    %v2291 = vand.u32 %v2290, 4294901760
    %2292 = vmatprep.mubr.f32.mxu0 %v2291
    %v2293 = vand.u32 %v63, 4294901760
    %v2294 = vsub.f32 %v63, %v2293
    %v2295 = vand.u32 %v2294, 4294901760
    %v2296 = vsub.f32 %v2294, %v2295
    %v2297 = vand.u32 %v2296, 4294901760
    %2298 = vmatmul.mubr.f32.gmra.mxu0 %v2297
    %v2299 = vpop.f32.mrf.mxu0
    %v2300 = vadd.f32 %v1995, %v2299
    %v2301 = vpop.f32.mrf.mxu0
    %v2302 = vand.u32 %v82, 4294901760
    %v2303 = vsub.f32 %v82, %v2302
    %v2304 = vand.u32 %v2303, 4294901760
    %v2305 = vsub.f32 %v2303, %v2304
    %v2306 = vand.u32 %v2305, 4294901760
    %2307 = vmatprep.mubr.f32.mxu0 %v2306
    %v2308 = vand.u32 %v64, 4294901760
    %v2309 = vsub.f32 %v64, %v2308
    %v2310 = vand.u32 %v2309, 4294901760
    %v2311 = vsub.f32 %v2309, %v2310
    %v2312 = vand.u32 %v2311, 4294901760
    %2313 = vmatmul.mubr.f32.gmra.mxu0 %v2312
    %v2314 = vpop.f32.mrf.mxu0
    %v2315 = vadd.f32 %v2002, %v2314
    %v2316 = vpop.f32.mrf.mxu0
    %v2317 = vand.u32 %v83, 4294901760
    %v2318 = vsub.f32 %v83, %v2317
    %v2319 = vand.u32 %v2318, 4294901760
    %v2320 = vsub.f32 %v2318, %v2319
    %v2321 = vand.u32 %v2320, 4294901760
    %2322 = vmatprep.mubr.f32.mxu0 %v2321
    %v2323 = vand.u32 %v65, 4294901760
    %v2324 = vsub.f32 %v65, %v2323
    %v2325 = vand.u32 %v2324, 4294901760
    %v2326 = vsub.f32 %v2324, %v2325
    %v2327 = vand.u32 %v2326, 4294901760
    %2328 = vmatmul.mubr.f32.gmra.mxu0 %v2327
    %v2329 = vpop.f32.mrf.mxu0
    %v2330 = vadd.f32 %v2009, %v2329
    %v2331 = vpop.f32.mrf.mxu0
    %v2332 = vand.u32 %v84, 4294901760
    %v2333 = vsub.f32 %v84, %v2332
    %v2334 = vand.u32 %v2333, 4294901760
    %v2335 = vsub.f32 %v2333, %v2334
    %v2336 = vand.u32 %v2335, 4294901760
    %2337 = vmatprep.mubr.f32.mxu0 %v2336
    %v2338 = vand.u32 %v66, 4294901760
    %v2339 = vsub.f32 %v66, %v2338
    %v2340 = vand.u32 %v2339, 4294901760
    %v2341 = vsub.f32 %v2339, %v2340
    %v2342 = vand.u32 %v2341, 4294901760
    %2343 = vmatmul.mubr.f32.gmra.mxu0 %v2342
    %v2344 = vpop.f32.mrf.mxu0
    %v2345 = vadd.f32 %v2016, %v2344
    %v2346 = vpop.f32.mrf.mxu0
    %v2347 = vand.u32 %v85, 4294901760
    %v2348 = vsub.f32 %v85, %v2347
    %v2349 = vand.u32 %v2348, 4294901760
    %v2350 = vsub.f32 %v2348, %v2349
    %v2351 = vand.u32 %v2350, 4294901760
    %2352 = vmatprep.mubr.f32.mxu0 %v2351
    %v2353 = vand.u32 %v67, 4294901760
    %v2354 = vsub.f32 %v67, %v2353
    %v2355 = vand.u32 %v2354, 4294901760
    %v2356 = vsub.f32 %v2354, %v2355
    %v2357 = vand.u32 %v2356, 4294901760
    %2358 = vmatmul.mubr.f32.gmra.mxu0 %v2357
    %v2359 = vpop.f32.mrf.mxu0
    %v2360 = vadd.f32 %v2023, %v2359
    %v2361 = vpop.f32.mrf.mxu0
    %2362 = vdwg.mxu0
    %2363 = vmatprep.subr.mxu0 0.0
    %v2364 = vand.u32 %v220, 4294901760
    %v2365 = vsub.f32 %v220, %v2364
    %v2366 = vand.u32 %v2365, 4294901760
    %v2367 = vsub.f32 %v2365, %v2366
    %v2368 = vand.u32 %v2367, 4294901760
    %2369 = vmatpush1.msra.mxu0 %v2368
    %2370 = vmatprep.subr.mxu0 0.0
    %v2371 = vand.u32 %v219, 4294901760
    %v2372 = vsub.f32 %v219, %v2371
    %v2373 = vand.u32 %v2372, 4294901760
    %v2374 = vsub.f32 %v2372, %v2373
    %v2375 = vand.u32 %v2374, 4294901760
    %2376 = vmatpush1.msra.mxu0 %v2375
    %2377 = vmatprep.subr.mxu0 0.0
    %v2378 = vand.u32 %v218, 4294901760
    %v2379 = vsub.f32 %v218, %v2378
    %v2380 = vand.u32 %v2379, 4294901760
    %v2381 = vsub.f32 %v2379, %v2380
    %v2382 = vand.u32 %v2381, 4294901760
    %2383 = vmatpush1.msra.mxu0 %v2382
    %2384 = vmatprep.subr.mxu0 0.0
    %v2385 = vand.u32 %v217, 4294901760
    %v2386 = vsub.f32 %v217, %v2385
    %v2387 = vand.u32 %v2386, 4294901760
    %v2388 = vsub.f32 %v2386, %v2387
    %v2389 = vand.u32 %v2388, 4294901760
    %2390 = vmatpush1.msra.mxu0 %v2389
    %2391 = vmatprep.subr.mxu0 0.0
    %v2392 = vand.u32 %v216, 4294901760
    %v2393 = vsub.f32 %v216, %v2392
    %v2394 = vand.u32 %v2393, 4294901760
    %v2395 = vsub.f32 %v2393, %v2394
    %v2396 = vand.u32 %v2395, 4294901760
    %2397 = vmatpush1.msra.mxu0 %v2396
    %2398 = vmatprep.subr.mxu0 0.0
    %v2399 = vand.u32 %v215, 4294901760
    %v2400 = vsub.f32 %v215, %v2399
    %v2401 = vand.u32 %v2400, 4294901760
    %v2402 = vsub.f32 %v2400, %v2401
    %v2403 = vand.u32 %v2402, 4294901760
    %2404 = vmatpush1.msra.mxu0 %v2403
    %2405 = vmatprep.subr.mxu0 0.0
    %v2406 = vand.u32 %v214, 4294901760
    %v2407 = vsub.f32 %v214, %v2406
    %v2408 = vand.u32 %v2407, 4294901760
    %v2409 = vsub.f32 %v2407, %v2408
    %v2410 = vand.u32 %v2409, 4294901760
    %2411 = vmatpush1.msra.mxu0 %v2410
    %2412 = vmatprep.subr.mxu0 0.0
    %v2413 = vand.u32 %v213, 4294901760
    %v2414 = vsub.f32 %v213, %v2413
    %v2415 = vand.u32 %v2414, 4294901760
    %v2416 = vsub.f32 %v2414, %v2415
    %v2417 = vand.u32 %v2416, 4294901760
    %2418 = vmatpush1.msra.mxu0 %v2417
    %2419 = vmatprep.subr.mxu0 0.0
    %v2420 = vand.u32 %v212, 4294901760
    %v2421 = vsub.f32 %v212, %v2420
    %v2422 = vand.u32 %v2421, 4294901760
    %v2423 = vsub.f32 %v2421, %v2422
    %v2424 = vand.u32 %v2423, 4294901760
    %2425 = vmatpush1.msra.mxu0 %v2424
    %2426 = vmatprep.subr.mxu0 0.0
    %v2427 = vand.u32 %v211, 4294901760
    %v2428 = vsub.f32 %v211, %v2427
    %v2429 = vand.u32 %v2428, 4294901760
    %v2430 = vsub.f32 %v2428, %v2429
    %v2431 = vand.u32 %v2430, 4294901760
    %2432 = vmatpush1.msra.mxu0 %v2431
    %2433 = vmatprep.subr.mxu0 0.0
    %v2434 = vand.u32 %v210, 4294901760
    %v2435 = vsub.f32 %v210, %v2434
    %v2436 = vand.u32 %v2435, 4294901760
    %v2437 = vsub.f32 %v2435, %v2436
    %v2438 = vand.u32 %v2437, 4294901760
    %2439 = vmatpush1.msra.mxu0 %v2438
    %2440 = vmatprep.subr.mxu0 0.0
    %v2441 = vand.u32 %v209, 4294901760
    %v2442 = vsub.f32 %v209, %v2441
    %v2443 = vand.u32 %v2442, 4294901760
    %v2444 = vsub.f32 %v2442, %v2443
    %v2445 = vand.u32 %v2444, 4294901760
    %2446 = vmatpush1.msra.mxu0 %v2445
    %2447 = vmatprep.subr.mxu0 0.0
    %v2448 = vand.u32 %v208, 4294901760
    %v2449 = vsub.f32 %v208, %v2448
    %v2450 = vand.u32 %v2449, 4294901760
    %v2451 = vsub.f32 %v2449, %v2450
    %v2452 = vand.u32 %v2451, 4294901760
    %2453 = vmatpush1.msra.mxu0 %v2452
    %2454 = vmatprep.subr.mxu0 0.0
    %v2455 = vand.u32 %v207, 4294901760
    %v2456 = vsub.f32 %v207, %v2455
    %v2457 = vand.u32 %v2456, 4294901760
    %v2458 = vsub.f32 %v2456, %v2457
    %v2459 = vand.u32 %v2458, 4294901760
    %2460 = vmatpush1.msra.mxu0 %v2459
    %2461 = vmatprep.subr.mxu0 0.0
    %v2462 = vand.u32 %v206, 4294901760
    %v2463 = vsub.f32 %v206, %v2462
    %v2464 = vand.u32 %v2463, 4294901760
    %v2465 = vsub.f32 %v2463, %v2464
    %v2466 = vand.u32 %v2465, 4294901760
    %2467 = vmatpush1.msra.mxu0 %v2466
    %2468 = vmatprep.subr.mxu0 0.0
    %v2469 = vand.u32 %v205, 4294901760
    %v2470 = vsub.f32 %v205, %v2469
    %v2471 = vand.u32 %v2470, 4294901760
    %v2472 = vsub.f32 %v2470, %v2471
    %v2473 = vand.u32 %v2472, 4294901760
    %2474 = vmatpush1.msra.mxu0 %v2473
    %2475 = vmatprep.subr.mxu0 0.0
    %v2476 = vand.u32 %v236, 4294901760
    %v2477 = vsub.f32 %v236, %v2476
    %v2478 = vand.u32 %v2477, 4294901760
    %v2479 = vsub.f32 %v2477, %v2478
    %v2480 = vand.u32 %v2479, 4294901760
    %2481 = vmatpush2.msra.mxu0 %v2480
    %2482 = vmatprep.subr.mxu0 0.0
    %v2483 = vand.u32 %v235, 4294901760
    %v2484 = vsub.f32 %v235, %v2483
    %v2485 = vand.u32 %v2484, 4294901760
    %v2486 = vsub.f32 %v2484, %v2485
    %v2487 = vand.u32 %v2486, 4294901760
    %2488 = vmatpush2.msra.mxu0 %v2487
    %2489 = vmatprep.subr.mxu0 0.0
    %v2490 = vand.u32 %v234, 4294901760
    %v2491 = vsub.f32 %v234, %v2490
    %v2492 = vand.u32 %v2491, 4294901760
    %v2493 = vsub.f32 %v2491, %v2492
    %v2494 = vand.u32 %v2493, 4294901760
    %2495 = vmatpush2.msra.mxu0 %v2494
    %2496 = vmatprep.subr.mxu0 0.0
    %v2497 = vand.u32 %v233, 4294901760
    %v2498 = vsub.f32 %v233, %v2497
    %v2499 = vand.u32 %v2498, 4294901760
    %v2500 = vsub.f32 %v2498, %v2499
    %v2501 = vand.u32 %v2500, 4294901760
    %2502 = vmatpush2.msra.mxu0 %v2501
    %2503 = vmatprep.subr.mxu0 0.0
    %v2504 = vand.u32 %v232, 4294901760
    %v2505 = vsub.f32 %v232, %v2504
    %v2506 = vand.u32 %v2505, 4294901760
    %v2507 = vsub.f32 %v2505, %v2506
    %v2508 = vand.u32 %v2507, 4294901760
    %2509 = vmatpush2.msra.mxu0 %v2508
    %2510 = vmatprep.subr.mxu0 0.0
    %v2511 = vand.u32 %v231, 4294901760
    %v2512 = vsub.f32 %v231, %v2511
    %v2513 = vand.u32 %v2512, 4294901760
    %v2514 = vsub.f32 %v2512, %v2513
    %v2515 = vand.u32 %v2514, 4294901760
    %2516 = vmatpush2.msra.mxu0 %v2515
    %2517 = vmatprep.subr.mxu0 0.0
    %v2518 = vand.u32 %v230, 4294901760
    %v2519 = vsub.f32 %v230, %v2518
    %v2520 = vand.u32 %v2519, 4294901760
    %v2521 = vsub.f32 %v2519, %v2520
    %v2522 = vand.u32 %v2521, 4294901760
    %2523 = vmatpush2.msra.mxu0 %v2522
    %2524 = vmatprep.subr.mxu0 0.0
    %v2525 = vand.u32 %v229, 4294901760
    %v2526 = vsub.f32 %v229, %v2525
    %v2527 = vand.u32 %v2526, 4294901760
    %v2528 = vsub.f32 %v2526, %v2527
    %v2529 = vand.u32 %v2528, 4294901760
    %2530 = vmatpush2.msra.mxu0 %v2529
    %2531 = vmatprep.subr.mxu0 0.0
    %v2532 = vand.u32 %v228, 4294901760
    %v2533 = vsub.f32 %v228, %v2532
    %v2534 = vand.u32 %v2533, 4294901760
    %v2535 = vsub.f32 %v2533, %v2534
    %v2536 = vand.u32 %v2535, 4294901760
    %2537 = vmatpush2.msra.mxu0 %v2536
    %2538 = vmatprep.subr.mxu0 0.0
    %v2539 = vand.u32 %v227, 4294901760
    %v2540 = vsub.f32 %v227, %v2539
    %v2541 = vand.u32 %v2540, 4294901760
    %v2542 = vsub.f32 %v2540, %v2541
    %v2543 = vand.u32 %v2542, 4294901760
    %2544 = vmatpush2.msra.mxu0 %v2543
    %2545 = vmatprep.subr.mxu0 0.0
    %v2546 = vand.u32 %v226, 4294901760
    %v2547 = vsub.f32 %v226, %v2546
    %v2548 = vand.u32 %v2547, 4294901760
    %v2549 = vsub.f32 %v2547, %v2548
    %v2550 = vand.u32 %v2549, 4294901760
    %2551 = vmatpush2.msra.mxu0 %v2550
    %2552 = vmatprep.subr.mxu0 0.0
    %v2553 = vand.u32 %v225, 4294901760
    %v2554 = vsub.f32 %v225, %v2553
    %v2555 = vand.u32 %v2554, 4294901760
    %v2556 = vsub.f32 %v2554, %v2555
    %v2557 = vand.u32 %v2556, 4294901760
    %2558 = vmatpush2.msra.mxu0 %v2557
    %2559 = vmatprep.subr.mxu0 0.0
    %v2560 = vand.u32 %v224, 4294901760
    %v2561 = vsub.f32 %v224, %v2560
    %v2562 = vand.u32 %v2561, 4294901760
    %v2563 = vsub.f32 %v2561, %v2562
    %v2564 = vand.u32 %v2563, 4294901760
    %2565 = vmatpush2.msra.mxu0 %v2564
    %2566 = vmatprep.subr.mxu0 0.0
    %v2567 = vand.u32 %v223, 4294901760
    %v2568 = vsub.f32 %v223, %v2567
    %v2569 = vand.u32 %v2568, 4294901760
    %v2570 = vsub.f32 %v2568, %v2569
    %v2571 = vand.u32 %v2570, 4294901760
    %2572 = vmatpush2.msra.mxu0 %v2571
    %2573 = vmatprep.subr.mxu0 0.0
    %v2574 = vand.u32 %v222, 4294901760
    %v2575 = vsub.f32 %v222, %v2574
    %v2576 = vand.u32 %v2575, 4294901760
    %v2577 = vsub.f32 %v2575, %v2576
    %v2578 = vand.u32 %v2577, 4294901760
    %2579 = vmatpush2.msra.mxu0 %v2578
    %2580 = vmatprep.subr.mxu0 0.0
    %v2581 = vand.u32 %v221, 4294901760
    %v2582 = vsub.f32 %v221, %v2581
    %v2583 = vand.u32 %v2582, 4294901760
    %v2584 = vsub.f32 %v2582, %v2583
    %v2585 = vand.u32 %v2584, 4294901760
    %2586 = vmatpush2.msra.mxu0 %v2585
    %v2587 = vand.u32 %v70, 4294901760
    %2588 = vmatprep.mubr.f32.mxu0 %v2587
    %v2589 = vand.u32 %v52, 4294901760
    %2590 = vmatmul.mubr.f32.gmra.mxu0 %v2589
    %v2591 = vpop.f32.mrf.mxu0
    %v2592 = vadd.f32 %v2135, %v2591
    %v2593 = vpop.f32.mrf.mxu0
    %v2594 = vand.u32 %v71, 4294901760
    %2595 = vmatprep.mubr.f32.mxu0 %v2594
    %v2596 = vand.u32 %v53, 4294901760
    %2597 = vmatmul.mubr.f32.gmra.mxu0 %v2596
    %v2598 = vpop.f32.mrf.mxu0
    %v2599 = vadd.f32 %v2150, %v2598
    %v2600 = vpop.f32.mrf.mxu0
    %v2601 = vand.u32 %v72, 4294901760
    %2602 = vmatprep.mubr.f32.mxu0 %v2601
    %v2603 = vand.u32 %v54, 4294901760
    %2604 = vmatmul.mubr.f32.gmra.mxu0 %v2603
    %v2605 = vpop.f32.mrf.mxu0
    %v2606 = vadd.f32 %v2165, %v2605
    %v2607 = vpop.f32.mrf.mxu0
    %v2608 = vand.u32 %v73, 4294901760
    %2609 = vmatprep.mubr.f32.mxu0 %v2608
    %v2610 = vand.u32 %v55, 4294901760
    %2611 = vmatmul.mubr.f32.gmra.mxu0 %v2610
    %v2612 = vpop.f32.mrf.mxu0
    %v2613 = vadd.f32 %v2180, %v2612
    %v2614 = vpop.f32.mrf.mxu0
    %v2615 = vand.u32 %v74, 4294901760
    %2616 = vmatprep.mubr.f32.mxu0 %v2615
    %v2617 = vand.u32 %v56, 4294901760
    %2618 = vmatmul.mubr.f32.gmra.mxu0 %v2617
    %v2619 = vpop.f32.mrf.mxu0
    %v2620 = vadd.f32 %v2195, %v2619
    %v2621 = vpop.f32.mrf.mxu0
    %v2622 = vand.u32 %v75, 4294901760
    %2623 = vmatprep.mubr.f32.mxu0 %v2622
    %v2624 = vand.u32 %v57, 4294901760
    %2625 = vmatmul.mubr.f32.gmra.mxu0 %v2624
    %v2626 = vpop.f32.mrf.mxu0
    %v2627 = vadd.f32 %v2210, %v2626
    %v2628 = vpop.f32.mrf.mxu0
    %v2629 = vand.u32 %v76, 4294901760
    %2630 = vmatprep.mubr.f32.mxu0 %v2629
    %v2631 = vand.u32 %v58, 4294901760
    %2632 = vmatmul.mubr.f32.gmra.mxu0 %v2631
    %v2633 = vpop.f32.mrf.mxu0
    %v2634 = vadd.f32 %v2225, %v2633
    %v2635 = vpop.f32.mrf.mxu0
    %v2636 = vand.u32 %v77, 4294901760
    %2637 = vmatprep.mubr.f32.mxu0 %v2636
    %v2638 = vand.u32 %v59, 4294901760
    %2639 = vmatmul.mubr.f32.gmra.mxu0 %v2638
    %v2640 = vpop.f32.mrf.mxu0
    %v2641 = vadd.f32 %v2240, %v2640
    %v2642 = vpop.f32.mrf.mxu0
    %v2643 = vand.u32 %v78, 4294901760
    %2644 = vmatprep.mubr.f32.mxu0 %v2643
    %v2645 = vand.u32 %v60, 4294901760
    %2646 = vmatmul.mubr.f32.gmra.mxu0 %v2645
    %v2647 = vpop.f32.mrf.mxu0
    %v2648 = vadd.f32 %v2255, %v2647
    %v2649 = vpop.f32.mrf.mxu0
    %v2650 = vand.u32 %v79, 4294901760
    %2651 = vmatprep.mubr.f32.mxu0 %v2650
    %v2652 = vand.u32 %v61, 4294901760
    %2653 = vmatmul.mubr.f32.gmra.mxu0 %v2652
    %v2654 = vpop.f32.mrf.mxu0
    %v2655 = vadd.f32 %v2270, %v2654
    %v2656 = vpop.f32.mrf.mxu0
    %v2657 = vand.u32 %v80, 4294901760
    %2658 = vmatprep.mubr.f32.mxu0 %v2657
    %v2659 = vand.u32 %v62, 4294901760
    %2660 = vmatmul.mubr.f32.gmra.mxu0 %v2659
    %v2661 = vpop.f32.mrf.mxu0
    %v2662 = vadd.f32 %v2285, %v2661
    %v2663 = vpop.f32.mrf.mxu0
    %v2664 = vand.u32 %v81, 4294901760
    %2665 = vmatprep.mubr.f32.mxu0 %v2664
    %v2666 = vand.u32 %v63, 4294901760
    %2667 = vmatmul.mubr.f32.gmra.mxu0 %v2666
    %v2668 = vpop.f32.mrf.mxu0
    %v2669 = vadd.f32 %v2300, %v2668
    %v2670 = vpop.f32.mrf.mxu0
    %v2671 = vand.u32 %v82, 4294901760
    %2672 = vmatprep.mubr.f32.mxu0 %v2671
    %v2673 = vand.u32 %v64, 4294901760
    %2674 = vmatmul.mubr.f32.gmra.mxu0 %v2673
    %v2675 = vpop.f32.mrf.mxu0
    %v2676 = vadd.f32 %v2315, %v2675
    %v2677 = vpop.f32.mrf.mxu0
    %v2678 = vand.u32 %v83, 4294901760
    %2679 = vmatprep.mubr.f32.mxu0 %v2678
    %v2680 = vand.u32 %v65, 4294901760
    %2681 = vmatmul.mubr.f32.gmra.mxu0 %v2680
    %v2682 = vpop.f32.mrf.mxu0
    %v2683 = vadd.f32 %v2330, %v2682
    %v2684 = vpop.f32.mrf.mxu0
    %v2685 = vand.u32 %v84, 4294901760
    %2686 = vmatprep.mubr.f32.mxu0 %v2685
    %v2687 = vand.u32 %v66, 4294901760
    %2688 = vmatmul.mubr.f32.gmra.mxu0 %v2687
    %v2689 = vpop.f32.mrf.mxu0
    %v2690 = vadd.f32 %v2345, %v2689
    %v2691 = vpop.f32.mrf.mxu0
    %v2692 = vand.u32 %v85, 4294901760
    %2693 = vmatprep.mubr.f32.mxu0 %v2692
    %v2694 = vand.u32 %v67, 4294901760
    %2695 = vmatmul.mubr.f32.gmra.mxu0 %v2694
    %v2696 = vpop.f32.mrf.mxu0
    %v2697 = vadd.f32 %v2360, %v2696
    %v2698 = vpop.f32.mrf.mxu0
    %2699 = vdwg.mxu0
    %2700 = vmatprep.subr.mxu0 0.0
    %v2701 = vand.u32 %v220, 4294901760
    %v2702 = vsub.f32 %v220, %v2701
    %2703 = vmatpush1.msra.mxu0 %v2702
    %2704 = vmatprep.subr.mxu0 0.0
    %v2705 = vand.u32 %v219, 4294901760
    %v2706 = vsub.f32 %v219, %v2705
    %2707 = vmatpush1.msra.mxu0 %v2706
    %2708 = vmatprep.subr.mxu0 0.0
    %v2709 = vand.u32 %v218, 4294901760
    %v2710 = vsub.f32 %v218, %v2709
    %2711 = vmatpush1.msra.mxu0 %v2710
    %2712 = vmatprep.subr.mxu0 0.0
    %v2713 = vand.u32 %v217, 4294901760
    %v2714 = vsub.f32 %v217, %v2713
    %2715 = vmatpush1.msra.mxu0 %v2714
    %2716 = vmatprep.subr.mxu0 0.0
    %v2717 = vand.u32 %v216, 4294901760
    %v2718 = vsub.f32 %v216, %v2717
    %2719 = vmatpush1.msra.mxu0 %v2718
    %2720 = vmatprep.subr.mxu0 0.0
    %v2721 = vand.u32 %v215, 4294901760
    %v2722 = vsub.f32 %v215, %v2721
    %2723 = vmatpush1.msra.mxu0 %v2722
    %2724 = vmatprep.subr.mxu0 0.0
    %v2725 = vand.u32 %v214, 4294901760
    %v2726 = vsub.f32 %v214, %v2725
    %2727 = vmatpush1.msra.mxu0 %v2726
    %2728 = vmatprep.subr.mxu0 0.0
    %v2729 = vand.u32 %v213, 4294901760
    %v2730 = vsub.f32 %v213, %v2729
    %2731 = vmatpush1.msra.mxu0 %v2730
    %2732 = vmatprep.subr.mxu0 0.0
    %v2733 = vand.u32 %v212, 4294901760
    %v2734 = vsub.f32 %v212, %v2733
    %2735 = vmatpush1.msra.mxu0 %v2734
    %2736 = vmatprep.subr.mxu0 0.0
    %v2737 = vand.u32 %v211, 4294901760
    %v2738 = vsub.f32 %v211, %v2737
    %2739 = vmatpush1.msra.mxu0 %v2738
    %2740 = vmatprep.subr.mxu0 0.0
    %v2741 = vand.u32 %v210, 4294901760
    %v2742 = vsub.f32 %v210, %v2741
    %2743 = vmatpush1.msra.mxu0 %v2742
    %2744 = vmatprep.subr.mxu0 0.0
    %v2745 = vand.u32 %v209, 4294901760
    %v2746 = vsub.f32 %v209, %v2745
    %2747 = vmatpush1.msra.mxu0 %v2746
    %2748 = vmatprep.subr.mxu0 0.0
    %v2749 = vand.u32 %v208, 4294901760
    %v2750 = vsub.f32 %v208, %v2749
    %2751 = vmatpush1.msra.mxu0 %v2750
    %2752 = vmatprep.subr.mxu0 0.0
    %v2753 = vand.u32 %v207, 4294901760
    %v2754 = vsub.f32 %v207, %v2753
    %2755 = vmatpush1.msra.mxu0 %v2754
    %2756 = vmatprep.subr.mxu0 0.0
    %v2757 = vand.u32 %v206, 4294901760
    %v2758 = vsub.f32 %v206, %v2757
    %2759 = vmatpush1.msra.mxu0 %v2758
    %2760 = vmatprep.subr.mxu0 0.0
    %v2761 = vand.u32 %v205, 4294901760
    %v2762 = vsub.f32 %v205, %v2761
    %2763 = vmatpush1.msra.mxu0 %v2762
    %2764 = vmatprep.subr.mxu0 0.0
    %v2765 = vand.u32 %v236, 4294901760
    %v2766 = vsub.f32 %v236, %v2765
    %2767 = vmatpush2.msra.mxu0 %v2766
    %2768 = vmatprep.subr.mxu0 0.0
    %v2769 = vand.u32 %v235, 4294901760
    %v2770 = vsub.f32 %v235, %v2769
    %2771 = vmatpush2.msra.mxu0 %v2770
    %2772 = vmatprep.subr.mxu0 0.0
    %v2773 = vand.u32 %v234, 4294901760
    %v2774 = vsub.f32 %v234, %v2773
    %2775 = vmatpush2.msra.mxu0 %v2774
    %2776 = vmatprep.subr.mxu0 0.0
    %v2777 = vand.u32 %v233, 4294901760
    %v2778 = vsub.f32 %v233, %v2777
    %2779 = vmatpush2.msra.mxu0 %v2778
    %2780 = vmatprep.subr.mxu0 0.0
    %v2781 = vand.u32 %v232, 4294901760
    %v2782 = vsub.f32 %v232, %v2781
    %2783 = vmatpush2.msra.mxu0 %v2782
    %2784 = vmatprep.subr.mxu0 0.0
    %v2785 = vand.u32 %v231, 4294901760
    %v2786 = vsub.f32 %v231, %v2785
    %2787 = vmatpush2.msra.mxu0 %v2786
    %2788 = vmatprep.subr.mxu0 0.0
    %v2789 = vand.u32 %v230, 4294901760
    %v2790 = vsub.f32 %v230, %v2789
    %2791 = vmatpush2.msra.mxu0 %v2790
    %2792 = vmatprep.subr.mxu0 0.0
    %v2793 = vand.u32 %v229, 4294901760
    %v2794 = vsub.f32 %v229, %v2793
    %2795 = vmatpush2.msra.mxu0 %v2794
    %2796 = vmatprep.subr.mxu0 0.0
    %v2797 = vand.u32 %v228, 4294901760
    %v2798 = vsub.f32 %v228, %v2797
    %2799 = vmatpush2.msra.mxu0 %v2798
    %2800 = vmatprep.subr.mxu0 0.0
    %v2801 = vand.u32 %v227, 4294901760
    %v2802 = vsub.f32 %v227, %v2801
    %2803 = vmatpush2.msra.mxu0 %v2802
    %2804 = vmatprep.subr.mxu0 0.0
    %v2805 = vand.u32 %v226, 4294901760
    %v2806 = vsub.f32 %v226, %v2805
    %2807 = vmatpush2.msra.mxu0 %v2806
    %2808 = vmatprep.subr.mxu0 0.0
    %v2809 = vand.u32 %v225, 4294901760
    %v2810 = vsub.f32 %v225, %v2809
    %2811 = vmatpush2.msra.mxu0 %v2810
    %2812 = vmatprep.subr.mxu0 0.0
    %v2813 = vand.u32 %v224, 4294901760
    %v2814 = vsub.f32 %v224, %v2813
    %2815 = vmatpush2.msra.mxu0 %v2814
    %2816 = vmatprep.subr.mxu0 0.0
    %v2817 = vand.u32 %v223, 4294901760
    %v2818 = vsub.f32 %v223, %v2817
    %2819 = vmatpush2.msra.mxu0 %v2818
    %2820 = vmatprep.subr.mxu0 0.0
    %v2821 = vand.u32 %v222, 4294901760
    %v2822 = vsub.f32 %v222, %v2821
    %2823 = vmatpush2.msra.mxu0 %v2822
    %2824 = vmatprep.subr.mxu0 0.0
    %v2825 = vand.u32 %v221, 4294901760
    %v2826 = vsub.f32 %v221, %v2825
    %2827 = vmatpush2.msra.mxu0 %v2826
    %v2828 = vand.u32 %v70, 4294901760
    %v2829 = vsub.f32 %v70, %v2828
    %2830 = vmatprep.mubr.f32.mxu0 %v2829
    %v2831 = vand.u32 %v52, 4294901760
    %v2832 = vsub.f32 %v52, %v2831
    %2833 = vmatmul.mubr.f32.gmra.mxu0 %v2832
    %v2834 = vpop.f32.mrf.mxu0
    %v2835 = vadd.f32 %v2592, %v2834
    %v2836 = vpop.f32.mrf.mxu0
    %v2837 = vand.u32 %v71, 4294901760
    %v2838 = vsub.f32 %v71, %v2837
    %2839 = vmatprep.mubr.f32.mxu0 %v2838
    %v2840 = vand.u32 %v53, 4294901760
    %v2841 = vsub.f32 %v53, %v2840
    %2842 = vmatmul.mubr.f32.gmra.mxu0 %v2841
    %v2843 = vpop.f32.mrf.mxu0
    %v2844 = vadd.f32 %v2599, %v2843
    %v2845 = vpop.f32.mrf.mxu0
    %v2846 = vand.u32 %v72, 4294901760
    %v2847 = vsub.f32 %v72, %v2846
    %2848 = vmatprep.mubr.f32.mxu0 %v2847
    %v2849 = vand.u32 %v54, 4294901760
    %v2850 = vsub.f32 %v54, %v2849
    %2851 = vmatmul.mubr.f32.gmra.mxu0 %v2850
    %v2852 = vpop.f32.mrf.mxu0
    %v2853 = vadd.f32 %v2606, %v2852
    %v2854 = vpop.f32.mrf.mxu0
    %v2855 = vand.u32 %v73, 4294901760
    %v2856 = vsub.f32 %v73, %v2855
    %2857 = vmatprep.mubr.f32.mxu0 %v2856
    %v2858 = vand.u32 %v55, 4294901760
    %v2859 = vsub.f32 %v55, %v2858
    %2860 = vmatmul.mubr.f32.gmra.mxu0 %v2859
    %v2861 = vpop.f32.mrf.mxu0
    %v2862 = vadd.f32 %v2613, %v2861
    %v2863 = vpop.f32.mrf.mxu0
    %v2864 = vand.u32 %v74, 4294901760
    %v2865 = vsub.f32 %v74, %v2864
    %2866 = vmatprep.mubr.f32.mxu0 %v2865
    %v2867 = vand.u32 %v56, 4294901760
    %v2868 = vsub.f32 %v56, %v2867
    %2869 = vmatmul.mubr.f32.gmra.mxu0 %v2868
    %v2870 = vpop.f32.mrf.mxu0
    %v2871 = vadd.f32 %v2620, %v2870
    %v2872 = vpop.f32.mrf.mxu0
    %v2873 = vand.u32 %v75, 4294901760
    %v2874 = vsub.f32 %v75, %v2873
    %2875 = vmatprep.mubr.f32.mxu0 %v2874
    %v2876 = vand.u32 %v57, 4294901760
    %v2877 = vsub.f32 %v57, %v2876
    %2878 = vmatmul.mubr.f32.gmra.mxu0 %v2877
    %v2879 = vpop.f32.mrf.mxu0
    %v2880 = vadd.f32 %v2627, %v2879
    %v2881 = vpop.f32.mrf.mxu0
    %v2882 = vand.u32 %v76, 4294901760
    %v2883 = vsub.f32 %v76, %v2882
    %2884 = vmatprep.mubr.f32.mxu0 %v2883
    %v2885 = vand.u32 %v58, 4294901760
    %v2886 = vsub.f32 %v58, %v2885
    %2887 = vmatmul.mubr.f32.gmra.mxu0 %v2886
    %v2888 = vpop.f32.mrf.mxu0
    %v2889 = vadd.f32 %v2634, %v2888
    %v2890 = vpop.f32.mrf.mxu0
    %v2891 = vand.u32 %v77, 4294901760
    %v2892 = vsub.f32 %v77, %v2891
    %2893 = vmatprep.mubr.f32.mxu0 %v2892
    %v2894 = vand.u32 %v59, 4294901760
    %v2895 = vsub.f32 %v59, %v2894
    %2896 = vmatmul.mubr.f32.gmra.mxu0 %v2895
    %v2897 = vpop.f32.mrf.mxu0
    %v2898 = vadd.f32 %v2641, %v2897
    %v2899 = vpop.f32.mrf.mxu0
    %v2900 = vand.u32 %v78, 4294901760
    %v2901 = vsub.f32 %v78, %v2900
    %2902 = vmatprep.mubr.f32.mxu0 %v2901
    %v2903 = vand.u32 %v60, 4294901760
    %v2904 = vsub.f32 %v60, %v2903
    %2905 = vmatmul.mubr.f32.gmra.mxu0 %v2904
    %v2906 = vpop.f32.mrf.mxu0
    %v2907 = vadd.f32 %v2648, %v2906
    %v2908 = vpop.f32.mrf.mxu0
    %v2909 = vand.u32 %v79, 4294901760
    %v2910 = vsub.f32 %v79, %v2909
    %2911 = vmatprep.mubr.f32.mxu0 %v2910
    %v2912 = vand.u32 %v61, 4294901760
    %v2913 = vsub.f32 %v61, %v2912
    %2914 = vmatmul.mubr.f32.gmra.mxu0 %v2913
    %v2915 = vpop.f32.mrf.mxu0
    %v2916 = vadd.f32 %v2655, %v2915
    %v2917 = vpop.f32.mrf.mxu0
    %v2918 = vand.u32 %v80, 4294901760
    %v2919 = vsub.f32 %v80, %v2918
    %2920 = vmatprep.mubr.f32.mxu0 %v2919
    %v2921 = vand.u32 %v62, 4294901760
    %v2922 = vsub.f32 %v62, %v2921
    %2923 = vmatmul.mubr.f32.gmra.mxu0 %v2922
    %v2924 = vpop.f32.mrf.mxu0
    %v2925 = vadd.f32 %v2662, %v2924
    %v2926 = vpop.f32.mrf.mxu0
    %v2927 = vand.u32 %v81, 4294901760
    %v2928 = vsub.f32 %v81, %v2927
    %2929 = vmatprep.mubr.f32.mxu0 %v2928
    %v2930 = vand.u32 %v63, 4294901760
    %v2931 = vsub.f32 %v63, %v2930
    %2932 = vmatmul.mubr.f32.gmra.mxu0 %v2931
    %v2933 = vpop.f32.mrf.mxu0
    %v2934 = vadd.f32 %v2669, %v2933
    %v2935 = vpop.f32.mrf.mxu0
    %v2936 = vand.u32 %v82, 4294901760
    %v2937 = vsub.f32 %v82, %v2936
    %2938 = vmatprep.mubr.f32.mxu0 %v2937
    %v2939 = vand.u32 %v64, 4294901760
    %v2940 = vsub.f32 %v64, %v2939
    %2941 = vmatmul.mubr.f32.gmra.mxu0 %v2940
    %v2942 = vpop.f32.mrf.mxu0
    %v2943 = vadd.f32 %v2676, %v2942
    %v2944 = vpop.f32.mrf.mxu0
    %v2945 = vand.u32 %v83, 4294901760
    %v2946 = vsub.f32 %v83, %v2945
    %2947 = vmatprep.mubr.f32.mxu0 %v2946
    %v2948 = vand.u32 %v65, 4294901760
    %v2949 = vsub.f32 %v65, %v2948
    %2950 = vmatmul.mubr.f32.gmra.mxu0 %v2949
    %v2951 = vpop.f32.mrf.mxu0
    %v2952 = vadd.f32 %v2683, %v2951
    %v2953 = vpop.f32.mrf.mxu0
    %v2954 = vand.u32 %v84, 4294901760
    %v2955 = vsub.f32 %v84, %v2954
    %2956 = vmatprep.mubr.f32.mxu0 %v2955
    %v2957 = vand.u32 %v66, 4294901760
    %v2958 = vsub.f32 %v66, %v2957
    %2959 = vmatmul.mubr.f32.gmra.mxu0 %v2958
    %v2960 = vpop.f32.mrf.mxu0
    %v2961 = vadd.f32 %v2690, %v2960
    %v2962 = vpop.f32.mrf.mxu0
    %v2963 = vand.u32 %v85, 4294901760
    %v2964 = vsub.f32 %v85, %v2963
    %2965 = vmatprep.mubr.f32.mxu0 %v2964
    %v2966 = vand.u32 %v67, 4294901760
    %v2967 = vsub.f32 %v67, %v2966
    %2968 = vmatmul.mubr.f32.gmra.mxu0 %v2967
    %v2969 = vpop.f32.mrf.mxu0
    %v2970 = vadd.f32 %v2697, %v2969
    %v2971 = vpop.f32.mrf.mxu0
    %2972 = vdwg.mxu0
    %2973 = vmatprep.subr.mxu0 0.0
    %v2974 = vand.u32 %v220, 4294901760
    %2975 = vmatpush1.msra.mxu0 %v2974
    %2976 = vmatprep.subr.mxu0 0.0
    %v2977 = vand.u32 %v219, 4294901760
    %2978 = vmatpush1.msra.mxu0 %v2977
    %2979 = vmatprep.subr.mxu0 0.0
    %v2980 = vand.u32 %v218, 4294901760
    %2981 = vmatpush1.msra.mxu0 %v2980
    %2982 = vmatprep.subr.mxu0 0.0
    %v2983 = vand.u32 %v217, 4294901760
    %2984 = vmatpush1.msra.mxu0 %v2983
    %2985 = vmatprep.subr.mxu0 0.0
    %v2986 = vand.u32 %v216, 4294901760
    %2987 = vmatpush1.msra.mxu0 %v2986
    %2988 = vmatprep.subr.mxu0 0.0
    %v2989 = vand.u32 %v215, 4294901760
    %2990 = vmatpush1.msra.mxu0 %v2989
    %2991 = vmatprep.subr.mxu0 0.0
    %v2992 = vand.u32 %v214, 4294901760
    %2993 = vmatpush1.msra.mxu0 %v2992
    %2994 = vmatprep.subr.mxu0 0.0
    %v2995 = vand.u32 %v213, 4294901760
    %2996 = vmatpush1.msra.mxu0 %v2995
    %2997 = vmatprep.subr.mxu0 0.0
    %v2998 = vand.u32 %v212, 4294901760
    %2999 = vmatpush1.msra.mxu0 %v2998
    %3000 = vmatprep.subr.mxu0 0.0
    %v3001 = vand.u32 %v211, 4294901760
    %3002 = vmatpush1.msra.mxu0 %v3001
    %3003 = vmatprep.subr.mxu0 0.0
    %v3004 = vand.u32 %v210, 4294901760
    %3005 = vmatpush1.msra.mxu0 %v3004
    %3006 = vmatprep.subr.mxu0 0.0
    %v3007 = vand.u32 %v209, 4294901760
    %3008 = vmatpush1.msra.mxu0 %v3007
    %3009 = vmatprep.subr.mxu0 0.0
    %v3010 = vand.u32 %v208, 4294901760
    %3011 = vmatpush1.msra.mxu0 %v3010
    %3012 = vmatprep.subr.mxu0 0.0
    %v3013 = vand.u32 %v207, 4294901760
    %3014 = vmatpush1.msra.mxu0 %v3013
    %3015 = vmatprep.subr.mxu0 0.0
    %v3016 = vand.u32 %v206, 4294901760
    %3017 = vmatpush1.msra.mxu0 %v3016
    %3018 = vmatprep.subr.mxu0 0.0
    %v3019 = vand.u32 %v205, 4294901760
    %3020 = vmatpush1.msra.mxu0 %v3019
    %3021 = vmatprep.subr.mxu0 0.0
    %v3022 = vand.u32 %v236, 4294901760
    %3023 = vmatpush2.msra.mxu0 %v3022
    %3024 = vmatprep.subr.mxu0 0.0
    %v3025 = vand.u32 %v235, 4294901760
    %3026 = vmatpush2.msra.mxu0 %v3025
    %3027 = vmatprep.subr.mxu0 0.0
    %v3028 = vand.u32 %v234, 4294901760
    %3029 = vmatpush2.msra.mxu0 %v3028
    %3030 = vmatprep.subr.mxu0 0.0
    %v3031 = vand.u32 %v233, 4294901760
    %3032 = vmatpush2.msra.mxu0 %v3031
    %3033 = vmatprep.subr.mxu0 0.0
    %v3034 = vand.u32 %v232, 4294901760
    %3035 = vmatpush2.msra.mxu0 %v3034
    %3036 = vmatprep.subr.mxu0 0.0
    %v3037 = vand.u32 %v231, 4294901760
    %3038 = vmatpush2.msra.mxu0 %v3037
    %3039 = vmatprep.subr.mxu0 0.0
    %v3040 = vand.u32 %v230, 4294901760
    %3041 = vmatpush2.msra.mxu0 %v3040
    %3042 = vmatprep.subr.mxu0 0.0
    %v3043 = vand.u32 %v229, 4294901760
    %3044 = vmatpush2.msra.mxu0 %v3043
    %3045 = vmatprep.subr.mxu0 0.0
    %v3046 = vand.u32 %v228, 4294901760
    %3047 = vmatpush2.msra.mxu0 %v3046
    %3048 = vmatprep.subr.mxu0 0.0
    %v3049 = vand.u32 %v227, 4294901760
    %3050 = vmatpush2.msra.mxu0 %v3049
    %3051 = vmatprep.subr.mxu0 0.0
    %v3052 = vand.u32 %v226, 4294901760
    %3053 = vmatpush2.msra.mxu0 %v3052
    %3054 = vmatprep.subr.mxu0 0.0
    %v3055 = vand.u32 %v225, 4294901760
    %3056 = vmatpush2.msra.mxu0 %v3055
    %3057 = vmatprep.subr.mxu0 0.0
    %v3058 = vand.u32 %v224, 4294901760
    %3059 = vmatpush2.msra.mxu0 %v3058
    %3060 = vmatprep.subr.mxu0 0.0
    %v3061 = vand.u32 %v223, 4294901760
    %3062 = vmatpush2.msra.mxu0 %v3061
    %3063 = vmatprep.subr.mxu0 0.0
    %v3064 = vand.u32 %v222, 4294901760
    %3065 = vmatpush2.msra.mxu0 %v3064
    %3066 = vmatprep.subr.mxu0 0.0
    %v3067 = vand.u32 %v221, 4294901760
    %3068 = vmatpush2.msra.mxu0 %v3067
    %v3069 = vand.u32 %v70, 4294901760
    %v3070 = vsub.f32 %v70, %v3069
    %v3071 = vand.u32 %v3070, 4294901760
    %3072 = vmatprep.mubr.f32.mxu0 %v3071
    %v3073 = vand.u32 %v52, 4294901760
    %v3074 = vsub.f32 %v52, %v3073
    %v3075 = vand.u32 %v3074, 4294901760
    %3076 = vmatmul.mubr.f32.gmra.mxu0 %v3075
    %v3077 = vpop.f32.mrf.mxu0
    %v3078 = vadd.f32 %v2835, %v3077
    %v3079 = vpop.f32.mrf.mxu0
    %v3080 = vand.u32 %v71, 4294901760
    %v3081 = vsub.f32 %v71, %v3080
    %v3082 = vand.u32 %v3081, 4294901760
    %3083 = vmatprep.mubr.f32.mxu0 %v3082
    %v3084 = vand.u32 %v53, 4294901760
    %v3085 = vsub.f32 %v53, %v3084
    %v3086 = vand.u32 %v3085, 4294901760
    %3087 = vmatmul.mubr.f32.gmra.mxu0 %v3086
    %v3088 = vpop.f32.mrf.mxu0
    %v3089 = vadd.f32 %v2844, %v3088
    %v3090 = vpop.f32.mrf.mxu0
    %v3091 = vand.u32 %v72, 4294901760
    %v3092 = vsub.f32 %v72, %v3091
    %v3093 = vand.u32 %v3092, 4294901760
    %3094 = vmatprep.mubr.f32.mxu0 %v3093
    %v3095 = vand.u32 %v54, 4294901760
    %v3096 = vsub.f32 %v54, %v3095
    %v3097 = vand.u32 %v3096, 4294901760
    %3098 = vmatmul.mubr.f32.gmra.mxu0 %v3097
    %v3099 = vpop.f32.mrf.mxu0
    %v3100 = vadd.f32 %v2853, %v3099
    %v3101 = vpop.f32.mrf.mxu0
    %v3102 = vand.u32 %v73, 4294901760
    %v3103 = vsub.f32 %v73, %v3102
    %v3104 = vand.u32 %v3103, 4294901760
    %3105 = vmatprep.mubr.f32.mxu0 %v3104
    %v3106 = vand.u32 %v55, 4294901760
    %v3107 = vsub.f32 %v55, %v3106
    %v3108 = vand.u32 %v3107, 4294901760
    %3109 = vmatmul.mubr.f32.gmra.mxu0 %v3108
    %v3110 = vpop.f32.mrf.mxu0
    %v3111 = vadd.f32 %v2862, %v3110
    %v3112 = vpop.f32.mrf.mxu0
    %v3113 = vand.u32 %v74, 4294901760
    %v3114 = vsub.f32 %v74, %v3113
    %v3115 = vand.u32 %v3114, 4294901760
    %3116 = vmatprep.mubr.f32.mxu0 %v3115
    %v3117 = vand.u32 %v56, 4294901760
    %v3118 = vsub.f32 %v56, %v3117
    %v3119 = vand.u32 %v3118, 4294901760
    %3120 = vmatmul.mubr.f32.gmra.mxu0 %v3119
    %v3121 = vpop.f32.mrf.mxu0
    %v3122 = vadd.f32 %v2871, %v3121
    %v3123 = vpop.f32.mrf.mxu0
    %v3124 = vand.u32 %v75, 4294901760
    %v3125 = vsub.f32 %v75, %v3124
    %v3126 = vand.u32 %v3125, 4294901760
    %3127 = vmatprep.mubr.f32.mxu0 %v3126
    %v3128 = vand.u32 %v57, 4294901760
    %v3129 = vsub.f32 %v57, %v3128
    %v3130 = vand.u32 %v3129, 4294901760
    %3131 = vmatmul.mubr.f32.gmra.mxu0 %v3130
    %v3132 = vpop.f32.mrf.mxu0
    %v3133 = vadd.f32 %v2880, %v3132
    %v3134 = vpop.f32.mrf.mxu0
    %v3135 = vand.u32 %v76, 4294901760
    %v3136 = vsub.f32 %v76, %v3135
    %v3137 = vand.u32 %v3136, 4294901760
    %3138 = vmatprep.mubr.f32.mxu0 %v3137
    %v3139 = vand.u32 %v58, 4294901760
    %v3140 = vsub.f32 %v58, %v3139
    %v3141 = vand.u32 %v3140, 4294901760
    %3142 = vmatmul.mubr.f32.gmra.mxu0 %v3141
    %v3143 = vpop.f32.mrf.mxu0
    %v3144 = vadd.f32 %v2889, %v3143
    %v3145 = vpop.f32.mrf.mxu0
    %v3146 = vand.u32 %v77, 4294901760
    %v3147 = vsub.f32 %v77, %v3146
    %v3148 = vand.u32 %v3147, 4294901760
    %3149 = vmatprep.mubr.f32.mxu0 %v3148
    %v3150 = vand.u32 %v59, 4294901760
    %v3151 = vsub.f32 %v59, %v3150
    %v3152 = vand.u32 %v3151, 4294901760
    %3153 = vmatmul.mubr.f32.gmra.mxu0 %v3152
    %v3154 = vpop.f32.mrf.mxu0
    %v3155 = vadd.f32 %v2898, %v3154
    %v3156 = vpop.f32.mrf.mxu0
    %v3157 = vand.u32 %v78, 4294901760
    %v3158 = vsub.f32 %v78, %v3157
    %v3159 = vand.u32 %v3158, 4294901760
    %3160 = vmatprep.mubr.f32.mxu0 %v3159
    %v3161 = vand.u32 %v60, 4294901760
    %v3162 = vsub.f32 %v60, %v3161
    %v3163 = vand.u32 %v3162, 4294901760
    %3164 = vmatmul.mubr.f32.gmra.mxu0 %v3163
    %v3165 = vpop.f32.mrf.mxu0
    %v3166 = vadd.f32 %v2907, %v3165
    %v3167 = vpop.f32.mrf.mxu0
    %v3168 = vand.u32 %v79, 4294901760
    %v3169 = vsub.f32 %v79, %v3168
    %v3170 = vand.u32 %v3169, 4294901760
    %3171 = vmatprep.mubr.f32.mxu0 %v3170
    %v3172 = vand.u32 %v61, 4294901760
    %v3173 = vsub.f32 %v61, %v3172
    %v3174 = vand.u32 %v3173, 4294901760
    %3175 = vmatmul.mubr.f32.gmra.mxu0 %v3174
    %v3176 = vpop.f32.mrf.mxu0
    %v3177 = vadd.f32 %v2916, %v3176
    %v3178 = vpop.f32.mrf.mxu0
    %v3179 = vand.u32 %v80, 4294901760
    %v3180 = vsub.f32 %v80, %v3179
    %v3181 = vand.u32 %v3180, 4294901760
    %3182 = vmatprep.mubr.f32.mxu0 %v3181
    %v3183 = vand.u32 %v62, 4294901760
    %v3184 = vsub.f32 %v62, %v3183
    %v3185 = vand.u32 %v3184, 4294901760
    %3186 = vmatmul.mubr.f32.gmra.mxu0 %v3185
    %v3187 = vpop.f32.mrf.mxu0
    %v3188 = vadd.f32 %v2925, %v3187
    %v3189 = vpop.f32.mrf.mxu0
    %v3190 = vand.u32 %v81, 4294901760
    %v3191 = vsub.f32 %v81, %v3190
    %v3192 = vand.u32 %v3191, 4294901760
    %3193 = vmatprep.mubr.f32.mxu0 %v3192
    %v3194 = vand.u32 %v63, 4294901760
    %v3195 = vsub.f32 %v63, %v3194
    %v3196 = vand.u32 %v3195, 4294901760
    %3197 = vmatmul.mubr.f32.gmra.mxu0 %v3196
    %v3198 = vpop.f32.mrf.mxu0
    %v3199 = vadd.f32 %v2934, %v3198
    %v3200 = vpop.f32.mrf.mxu0
    %v3201 = vand.u32 %v82, 4294901760
    %v3202 = vsub.f32 %v82, %v3201
    %v3203 = vand.u32 %v3202, 4294901760
    %3204 = vmatprep.mubr.f32.mxu0 %v3203
    %v3205 = vand.u32 %v64, 4294901760
    %v3206 = vsub.f32 %v64, %v3205
    %v3207 = vand.u32 %v3206, 4294901760
    %3208 = vmatmul.mubr.f32.gmra.mxu0 %v3207
    %v3209 = vpop.f32.mrf.mxu0
    %v3210 = vadd.f32 %v2943, %v3209
    %v3211 = vpop.f32.mrf.mxu0
    %v3212 = vand.u32 %v83, 4294901760
    %v3213 = vsub.f32 %v83, %v3212
    %v3214 = vand.u32 %v3213, 4294901760
    %3215 = vmatprep.mubr.f32.mxu0 %v3214
    %v3216 = vand.u32 %v65, 4294901760
    %v3217 = vsub.f32 %v65, %v3216
    %v3218 = vand.u32 %v3217, 4294901760
    %3219 = vmatmul.mubr.f32.gmra.mxu0 %v3218
    %v3220 = vpop.f32.mrf.mxu0
    %v3221 = vadd.f32 %v2952, %v3220
    %v3222 = vpop.f32.mrf.mxu0
    %v3223 = vand.u32 %v84, 4294901760
    %v3224 = vsub.f32 %v84, %v3223
    %v3225 = vand.u32 %v3224, 4294901760
    %3226 = vmatprep.mubr.f32.mxu0 %v3225
    %v3227 = vand.u32 %v66, 4294901760
    %v3228 = vsub.f32 %v66, %v3227
    %v3229 = vand.u32 %v3228, 4294901760
    %3230 = vmatmul.mubr.f32.gmra.mxu0 %v3229
    %v3231 = vpop.f32.mrf.mxu0
    %v3232 = vadd.f32 %v2961, %v3231
    %v3233 = vpop.f32.mrf.mxu0
    %v3234 = vand.u32 %v85, 4294901760
    %v3235 = vsub.f32 %v85, %v3234
    %v3236 = vand.u32 %v3235, 4294901760
    %3237 = vmatprep.mubr.f32.mxu0 %v3236
    %v3238 = vand.u32 %v67, 4294901760
    %v3239 = vsub.f32 %v67, %v3238
    %v3240 = vand.u32 %v3239, 4294901760
    %3241 = vmatmul.mubr.f32.gmra.mxu0 %v3240
    %v3242 = vpop.f32.mrf.mxu0
    %v3243 = vadd.f32 %v2970, %v3242
    %v3244 = vpop.f32.mrf.mxu0
    %3245 = vdwg.mxu0
    %3246 = vmatprep.subr.mxu0 0.0
    %v3247 = vand.u32 %v220, 4294901760
    %v3248 = vsub.f32 %v220, %v3247
    %v3249 = vand.u32 %v3248, 4294901760
    %3250 = vmatpush1.msra.mxu0 %v3249
    %3251 = vmatprep.subr.mxu0 0.0
    %v3252 = vand.u32 %v219, 4294901760
    %v3253 = vsub.f32 %v219, %v3252
    %v3254 = vand.u32 %v3253, 4294901760
    %3255 = vmatpush1.msra.mxu0 %v3254
    %3256 = vmatprep.subr.mxu0 0.0
    %v3257 = vand.u32 %v218, 4294901760
    %v3258 = vsub.f32 %v218, %v3257
    %v3259 = vand.u32 %v3258, 4294901760
    %3260 = vmatpush1.msra.mxu0 %v3259
    %3261 = vmatprep.subr.mxu0 0.0
    %v3262 = vand.u32 %v217, 4294901760
    %v3263 = vsub.f32 %v217, %v3262
    %v3264 = vand.u32 %v3263, 4294901760
    %3265 = vmatpush1.msra.mxu0 %v3264
    %3266 = vmatprep.subr.mxu0 0.0
    %v3267 = vand.u32 %v216, 4294901760
    %v3268 = vsub.f32 %v216, %v3267
    %v3269 = vand.u32 %v3268, 4294901760
    %3270 = vmatpush1.msra.mxu0 %v3269
    %3271 = vmatprep.subr.mxu0 0.0
    %v3272 = vand.u32 %v215, 4294901760
    %v3273 = vsub.f32 %v215, %v3272
    %v3274 = vand.u32 %v3273, 4294901760
    %3275 = vmatpush1.msra.mxu0 %v3274
    %3276 = vmatprep.subr.mxu0 0.0
    %v3277 = vand.u32 %v214, 4294901760
    %v3278 = vsub.f32 %v214, %v3277
    %v3279 = vand.u32 %v3278, 4294901760
    %3280 = vmatpush1.msra.mxu0 %v3279
    %3281 = vmatprep.subr.mxu0 0.0
    %v3282 = vand.u32 %v213, 4294901760
    %v3283 = vsub.f32 %v213, %v3282
    %v3284 = vand.u32 %v3283, 4294901760
    %3285 = vmatpush1.msra.mxu0 %v3284
    %3286 = vmatprep.subr.mxu0 0.0
    %v3287 = vand.u32 %v212, 4294901760
    %v3288 = vsub.f32 %v212, %v3287
    %v3289 = vand.u32 %v3288, 4294901760
    %3290 = vmatpush1.msra.mxu0 %v3289
    %3291 = vmatprep.subr.mxu0 0.0
    %v3292 = vand.u32 %v211, 4294901760
    %v3293 = vsub.f32 %v211, %v3292
    %v3294 = vand.u32 %v3293, 4294901760
    %3295 = vmatpush1.msra.mxu0 %v3294
    %3296 = vmatprep.subr.mxu0 0.0
    %v3297 = vand.u32 %v210, 4294901760
    %v3298 = vsub.f32 %v210, %v3297
    %v3299 = vand.u32 %v3298, 4294901760
    %3300 = vmatpush1.msra.mxu0 %v3299
    %3301 = vmatprep.subr.mxu0 0.0
    %v3302 = vand.u32 %v209, 4294901760
    %v3303 = vsub.f32 %v209, %v3302
    %v3304 = vand.u32 %v3303, 4294901760
    %3305 = vmatpush1.msra.mxu0 %v3304
    %3306 = vmatprep.subr.mxu0 0.0
    %v3307 = vand.u32 %v208, 4294901760
    %v3308 = vsub.f32 %v208, %v3307
    %v3309 = vand.u32 %v3308, 4294901760
    %3310 = vmatpush1.msra.mxu0 %v3309
    %3311 = vmatprep.subr.mxu0 0.0
    %v3312 = vand.u32 %v207, 4294901760
    %v3313 = vsub.f32 %v207, %v3312
    %v3314 = vand.u32 %v3313, 4294901760
    %3315 = vmatpush1.msra.mxu0 %v3314
    %3316 = vmatprep.subr.mxu0 0.0
    %v3317 = vand.u32 %v206, 4294901760
    %v3318 = vsub.f32 %v206, %v3317
    %v3319 = vand.u32 %v3318, 4294901760
    %3320 = vmatpush1.msra.mxu0 %v3319
    %3321 = vmatprep.subr.mxu0 0.0
    %v3322 = vand.u32 %v205, 4294901760
    %v3323 = vsub.f32 %v205, %v3322
    %v3324 = vand.u32 %v3323, 4294901760
    %3325 = vmatpush1.msra.mxu0 %v3324
    %3326 = vmatprep.subr.mxu0 0.0
    %v3327 = vand.u32 %v236, 4294901760
    %v3328 = vsub.f32 %v236, %v3327
    %v3329 = vand.u32 %v3328, 4294901760
    %3330 = vmatpush2.msra.mxu0 %v3329
    %3331 = vmatprep.subr.mxu0 0.0
    %v3332 = vand.u32 %v235, 4294901760
    %v3333 = vsub.f32 %v235, %v3332
    %v3334 = vand.u32 %v3333, 4294901760
    %3335 = vmatpush2.msra.mxu0 %v3334
    %3336 = vmatprep.subr.mxu0 0.0
    %v3337 = vand.u32 %v234, 4294901760
    %v3338 = vsub.f32 %v234, %v3337
    %v3339 = vand.u32 %v3338, 4294901760
    %3340 = vmatpush2.msra.mxu0 %v3339
    %3341 = vmatprep.subr.mxu0 0.0
    %v3342 = vand.u32 %v233, 4294901760
    %v3343 = vsub.f32 %v233, %v3342
    %v3344 = vand.u32 %v3343, 4294901760
    %3345 = vmatpush2.msra.mxu0 %v3344
    %3346 = vmatprep.subr.mxu0 0.0
    %v3347 = vand.u32 %v232, 4294901760
    %v3348 = vsub.f32 %v232, %v3347
    %v3349 = vand.u32 %v3348, 4294901760
    %3350 = vmatpush2.msra.mxu0 %v3349
    %3351 = vmatprep.subr.mxu0 0.0
    %v3352 = vand.u32 %v231, 4294901760
    %v3353 = vsub.f32 %v231, %v3352
    %v3354 = vand.u32 %v3353, 4294901760
    %3355 = vmatpush2.msra.mxu0 %v3354
    %3356 = vmatprep.subr.mxu0 0.0
    %v3357 = vand.u32 %v230, 4294901760
    %v3358 = vsub.f32 %v230, %v3357
    %v3359 = vand.u32 %v3358, 4294901760
    %3360 = vmatpush2.msra.mxu0 %v3359
    %3361 = vmatprep.subr.mxu0 0.0
    %v3362 = vand.u32 %v229, 4294901760
    %v3363 = vsub.f32 %v229, %v3362
    %v3364 = vand.u32 %v3363, 4294901760
    %3365 = vmatpush2.msra.mxu0 %v3364
    %3366 = vmatprep.subr.mxu0 0.0
    %v3367 = vand.u32 %v228, 4294901760
    %v3368 = vsub.f32 %v228, %v3367
    %v3369 = vand.u32 %v3368, 4294901760
    %3370 = vmatpush2.msra.mxu0 %v3369
    %3371 = vmatprep.subr.mxu0 0.0
    %v3372 = vand.u32 %v227, 4294901760
    %v3373 = vsub.f32 %v227, %v3372
    %v3374 = vand.u32 %v3373, 4294901760
    %3375 = vmatpush2.msra.mxu0 %v3374
    %3376 = vmatprep.subr.mxu0 0.0
    %v3377 = vand.u32 %v226, 4294901760
    %v3378 = vsub.f32 %v226, %v3377
    %v3379 = vand.u32 %v3378, 4294901760
    %3380 = vmatpush2.msra.mxu0 %v3379
    %3381 = vmatprep.subr.mxu0 0.0
    %v3382 = vand.u32 %v225, 4294901760
    %v3383 = vsub.f32 %v225, %v3382
    %v3384 = vand.u32 %v3383, 4294901760
    %3385 = vmatpush2.msra.mxu0 %v3384
    %3386 = vmatprep.subr.mxu0 0.0
    %v3387 = vand.u32 %v224, 4294901760
    %v3388 = vsub.f32 %v224, %v3387
    %v3389 = vand.u32 %v3388, 4294901760
    %3390 = vmatpush2.msra.mxu0 %v3389
    %3391 = vmatprep.subr.mxu0 0.0
    %v3392 = vand.u32 %v223, 4294901760
    %v3393 = vsub.f32 %v223, %v3392
    %v3394 = vand.u32 %v3393, 4294901760
    %3395 = vmatpush2.msra.mxu0 %v3394
    %3396 = vmatprep.subr.mxu0 0.0
    %v3397 = vand.u32 %v222, 4294901760
    %v3398 = vsub.f32 %v222, %v3397
    %v3399 = vand.u32 %v3398, 4294901760
    %3400 = vmatpush2.msra.mxu0 %v3399
    %3401 = vmatprep.subr.mxu0 0.0
    %v3402 = vand.u32 %v221, 4294901760
    %v3403 = vsub.f32 %v221, %v3402
    %v3404 = vand.u32 %v3403, 4294901760
    %3405 = vmatpush2.msra.mxu0 %v3404
    %v3406 = vand.u32 %v70, 4294901760
    %3407 = vmatprep.mubr.f32.mxu0 %v3406
    %v3408 = vand.u32 %v52, 4294901760
    %3409 = vmatmul.mubr.f32.gmra.mxu0 %v3408
    %v3410 = vpop.f32.mrf.mxu0
    %v3411 = vadd.f32 %v3078, %v3410
    %v3412 = vpop.f32.mrf.mxu0
    %v3413 = vand.u32 %v71, 4294901760
    %3414 = vmatprep.mubr.f32.mxu0 %v3413
    %v3415 = vand.u32 %v53, 4294901760
    %3416 = vmatmul.mubr.f32.gmra.mxu0 %v3415
    %v3417 = vpop.f32.mrf.mxu0
    %v3418 = vadd.f32 %v3089, %v3417
    %v3419 = vpop.f32.mrf.mxu0
    %v3420 = vand.u32 %v72, 4294901760
    %3421 = vmatprep.mubr.f32.mxu0 %v3420
    %v3422 = vand.u32 %v54, 4294901760
    %3423 = vmatmul.mubr.f32.gmra.mxu0 %v3422
    %v3424 = vpop.f32.mrf.mxu0
    %v3425 = vadd.f32 %v3100, %v3424
    %v3426 = vpop.f32.mrf.mxu0
    %v3427 = vand.u32 %v73, 4294901760
    %3428 = vmatprep.mubr.f32.mxu0 %v3427
    %v3429 = vand.u32 %v55, 4294901760
    %3430 = vmatmul.mubr.f32.gmra.mxu0 %v3429
    %v3431 = vpop.f32.mrf.mxu0
    %v3432 = vadd.f32 %v3111, %v3431
    %v3433 = vpop.f32.mrf.mxu0
    %v3434 = vand.u32 %v74, 4294901760
    %3435 = vmatprep.mubr.f32.mxu0 %v3434
    %v3436 = vand.u32 %v56, 4294901760
    %3437 = vmatmul.mubr.f32.gmra.mxu0 %v3436
    %v3438 = vpop.f32.mrf.mxu0
    %v3439 = vadd.f32 %v3122, %v3438
    %v3440 = vpop.f32.mrf.mxu0
    %v3441 = vand.u32 %v75, 4294901760
    %3442 = vmatprep.mubr.f32.mxu0 %v3441
    %v3443 = vand.u32 %v57, 4294901760
    %3444 = vmatmul.mubr.f32.gmra.mxu0 %v3443
    %v3445 = vpop.f32.mrf.mxu0
    %v3446 = vadd.f32 %v3133, %v3445
    %v3447 = vpop.f32.mrf.mxu0
    %v3448 = vand.u32 %v76, 4294901760
    %3449 = vmatprep.mubr.f32.mxu0 %v3448
    %v3450 = vand.u32 %v58, 4294901760
    %3451 = vmatmul.mubr.f32.gmra.mxu0 %v3450
    %v3452 = vpop.f32.mrf.mxu0
    %v3453 = vadd.f32 %v3144, %v3452
    %v3454 = vpop.f32.mrf.mxu0
    %v3455 = vand.u32 %v77, 4294901760
    %3456 = vmatprep.mubr.f32.mxu0 %v3455
    %v3457 = vand.u32 %v59, 4294901760
    %3458 = vmatmul.mubr.f32.gmra.mxu0 %v3457
    %v3459 = vpop.f32.mrf.mxu0
    %v3460 = vadd.f32 %v3155, %v3459
    %v3461 = vpop.f32.mrf.mxu0
    %v3462 = vand.u32 %v78, 4294901760
    %3463 = vmatprep.mubr.f32.mxu0 %v3462
    %v3464 = vand.u32 %v60, 4294901760
    %3465 = vmatmul.mubr.f32.gmra.mxu0 %v3464
    %v3466 = vpop.f32.mrf.mxu0
    %v3467 = vadd.f32 %v3166, %v3466
    %v3468 = vpop.f32.mrf.mxu0
    %v3469 = vand.u32 %v79, 4294901760
    %3470 = vmatprep.mubr.f32.mxu0 %v3469
    %v3471 = vand.u32 %v61, 4294901760
    %3472 = vmatmul.mubr.f32.gmra.mxu0 %v3471
    %v3473 = vpop.f32.mrf.mxu0
    %v3474 = vadd.f32 %v3177, %v3473
    %v3475 = vpop.f32.mrf.mxu0
    %v3476 = vand.u32 %v80, 4294901760
    %3477 = vmatprep.mubr.f32.mxu0 %v3476
    %v3478 = vand.u32 %v62, 4294901760
    %3479 = vmatmul.mubr.f32.gmra.mxu0 %v3478
    %v3480 = vpop.f32.mrf.mxu0
    %v3481 = vadd.f32 %v3188, %v3480
    %v3482 = vpop.f32.mrf.mxu0
    %v3483 = vand.u32 %v81, 4294901760
    %3484 = vmatprep.mubr.f32.mxu0 %v3483
    %v3485 = vand.u32 %v63, 4294901760
    %3486 = vmatmul.mubr.f32.gmra.mxu0 %v3485
    %v3487 = vpop.f32.mrf.mxu0
    %v3488 = vadd.f32 %v3199, %v3487
    %v3489 = vpop.f32.mrf.mxu0
    %v3490 = vand.u32 %v82, 4294901760
    %3491 = vmatprep.mubr.f32.mxu0 %v3490
    %v3492 = vand.u32 %v64, 4294901760
    %3493 = vmatmul.mubr.f32.gmra.mxu0 %v3492
    %v3494 = vpop.f32.mrf.mxu0
    %v3495 = vadd.f32 %v3210, %v3494
    %v3496 = vpop.f32.mrf.mxu0
    %v3497 = vand.u32 %v83, 4294901760
    %3498 = vmatprep.mubr.f32.mxu0 %v3497
    %v3499 = vand.u32 %v65, 4294901760
    %3500 = vmatmul.mubr.f32.gmra.mxu0 %v3499
    %v3501 = vpop.f32.mrf.mxu0
    %v3502 = vadd.f32 %v3221, %v3501
    %v3503 = vpop.f32.mrf.mxu0
    %v3504 = vand.u32 %v84, 4294901760
    %3505 = vmatprep.mubr.f32.mxu0 %v3504
    %v3506 = vand.u32 %v66, 4294901760
    %3507 = vmatmul.mubr.f32.gmra.mxu0 %v3506
    %v3508 = vpop.f32.mrf.mxu0
    %v3509 = vadd.f32 %v3232, %v3508
    %v3510 = vpop.f32.mrf.mxu0
    %v3511 = vand.u32 %v85, 4294901760
    %3512 = vmatprep.mubr.f32.mxu0 %v3511
    %v3513 = vand.u32 %v67, 4294901760
    %3514 = vmatmul.mubr.f32.gmra.mxu0 %v3513
    %v3515 = vpop.f32.mrf.mxu0
    %v3516 = vadd.f32 %v3243, %v3515
    %v3517 = vpop.f32.mrf.mxu0
    %3518 = vdwg.mxu0
    %3519 = vmatprep.subr.mxu0 0.0
    %v3520 = vand.u32 %v220, 4294901760
    %3521 = vmatpush1.msra.mxu0 %v3520
    %3522 = vmatprep.subr.mxu0 0.0
    %v3523 = vand.u32 %v219, 4294901760
    %3524 = vmatpush1.msra.mxu0 %v3523
    %3525 = vmatprep.subr.mxu0 0.0
    %v3526 = vand.u32 %v218, 4294901760
    %3527 = vmatpush1.msra.mxu0 %v3526
    %3528 = vmatprep.subr.mxu0 0.0
    %v3529 = vand.u32 %v217, 4294901760
    %3530 = vmatpush1.msra.mxu0 %v3529
    %3531 = vmatprep.subr.mxu0 0.0
    %v3532 = vand.u32 %v216, 4294901760
    %3533 = vmatpush1.msra.mxu0 %v3532
    %3534 = vmatprep.subr.mxu0 0.0
    %v3535 = vand.u32 %v215, 4294901760
    %3536 = vmatpush1.msra.mxu0 %v3535
    %3537 = vmatprep.subr.mxu0 0.0
    %v3538 = vand.u32 %v214, 4294901760
    %3539 = vmatpush1.msra.mxu0 %v3538
    %3540 = vmatprep.subr.mxu0 0.0
    %v3541 = vand.u32 %v213, 4294901760
    %3542 = vmatpush1.msra.mxu0 %v3541
    %3543 = vmatprep.subr.mxu0 0.0
    %v3544 = vand.u32 %v212, 4294901760
    %3545 = vmatpush1.msra.mxu0 %v3544
    %3546 = vmatprep.subr.mxu0 0.0
    %v3547 = vand.u32 %v211, 4294901760
    %3548 = vmatpush1.msra.mxu0 %v3547
    %3549 = vmatprep.subr.mxu0 0.0
    %v3550 = vand.u32 %v210, 4294901760
    %3551 = vmatpush1.msra.mxu0 %v3550
    %3552 = vmatprep.subr.mxu0 0.0
    %v3553 = vand.u32 %v209, 4294901760
    %3554 = vmatpush1.msra.mxu0 %v3553
    %3555 = vmatprep.subr.mxu0 0.0
    %v3556 = vand.u32 %v208, 4294901760
    %3557 = vmatpush1.msra.mxu0 %v3556
    %3558 = vmatprep.subr.mxu0 0.0
    %v3559 = vand.u32 %v207, 4294901760
    %3560 = vmatpush1.msra.mxu0 %v3559
    %3561 = vmatprep.subr.mxu0 0.0
    %v3562 = vand.u32 %v206, 4294901760
    %3563 = vmatpush1.msra.mxu0 %v3562
    %3564 = vmatprep.subr.mxu0 0.0
    %v3565 = vand.u32 %v205, 4294901760
    %3566 = vmatpush1.msra.mxu0 %v3565
    %3567 = vmatprep.subr.mxu0 0.0
    %v3568 = vand.u32 %v236, 4294901760
    %3569 = vmatpush2.msra.mxu0 %v3568
    %3570 = vmatprep.subr.mxu0 0.0
    %v3571 = vand.u32 %v235, 4294901760
    %3572 = vmatpush2.msra.mxu0 %v3571
    %3573 = vmatprep.subr.mxu0 0.0
    %v3574 = vand.u32 %v234, 4294901760
    %3575 = vmatpush2.msra.mxu0 %v3574
    %3576 = vmatprep.subr.mxu0 0.0
    %v3577 = vand.u32 %v233, 4294901760
    %3578 = vmatpush2.msra.mxu0 %v3577
    %3579 = vmatprep.subr.mxu0 0.0
    %v3580 = vand.u32 %v232, 4294901760
    %3581 = vmatpush2.msra.mxu0 %v3580
    %3582 = vmatprep.subr.mxu0 0.0
    %v3583 = vand.u32 %v231, 4294901760
    %3584 = vmatpush2.msra.mxu0 %v3583
    %3585 = vmatprep.subr.mxu0 0.0
    %v3586 = vand.u32 %v230, 4294901760
    %3587 = vmatpush2.msra.mxu0 %v3586
    %3588 = vmatprep.subr.mxu0 0.0
    %v3589 = vand.u32 %v229, 4294901760
    %3590 = vmatpush2.msra.mxu0 %v3589
    %3591 = vmatprep.subr.mxu0 0.0
    %v3592 = vand.u32 %v228, 4294901760
    %3593 = vmatpush2.msra.mxu0 %v3592
    %3594 = vmatprep.subr.mxu0 0.0
    %v3595 = vand.u32 %v227, 4294901760
    %3596 = vmatpush2.msra.mxu0 %v3595
    %3597 = vmatprep.subr.mxu0 0.0
    %v3598 = vand.u32 %v226, 4294901760
    %3599 = vmatpush2.msra.mxu0 %v3598
    %3600 = vmatprep.subr.mxu0 0.0
    %v3601 = vand.u32 %v225, 4294901760
    %3602 = vmatpush2.msra.mxu0 %v3601
    %3603 = vmatprep.subr.mxu0 0.0
    %v3604 = vand.u32 %v224, 4294901760
    %3605 = vmatpush2.msra.mxu0 %v3604
    %3606 = vmatprep.subr.mxu0 0.0
    %v3607 = vand.u32 %v223, 4294901760
    %3608 = vmatpush2.msra.mxu0 %v3607
    %3609 = vmatprep.subr.mxu0 0.0
    %v3610 = vand.u32 %v222, 4294901760
    %3611 = vmatpush2.msra.mxu0 %v3610
    %3612 = vmatprep.subr.mxu0 0.0
    %v3613 = vand.u32 %v221, 4294901760
    %3614 = vmatpush2.msra.mxu0 %v3613
    %v3615 = vand.u32 %v70, 4294901760
    %3616 = vmatprep.mubr.f32.mxu0 %v3615
    %v3617 = vand.u32 %v52, 4294901760
    %3618 = vmatmul.mubr.f32.gmra.mxu0 %v3617
    %v3619 = vpop.f32.mrf.mxu0
    %v3620 = vadd.f32 %v3411, %v3619
    %v3621 = vpop.f32.mrf.mxu0
    %v3622 = vand.u32 %v71, 4294901760
    %3623 = vmatprep.mubr.f32.mxu0 %v3622
    %v3624 = vand.u32 %v53, 4294901760
    %3625 = vmatmul.mubr.f32.gmra.mxu0 %v3624
    %v3626 = vpop.f32.mrf.mxu0
    %v3627 = vadd.f32 %v3418, %v3626
    %v3628 = vpop.f32.mrf.mxu0
    %v3629 = vand.u32 %v72, 4294901760
    %3630 = vmatprep.mubr.f32.mxu0 %v3629
    %v3631 = vand.u32 %v54, 4294901760
    %3632 = vmatmul.mubr.f32.gmra.mxu0 %v3631
    %v3633 = vpop.f32.mrf.mxu0
    %v3634 = vadd.f32 %v3425, %v3633
    %v3635 = vpop.f32.mrf.mxu0
    %v3636 = vand.u32 %v73, 4294901760
    %3637 = vmatprep.mubr.f32.mxu0 %v3636
    %v3638 = vand.u32 %v55, 4294901760
    %3639 = vmatmul.mubr.f32.gmra.mxu0 %v3638
    %v3640 = vpop.f32.mrf.mxu0
    %v3641 = vadd.f32 %v3432, %v3640
    %v3642 = vpop.f32.mrf.mxu0
    %v3643 = vand.u32 %v74, 4294901760
    %3644 = vmatprep.mubr.f32.mxu0 %v3643
    %v3645 = vand.u32 %v56, 4294901760
    %3646 = vmatmul.mubr.f32.gmra.mxu0 %v3645
    %v3647 = vpop.f32.mrf.mxu0
    %v3648 = vadd.f32 %v3439, %v3647
    %v3649 = vpop.f32.mrf.mxu0
    %v3650 = vand.u32 %v75, 4294901760
    %3651 = vmatprep.mubr.f32.mxu0 %v3650
    %v3652 = vand.u32 %v57, 4294901760
    %3653 = vmatmul.mubr.f32.gmra.mxu0 %v3652
    %v3654 = vpop.f32.mrf.mxu0
    %v3655 = vadd.f32 %v3446, %v3654
    %v3656 = vpop.f32.mrf.mxu0
    %v3657 = vand.u32 %v76, 4294901760
    %3658 = vmatprep.mubr.f32.mxu0 %v3657
    %v3659 = vand.u32 %v58, 4294901760
    %3660 = vmatmul.mubr.f32.gmra.mxu0 %v3659
    %v3661 = vpop.f32.mrf.mxu0
    %v3662 = vadd.f32 %v3453, %v3661
    %v3663 = vpop.f32.mrf.mxu0
    %v3664 = vand.u32 %v77, 4294901760
    %3665 = vmatprep.mubr.f32.mxu0 %v3664
    %v3666 = vand.u32 %v59, 4294901760
    %3667 = vmatmul.mubr.f32.gmra.mxu0 %v3666
    %v3668 = vpop.f32.mrf.mxu0
    %v3669 = vadd.f32 %v3460, %v3668
    %v3670 = vpop.f32.mrf.mxu0
    %v3671 = vand.u32 %v78, 4294901760
    %3672 = vmatprep.mubr.f32.mxu0 %v3671
    %v3673 = vand.u32 %v60, 4294901760
    %3674 = vmatmul.mubr.f32.gmra.mxu0 %v3673
    %v3675 = vpop.f32.mrf.mxu0
    %v3676 = vadd.f32 %v3467, %v3675
    %v3677 = vpop.f32.mrf.mxu0
    %v3678 = vand.u32 %v79, 4294901760
    %3679 = vmatprep.mubr.f32.mxu0 %v3678
    %v3680 = vand.u32 %v61, 4294901760
    %3681 = vmatmul.mubr.f32.gmra.mxu0 %v3680
    %v3682 = vpop.f32.mrf.mxu0
    %v3683 = vadd.f32 %v3474, %v3682
    %v3684 = vpop.f32.mrf.mxu0
    %v3685 = vand.u32 %v80, 4294901760
    %3686 = vmatprep.mubr.f32.mxu0 %v3685
    %v3687 = vand.u32 %v62, 4294901760
    %3688 = vmatmul.mubr.f32.gmra.mxu0 %v3687
    %v3689 = vpop.f32.mrf.mxu0
    %v3690 = vadd.f32 %v3481, %v3689
    %v3691 = vpop.f32.mrf.mxu0
    %v3692 = vand.u32 %v81, 4294901760
    %3693 = vmatprep.mubr.f32.mxu0 %v3692
    %v3694 = vand.u32 %v63, 4294901760
    %3695 = vmatmul.mubr.f32.gmra.mxu0 %v3694
    %v3696 = vpop.f32.mrf.mxu0
    %v3697 = vadd.f32 %v3488, %v3696
    %v3698 = vpop.f32.mrf.mxu0
    %v3699 = vand.u32 %v82, 4294901760
    %3700 = vmatprep.mubr.f32.mxu0 %v3699
    %v3701 = vand.u32 %v64, 4294901760
    %3702 = vmatmul.mubr.f32.gmra.mxu0 %v3701
    %v3703 = vpop.f32.mrf.mxu0
    %v3704 = vadd.f32 %v3495, %v3703
    %v3705 = vpop.f32.mrf.mxu0
    %v3706 = vand.u32 %v83, 4294901760
    %3707 = vmatprep.mubr.f32.mxu0 %v3706
    %v3708 = vand.u32 %v65, 4294901760
    %3709 = vmatmul.mubr.f32.gmra.mxu0 %v3708
    %v3710 = vpop.f32.mrf.mxu0
    %v3711 = vadd.f32 %v3502, %v3710
    %v3712 = vpop.f32.mrf.mxu0
    %v3713 = vand.u32 %v84, 4294901760
    %3714 = vmatprep.mubr.f32.mxu0 %v3713
    %v3715 = vand.u32 %v66, 4294901760
    %3716 = vmatmul.mubr.f32.gmra.mxu0 %v3715
    %v3717 = vpop.f32.mrf.mxu0
    %v3718 = vadd.f32 %v3509, %v3717
    %v3719 = vpop.f32.mrf.mxu0
    %v3720 = vand.u32 %v85, 4294901760
    %3721 = vmatprep.mubr.f32.mxu0 %v3720
    %v3722 = vand.u32 %v67, 4294901760
    %3723 = vmatmul.mubr.f32.gmra.mxu0 %v3722
    %v3724 = vpop.f32.mrf.mxu0
    %v3725 = vadd.f32 %v3516, %v3724
    %v3726 = vpop.f32.mrf.mxu0
    %3727 = vdwg.mxu0
    %3728 = vmatprep.subr.mxu0 0.0
    %v3729 = vand.u32 %v252, 4294901760
    %3730 = vmatpush1.msra.mxu0 %v3729
    %3731 = vmatprep.subr.mxu0 0.0
    %v3732 = vand.u32 %v251, 4294901760
    %3733 = vmatpush1.msra.mxu0 %v3732
    %3734 = vmatprep.subr.mxu0 0.0
    %v3735 = vand.u32 %v250, 4294901760
    %3736 = vmatpush1.msra.mxu0 %v3735
    %3737 = vmatprep.subr.mxu0 0.0
    %v3738 = vand.u32 %v249, 4294901760
    %3739 = vmatpush1.msra.mxu0 %v3738
    %3740 = vmatprep.subr.mxu0 0.0
    %v3741 = vand.u32 %v248, 4294901760
    %3742 = vmatpush1.msra.mxu0 %v3741
    %3743 = vmatprep.subr.mxu0 0.0
    %v3744 = vand.u32 %v247, 4294901760
    %3745 = vmatpush1.msra.mxu0 %v3744
    %3746 = vmatprep.subr.mxu0 0.0
    %v3747 = vand.u32 %v246, 4294901760
    %3748 = vmatpush1.msra.mxu0 %v3747
    %3749 = vmatprep.subr.mxu0 0.0
    %v3750 = vand.u32 %v245, 4294901760
    %3751 = vmatpush1.msra.mxu0 %v3750
    %3752 = vmatprep.subr.mxu0 0.0
    %v3753 = vand.u32 %v244, 4294901760
    %3754 = vmatpush1.msra.mxu0 %v3753
    %3755 = vmatprep.subr.mxu0 0.0
    %v3756 = vand.u32 %v243, 4294901760
    %3757 = vmatpush1.msra.mxu0 %v3756
    %3758 = vmatprep.subr.mxu0 0.0
    %v3759 = vand.u32 %v242, 4294901760
    %3760 = vmatpush1.msra.mxu0 %v3759
    %3761 = vmatprep.subr.mxu0 0.0
    %v3762 = vand.u32 %v241, 4294901760
    %3763 = vmatpush1.msra.mxu0 %v3762
    %3764 = vmatprep.subr.mxu0 0.0
    %v3765 = vand.u32 %v240, 4294901760
    %3766 = vmatpush1.msra.mxu0 %v3765
    %3767 = vmatprep.subr.mxu0 0.0
    %v3768 = vand.u32 %v239, 4294901760
    %3769 = vmatpush1.msra.mxu0 %v3768
    %3770 = vmatprep.subr.mxu0 0.0
    %v3771 = vand.u32 %v238, 4294901760
    %3772 = vmatpush1.msra.mxu0 %v3771
    %3773 = vmatprep.subr.mxu0 0.0
    %v3774 = vand.u32 %v237, 4294901760
    %3775 = vmatpush1.msra.mxu0 %v3774
    %3776 = vmatprep.subr.mxu0 0.0
    %v3777 = vand.u32 %v268, 4294901760
    %3778 = vmatpush2.msra.mxu0 %v3777
    %3779 = vmatprep.subr.mxu0 0.0
    %v3780 = vand.u32 %v267, 4294901760
    %3781 = vmatpush2.msra.mxu0 %v3780
    %3782 = vmatprep.subr.mxu0 0.0
    %v3783 = vand.u32 %v266, 4294901760
    %3784 = vmatpush2.msra.mxu0 %v3783
    %3785 = vmatprep.subr.mxu0 0.0
    %v3786 = vand.u32 %v265, 4294901760
    %3787 = vmatpush2.msra.mxu0 %v3786
    %3788 = vmatprep.subr.mxu0 0.0
    %v3789 = vand.u32 %v264, 4294901760
    %3790 = vmatpush2.msra.mxu0 %v3789
    %3791 = vmatprep.subr.mxu0 0.0
    %v3792 = vand.u32 %v263, 4294901760
    %3793 = vmatpush2.msra.mxu0 %v3792
    %3794 = vmatprep.subr.mxu0 0.0
    %v3795 = vand.u32 %v262, 4294901760
    %3796 = vmatpush2.msra.mxu0 %v3795
    %3797 = vmatprep.subr.mxu0 0.0
    %v3798 = vand.u32 %v261, 4294901760
    %3799 = vmatpush2.msra.mxu0 %v3798
    %3800 = vmatprep.subr.mxu0 0.0
    %v3801 = vand.u32 %v260, 4294901760
    %3802 = vmatpush2.msra.mxu0 %v3801
    %3803 = vmatprep.subr.mxu0 0.0
    %v3804 = vand.u32 %v259, 4294901760
    %3805 = vmatpush2.msra.mxu0 %v3804
    %3806 = vmatprep.subr.mxu0 0.0
    %v3807 = vand.u32 %v258, 4294901760
    %3808 = vmatpush2.msra.mxu0 %v3807
    %3809 = vmatprep.subr.mxu0 0.0
    %v3810 = vand.u32 %v257, 4294901760
    %3811 = vmatpush2.msra.mxu0 %v3810
    %3812 = vmatprep.subr.mxu0 0.0
    %v3813 = vand.u32 %v256, 4294901760
    %3814 = vmatpush2.msra.mxu0 %v3813
    %3815 = vmatprep.subr.mxu0 0.0
    %v3816 = vand.u32 %v255, 4294901760
    %3817 = vmatpush2.msra.mxu0 %v3816
    %3818 = vmatprep.subr.mxu0 0.0
    %v3819 = vand.u32 %v254, 4294901760
    %3820 = vmatpush2.msra.mxu0 %v3819
    %3821 = vmatprep.subr.mxu0 0.0
    %v3822 = vand.u32 %v253, 4294901760
    %3823 = vmatpush2.msra.mxu0 %v3822
    %v3824 = vand.u32 %v104, 4294901760
    %v3825 = vsub.f32 %v104, %v3824
    %v3826 = vand.u32 %v3825, 4294901760
    %v3827 = vsub.f32 %v3825, %v3826
    %v3828 = vand.u32 %v3827, 4294901760
    %3829 = vmatprep.mubr.f32.mxu0 %v3828
    %v3830 = vand.u32 %v88, 4294901760
    %v3831 = vsub.f32 %v88, %v3830
    %v3832 = vand.u32 %v3831, 4294901760
    %v3833 = vsub.f32 %v3831, %v3832
    %v3834 = vand.u32 %v3833, 4294901760
    %3835 = vmatmul.mubr.f32.gmra.mxu0 %v3834
    %v3836 = vpop.f32.mrf.mxu0
    %v3837 = vadd.f32 %v3620, %v3836
    %v3838 = vpop.f32.mrf.mxu0
    %v3839 = vand.u32 %v105, 4294901760
    %v3840 = vsub.f32 %v105, %v3839
    %v3841 = vand.u32 %v3840, 4294901760
    %v3842 = vsub.f32 %v3840, %v3841
    %v3843 = vand.u32 %v3842, 4294901760
    %3844 = vmatprep.mubr.f32.mxu0 %v3843
    %v3845 = vand.u32 %v89, 4294901760
    %v3846 = vsub.f32 %v89, %v3845
    %v3847 = vand.u32 %v3846, 4294901760
    %v3848 = vsub.f32 %v3846, %v3847
    %v3849 = vand.u32 %v3848, 4294901760
    %3850 = vmatmul.mubr.f32.gmra.mxu0 %v3849
    %v3851 = vpop.f32.mrf.mxu0
    %v3852 = vadd.f32 %v3627, %v3851
    %v3853 = vpop.f32.mrf.mxu0
    %v3854 = vand.u32 %v106, 4294901760
    %v3855 = vsub.f32 %v106, %v3854
    %v3856 = vand.u32 %v3855, 4294901760
    %v3857 = vsub.f32 %v3855, %v3856
    %v3858 = vand.u32 %v3857, 4294901760
    %3859 = vmatprep.mubr.f32.mxu0 %v3858
    %v3860 = vand.u32 %v90, 4294901760
    %v3861 = vsub.f32 %v90, %v3860
    %v3862 = vand.u32 %v3861, 4294901760
    %v3863 = vsub.f32 %v3861, %v3862
    %v3864 = vand.u32 %v3863, 4294901760
    %3865 = vmatmul.mubr.f32.gmra.mxu0 %v3864
    %v3866 = vpop.f32.mrf.mxu0
    %v3867 = vadd.f32 %v3634, %v3866
    %v3868 = vpop.f32.mrf.mxu0
    %v3869 = vand.u32 %v107, 4294901760
    %v3870 = vsub.f32 %v107, %v3869
    %v3871 = vand.u32 %v3870, 4294901760
    %v3872 = vsub.f32 %v3870, %v3871
    %v3873 = vand.u32 %v3872, 4294901760
    %3874 = vmatprep.mubr.f32.mxu0 %v3873
    %v3875 = vand.u32 %v91, 4294901760
    %v3876 = vsub.f32 %v91, %v3875
    %v3877 = vand.u32 %v3876, 4294901760
    %v3878 = vsub.f32 %v3876, %v3877
    %v3879 = vand.u32 %v3878, 4294901760
    %3880 = vmatmul.mubr.f32.gmra.mxu0 %v3879
    %v3881 = vpop.f32.mrf.mxu0
    %v3882 = vadd.f32 %v3641, %v3881
    %v3883 = vpop.f32.mrf.mxu0
    %v3884 = vand.u32 %v108, 4294901760
    %v3885 = vsub.f32 %v108, %v3884
    %v3886 = vand.u32 %v3885, 4294901760
    %v3887 = vsub.f32 %v3885, %v3886
    %v3888 = vand.u32 %v3887, 4294901760
    %3889 = vmatprep.mubr.f32.mxu0 %v3888
    %v3890 = vand.u32 %v92, 4294901760
    %v3891 = vsub.f32 %v92, %v3890
    %v3892 = vand.u32 %v3891, 4294901760
    %v3893 = vsub.f32 %v3891, %v3892
    %v3894 = vand.u32 %v3893, 4294901760
    %3895 = vmatmul.mubr.f32.gmra.mxu0 %v3894
    %v3896 = vpop.f32.mrf.mxu0
    %v3897 = vadd.f32 %v3648, %v3896
    %v3898 = vpop.f32.mrf.mxu0
    %v3899 = vand.u32 %v109, 4294901760
    %v3900 = vsub.f32 %v109, %v3899
    %v3901 = vand.u32 %v3900, 4294901760
    %v3902 = vsub.f32 %v3900, %v3901
    %v3903 = vand.u32 %v3902, 4294901760
    %3904 = vmatprep.mubr.f32.mxu0 %v3903
    %v3905 = vand.u32 %v93, 4294901760
    %v3906 = vsub.f32 %v93, %v3905
    %v3907 = vand.u32 %v3906, 4294901760
    %v3908 = vsub.f32 %v3906, %v3907
    %v3909 = vand.u32 %v3908, 4294901760
    %3910 = vmatmul.mubr.f32.gmra.mxu0 %v3909
    %v3911 = vpop.f32.mrf.mxu0
    %v3912 = vadd.f32 %v3655, %v3911
    %v3913 = vpop.f32.mrf.mxu0
    %v3914 = vand.u32 %v110, 4294901760
    %v3915 = vsub.f32 %v110, %v3914
    %v3916 = vand.u32 %v3915, 4294901760
    %v3917 = vsub.f32 %v3915, %v3916
    %v3918 = vand.u32 %v3917, 4294901760
    %3919 = vmatprep.mubr.f32.mxu0 %v3918
    %v3920 = vand.u32 %v94, 4294901760
    %v3921 = vsub.f32 %v94, %v3920
    %v3922 = vand.u32 %v3921, 4294901760
    %v3923 = vsub.f32 %v3921, %v3922
    %v3924 = vand.u32 %v3923, 4294901760
    %3925 = vmatmul.mubr.f32.gmra.mxu0 %v3924
    %v3926 = vpop.f32.mrf.mxu0
    %v3927 = vadd.f32 %v3662, %v3926
    %v3928 = vpop.f32.mrf.mxu0
    %v3929 = vand.u32 %v111, 4294901760
    %v3930 = vsub.f32 %v111, %v3929
    %v3931 = vand.u32 %v3930, 4294901760
    %v3932 = vsub.f32 %v3930, %v3931
    %v3933 = vand.u32 %v3932, 4294901760
    %3934 = vmatprep.mubr.f32.mxu0 %v3933
    %v3935 = vand.u32 %v95, 4294901760
    %v3936 = vsub.f32 %v95, %v3935
    %v3937 = vand.u32 %v3936, 4294901760
    %v3938 = vsub.f32 %v3936, %v3937
    %v3939 = vand.u32 %v3938, 4294901760
    %3940 = vmatmul.mubr.f32.gmra.mxu0 %v3939
    %v3941 = vpop.f32.mrf.mxu0
    %v3942 = vadd.f32 %v3669, %v3941
    %v3943 = vpop.f32.mrf.mxu0
    %v3944 = vand.u32 %v112, 4294901760
    %v3945 = vsub.f32 %v112, %v3944
    %v3946 = vand.u32 %v3945, 4294901760
    %v3947 = vsub.f32 %v3945, %v3946
    %v3948 = vand.u32 %v3947, 4294901760
    %3949 = vmatprep.mubr.f32.mxu0 %v3948
    %v3950 = vand.u32 %v96, 4294901760
    %v3951 = vsub.f32 %v96, %v3950
    %v3952 = vand.u32 %v3951, 4294901760
    %v3953 = vsub.f32 %v3951, %v3952
    %v3954 = vand.u32 %v3953, 4294901760
    %3955 = vmatmul.mubr.f32.gmra.mxu0 %v3954
    %v3956 = vpop.f32.mrf.mxu0
    %v3957 = vadd.f32 %v3676, %v3956
    %v3958 = vpop.f32.mrf.mxu0
    %v3959 = vand.u32 %v113, 4294901760
    %v3960 = vsub.f32 %v113, %v3959
    %v3961 = vand.u32 %v3960, 4294901760
    %v3962 = vsub.f32 %v3960, %v3961
    %v3963 = vand.u32 %v3962, 4294901760
    %3964 = vmatprep.mubr.f32.mxu0 %v3963
    %v3965 = vand.u32 %v97, 4294901760
    %v3966 = vsub.f32 %v97, %v3965
    %v3967 = vand.u32 %v3966, 4294901760
    %v3968 = vsub.f32 %v3966, %v3967
    %v3969 = vand.u32 %v3968, 4294901760
    %3970 = vmatmul.mubr.f32.gmra.mxu0 %v3969
    %v3971 = vpop.f32.mrf.mxu0
    %v3972 = vadd.f32 %v3683, %v3971
    %v3973 = vpop.f32.mrf.mxu0
    %v3974 = vand.u32 %v114, 4294901760
    %v3975 = vsub.f32 %v114, %v3974
    %v3976 = vand.u32 %v3975, 4294901760
    %v3977 = vsub.f32 %v3975, %v3976
    %v3978 = vand.u32 %v3977, 4294901760
    %3979 = vmatprep.mubr.f32.mxu0 %v3978
    %v3980 = vand.u32 %v98, 4294901760
    %v3981 = vsub.f32 %v98, %v3980
    %v3982 = vand.u32 %v3981, 4294901760
    %v3983 = vsub.f32 %v3981, %v3982
    %v3984 = vand.u32 %v3983, 4294901760
    %3985 = vmatmul.mubr.f32.gmra.mxu0 %v3984
    %v3986 = vpop.f32.mrf.mxu0
    %v3987 = vadd.f32 %v3690, %v3986
    %v3988 = vpop.f32.mrf.mxu0
    %v3989 = vand.u32 %v115, 4294901760
    %v3990 = vsub.f32 %v115, %v3989
    %v3991 = vand.u32 %v3990, 4294901760
    %v3992 = vsub.f32 %v3990, %v3991
    %v3993 = vand.u32 %v3992, 4294901760
    %3994 = vmatprep.mubr.f32.mxu0 %v3993
    %v3995 = vand.u32 %v99, 4294901760
    %v3996 = vsub.f32 %v99, %v3995
    %v3997 = vand.u32 %v3996, 4294901760
    %v3998 = vsub.f32 %v3996, %v3997
    %v3999 = vand.u32 %v3998, 4294901760
    %4000 = vmatmul.mubr.f32.gmra.mxu0 %v3999
    %v4001 = vpop.f32.mrf.mxu0
    %v4002 = vadd.f32 %v3697, %v4001
    %v4003 = vpop.f32.mrf.mxu0
    %v4004 = vand.u32 %v116, 4294901760
    %v4005 = vsub.f32 %v116, %v4004
    %v4006 = vand.u32 %v4005, 4294901760
    %v4007 = vsub.f32 %v4005, %v4006
    %v4008 = vand.u32 %v4007, 4294901760
    %4009 = vmatprep.mubr.f32.mxu0 %v4008
    %v4010 = vand.u32 %v100, 4294901760
    %v4011 = vsub.f32 %v100, %v4010
    %v4012 = vand.u32 %v4011, 4294901760
    %v4013 = vsub.f32 %v4011, %v4012
    %v4014 = vand.u32 %v4013, 4294901760
    %4015 = vmatmul.mubr.f32.gmra.mxu0 %v4014
    %v4016 = vpop.f32.mrf.mxu0
    %v4017 = vadd.f32 %v3704, %v4016
    %v4018 = vpop.f32.mrf.mxu0
    %v4019 = vand.u32 %v117, 4294901760
    %v4020 = vsub.f32 %v117, %v4019
    %v4021 = vand.u32 %v4020, 4294901760
    %v4022 = vsub.f32 %v4020, %v4021
    %v4023 = vand.u32 %v4022, 4294901760
    %4024 = vmatprep.mubr.f32.mxu0 %v4023
    %v4025 = vand.u32 %v101, 4294901760
    %v4026 = vsub.f32 %v101, %v4025
    %v4027 = vand.u32 %v4026, 4294901760
    %v4028 = vsub.f32 %v4026, %v4027
    %v4029 = vand.u32 %v4028, 4294901760
    %4030 = vmatmul.mubr.f32.gmra.mxu0 %v4029
    %v4031 = vpop.f32.mrf.mxu0
    %v4032 = vadd.f32 %v3711, %v4031
    %v4033 = vpop.f32.mrf.mxu0
    %v4034 = vand.u32 %v118, 4294901760
    %v4035 = vsub.f32 %v118, %v4034
    %v4036 = vand.u32 %v4035, 4294901760
    %v4037 = vsub.f32 %v4035, %v4036
    %v4038 = vand.u32 %v4037, 4294901760
    %4039 = vmatprep.mubr.f32.mxu0 %v4038
    %v4040 = vand.u32 %v102, 4294901760
    %v4041 = vsub.f32 %v102, %v4040
    %v4042 = vand.u32 %v4041, 4294901760
    %v4043 = vsub.f32 %v4041, %v4042
    %v4044 = vand.u32 %v4043, 4294901760
    %4045 = vmatmul.mubr.f32.gmra.mxu0 %v4044
    %v4046 = vpop.f32.mrf.mxu0
    %v4047 = vadd.f32 %v3718, %v4046
    %v4048 = vpop.f32.mrf.mxu0
    %v4049 = vand.u32 %v119, 4294901760
    %v4050 = vsub.f32 %v119, %v4049
    %v4051 = vand.u32 %v4050, 4294901760
    %v4052 = vsub.f32 %v4050, %v4051
    %v4053 = vand.u32 %v4052, 4294901760
    %4054 = vmatprep.mubr.f32.mxu0 %v4053
    %v4055 = vand.u32 %v103, 4294901760
    %v4056 = vsub.f32 %v103, %v4055
    %v4057 = vand.u32 %v4056, 4294901760
    %v4058 = vsub.f32 %v4056, %v4057
    %v4059 = vand.u32 %v4058, 4294901760
    %4060 = vmatmul.mubr.f32.gmra.mxu0 %v4059
    %v4061 = vpop.f32.mrf.mxu0
    %v4062 = vadd.f32 %v3725, %v4061
    %v4063 = vpop.f32.mrf.mxu0
    %4064 = vdwg.mxu0
    %4065 = vmatprep.subr.mxu0 0.0
    %v4066 = vand.u32 %v252, 4294901760
    %v4067 = vsub.f32 %v252, %v4066
    %v4068 = vand.u32 %v4067, 4294901760
    %v4069 = vsub.f32 %v4067, %v4068
    %v4070 = vand.u32 %v4069, 4294901760
    %4071 = vmatpush1.msra.mxu0 %v4070
    %4072 = vmatprep.subr.mxu0 0.0
    %v4073 = vand.u32 %v251, 4294901760
    %v4074 = vsub.f32 %v251, %v4073
    %v4075 = vand.u32 %v4074, 4294901760
    %v4076 = vsub.f32 %v4074, %v4075
    %v4077 = vand.u32 %v4076, 4294901760
    %4078 = vmatpush1.msra.mxu0 %v4077
    %4079 = vmatprep.subr.mxu0 0.0
    %v4080 = vand.u32 %v250, 4294901760
    %v4081 = vsub.f32 %v250, %v4080
    %v4082 = vand.u32 %v4081, 4294901760
    %v4083 = vsub.f32 %v4081, %v4082
    %v4084 = vand.u32 %v4083, 4294901760
    %4085 = vmatpush1.msra.mxu0 %v4084
    %4086 = vmatprep.subr.mxu0 0.0
    %v4087 = vand.u32 %v249, 4294901760
    %v4088 = vsub.f32 %v249, %v4087
    %v4089 = vand.u32 %v4088, 4294901760
    %v4090 = vsub.f32 %v4088, %v4089
    %v4091 = vand.u32 %v4090, 4294901760
    %4092 = vmatpush1.msra.mxu0 %v4091
    %4093 = vmatprep.subr.mxu0 0.0
    %v4094 = vand.u32 %v248, 4294901760
    %v4095 = vsub.f32 %v248, %v4094
    %v4096 = vand.u32 %v4095, 4294901760
    %v4097 = vsub.f32 %v4095, %v4096
    %v4098 = vand.u32 %v4097, 4294901760
    %4099 = vmatpush1.msra.mxu0 %v4098
    %4100 = vmatprep.subr.mxu0 0.0
    %v4101 = vand.u32 %v247, 4294901760
    %v4102 = vsub.f32 %v247, %v4101
    %v4103 = vand.u32 %v4102, 4294901760
    %v4104 = vsub.f32 %v4102, %v4103
    %v4105 = vand.u32 %v4104, 4294901760
    %4106 = vmatpush1.msra.mxu0 %v4105
    %4107 = vmatprep.subr.mxu0 0.0
    %v4108 = vand.u32 %v246, 4294901760
    %v4109 = vsub.f32 %v246, %v4108
    %v4110 = vand.u32 %v4109, 4294901760
    %v4111 = vsub.f32 %v4109, %v4110
    %v4112 = vand.u32 %v4111, 4294901760
    %4113 = vmatpush1.msra.mxu0 %v4112
    %4114 = vmatprep.subr.mxu0 0.0
    %v4115 = vand.u32 %v245, 4294901760
    %v4116 = vsub.f32 %v245, %v4115
    %v4117 = vand.u32 %v4116, 4294901760
    %v4118 = vsub.f32 %v4116, %v4117
    %v4119 = vand.u32 %v4118, 4294901760
    %4120 = vmatpush1.msra.mxu0 %v4119
    %4121 = vmatprep.subr.mxu0 0.0
    %v4122 = vand.u32 %v244, 4294901760
    %v4123 = vsub.f32 %v244, %v4122
    %v4124 = vand.u32 %v4123, 4294901760
    %v4125 = vsub.f32 %v4123, %v4124
    %v4126 = vand.u32 %v4125, 4294901760
    %4127 = vmatpush1.msra.mxu0 %v4126
    %4128 = vmatprep.subr.mxu0 0.0
    %v4129 = vand.u32 %v243, 4294901760
    %v4130 = vsub.f32 %v243, %v4129
    %v4131 = vand.u32 %v4130, 4294901760
    %v4132 = vsub.f32 %v4130, %v4131
    %v4133 = vand.u32 %v4132, 4294901760
    %4134 = vmatpush1.msra.mxu0 %v4133
    %4135 = vmatprep.subr.mxu0 0.0
    %v4136 = vand.u32 %v242, 4294901760
    %v4137 = vsub.f32 %v242, %v4136
    %v4138 = vand.u32 %v4137, 4294901760
    %v4139 = vsub.f32 %v4137, %v4138
    %v4140 = vand.u32 %v4139, 4294901760
    %4141 = vmatpush1.msra.mxu0 %v4140
    %4142 = vmatprep.subr.mxu0 0.0
    %v4143 = vand.u32 %v241, 4294901760
    %v4144 = vsub.f32 %v241, %v4143
    %v4145 = vand.u32 %v4144, 4294901760
    %v4146 = vsub.f32 %v4144, %v4145
    %v4147 = vand.u32 %v4146, 4294901760
    %4148 = vmatpush1.msra.mxu0 %v4147
    %4149 = vmatprep.subr.mxu0 0.0
    %v4150 = vand.u32 %v240, 4294901760
    %v4151 = vsub.f32 %v240, %v4150
    %v4152 = vand.u32 %v4151, 4294901760
    %v4153 = vsub.f32 %v4151, %v4152
    %v4154 = vand.u32 %v4153, 4294901760
    %4155 = vmatpush1.msra.mxu0 %v4154
    %4156 = vmatprep.subr.mxu0 0.0
    %v4157 = vand.u32 %v239, 4294901760
    %v4158 = vsub.f32 %v239, %v4157
    %v4159 = vand.u32 %v4158, 4294901760
    %v4160 = vsub.f32 %v4158, %v4159
    %v4161 = vand.u32 %v4160, 4294901760
    %4162 = vmatpush1.msra.mxu0 %v4161
    %4163 = vmatprep.subr.mxu0 0.0
    %v4164 = vand.u32 %v238, 4294901760
    %v4165 = vsub.f32 %v238, %v4164
    %v4166 = vand.u32 %v4165, 4294901760
    %v4167 = vsub.f32 %v4165, %v4166
    %v4168 = vand.u32 %v4167, 4294901760
    %4169 = vmatpush1.msra.mxu0 %v4168
    %4170 = vmatprep.subr.mxu0 0.0
    %v4171 = vand.u32 %v237, 4294901760
    %v4172 = vsub.f32 %v237, %v4171
    %v4173 = vand.u32 %v4172, 4294901760
    %v4174 = vsub.f32 %v4172, %v4173
    %v4175 = vand.u32 %v4174, 4294901760
    %4176 = vmatpush1.msra.mxu0 %v4175
    %4177 = vmatprep.subr.mxu0 0.0
    %v4178 = vand.u32 %v268, 4294901760
    %v4179 = vsub.f32 %v268, %v4178
    %v4180 = vand.u32 %v4179, 4294901760
    %v4181 = vsub.f32 %v4179, %v4180
    %v4182 = vand.u32 %v4181, 4294901760
    %4183 = vmatpush2.msra.mxu0 %v4182
    %4184 = vmatprep.subr.mxu0 0.0
    %v4185 = vand.u32 %v267, 4294901760
    %v4186 = vsub.f32 %v267, %v4185
    %v4187 = vand.u32 %v4186, 4294901760
    %v4188 = vsub.f32 %v4186, %v4187
    %v4189 = vand.u32 %v4188, 4294901760
    %4190 = vmatpush2.msra.mxu0 %v4189
    %4191 = vmatprep.subr.mxu0 0.0
    %v4192 = vand.u32 %v266, 4294901760
    %v4193 = vsub.f32 %v266, %v4192
    %v4194 = vand.u32 %v4193, 4294901760
    %v4195 = vsub.f32 %v4193, %v4194
    %v4196 = vand.u32 %v4195, 4294901760
    %4197 = vmatpush2.msra.mxu0 %v4196
    %4198 = vmatprep.subr.mxu0 0.0
    %v4199 = vand.u32 %v265, 4294901760
    %v4200 = vsub.f32 %v265, %v4199
    %v4201 = vand.u32 %v4200, 4294901760
    %v4202 = vsub.f32 %v4200, %v4201
    %v4203 = vand.u32 %v4202, 4294901760
    %4204 = vmatpush2.msra.mxu0 %v4203
    %4205 = vmatprep.subr.mxu0 0.0
    %v4206 = vand.u32 %v264, 4294901760
    %v4207 = vsub.f32 %v264, %v4206
    %v4208 = vand.u32 %v4207, 4294901760
    %v4209 = vsub.f32 %v4207, %v4208
    %v4210 = vand.u32 %v4209, 4294901760
    %4211 = vmatpush2.msra.mxu0 %v4210
    %4212 = vmatprep.subr.mxu0 0.0
    %v4213 = vand.u32 %v263, 4294901760
    %v4214 = vsub.f32 %v263, %v4213
    %v4215 = vand.u32 %v4214, 4294901760
    %v4216 = vsub.f32 %v4214, %v4215
    %v4217 = vand.u32 %v4216, 4294901760
    %4218 = vmatpush2.msra.mxu0 %v4217
    %4219 = vmatprep.subr.mxu0 0.0
    %v4220 = vand.u32 %v262, 4294901760
    %v4221 = vsub.f32 %v262, %v4220
    %v4222 = vand.u32 %v4221, 4294901760
    %v4223 = vsub.f32 %v4221, %v4222
    %v4224 = vand.u32 %v4223, 4294901760
    %4225 = vmatpush2.msra.mxu0 %v4224
    %4226 = vmatprep.subr.mxu0 0.0
    %v4227 = vand.u32 %v261, 4294901760
    %v4228 = vsub.f32 %v261, %v4227
    %v4229 = vand.u32 %v4228, 4294901760
    %v4230 = vsub.f32 %v4228, %v4229
    %v4231 = vand.u32 %v4230, 4294901760
    %4232 = vmatpush2.msra.mxu0 %v4231
    %4233 = vmatprep.subr.mxu0 0.0
    %v4234 = vand.u32 %v260, 4294901760
    %v4235 = vsub.f32 %v260, %v4234
    %v4236 = vand.u32 %v4235, 4294901760
    %v4237 = vsub.f32 %v4235, %v4236
    %v4238 = vand.u32 %v4237, 4294901760
    %4239 = vmatpush2.msra.mxu0 %v4238
    %4240 = vmatprep.subr.mxu0 0.0
    %v4241 = vand.u32 %v259, 4294901760
    %v4242 = vsub.f32 %v259, %v4241
    %v4243 = vand.u32 %v4242, 4294901760
    %v4244 = vsub.f32 %v4242, %v4243
    %v4245 = vand.u32 %v4244, 4294901760
    %4246 = vmatpush2.msra.mxu0 %v4245
    %4247 = vmatprep.subr.mxu0 0.0
    %v4248 = vand.u32 %v258, 4294901760
    %v4249 = vsub.f32 %v258, %v4248
    %v4250 = vand.u32 %v4249, 4294901760
    %v4251 = vsub.f32 %v4249, %v4250
    %v4252 = vand.u32 %v4251, 4294901760
    %4253 = vmatpush2.msra.mxu0 %v4252
    %4254 = vmatprep.subr.mxu0 0.0
    %v4255 = vand.u32 %v257, 4294901760
    %v4256 = vsub.f32 %v257, %v4255
    %v4257 = vand.u32 %v4256, 4294901760
    %v4258 = vsub.f32 %v4256, %v4257
    %v4259 = vand.u32 %v4258, 4294901760
    %4260 = vmatpush2.msra.mxu0 %v4259
    %4261 = vmatprep.subr.mxu0 0.0
    %v4262 = vand.u32 %v256, 4294901760
    %v4263 = vsub.f32 %v256, %v4262
    %v4264 = vand.u32 %v4263, 4294901760
    %v4265 = vsub.f32 %v4263, %v4264
    %v4266 = vand.u32 %v4265, 4294901760
    %4267 = vmatpush2.msra.mxu0 %v4266
    %4268 = vmatprep.subr.mxu0 0.0
    %v4269 = vand.u32 %v255, 4294901760
    %v4270 = vsub.f32 %v255, %v4269
    %v4271 = vand.u32 %v4270, 4294901760
    %v4272 = vsub.f32 %v4270, %v4271
    %v4273 = vand.u32 %v4272, 4294901760
    %4274 = vmatpush2.msra.mxu0 %v4273
    %4275 = vmatprep.subr.mxu0 0.0
    %v4276 = vand.u32 %v254, 4294901760
    %v4277 = vsub.f32 %v254, %v4276
    %v4278 = vand.u32 %v4277, 4294901760
    %v4279 = vsub.f32 %v4277, %v4278
    %v4280 = vand.u32 %v4279, 4294901760
    %4281 = vmatpush2.msra.mxu0 %v4280
    %4282 = vmatprep.subr.mxu0 0.0
    %v4283 = vand.u32 %v253, 4294901760
    %v4284 = vsub.f32 %v253, %v4283
    %v4285 = vand.u32 %v4284, 4294901760
    %v4286 = vsub.f32 %v4284, %v4285
    %v4287 = vand.u32 %v4286, 4294901760
    %4288 = vmatpush2.msra.mxu0 %v4287
    %v4289 = vand.u32 %v104, 4294901760
    %4290 = vmatprep.mubr.f32.mxu0 %v4289
    %v4291 = vand.u32 %v88, 4294901760
    %4292 = vmatmul.mubr.f32.gmra.mxu0 %v4291
    %v4293 = vpop.f32.mrf.mxu0
    %v4294 = vadd.f32 %v3837, %v4293
    %v4295 = vpop.f32.mrf.mxu0
    %v4296 = vand.u32 %v105, 4294901760
    %4297 = vmatprep.mubr.f32.mxu0 %v4296
    %v4298 = vand.u32 %v89, 4294901760
    %4299 = vmatmul.mubr.f32.gmra.mxu0 %v4298
    %v4300 = vpop.f32.mrf.mxu0
    %v4301 = vadd.f32 %v3852, %v4300
    %v4302 = vpop.f32.mrf.mxu0
    %v4303 = vand.u32 %v106, 4294901760
    %4304 = vmatprep.mubr.f32.mxu0 %v4303
    %v4305 = vand.u32 %v90, 4294901760
    %4306 = vmatmul.mubr.f32.gmra.mxu0 %v4305
    %v4307 = vpop.f32.mrf.mxu0
    %v4308 = vadd.f32 %v3867, %v4307
    %v4309 = vpop.f32.mrf.mxu0
    %v4310 = vand.u32 %v107, 4294901760
    %4311 = vmatprep.mubr.f32.mxu0 %v4310
    %v4312 = vand.u32 %v91, 4294901760
    %4313 = vmatmul.mubr.f32.gmra.mxu0 %v4312
    %v4314 = vpop.f32.mrf.mxu0
    %v4315 = vadd.f32 %v3882, %v4314
    %v4316 = vpop.f32.mrf.mxu0
    %v4317 = vand.u32 %v108, 4294901760
    %4318 = vmatprep.mubr.f32.mxu0 %v4317
    %v4319 = vand.u32 %v92, 4294901760
    %4320 = vmatmul.mubr.f32.gmra.mxu0 %v4319
    %v4321 = vpop.f32.mrf.mxu0
    %v4322 = vadd.f32 %v3897, %v4321
    %v4323 = vpop.f32.mrf.mxu0
    %v4324 = vand.u32 %v109, 4294901760
    %4325 = vmatprep.mubr.f32.mxu0 %v4324
    %v4326 = vand.u32 %v93, 4294901760
    %4327 = vmatmul.mubr.f32.gmra.mxu0 %v4326
    %v4328 = vpop.f32.mrf.mxu0
    %v4329 = vadd.f32 %v3912, %v4328
    %v4330 = vpop.f32.mrf.mxu0
    %v4331 = vand.u32 %v110, 4294901760
    %4332 = vmatprep.mubr.f32.mxu0 %v4331
    %v4333 = vand.u32 %v94, 4294901760
    %4334 = vmatmul.mubr.f32.gmra.mxu0 %v4333
    %v4335 = vpop.f32.mrf.mxu0
    %v4336 = vadd.f32 %v3927, %v4335
    %v4337 = vpop.f32.mrf.mxu0
    %v4338 = vand.u32 %v111, 4294901760
    %4339 = vmatprep.mubr.f32.mxu0 %v4338
    %v4340 = vand.u32 %v95, 4294901760
    %4341 = vmatmul.mubr.f32.gmra.mxu0 %v4340
    %v4342 = vpop.f32.mrf.mxu0
    %v4343 = vadd.f32 %v3942, %v4342
    %v4344 = vpop.f32.mrf.mxu0
    %v4345 = vand.u32 %v112, 4294901760
    %4346 = vmatprep.mubr.f32.mxu0 %v4345
    %v4347 = vand.u32 %v96, 4294901760
    %4348 = vmatmul.mubr.f32.gmra.mxu0 %v4347
    %v4349 = vpop.f32.mrf.mxu0
    %v4350 = vadd.f32 %v3957, %v4349
    %v4351 = vpop.f32.mrf.mxu0
    %v4352 = vand.u32 %v113, 4294901760
    %4353 = vmatprep.mubr.f32.mxu0 %v4352
    %v4354 = vand.u32 %v97, 4294901760
    %4355 = vmatmul.mubr.f32.gmra.mxu0 %v4354
    %v4356 = vpop.f32.mrf.mxu0
    %v4357 = vadd.f32 %v3972, %v4356
    %v4358 = vpop.f32.mrf.mxu0
    %v4359 = vand.u32 %v114, 4294901760
    %4360 = vmatprep.mubr.f32.mxu0 %v4359
    %v4361 = vand.u32 %v98, 4294901760
    %4362 = vmatmul.mubr.f32.gmra.mxu0 %v4361
    %v4363 = vpop.f32.mrf.mxu0
    %v4364 = vadd.f32 %v3987, %v4363
    %v4365 = vpop.f32.mrf.mxu0
    %v4366 = vand.u32 %v115, 4294901760
    %4367 = vmatprep.mubr.f32.mxu0 %v4366
    %v4368 = vand.u32 %v99, 4294901760
    %4369 = vmatmul.mubr.f32.gmra.mxu0 %v4368
    %v4370 = vpop.f32.mrf.mxu0
    %v4371 = vadd.f32 %v4002, %v4370
    %v4372 = vpop.f32.mrf.mxu0
    %v4373 = vand.u32 %v116, 4294901760
    %4374 = vmatprep.mubr.f32.mxu0 %v4373
    %v4375 = vand.u32 %v100, 4294901760
    %4376 = vmatmul.mubr.f32.gmra.mxu0 %v4375
    %v4377 = vpop.f32.mrf.mxu0
    %v4378 = vadd.f32 %v4017, %v4377
    %v4379 = vpop.f32.mrf.mxu0
    %v4380 = vand.u32 %v117, 4294901760
    %4381 = vmatprep.mubr.f32.mxu0 %v4380
    %v4382 = vand.u32 %v101, 4294901760
    %4383 = vmatmul.mubr.f32.gmra.mxu0 %v4382
    %v4384 = vpop.f32.mrf.mxu0
    %v4385 = vadd.f32 %v4032, %v4384
    %v4386 = vpop.f32.mrf.mxu0
    %v4387 = vand.u32 %v118, 4294901760
    %4388 = vmatprep.mubr.f32.mxu0 %v4387
    %v4389 = vand.u32 %v102, 4294901760
    %4390 = vmatmul.mubr.f32.gmra.mxu0 %v4389
    %v4391 = vpop.f32.mrf.mxu0
    %v4392 = vadd.f32 %v4047, %v4391
    %v4393 = vpop.f32.mrf.mxu0
    %v4394 = vand.u32 %v119, 4294901760
    %4395 = vmatprep.mubr.f32.mxu0 %v4394
    %v4396 = vand.u32 %v103, 4294901760
    %4397 = vmatmul.mubr.f32.gmra.mxu0 %v4396
    %v4398 = vpop.f32.mrf.mxu0
    %v4399 = vadd.f32 %v4062, %v4398
    %v4400 = vpop.f32.mrf.mxu0
    %4401 = vdwg.mxu0
    %4402 = vmatprep.subr.mxu0 0.0
    %v4403 = vand.u32 %v252, 4294901760
    %v4404 = vsub.f32 %v252, %v4403
    %4405 = vmatpush1.msra.mxu0 %v4404
    %4406 = vmatprep.subr.mxu0 0.0
    %v4407 = vand.u32 %v251, 4294901760
    %v4408 = vsub.f32 %v251, %v4407
    %4409 = vmatpush1.msra.mxu0 %v4408
    %4410 = vmatprep.subr.mxu0 0.0
    %v4411 = vand.u32 %v250, 4294901760
    %v4412 = vsub.f32 %v250, %v4411
    %4413 = vmatpush1.msra.mxu0 %v4412
    %4414 = vmatprep.subr.mxu0 0.0
    %v4415 = vand.u32 %v249, 4294901760
    %v4416 = vsub.f32 %v249, %v4415
    %4417 = vmatpush1.msra.mxu0 %v4416
    %4418 = vmatprep.subr.mxu0 0.0
    %v4419 = vand.u32 %v248, 4294901760
    %v4420 = vsub.f32 %v248, %v4419
    %4421 = vmatpush1.msra.mxu0 %v4420
    %4422 = vmatprep.subr.mxu0 0.0
    %v4423 = vand.u32 %v247, 4294901760
    %v4424 = vsub.f32 %v247, %v4423
    %4425 = vmatpush1.msra.mxu0 %v4424
    %4426 = vmatprep.subr.mxu0 0.0
    %v4427 = vand.u32 %v246, 4294901760
    %v4428 = vsub.f32 %v246, %v4427
    %4429 = vmatpush1.msra.mxu0 %v4428
    %4430 = vmatprep.subr.mxu0 0.0
    %v4431 = vand.u32 %v245, 4294901760
    %v4432 = vsub.f32 %v245, %v4431
    %4433 = vmatpush1.msra.mxu0 %v4432
    %4434 = vmatprep.subr.mxu0 0.0
    %v4435 = vand.u32 %v244, 4294901760
    %v4436 = vsub.f32 %v244, %v4435
    %4437 = vmatpush1.msra.mxu0 %v4436
    %4438 = vmatprep.subr.mxu0 0.0
    %v4439 = vand.u32 %v243, 4294901760
    %v4440 = vsub.f32 %v243, %v4439
    %4441 = vmatpush1.msra.mxu0 %v4440
    %4442 = vmatprep.subr.mxu0 0.0
    %v4443 = vand.u32 %v242, 4294901760
    %v4444 = vsub.f32 %v242, %v4443
    %4445 = vmatpush1.msra.mxu0 %v4444
    %4446 = vmatprep.subr.mxu0 0.0
    %v4447 = vand.u32 %v241, 4294901760
    %v4448 = vsub.f32 %v241, %v4447
    %4449 = vmatpush1.msra.mxu0 %v4448
    %4450 = vmatprep.subr.mxu0 0.0
    %v4451 = vand.u32 %v240, 4294901760
    %v4452 = vsub.f32 %v240, %v4451
    %4453 = vmatpush1.msra.mxu0 %v4452
    %4454 = vmatprep.subr.mxu0 0.0
    %v4455 = vand.u32 %v239, 4294901760
    %v4456 = vsub.f32 %v239, %v4455
    %4457 = vmatpush1.msra.mxu0 %v4456
    %4458 = vmatprep.subr.mxu0 0.0
    %v4459 = vand.u32 %v238, 4294901760
    %v4460 = vsub.f32 %v238, %v4459
    %4461 = vmatpush1.msra.mxu0 %v4460
    %4462 = vmatprep.subr.mxu0 0.0
    %v4463 = vand.u32 %v237, 4294901760
    %v4464 = vsub.f32 %v237, %v4463
    %4465 = vmatpush1.msra.mxu0 %v4464
    %4466 = vmatprep.subr.mxu0 0.0
    %v4467 = vand.u32 %v268, 4294901760
    %v4468 = vsub.f32 %v268, %v4467
    %4469 = vmatpush2.msra.mxu0 %v4468
    %4470 = vmatprep.subr.mxu0 0.0
    %v4471 = vand.u32 %v267, 4294901760
    %v4472 = vsub.f32 %v267, %v4471
    %4473 = vmatpush2.msra.mxu0 %v4472
    %4474 = vmatprep.subr.mxu0 0.0
    %v4475 = vand.u32 %v266, 4294901760
    %v4476 = vsub.f32 %v266, %v4475
    %4477 = vmatpush2.msra.mxu0 %v4476
    %4478 = vmatprep.subr.mxu0 0.0
    %v4479 = vand.u32 %v265, 4294901760
    %v4480 = vsub.f32 %v265, %v4479
    %4481 = vmatpush2.msra.mxu0 %v4480
    %4482 = vmatprep.subr.mxu0 0.0
    %v4483 = vand.u32 %v264, 4294901760
    %v4484 = vsub.f32 %v264, %v4483
    %4485 = vmatpush2.msra.mxu0 %v4484
    %4486 = vmatprep.subr.mxu0 0.0
    %v4487 = vand.u32 %v263, 4294901760
    %v4488 = vsub.f32 %v263, %v4487
    %4489 = vmatpush2.msra.mxu0 %v4488
    %4490 = vmatprep.subr.mxu0 0.0
    %v4491 = vand.u32 %v262, 4294901760
    %v4492 = vsub.f32 %v262, %v4491
    %4493 = vmatpush2.msra.mxu0 %v4492
    %4494 = vmatprep.subr.mxu0 0.0
    %v4495 = vand.u32 %v261, 4294901760
    %v4496 = vsub.f32 %v261, %v4495
    %4497 = vmatpush2.msra.mxu0 %v4496
    %4498 = vmatprep.subr.mxu0 0.0
    %v4499 = vand.u32 %v260, 4294901760
    %v4500 = vsub.f32 %v260, %v4499
    %4501 = vmatpush2.msra.mxu0 %v4500
    %4502 = vmatprep.subr.mxu0 0.0
    %v4503 = vand.u32 %v259, 4294901760
    %v4504 = vsub.f32 %v259, %v4503
    %4505 = vmatpush2.msra.mxu0 %v4504
    %4506 = vmatprep.subr.mxu0 0.0
    %v4507 = vand.u32 %v258, 4294901760
    %v4508 = vsub.f32 %v258, %v4507
    %4509 = vmatpush2.msra.mxu0 %v4508
    %4510 = vmatprep.subr.mxu0 0.0
    %v4511 = vand.u32 %v257, 4294901760
    %v4512 = vsub.f32 %v257, %v4511
    %4513 = vmatpush2.msra.mxu0 %v4512
    %4514 = vmatprep.subr.mxu0 0.0
    %v4515 = vand.u32 %v256, 4294901760
    %v4516 = vsub.f32 %v256, %v4515
    %4517 = vmatpush2.msra.mxu0 %v4516
    %4518 = vmatprep.subr.mxu0 0.0
    %v4519 = vand.u32 %v255, 4294901760
    %v4520 = vsub.f32 %v255, %v4519
    %4521 = vmatpush2.msra.mxu0 %v4520
    %4522 = vmatprep.subr.mxu0 0.0
    %v4523 = vand.u32 %v254, 4294901760
    %v4524 = vsub.f32 %v254, %v4523
    %4525 = vmatpush2.msra.mxu0 %v4524
    %4526 = vmatprep.subr.mxu0 0.0
    %v4527 = vand.u32 %v253, 4294901760
    %v4528 = vsub.f32 %v253, %v4527
    %4529 = vmatpush2.msra.mxu0 %v4528
    %v4530 = vand.u32 %v104, 4294901760
    %v4531 = vsub.f32 %v104, %v4530
    %4532 = vmatprep.mubr.f32.mxu0 %v4531
    %v4533 = vand.u32 %v88, 4294901760
    %v4534 = vsub.f32 %v88, %v4533
    %4535 = vmatmul.mubr.f32.gmra.mxu0 %v4534
    %v4536 = vpop.f32.mrf.mxu0
    %v4537 = vadd.f32 %v4294, %v4536
    %v4538 = vpop.f32.mrf.mxu0
    %v4539 = vand.u32 %v105, 4294901760
    %v4540 = vsub.f32 %v105, %v4539
    %4541 = vmatprep.mubr.f32.mxu0 %v4540
    %v4542 = vand.u32 %v89, 4294901760
    %v4543 = vsub.f32 %v89, %v4542
    %4544 = vmatmul.mubr.f32.gmra.mxu0 %v4543
    %v4545 = vpop.f32.mrf.mxu0
    %v4546 = vadd.f32 %v4301, %v4545
    %v4547 = vpop.f32.mrf.mxu0
    %v4548 = vand.u32 %v106, 4294901760
    %v4549 = vsub.f32 %v106, %v4548
    %4550 = vmatprep.mubr.f32.mxu0 %v4549
    %v4551 = vand.u32 %v90, 4294901760
    %v4552 = vsub.f32 %v90, %v4551
    %4553 = vmatmul.mubr.f32.gmra.mxu0 %v4552
    %v4554 = vpop.f32.mrf.mxu0
    %v4555 = vadd.f32 %v4308, %v4554
    %v4556 = vpop.f32.mrf.mxu0
    %v4557 = vand.u32 %v107, 4294901760
    %v4558 = vsub.f32 %v107, %v4557
    %4559 = vmatprep.mubr.f32.mxu0 %v4558
    %v4560 = vand.u32 %v91, 4294901760
    %v4561 = vsub.f32 %v91, %v4560
    %4562 = vmatmul.mubr.f32.gmra.mxu0 %v4561
    %v4563 = vpop.f32.mrf.mxu0
    %v4564 = vadd.f32 %v4315, %v4563
    %v4565 = vpop.f32.mrf.mxu0
    %v4566 = vand.u32 %v108, 4294901760
    %v4567 = vsub.f32 %v108, %v4566
    %4568 = vmatprep.mubr.f32.mxu0 %v4567
    %v4569 = vand.u32 %v92, 4294901760
    %v4570 = vsub.f32 %v92, %v4569
    %4571 = vmatmul.mubr.f32.gmra.mxu0 %v4570
    %v4572 = vpop.f32.mrf.mxu0
    %v4573 = vadd.f32 %v4322, %v4572
    %v4574 = vpop.f32.mrf.mxu0
    %v4575 = vand.u32 %v109, 4294901760
    %v4576 = vsub.f32 %v109, %v4575
    %4577 = vmatprep.mubr.f32.mxu0 %v4576
    %v4578 = vand.u32 %v93, 4294901760
    %v4579 = vsub.f32 %v93, %v4578
    %4580 = vmatmul.mubr.f32.gmra.mxu0 %v4579
    %v4581 = vpop.f32.mrf.mxu0
    %v4582 = vadd.f32 %v4329, %v4581
    %v4583 = vpop.f32.mrf.mxu0
    %v4584 = vand.u32 %v110, 4294901760
    %v4585 = vsub.f32 %v110, %v4584
    %4586 = vmatprep.mubr.f32.mxu0 %v4585
    %v4587 = vand.u32 %v94, 4294901760
    %v4588 = vsub.f32 %v94, %v4587
    %4589 = vmatmul.mubr.f32.gmra.mxu0 %v4588
    %v4590 = vpop.f32.mrf.mxu0
    %v4591 = vadd.f32 %v4336, %v4590
    %v4592 = vpop.f32.mrf.mxu0
    %v4593 = vand.u32 %v111, 4294901760
    %v4594 = vsub.f32 %v111, %v4593
    %4595 = vmatprep.mubr.f32.mxu0 %v4594
    %v4596 = vand.u32 %v95, 4294901760
    %v4597 = vsub.f32 %v95, %v4596
    %4598 = vmatmul.mubr.f32.gmra.mxu0 %v4597
    %v4599 = vpop.f32.mrf.mxu0
    %v4600 = vadd.f32 %v4343, %v4599
    %v4601 = vpop.f32.mrf.mxu0
    %v4602 = vand.u32 %v112, 4294901760
    %v4603 = vsub.f32 %v112, %v4602
    %4604 = vmatprep.mubr.f32.mxu0 %v4603
    %v4605 = vand.u32 %v96, 4294901760
    %v4606 = vsub.f32 %v96, %v4605
    %4607 = vmatmul.mubr.f32.gmra.mxu0 %v4606
    %v4608 = vpop.f32.mrf.mxu0
    %v4609 = vadd.f32 %v4350, %v4608
    %v4610 = vpop.f32.mrf.mxu0
    %v4611 = vand.u32 %v113, 4294901760
    %v4612 = vsub.f32 %v113, %v4611
    %4613 = vmatprep.mubr.f32.mxu0 %v4612
    %v4614 = vand.u32 %v97, 4294901760
    %v4615 = vsub.f32 %v97, %v4614
    %4616 = vmatmul.mubr.f32.gmra.mxu0 %v4615
    %v4617 = vpop.f32.mrf.mxu0
    %v4618 = vadd.f32 %v4357, %v4617
    %v4619 = vpop.f32.mrf.mxu0
    %v4620 = vand.u32 %v114, 4294901760
    %v4621 = vsub.f32 %v114, %v4620
    %4622 = vmatprep.mubr.f32.mxu0 %v4621
    %v4623 = vand.u32 %v98, 4294901760
    %v4624 = vsub.f32 %v98, %v4623
    %4625 = vmatmul.mubr.f32.gmra.mxu0 %v4624
    %v4626 = vpop.f32.mrf.mxu0
    %v4627 = vadd.f32 %v4364, %v4626
    %v4628 = vpop.f32.mrf.mxu0
    %v4629 = vand.u32 %v115, 4294901760
    %v4630 = vsub.f32 %v115, %v4629
    %4631 = vmatprep.mubr.f32.mxu0 %v4630
    %v4632 = vand.u32 %v99, 4294901760
    %v4633 = vsub.f32 %v99, %v4632
    %4634 = vmatmul.mubr.f32.gmra.mxu0 %v4633
    %v4635 = vpop.f32.mrf.mxu0
    %v4636 = vadd.f32 %v4371, %v4635
    %v4637 = vpop.f32.mrf.mxu0
    %v4638 = vand.u32 %v116, 4294901760
    %v4639 = vsub.f32 %v116, %v4638
    %4640 = vmatprep.mubr.f32.mxu0 %v4639
    %v4641 = vand.u32 %v100, 4294901760
    %v4642 = vsub.f32 %v100, %v4641
    %4643 = vmatmul.mubr.f32.gmra.mxu0 %v4642
    %v4644 = vpop.f32.mrf.mxu0
    %v4645 = vadd.f32 %v4378, %v4644
    %v4646 = vpop.f32.mrf.mxu0
    %v4647 = vand.u32 %v117, 4294901760
    %v4648 = vsub.f32 %v117, %v4647
    %4649 = vmatprep.mubr.f32.mxu0 %v4648
    %v4650 = vand.u32 %v101, 4294901760
    %v4651 = vsub.f32 %v101, %v4650
    %4652 = vmatmul.mubr.f32.gmra.mxu0 %v4651
    %v4653 = vpop.f32.mrf.mxu0
    %v4654 = vadd.f32 %v4385, %v4653
    %v4655 = vpop.f32.mrf.mxu0
    %v4656 = vand.u32 %v118, 4294901760
    %v4657 = vsub.f32 %v118, %v4656
    %4658 = vmatprep.mubr.f32.mxu0 %v4657
    %v4659 = vand.u32 %v102, 4294901760
    %v4660 = vsub.f32 %v102, %v4659
    %4661 = vmatmul.mubr.f32.gmra.mxu0 %v4660
    %v4662 = vpop.f32.mrf.mxu0
    %v4663 = vadd.f32 %v4392, %v4662
    %v4664 = vpop.f32.mrf.mxu0
    %v4665 = vand.u32 %v119, 4294901760
    %v4666 = vsub.f32 %v119, %v4665
    %4667 = vmatprep.mubr.f32.mxu0 %v4666
    %v4668 = vand.u32 %v103, 4294901760
    %v4669 = vsub.f32 %v103, %v4668
    %4670 = vmatmul.mubr.f32.gmra.mxu0 %v4669
    %v4671 = vpop.f32.mrf.mxu0
    %v4672 = vadd.f32 %v4399, %v4671
    %v4673 = vpop.f32.mrf.mxu0
    %4674 = vdwg.mxu0
    %4675 = vmatprep.subr.mxu0 0.0
    %v4676 = vand.u32 %v252, 4294901760
    %4677 = vmatpush1.msra.mxu0 %v4676
    %4678 = vmatprep.subr.mxu0 0.0
    %v4679 = vand.u32 %v251, 4294901760
    %4680 = vmatpush1.msra.mxu0 %v4679
    %4681 = vmatprep.subr.mxu0 0.0
    %v4682 = vand.u32 %v250, 4294901760
    %4683 = vmatpush1.msra.mxu0 %v4682
    %4684 = vmatprep.subr.mxu0 0.0
    %v4685 = vand.u32 %v249, 4294901760
    %4686 = vmatpush1.msra.mxu0 %v4685
    %4687 = vmatprep.subr.mxu0 0.0
    %v4688 = vand.u32 %v248, 4294901760
    %4689 = vmatpush1.msra.mxu0 %v4688
    %4690 = vmatprep.subr.mxu0 0.0
    %v4691 = vand.u32 %v247, 4294901760
    %4692 = vmatpush1.msra.mxu0 %v4691
    %4693 = vmatprep.subr.mxu0 0.0
    %v4694 = vand.u32 %v246, 4294901760
    %4695 = vmatpush1.msra.mxu0 %v4694
    %4696 = vmatprep.subr.mxu0 0.0
    %v4697 = vand.u32 %v245, 4294901760
    %4698 = vmatpush1.msra.mxu0 %v4697
    %4699 = vmatprep.subr.mxu0 0.0
    %v4700 = vand.u32 %v244, 4294901760
    %4701 = vmatpush1.msra.mxu0 %v4700
    %4702 = vmatprep.subr.mxu0 0.0
    %v4703 = vand.u32 %v243, 4294901760
    %4704 = vmatpush1.msra.mxu0 %v4703
    %4705 = vmatprep.subr.mxu0 0.0
    %v4706 = vand.u32 %v242, 4294901760
    %4707 = vmatpush1.msra.mxu0 %v4706
    %4708 = vmatprep.subr.mxu0 0.0
    %v4709 = vand.u32 %v241, 4294901760
    %4710 = vmatpush1.msra.mxu0 %v4709
    %4711 = vmatprep.subr.mxu0 0.0
    %v4712 = vand.u32 %v240, 4294901760
    %4713 = vmatpush1.msra.mxu0 %v4712
    %4714 = vmatprep.subr.mxu0 0.0
    %v4715 = vand.u32 %v239, 4294901760
    %4716 = vmatpush1.msra.mxu0 %v4715
    %4717 = vmatprep.subr.mxu0 0.0
    %v4718 = vand.u32 %v238, 4294901760
    %4719 = vmatpush1.msra.mxu0 %v4718
    %4720 = vmatprep.subr.mxu0 0.0
    %v4721 = vand.u32 %v237, 4294901760
    %4722 = vmatpush1.msra.mxu0 %v4721
    %4723 = vmatprep.subr.mxu0 0.0
    %v4724 = vand.u32 %v268, 4294901760
    %4725 = vmatpush2.msra.mxu0 %v4724
    %4726 = vmatprep.subr.mxu0 0.0
    %v4727 = vand.u32 %v267, 4294901760
    %4728 = vmatpush2.msra.mxu0 %v4727
    %4729 = vmatprep.subr.mxu0 0.0
    %v4730 = vand.u32 %v266, 4294901760
    %4731 = vmatpush2.msra.mxu0 %v4730
    %4732 = vmatprep.subr.mxu0 0.0
    %v4733 = vand.u32 %v265, 4294901760
    %4734 = vmatpush2.msra.mxu0 %v4733
    %4735 = vmatprep.subr.mxu0 0.0
    %v4736 = vand.u32 %v264, 4294901760
    %4737 = vmatpush2.msra.mxu0 %v4736
    %4738 = vmatprep.subr.mxu0 0.0
    %v4739 = vand.u32 %v263, 4294901760
    %4740 = vmatpush2.msra.mxu0 %v4739
    %4741 = vmatprep.subr.mxu0 0.0
    %v4742 = vand.u32 %v262, 4294901760
    %4743 = vmatpush2.msra.mxu0 %v4742
    %4744 = vmatprep.subr.mxu0 0.0
    %v4745 = vand.u32 %v261, 4294901760
    %4746 = vmatpush2.msra.mxu0 %v4745
    %4747 = vmatprep.subr.mxu0 0.0
    %v4748 = vand.u32 %v260, 4294901760
    %4749 = vmatpush2.msra.mxu0 %v4748
    %4750 = vmatprep.subr.mxu0 0.0
    %v4751 = vand.u32 %v259, 4294901760
    %4752 = vmatpush2.msra.mxu0 %v4751
    %4753 = vmatprep.subr.mxu0 0.0
    %v4754 = vand.u32 %v258, 4294901760
    %4755 = vmatpush2.msra.mxu0 %v4754
    %4756 = vmatprep.subr.mxu0 0.0
    %v4757 = vand.u32 %v257, 4294901760
    %4758 = vmatpush2.msra.mxu0 %v4757
    %4759 = vmatprep.subr.mxu0 0.0
    %v4760 = vand.u32 %v256, 4294901760
    %4761 = vmatpush2.msra.mxu0 %v4760
    %4762 = vmatprep.subr.mxu0 0.0
    %v4763 = vand.u32 %v255, 4294901760
    %4764 = vmatpush2.msra.mxu0 %v4763
    %4765 = vmatprep.subr.mxu0 0.0
    %v4766 = vand.u32 %v254, 4294901760
    %4767 = vmatpush2.msra.mxu0 %v4766
    %4768 = vmatprep.subr.mxu0 0.0
    %v4769 = vand.u32 %v253, 4294901760
    %4770 = vmatpush2.msra.mxu0 %v4769
    %v4771 = vand.u32 %v104, 4294901760
    %v4772 = vsub.f32 %v104, %v4771
    %v4773 = vand.u32 %v4772, 4294901760
    %4774 = vmatprep.mubr.f32.mxu0 %v4773
    %v4775 = vand.u32 %v88, 4294901760
    %v4776 = vsub.f32 %v88, %v4775
    %v4777 = vand.u32 %v4776, 4294901760
    %4778 = vmatmul.mubr.f32.gmra.mxu0 %v4777
    %v4779 = vpop.f32.mrf.mxu0
    %v4780 = vadd.f32 %v4537, %v4779
    %v4781 = vpop.f32.mrf.mxu0
    %v4782 = vand.u32 %v105, 4294901760
    %v4783 = vsub.f32 %v105, %v4782
    %v4784 = vand.u32 %v4783, 4294901760
    %4785 = vmatprep.mubr.f32.mxu0 %v4784
    %v4786 = vand.u32 %v89, 4294901760
    %v4787 = vsub.f32 %v89, %v4786
    %v4788 = vand.u32 %v4787, 4294901760
    %4789 = vmatmul.mubr.f32.gmra.mxu0 %v4788
    %v4790 = vpop.f32.mrf.mxu0
    %v4791 = vadd.f32 %v4546, %v4790
    %v4792 = vpop.f32.mrf.mxu0
    %v4793 = vand.u32 %v106, 4294901760
    %v4794 = vsub.f32 %v106, %v4793
    %v4795 = vand.u32 %v4794, 4294901760
    %4796 = vmatprep.mubr.f32.mxu0 %v4795
    %v4797 = vand.u32 %v90, 4294901760
    %v4798 = vsub.f32 %v90, %v4797
    %v4799 = vand.u32 %v4798, 4294901760
    %4800 = vmatmul.mubr.f32.gmra.mxu0 %v4799
    %v4801 = vpop.f32.mrf.mxu0
    %v4802 = vadd.f32 %v4555, %v4801
    %v4803 = vpop.f32.mrf.mxu0
    %v4804 = vand.u32 %v107, 4294901760
    %v4805 = vsub.f32 %v107, %v4804
    %v4806 = vand.u32 %v4805, 4294901760
    %4807 = vmatprep.mubr.f32.mxu0 %v4806
    %v4808 = vand.u32 %v91, 4294901760
    %v4809 = vsub.f32 %v91, %v4808
    %v4810 = vand.u32 %v4809, 4294901760
    %4811 = vmatmul.mubr.f32.gmra.mxu0 %v4810
    %v4812 = vpop.f32.mrf.mxu0
    %v4813 = vadd.f32 %v4564, %v4812
    %v4814 = vpop.f32.mrf.mxu0
    %v4815 = vand.u32 %v108, 4294901760
    %v4816 = vsub.f32 %v108, %v4815
    %v4817 = vand.u32 %v4816, 4294901760
    %4818 = vmatprep.mubr.f32.mxu0 %v4817
    %v4819 = vand.u32 %v92, 4294901760
    %v4820 = vsub.f32 %v92, %v4819
    %v4821 = vand.u32 %v4820, 4294901760
    %4822 = vmatmul.mubr.f32.gmra.mxu0 %v4821
    %v4823 = vpop.f32.mrf.mxu0
    %v4824 = vadd.f32 %v4573, %v4823
    %v4825 = vpop.f32.mrf.mxu0
    %v4826 = vand.u32 %v109, 4294901760
    %v4827 = vsub.f32 %v109, %v4826
    %v4828 = vand.u32 %v4827, 4294901760
    %4829 = vmatprep.mubr.f32.mxu0 %v4828
    %v4830 = vand.u32 %v93, 4294901760
    %v4831 = vsub.f32 %v93, %v4830
    %v4832 = vand.u32 %v4831, 4294901760
    %4833 = vmatmul.mubr.f32.gmra.mxu0 %v4832
    %v4834 = vpop.f32.mrf.mxu0
    %v4835 = vadd.f32 %v4582, %v4834
    %v4836 = vpop.f32.mrf.mxu0
    %v4837 = vand.u32 %v110, 4294901760
    %v4838 = vsub.f32 %v110, %v4837
    %v4839 = vand.u32 %v4838, 4294901760
    %4840 = vmatprep.mubr.f32.mxu0 %v4839
    %v4841 = vand.u32 %v94, 4294901760
    %v4842 = vsub.f32 %v94, %v4841
    %v4843 = vand.u32 %v4842, 4294901760
    %4844 = vmatmul.mubr.f32.gmra.mxu0 %v4843
    %v4845 = vpop.f32.mrf.mxu0
    %v4846 = vadd.f32 %v4591, %v4845
    %v4847 = vpop.f32.mrf.mxu0
    %v4848 = vand.u32 %v111, 4294901760
    %v4849 = vsub.f32 %v111, %v4848
    %v4850 = vand.u32 %v4849, 4294901760
    %4851 = vmatprep.mubr.f32.mxu0 %v4850
    %v4852 = vand.u32 %v95, 4294901760
    %v4853 = vsub.f32 %v95, %v4852
    %v4854 = vand.u32 %v4853, 4294901760
    %4855 = vmatmul.mubr.f32.gmra.mxu0 %v4854
    %v4856 = vpop.f32.mrf.mxu0
    %v4857 = vadd.f32 %v4600, %v4856
    %v4858 = vpop.f32.mrf.mxu0
    %v4859 = vand.u32 %v112, 4294901760
    %v4860 = vsub.f32 %v112, %v4859
    %v4861 = vand.u32 %v4860, 4294901760
    %4862 = vmatprep.mubr.f32.mxu0 %v4861
    %v4863 = vand.u32 %v96, 4294901760
    %v4864 = vsub.f32 %v96, %v4863
    %v4865 = vand.u32 %v4864, 4294901760
    %4866 = vmatmul.mubr.f32.gmra.mxu0 %v4865
    %v4867 = vpop.f32.mrf.mxu0
    %v4868 = vadd.f32 %v4609, %v4867
    %v4869 = vpop.f32.mrf.mxu0
    %v4870 = vand.u32 %v113, 4294901760
    %v4871 = vsub.f32 %v113, %v4870
    %v4872 = vand.u32 %v4871, 4294901760
    %4873 = vmatprep.mubr.f32.mxu0 %v4872
    %v4874 = vand.u32 %v97, 4294901760
    %v4875 = vsub.f32 %v97, %v4874
    %v4876 = vand.u32 %v4875, 4294901760
    %4877 = vmatmul.mubr.f32.gmra.mxu0 %v4876
    %v4878 = vpop.f32.mrf.mxu0
    %v4879 = vadd.f32 %v4618, %v4878
    %v4880 = vpop.f32.mrf.mxu0
    %v4881 = vand.u32 %v114, 4294901760
    %v4882 = vsub.f32 %v114, %v4881
    %v4883 = vand.u32 %v4882, 4294901760
    %4884 = vmatprep.mubr.f32.mxu0 %v4883
    %v4885 = vand.u32 %v98, 4294901760
    %v4886 = vsub.f32 %v98, %v4885
    %v4887 = vand.u32 %v4886, 4294901760
    %4888 = vmatmul.mubr.f32.gmra.mxu0 %v4887
    %v4889 = vpop.f32.mrf.mxu0
    %v4890 = vadd.f32 %v4627, %v4889
    %v4891 = vpop.f32.mrf.mxu0
    %v4892 = vand.u32 %v115, 4294901760
    %v4893 = vsub.f32 %v115, %v4892
    %v4894 = vand.u32 %v4893, 4294901760
    %4895 = vmatprep.mubr.f32.mxu0 %v4894
    %v4896 = vand.u32 %v99, 4294901760
    %v4897 = vsub.f32 %v99, %v4896
    %v4898 = vand.u32 %v4897, 4294901760
    %4899 = vmatmul.mubr.f32.gmra.mxu0 %v4898
    %v4900 = vpop.f32.mrf.mxu0
    %v4901 = vadd.f32 %v4636, %v4900
    %v4902 = vpop.f32.mrf.mxu0
    %v4903 = vand.u32 %v116, 4294901760
    %v4904 = vsub.f32 %v116, %v4903
    %v4905 = vand.u32 %v4904, 4294901760
    %4906 = vmatprep.mubr.f32.mxu0 %v4905
    %v4907 = vand.u32 %v100, 4294901760
    %v4908 = vsub.f32 %v100, %v4907
    %v4909 = vand.u32 %v4908, 4294901760
    %4910 = vmatmul.mubr.f32.gmra.mxu0 %v4909
    %v4911 = vpop.f32.mrf.mxu0
    %v4912 = vadd.f32 %v4645, %v4911
    %v4913 = vpop.f32.mrf.mxu0
    %v4914 = vand.u32 %v117, 4294901760
    %v4915 = vsub.f32 %v117, %v4914
    %v4916 = vand.u32 %v4915, 4294901760
    %4917 = vmatprep.mubr.f32.mxu0 %v4916
    %v4918 = vand.u32 %v101, 4294901760
    %v4919 = vsub.f32 %v101, %v4918
    %v4920 = vand.u32 %v4919, 4294901760
    %4921 = vmatmul.mubr.f32.gmra.mxu0 %v4920
    %v4922 = vpop.f32.mrf.mxu0
    %v4923 = vadd.f32 %v4654, %v4922
    %v4924 = vpop.f32.mrf.mxu0
    %v4925 = vand.u32 %v118, 4294901760
    %v4926 = vsub.f32 %v118, %v4925
    %v4927 = vand.u32 %v4926, 4294901760
    %4928 = vmatprep.mubr.f32.mxu0 %v4927
    %v4929 = vand.u32 %v102, 4294901760
    %v4930 = vsub.f32 %v102, %v4929
    %v4931 = vand.u32 %v4930, 4294901760
    %4932 = vmatmul.mubr.f32.gmra.mxu0 %v4931
    %v4933 = vpop.f32.mrf.mxu0
    %v4934 = vadd.f32 %v4663, %v4933
    %v4935 = vpop.f32.mrf.mxu0
    %v4936 = vand.u32 %v119, 4294901760
    %v4937 = vsub.f32 %v119, %v4936
    %v4938 = vand.u32 %v4937, 4294901760
    %4939 = vmatprep.mubr.f32.mxu0 %v4938
    %v4940 = vand.u32 %v103, 4294901760
    %v4941 = vsub.f32 %v103, %v4940
    %v4942 = vand.u32 %v4941, 4294901760
    %4943 = vmatmul.mubr.f32.gmra.mxu0 %v4942
    %v4944 = vpop.f32.mrf.mxu0
    %v4945 = vadd.f32 %v4672, %v4944
    %v4946 = vpop.f32.mrf.mxu0
    %4947 = vdwg.mxu0
    %4948 = vmatprep.subr.mxu0 0.0
    %v4949 = vand.u32 %v252, 4294901760
    %v4950 = vsub.f32 %v252, %v4949
    %v4951 = vand.u32 %v4950, 4294901760
    %4952 = vmatpush1.msra.mxu0 %v4951
    %4953 = vmatprep.subr.mxu0 0.0
    %v4954 = vand.u32 %v251, 4294901760
    %v4955 = vsub.f32 %v251, %v4954
    %v4956 = vand.u32 %v4955, 4294901760
    %4957 = vmatpush1.msra.mxu0 %v4956
    %4958 = vmatprep.subr.mxu0 0.0
    %v4959 = vand.u32 %v250, 4294901760
    %v4960 = vsub.f32 %v250, %v4959
    %v4961 = vand.u32 %v4960, 4294901760
    %4962 = vmatpush1.msra.mxu0 %v4961
    %4963 = vmatprep.subr.mxu0 0.0
    %v4964 = vand.u32 %v249, 4294901760
    %v4965 = vsub.f32 %v249, %v4964
    %v4966 = vand.u32 %v4965, 4294901760
    %4967 = vmatpush1.msra.mxu0 %v4966
    %4968 = vmatprep.subr.mxu0 0.0
    %v4969 = vand.u32 %v248, 4294901760
    %v4970 = vsub.f32 %v248, %v4969
    %v4971 = vand.u32 %v4970, 4294901760
    %4972 = vmatpush1.msra.mxu0 %v4971
    %4973 = vmatprep.subr.mxu0 0.0
    %v4974 = vand.u32 %v247, 4294901760
    %v4975 = vsub.f32 %v247, %v4974
    %v4976 = vand.u32 %v4975, 4294901760
    %4977 = vmatpush1.msra.mxu0 %v4976
    %4978 = vmatprep.subr.mxu0 0.0
    %v4979 = vand.u32 %v246, 4294901760
    %v4980 = vsub.f32 %v246, %v4979
    %v4981 = vand.u32 %v4980, 4294901760
    %4982 = vmatpush1.msra.mxu0 %v4981
    %4983 = vmatprep.subr.mxu0 0.0
    %v4984 = vand.u32 %v245, 4294901760
    %v4985 = vsub.f32 %v245, %v4984
    %v4986 = vand.u32 %v4985, 4294901760
    %4987 = vmatpush1.msra.mxu0 %v4986
    %4988 = vmatprep.subr.mxu0 0.0
    %v4989 = vand.u32 %v244, 4294901760
    %v4990 = vsub.f32 %v244, %v4989
    %v4991 = vand.u32 %v4990, 4294901760
    %4992 = vmatpush1.msra.mxu0 %v4991
    %4993 = vmatprep.subr.mxu0 0.0
    %v4994 = vand.u32 %v243, 4294901760
    %v4995 = vsub.f32 %v243, %v4994
    %v4996 = vand.u32 %v4995, 4294901760
    %4997 = vmatpush1.msra.mxu0 %v4996
    %4998 = vmatprep.subr.mxu0 0.0
    %v4999 = vand.u32 %v242, 4294901760
    %v5000 = vsub.f32 %v242, %v4999
    %v5001 = vand.u32 %v5000, 4294901760
    %5002 = vmatpush1.msra.mxu0 %v5001
    %5003 = vmatprep.subr.mxu0 0.0
    %v5004 = vand.u32 %v241, 4294901760
    %v5005 = vsub.f32 %v241, %v5004
    %v5006 = vand.u32 %v5005, 4294901760
    %5007 = vmatpush1.msra.mxu0 %v5006
    %5008 = vmatprep.subr.mxu0 0.0
    %v5009 = vand.u32 %v240, 4294901760
    %v5010 = vsub.f32 %v240, %v5009
    %v5011 = vand.u32 %v5010, 4294901760
    %5012 = vmatpush1.msra.mxu0 %v5011
    %5013 = vmatprep.subr.mxu0 0.0
    %v5014 = vand.u32 %v239, 4294901760
    %v5015 = vsub.f32 %v239, %v5014
    %v5016 = vand.u32 %v5015, 4294901760
    %5017 = vmatpush1.msra.mxu0 %v5016
    %5018 = vmatprep.subr.mxu0 0.0
    %v5019 = vand.u32 %v238, 4294901760
    %v5020 = vsub.f32 %v238, %v5019
    %v5021 = vand.u32 %v5020, 4294901760
    %5022 = vmatpush1.msra.mxu0 %v5021
    %5023 = vmatprep.subr.mxu0 0.0
    %v5024 = vand.u32 %v237, 4294901760
    %v5025 = vsub.f32 %v237, %v5024
    %v5026 = vand.u32 %v5025, 4294901760
    %5027 = vmatpush1.msra.mxu0 %v5026
    %5028 = vmatprep.subr.mxu0 0.0
    %v5029 = vand.u32 %v268, 4294901760
    %v5030 = vsub.f32 %v268, %v5029
    %v5031 = vand.u32 %v5030, 4294901760
    %5032 = vmatpush2.msra.mxu0 %v5031
    %5033 = vmatprep.subr.mxu0 0.0
    %v5034 = vand.u32 %v267, 4294901760
    %v5035 = vsub.f32 %v267, %v5034
    %v5036 = vand.u32 %v5035, 4294901760
    %5037 = vmatpush2.msra.mxu0 %v5036
    %5038 = vmatprep.subr.mxu0 0.0
    %v5039 = vand.u32 %v266, 4294901760
    %v5040 = vsub.f32 %v266, %v5039
    %v5041 = vand.u32 %v5040, 4294901760
    %5042 = vmatpush2.msra.mxu0 %v5041
    %5043 = vmatprep.subr.mxu0 0.0
    %v5044 = vand.u32 %v265, 4294901760
    %v5045 = vsub.f32 %v265, %v5044
    %v5046 = vand.u32 %v5045, 4294901760
    %5047 = vmatpush2.msra.mxu0 %v5046
    %5048 = vmatprep.subr.mxu0 0.0
    %v5049 = vand.u32 %v264, 4294901760
    %v5050 = vsub.f32 %v264, %v5049
    %v5051 = vand.u32 %v5050, 4294901760
    %5052 = vmatpush2.msra.mxu0 %v5051
    %5053 = vmatprep.subr.mxu0 0.0
    %v5054 = vand.u32 %v263, 4294901760
    %v5055 = vsub.f32 %v263, %v5054
    %v5056 = vand.u32 %v5055, 4294901760
    %5057 = vmatpush2.msra.mxu0 %v5056
    %5058 = vmatprep.subr.mxu0 0.0
    %v5059 = vand.u32 %v262, 4294901760
    %v5060 = vsub.f32 %v262, %v5059
    %v5061 = vand.u32 %v5060, 4294901760
    %5062 = vmatpush2.msra.mxu0 %v5061
    %5063 = vmatprep.subr.mxu0 0.0
    %v5064 = vand.u32 %v261, 4294901760
    %v5065 = vsub.f32 %v261, %v5064
    %v5066 = vand.u32 %v5065, 4294901760
    %5067 = vmatpush2.msra.mxu0 %v5066
    %5068 = vmatprep.subr.mxu0 0.0
    %v5069 = vand.u32 %v260, 4294901760
    %v5070 = vsub.f32 %v260, %v5069
    %v5071 = vand.u32 %v5070, 4294901760
    %5072 = vmatpush2.msra.mxu0 %v5071
    %5073 = vmatprep.subr.mxu0 0.0
    %v5074 = vand.u32 %v259, 4294901760
    %v5075 = vsub.f32 %v259, %v5074
    %v5076 = vand.u32 %v5075, 4294901760
    %5077 = vmatpush2.msra.mxu0 %v5076
    %5078 = vmatprep.subr.mxu0 0.0
    %v5079 = vand.u32 %v258, 4294901760
    %v5080 = vsub.f32 %v258, %v5079
    %v5081 = vand.u32 %v5080, 4294901760
    %5082 = vmatpush2.msra.mxu0 %v5081
    %5083 = vmatprep.subr.mxu0 0.0
    %v5084 = vand.u32 %v257, 4294901760
    %v5085 = vsub.f32 %v257, %v5084
    %v5086 = vand.u32 %v5085, 4294901760
    %5087 = vmatpush2.msra.mxu0 %v5086
    %5088 = vmatprep.subr.mxu0 0.0
    %v5089 = vand.u32 %v256, 4294901760
    %v5090 = vsub.f32 %v256, %v5089
    %v5091 = vand.u32 %v5090, 4294901760
    %5092 = vmatpush2.msra.mxu0 %v5091
    %5093 = vmatprep.subr.mxu0 0.0
    %v5094 = vand.u32 %v255, 4294901760
    %v5095 = vsub.f32 %v255, %v5094
    %v5096 = vand.u32 %v5095, 4294901760
    %5097 = vmatpush2.msra.mxu0 %v5096
    %5098 = vmatprep.subr.mxu0 0.0
    %v5099 = vand.u32 %v254, 4294901760
    %v5100 = vsub.f32 %v254, %v5099
    %v5101 = vand.u32 %v5100, 4294901760
    %5102 = vmatpush2.msra.mxu0 %v5101
    %5103 = vmatprep.subr.mxu0 0.0
    %v5104 = vand.u32 %v253, 4294901760
    %v5105 = vsub.f32 %v253, %v5104
    %v5106 = vand.u32 %v5105, 4294901760
    %5107 = vmatpush2.msra.mxu0 %v5106
    %v5108 = vand.u32 %v104, 4294901760
    %5109 = vmatprep.mubr.f32.mxu0 %v5108
    %v5110 = vand.u32 %v88, 4294901760
    %5111 = vmatmul.mubr.f32.gmra.mxu0 %v5110
    %v5112 = vpop.f32.mrf.mxu0
    %v5113 = vadd.f32 %v4780, %v5112
    %v5114 = vpop.f32.mrf.mxu0
    %v5115 = vand.u32 %v105, 4294901760
    %5116 = vmatprep.mubr.f32.mxu0 %v5115
    %v5117 = vand.u32 %v89, 4294901760
    %5118 = vmatmul.mubr.f32.gmra.mxu0 %v5117
    %v5119 = vpop.f32.mrf.mxu0
    %v5120 = vadd.f32 %v4791, %v5119
    %v5121 = vpop.f32.mrf.mxu0
    %v5122 = vand.u32 %v106, 4294901760
    %5123 = vmatprep.mubr.f32.mxu0 %v5122
    %v5124 = vand.u32 %v90, 4294901760
    %5125 = vmatmul.mubr.f32.gmra.mxu0 %v5124
    %v5126 = vpop.f32.mrf.mxu0
    %v5127 = vadd.f32 %v4802, %v5126
    %v5128 = vpop.f32.mrf.mxu0
    %v5129 = vand.u32 %v107, 4294901760
    %5130 = vmatprep.mubr.f32.mxu0 %v5129
    %v5131 = vand.u32 %v91, 4294901760
    %5132 = vmatmul.mubr.f32.gmra.mxu0 %v5131
    %v5133 = vpop.f32.mrf.mxu0
    %v5134 = vadd.f32 %v4813, %v5133
    %v5135 = vpop.f32.mrf.mxu0
    %v5136 = vand.u32 %v108, 4294901760
    %5137 = vmatprep.mubr.f32.mxu0 %v5136
    %v5138 = vand.u32 %v92, 4294901760
    %5139 = vmatmul.mubr.f32.gmra.mxu0 %v5138
    %v5140 = vpop.f32.mrf.mxu0
    %v5141 = vadd.f32 %v4824, %v5140
    %v5142 = vpop.f32.mrf.mxu0
    %v5143 = vand.u32 %v109, 4294901760
    %5144 = vmatprep.mubr.f32.mxu0 %v5143
    %v5145 = vand.u32 %v93, 4294901760
    %5146 = vmatmul.mubr.f32.gmra.mxu0 %v5145
    %v5147 = vpop.f32.mrf.mxu0
    %v5148 = vadd.f32 %v4835, %v5147
    %v5149 = vpop.f32.mrf.mxu0
    %v5150 = vand.u32 %v110, 4294901760
    %5151 = vmatprep.mubr.f32.mxu0 %v5150
    %v5152 = vand.u32 %v94, 4294901760
    %5153 = vmatmul.mubr.f32.gmra.mxu0 %v5152
    %v5154 = vpop.f32.mrf.mxu0
    %v5155 = vadd.f32 %v4846, %v5154
    %v5156 = vpop.f32.mrf.mxu0
    %v5157 = vand.u32 %v111, 4294901760
    %5158 = vmatprep.mubr.f32.mxu0 %v5157
    %v5159 = vand.u32 %v95, 4294901760
    %5160 = vmatmul.mubr.f32.gmra.mxu0 %v5159
    %v5161 = vpop.f32.mrf.mxu0
    %v5162 = vadd.f32 %v4857, %v5161
    %v5163 = vpop.f32.mrf.mxu0
    %v5164 = vand.u32 %v112, 4294901760
    %5165 = vmatprep.mubr.f32.mxu0 %v5164
    %v5166 = vand.u32 %v96, 4294901760
    %5167 = vmatmul.mubr.f32.gmra.mxu0 %v5166
    %v5168 = vpop.f32.mrf.mxu0
    %v5169 = vadd.f32 %v4868, %v5168
    %v5170 = vpop.f32.mrf.mxu0
    %v5171 = vand.u32 %v113, 4294901760
    %5172 = vmatprep.mubr.f32.mxu0 %v5171
    %v5173 = vand.u32 %v97, 4294901760
    %5174 = vmatmul.mubr.f32.gmra.mxu0 %v5173
    %v5175 = vpop.f32.mrf.mxu0
    %v5176 = vadd.f32 %v4879, %v5175
    %v5177 = vpop.f32.mrf.mxu0
    %v5178 = vand.u32 %v114, 4294901760
    %5179 = vmatprep.mubr.f32.mxu0 %v5178
    %v5180 = vand.u32 %v98, 4294901760
    %5181 = vmatmul.mubr.f32.gmra.mxu0 %v5180
    %v5182 = vpop.f32.mrf.mxu0
    %v5183 = vadd.f32 %v4890, %v5182
    %v5184 = vpop.f32.mrf.mxu0
    %v5185 = vand.u32 %v115, 4294901760
    %5186 = vmatprep.mubr.f32.mxu0 %v5185
    %v5187 = vand.u32 %v99, 4294901760
    %5188 = vmatmul.mubr.f32.gmra.mxu0 %v5187
    %v5189 = vpop.f32.mrf.mxu0
    %v5190 = vadd.f32 %v4901, %v5189
    %v5191 = vpop.f32.mrf.mxu0
    %v5192 = vand.u32 %v116, 4294901760
    %5193 = vmatprep.mubr.f32.mxu0 %v5192
    %v5194 = vand.u32 %v100, 4294901760
    %5195 = vmatmul.mubr.f32.gmra.mxu0 %v5194
    %v5196 = vpop.f32.mrf.mxu0
    %v5197 = vadd.f32 %v4912, %v5196
    %v5198 = vpop.f32.mrf.mxu0
    %v5199 = vand.u32 %v117, 4294901760
    %5200 = vmatprep.mubr.f32.mxu0 %v5199
    %v5201 = vand.u32 %v101, 4294901760
    %5202 = vmatmul.mubr.f32.gmra.mxu0 %v5201
    %v5203 = vpop.f32.mrf.mxu0
    %v5204 = vadd.f32 %v4923, %v5203
    %v5205 = vpop.f32.mrf.mxu0
    %v5206 = vand.u32 %v118, 4294901760
    %5207 = vmatprep.mubr.f32.mxu0 %v5206
    %v5208 = vand.u32 %v102, 4294901760
    %5209 = vmatmul.mubr.f32.gmra.mxu0 %v5208
    %v5210 = vpop.f32.mrf.mxu0
    %v5211 = vadd.f32 %v4934, %v5210
    %v5212 = vpop.f32.mrf.mxu0
    %v5213 = vand.u32 %v119, 4294901760
    %5214 = vmatprep.mubr.f32.mxu0 %v5213
    %v5215 = vand.u32 %v103, 4294901760
    %5216 = vmatmul.mubr.f32.gmra.mxu0 %v5215
    %v5217 = vpop.f32.mrf.mxu0
    %v5218 = vadd.f32 %v4945, %v5217
    %v5219 = vpop.f32.mrf.mxu0
    %5220 = vdwg.mxu0
    %5221 = vmatprep.subr.mxu0 0.0
    %v5222 = vand.u32 %v252, 4294901760
    %5223 = vmatpush1.msra.mxu0 %v5222
    %5224 = vmatprep.subr.mxu0 0.0
    %v5225 = vand.u32 %v251, 4294901760
    %5226 = vmatpush1.msra.mxu0 %v5225
    %5227 = vmatprep.subr.mxu0 0.0
    %v5228 = vand.u32 %v250, 4294901760
    %5229 = vmatpush1.msra.mxu0 %v5228
    %5230 = vmatprep.subr.mxu0 0.0
    %v5231 = vand.u32 %v249, 4294901760
    %5232 = vmatpush1.msra.mxu0 %v5231
    %5233 = vmatprep.subr.mxu0 0.0
    %v5234 = vand.u32 %v248, 4294901760
    %5235 = vmatpush1.msra.mxu0 %v5234
    %5236 = vmatprep.subr.mxu0 0.0
    %v5237 = vand.u32 %v247, 4294901760
    %5238 = vmatpush1.msra.mxu0 %v5237
    %5239 = vmatprep.subr.mxu0 0.0
    %v5240 = vand.u32 %v246, 4294901760
    %5241 = vmatpush1.msra.mxu0 %v5240
    %5242 = vmatprep.subr.mxu0 0.0
    %v5243 = vand.u32 %v245, 4294901760
    %5244 = vmatpush1.msra.mxu0 %v5243
    %5245 = vmatprep.subr.mxu0 0.0
    %v5246 = vand.u32 %v244, 4294901760
    %5247 = vmatpush1.msra.mxu0 %v5246
    %5248 = vmatprep.subr.mxu0 0.0
    %v5249 = vand.u32 %v243, 4294901760
    %5250 = vmatpush1.msra.mxu0 %v5249
    %5251 = vmatprep.subr.mxu0 0.0
    %v5252 = vand.u32 %v242, 4294901760
    %5253 = vmatpush1.msra.mxu0 %v5252
    %5254 = vmatprep.subr.mxu0 0.0
    %v5255 = vand.u32 %v241, 4294901760
    %5256 = vmatpush1.msra.mxu0 %v5255
    %5257 = vmatprep.subr.mxu0 0.0
    %v5258 = vand.u32 %v240, 4294901760
    %5259 = vmatpush1.msra.mxu0 %v5258
    %5260 = vmatprep.subr.mxu0 0.0
    %v5261 = vand.u32 %v239, 4294901760
    %5262 = vmatpush1.msra.mxu0 %v5261
    %5263 = vmatprep.subr.mxu0 0.0
    %v5264 = vand.u32 %v238, 4294901760
    %5265 = vmatpush1.msra.mxu0 %v5264
    %5266 = vmatprep.subr.mxu0 0.0
    %v5267 = vand.u32 %v237, 4294901760
    %5268 = vmatpush1.msra.mxu0 %v5267
    %5269 = vmatprep.subr.mxu0 0.0
    %v5270 = vand.u32 %v268, 4294901760
    %5271 = vmatpush2.msra.mxu0 %v5270
    %5272 = vmatprep.subr.mxu0 0.0
    %v5273 = vand.u32 %v267, 4294901760
    %5274 = vmatpush2.msra.mxu0 %v5273
    %5275 = vmatprep.subr.mxu0 0.0
    %v5276 = vand.u32 %v266, 4294901760
    %5277 = vmatpush2.msra.mxu0 %v5276
    %5278 = vmatprep.subr.mxu0 0.0
    %v5279 = vand.u32 %v265, 4294901760
    %5280 = vmatpush2.msra.mxu0 %v5279
    %5281 = vmatprep.subr.mxu0 0.0
    %v5282 = vand.u32 %v264, 4294901760
    %5283 = vmatpush2.msra.mxu0 %v5282
    %5284 = vmatprep.subr.mxu0 0.0
    %v5285 = vand.u32 %v263, 4294901760
    %5286 = vmatpush2.msra.mxu0 %v5285
    %5287 = vmatprep.subr.mxu0 0.0
    %v5288 = vand.u32 %v262, 4294901760
    %5289 = vmatpush2.msra.mxu0 %v5288
    %5290 = vmatprep.subr.mxu0 0.0
    %v5291 = vand.u32 %v261, 4294901760
    %5292 = vmatpush2.msra.mxu0 %v5291
    %5293 = vmatprep.subr.mxu0 0.0
    %v5294 = vand.u32 %v260, 4294901760
    %5295 = vmatpush2.msra.mxu0 %v5294
    %5296 = vmatprep.subr.mxu0 0.0
    %v5297 = vand.u32 %v259, 4294901760
    %5298 = vmatpush2.msra.mxu0 %v5297
    %5299 = vmatprep.subr.mxu0 0.0
    %v5300 = vand.u32 %v258, 4294901760
    %5301 = vmatpush2.msra.mxu0 %v5300
    %5302 = vmatprep.subr.mxu0 0.0
    %v5303 = vand.u32 %v257, 4294901760
    %5304 = vmatpush2.msra.mxu0 %v5303
    %5305 = vmatprep.subr.mxu0 0.0
    %v5306 = vand.u32 %v256, 4294901760
    %5307 = vmatpush2.msra.mxu0 %v5306
    %5308 = vmatprep.subr.mxu0 0.0
    %v5309 = vand.u32 %v255, 4294901760
    %5310 = vmatpush2.msra.mxu0 %v5309
    %5311 = vmatprep.subr.mxu0 0.0
    %v5312 = vand.u32 %v254, 4294901760
    %5313 = vmatpush2.msra.mxu0 %v5312
    %5314 = vmatprep.subr.mxu0 0.0
    %v5315 = vand.u32 %v253, 4294901760
    %5316 = vmatpush2.msra.mxu0 %v5315
    %v5317 = vand.u32 %v104, 4294901760
    %5318 = vmatprep.mubr.f32.mxu0 %v5317
    %v5319 = vand.u32 %v88, 4294901760
    %5320 = vmatmul.mubr.f32.gmra.mxu0 %v5319
    %v5321 = vpop.f32.mrf.mxu0
    %v5322 = vadd.f32 %v5113, %v5321
    %v5323 = vpop.f32.mrf.mxu0
    %v5324 = vand.u32 %v105, 4294901760
    %5325 = vmatprep.mubr.f32.mxu0 %v5324
    %v5326 = vand.u32 %v89, 4294901760
    %5327 = vmatmul.mubr.f32.gmra.mxu0 %v5326
    %v5328 = vpop.f32.mrf.mxu0
    %v5329 = vadd.f32 %v5120, %v5328
    %v5330 = vpop.f32.mrf.mxu0
    %v5331 = vand.u32 %v106, 4294901760
    %5332 = vmatprep.mubr.f32.mxu0 %v5331
    %v5333 = vand.u32 %v90, 4294901760
    %5334 = vmatmul.mubr.f32.gmra.mxu0 %v5333
    %v5335 = vpop.f32.mrf.mxu0
    %v5336 = vadd.f32 %v5127, %v5335
    %v5337 = vpop.f32.mrf.mxu0
    %v5338 = vand.u32 %v107, 4294901760
    %5339 = vmatprep.mubr.f32.mxu0 %v5338
    %v5340 = vand.u32 %v91, 4294901760
    %5341 = vmatmul.mubr.f32.gmra.mxu0 %v5340
    %v5342 = vpop.f32.mrf.mxu0
    %v5343 = vadd.f32 %v5134, %v5342
    %v5344 = vpop.f32.mrf.mxu0
    %v5345 = vand.u32 %v108, 4294901760
    %5346 = vmatprep.mubr.f32.mxu0 %v5345
    %v5347 = vand.u32 %v92, 4294901760
    %5348 = vmatmul.mubr.f32.gmra.mxu0 %v5347
    %v5349 = vpop.f32.mrf.mxu0
    %v5350 = vadd.f32 %v5141, %v5349
    %v5351 = vpop.f32.mrf.mxu0
    %v5352 = vand.u32 %v109, 4294901760
    %5353 = vmatprep.mubr.f32.mxu0 %v5352
    %v5354 = vand.u32 %v93, 4294901760
    %5355 = vmatmul.mubr.f32.gmra.mxu0 %v5354
    %v5356 = vpop.f32.mrf.mxu0
    %v5357 = vadd.f32 %v5148, %v5356
    %v5358 = vpop.f32.mrf.mxu0
    %v5359 = vand.u32 %v110, 4294901760
    %5360 = vmatprep.mubr.f32.mxu0 %v5359
    %v5361 = vand.u32 %v94, 4294901760
    %5362 = vmatmul.mubr.f32.gmra.mxu0 %v5361
    %v5363 = vpop.f32.mrf.mxu0
    %v5364 = vadd.f32 %v5155, %v5363
    %v5365 = vpop.f32.mrf.mxu0
    %v5366 = vand.u32 %v111, 4294901760
    %5367 = vmatprep.mubr.f32.mxu0 %v5366
    %v5368 = vand.u32 %v95, 4294901760
    %5369 = vmatmul.mubr.f32.gmra.mxu0 %v5368
    %v5370 = vpop.f32.mrf.mxu0
    %v5371 = vadd.f32 %v5162, %v5370
    %v5372 = vpop.f32.mrf.mxu0
    %v5373 = vand.u32 %v112, 4294901760
    %5374 = vmatprep.mubr.f32.mxu0 %v5373
    %v5375 = vand.u32 %v96, 4294901760
    %5376 = vmatmul.mubr.f32.gmra.mxu0 %v5375
    %v5377 = vpop.f32.mrf.mxu0
    %v5378 = vadd.f32 %v5169, %v5377
    %v5379 = vpop.f32.mrf.mxu0
    %v5380 = vand.u32 %v113, 4294901760
    %5381 = vmatprep.mubr.f32.mxu0 %v5380
    %v5382 = vand.u32 %v97, 4294901760
    %5383 = vmatmul.mubr.f32.gmra.mxu0 %v5382
    %v5384 = vpop.f32.mrf.mxu0
    %v5385 = vadd.f32 %v5176, %v5384
    %v5386 = vpop.f32.mrf.mxu0
    %v5387 = vand.u32 %v114, 4294901760
    %5388 = vmatprep.mubr.f32.mxu0 %v5387
    %v5389 = vand.u32 %v98, 4294901760
    %5390 = vmatmul.mubr.f32.gmra.mxu0 %v5389
    %v5391 = vpop.f32.mrf.mxu0
    %v5392 = vadd.f32 %v5183, %v5391
    %v5393 = vpop.f32.mrf.mxu0
    %v5394 = vand.u32 %v115, 4294901760
    %5395 = vmatprep.mubr.f32.mxu0 %v5394
    %v5396 = vand.u32 %v99, 4294901760
    %5397 = vmatmul.mubr.f32.gmra.mxu0 %v5396
    %v5398 = vpop.f32.mrf.mxu0
    %v5399 = vadd.f32 %v5190, %v5398
    %v5400 = vpop.f32.mrf.mxu0
    %v5401 = vand.u32 %v116, 4294901760
    %5402 = vmatprep.mubr.f32.mxu0 %v5401
    %v5403 = vand.u32 %v100, 4294901760
    %5404 = vmatmul.mubr.f32.gmra.mxu0 %v5403
    %v5405 = vpop.f32.mrf.mxu0
    %v5406 = vadd.f32 %v5197, %v5405
    %v5407 = vpop.f32.mrf.mxu0
    %v5408 = vand.u32 %v117, 4294901760
    %5409 = vmatprep.mubr.f32.mxu0 %v5408
    %v5410 = vand.u32 %v101, 4294901760
    %5411 = vmatmul.mubr.f32.gmra.mxu0 %v5410
    %v5412 = vpop.f32.mrf.mxu0
    %v5413 = vadd.f32 %v5204, %v5412
    %v5414 = vpop.f32.mrf.mxu0
    %v5415 = vand.u32 %v118, 4294901760
    %5416 = vmatprep.mubr.f32.mxu0 %v5415
    %v5417 = vand.u32 %v102, 4294901760
    %5418 = vmatmul.mubr.f32.gmra.mxu0 %v5417
    %v5419 = vpop.f32.mrf.mxu0
    %v5420 = vadd.f32 %v5211, %v5419
    %v5421 = vpop.f32.mrf.mxu0
    %v5422 = vand.u32 %v119, 4294901760
    %5423 = vmatprep.mubr.f32.mxu0 %v5422
    %v5424 = vand.u32 %v103, 4294901760
    %5425 = vmatmul.mubr.f32.gmra.mxu0 %v5424
    %v5426 = vpop.f32.mrf.mxu0
    %v5427 = vadd.f32 %v5218, %v5426
    %v5428 = vpop.f32.mrf.mxu0
    %5429 = vdwg.mxu0
    %5430 = vmatprep.subr.mxu0 0.0
    %v5431 = vand.u32 %v284, 4294901760
    %5432 = vmatpush1.msra.mxu0 %v5431
    %5433 = vmatprep.subr.mxu0 0.0
    %v5434 = vand.u32 %v283, 4294901760
    %5435 = vmatpush1.msra.mxu0 %v5434
    %5436 = vmatprep.subr.mxu0 0.0
    %v5437 = vand.u32 %v282, 4294901760
    %5438 = vmatpush1.msra.mxu0 %v5437
    %5439 = vmatprep.subr.mxu0 0.0
    %v5440 = vand.u32 %v281, 4294901760
    %5441 = vmatpush1.msra.mxu0 %v5440
    %5442 = vmatprep.subr.mxu0 0.0
    %v5443 = vand.u32 %v280, 4294901760
    %5444 = vmatpush1.msra.mxu0 %v5443
    %5445 = vmatprep.subr.mxu0 0.0
    %v5446 = vand.u32 %v279, 4294901760
    %5447 = vmatpush1.msra.mxu0 %v5446
    %5448 = vmatprep.subr.mxu0 0.0
    %v5449 = vand.u32 %v278, 4294901760
    %5450 = vmatpush1.msra.mxu0 %v5449
    %5451 = vmatprep.subr.mxu0 0.0
    %v5452 = vand.u32 %v277, 4294901760
    %5453 = vmatpush1.msra.mxu0 %v5452
    %5454 = vmatprep.subr.mxu0 0.0
    %v5455 = vand.u32 %v276, 4294901760
    %5456 = vmatpush1.msra.mxu0 %v5455
    %5457 = vmatprep.subr.mxu0 0.0
    %v5458 = vand.u32 %v275, 4294901760
    %5459 = vmatpush1.msra.mxu0 %v5458
    %5460 = vmatprep.subr.mxu0 0.0
    %v5461 = vand.u32 %v274, 4294901760
    %5462 = vmatpush1.msra.mxu0 %v5461
    %5463 = vmatprep.subr.mxu0 0.0
    %v5464 = vand.u32 %v273, 4294901760
    %5465 = vmatpush1.msra.mxu0 %v5464
    %5466 = vmatprep.subr.mxu0 0.0
    %v5467 = vand.u32 %v272, 4294901760
    %5468 = vmatpush1.msra.mxu0 %v5467
    %5469 = vmatprep.subr.mxu0 0.0
    %v5470 = vand.u32 %v271, 4294901760
    %5471 = vmatpush1.msra.mxu0 %v5470
    %5472 = vmatprep.subr.mxu0 0.0
    %v5473 = vand.u32 %v270, 4294901760
    %5474 = vmatpush1.msra.mxu0 %v5473
    %5475 = vmatprep.subr.mxu0 0.0
    %v5476 = vand.u32 %v269, 4294901760
    %5477 = vmatpush1.msra.mxu0 %v5476
    %5478 = vmatprep.subr.mxu0 0.0
    %v5479 = vand.u32 %v300, 4294901760
    %5480 = vmatpush2.msra.mxu0 %v5479
    %5481 = vmatprep.subr.mxu0 0.0
    %v5482 = vand.u32 %v299, 4294901760
    %5483 = vmatpush2.msra.mxu0 %v5482
    %5484 = vmatprep.subr.mxu0 0.0
    %v5485 = vand.u32 %v298, 4294901760
    %5486 = vmatpush2.msra.mxu0 %v5485
    %5487 = vmatprep.subr.mxu0 0.0
    %v5488 = vand.u32 %v297, 4294901760
    %5489 = vmatpush2.msra.mxu0 %v5488
    %5490 = vmatprep.subr.mxu0 0.0
    %v5491 = vand.u32 %v296, 4294901760
    %5492 = vmatpush2.msra.mxu0 %v5491
    %5493 = vmatprep.subr.mxu0 0.0
    %v5494 = vand.u32 %v295, 4294901760
    %5495 = vmatpush2.msra.mxu0 %v5494
    %5496 = vmatprep.subr.mxu0 0.0
    %v5497 = vand.u32 %v294, 4294901760
    %5498 = vmatpush2.msra.mxu0 %v5497
    %5499 = vmatprep.subr.mxu0 0.0
    %v5500 = vand.u32 %v293, 4294901760
    %5501 = vmatpush2.msra.mxu0 %v5500
    %5502 = vmatprep.subr.mxu0 0.0
    %v5503 = vand.u32 %v292, 4294901760
    %5504 = vmatpush2.msra.mxu0 %v5503
    %5505 = vmatprep.subr.mxu0 0.0
    %v5506 = vand.u32 %v291, 4294901760
    %5507 = vmatpush2.msra.mxu0 %v5506
    %5508 = vmatprep.subr.mxu0 0.0
    %v5509 = vand.u32 %v290, 4294901760
    %5510 = vmatpush2.msra.mxu0 %v5509
    %5511 = vmatprep.subr.mxu0 0.0
    %v5512 = vand.u32 %v289, 4294901760
    %5513 = vmatpush2.msra.mxu0 %v5512
    %5514 = vmatprep.subr.mxu0 0.0
    %v5515 = vand.u32 %v288, 4294901760
    %5516 = vmatpush2.msra.mxu0 %v5515
    %5517 = vmatprep.subr.mxu0 0.0
    %v5518 = vand.u32 %v287, 4294901760
    %5519 = vmatpush2.msra.mxu0 %v5518
    %5520 = vmatprep.subr.mxu0 0.0
    %v5521 = vand.u32 %v286, 4294901760
    %5522 = vmatpush2.msra.mxu0 %v5521
    %5523 = vmatprep.subr.mxu0 0.0
    %v5524 = vand.u32 %v285, 4294901760
    %5525 = vmatpush2.msra.mxu0 %v5524
    %v5526 = vand.u32 %v141, 4294901760
    %v5527 = vsub.f32 %v141, %v5526
    %v5528 = vand.u32 %v5527, 4294901760
    %v5529 = vsub.f32 %v5527, %v5528
    %v5530 = vand.u32 %v5529, 4294901760
    %5531 = vmatprep.mubr.f32.mxu0 %v5530
    %v5532 = vand.u32 %v123, 4294901760
    %v5533 = vsub.f32 %v123, %v5532
    %v5534 = vand.u32 %v5533, 4294901760
    %v5535 = vsub.f32 %v5533, %v5534
    %v5536 = vand.u32 %v5535, 4294901760
    %5537 = vmatmul.mubr.f32.gmra.mxu0 %v5536
    %v5538 = vpop.f32.mrf.mxu0
    %v5539 = vadd.f32 %v5322, %v5538
    %v5540 = vpop.f32.mrf.mxu0
    %v5541 = vand.u32 %v142, 4294901760
    %v5542 = vsub.f32 %v142, %v5541
    %v5543 = vand.u32 %v5542, 4294901760
    %v5544 = vsub.f32 %v5542, %v5543
    %v5545 = vand.u32 %v5544, 4294901760
    %5546 = vmatprep.mubr.f32.mxu0 %v5545
    %v5547 = vand.u32 %v124, 4294901760
    %v5548 = vsub.f32 %v124, %v5547
    %v5549 = vand.u32 %v5548, 4294901760
    %v5550 = vsub.f32 %v5548, %v5549
    %v5551 = vand.u32 %v5550, 4294901760
    %5552 = vmatmul.mubr.f32.gmra.mxu0 %v5551
    %v5553 = vpop.f32.mrf.mxu0
    %v5554 = vadd.f32 %v5329, %v5553
    %v5555 = vpop.f32.mrf.mxu0
    %v5556 = vand.u32 %v143, 4294901760
    %v5557 = vsub.f32 %v143, %v5556
    %v5558 = vand.u32 %v5557, 4294901760
    %v5559 = vsub.f32 %v5557, %v5558
    %v5560 = vand.u32 %v5559, 4294901760
    %5561 = vmatprep.mubr.f32.mxu0 %v5560
    %v5562 = vand.u32 %v125, 4294901760
    %v5563 = vsub.f32 %v125, %v5562
    %v5564 = vand.u32 %v5563, 4294901760
    %v5565 = vsub.f32 %v5563, %v5564
    %v5566 = vand.u32 %v5565, 4294901760
    %5567 = vmatmul.mubr.f32.gmra.mxu0 %v5566
    %v5568 = vpop.f32.mrf.mxu0
    %v5569 = vadd.f32 %v5336, %v5568
    %v5570 = vpop.f32.mrf.mxu0
    %v5571 = vand.u32 %v144, 4294901760
    %v5572 = vsub.f32 %v144, %v5571
    %v5573 = vand.u32 %v5572, 4294901760
    %v5574 = vsub.f32 %v5572, %v5573
    %v5575 = vand.u32 %v5574, 4294901760
    %5576 = vmatprep.mubr.f32.mxu0 %v5575
    %v5577 = vand.u32 %v126, 4294901760
    %v5578 = vsub.f32 %v126, %v5577
    %v5579 = vand.u32 %v5578, 4294901760
    %v5580 = vsub.f32 %v5578, %v5579
    %v5581 = vand.u32 %v5580, 4294901760
    %5582 = vmatmul.mubr.f32.gmra.mxu0 %v5581
    %v5583 = vpop.f32.mrf.mxu0
    %v5584 = vadd.f32 %v5343, %v5583
    %v5585 = vpop.f32.mrf.mxu0
    %v5586 = vand.u32 %v145, 4294901760
    %v5587 = vsub.f32 %v145, %v5586
    %v5588 = vand.u32 %v5587, 4294901760
    %v5589 = vsub.f32 %v5587, %v5588
    %v5590 = vand.u32 %v5589, 4294901760
    %5591 = vmatprep.mubr.f32.mxu0 %v5590
    %v5592 = vand.u32 %v127, 4294901760
    %v5593 = vsub.f32 %v127, %v5592
    %v5594 = vand.u32 %v5593, 4294901760
    %v5595 = vsub.f32 %v5593, %v5594
    %v5596 = vand.u32 %v5595, 4294901760
    %5597 = vmatmul.mubr.f32.gmra.mxu0 %v5596
    %v5598 = vpop.f32.mrf.mxu0
    %v5599 = vadd.f32 %v5350, %v5598
    %v5600 = vpop.f32.mrf.mxu0
    %v5601 = vand.u32 %v146, 4294901760
    %v5602 = vsub.f32 %v146, %v5601
    %v5603 = vand.u32 %v5602, 4294901760
    %v5604 = vsub.f32 %v5602, %v5603
    %v5605 = vand.u32 %v5604, 4294901760
    %5606 = vmatprep.mubr.f32.mxu0 %v5605
    %v5607 = vand.u32 %v128, 4294901760
    %v5608 = vsub.f32 %v128, %v5607
    %v5609 = vand.u32 %v5608, 4294901760
    %v5610 = vsub.f32 %v5608, %v5609
    %v5611 = vand.u32 %v5610, 4294901760
    %5612 = vmatmul.mubr.f32.gmra.mxu0 %v5611
    %v5613 = vpop.f32.mrf.mxu0
    %v5614 = vadd.f32 %v5357, %v5613
    %v5615 = vpop.f32.mrf.mxu0
    %v5616 = vand.u32 %v147, 4294901760
    %v5617 = vsub.f32 %v147, %v5616
    %v5618 = vand.u32 %v5617, 4294901760
    %v5619 = vsub.f32 %v5617, %v5618
    %v5620 = vand.u32 %v5619, 4294901760
    %5621 = vmatprep.mubr.f32.mxu0 %v5620
    %v5622 = vand.u32 %v129, 4294901760
    %v5623 = vsub.f32 %v129, %v5622
    %v5624 = vand.u32 %v5623, 4294901760
    %v5625 = vsub.f32 %v5623, %v5624
    %v5626 = vand.u32 %v5625, 4294901760
    %5627 = vmatmul.mubr.f32.gmra.mxu0 %v5626
    %v5628 = vpop.f32.mrf.mxu0
    %v5629 = vadd.f32 %v5364, %v5628
    %v5630 = vpop.f32.mrf.mxu0
    %v5631 = vand.u32 %v148, 4294901760
    %v5632 = vsub.f32 %v148, %v5631
    %v5633 = vand.u32 %v5632, 4294901760
    %v5634 = vsub.f32 %v5632, %v5633
    %v5635 = vand.u32 %v5634, 4294901760
    %5636 = vmatprep.mubr.f32.mxu0 %v5635
    %v5637 = vand.u32 %v130, 4294901760
    %v5638 = vsub.f32 %v130, %v5637
    %v5639 = vand.u32 %v5638, 4294901760
    %v5640 = vsub.f32 %v5638, %v5639
    %v5641 = vand.u32 %v5640, 4294901760
    %5642 = vmatmul.mubr.f32.gmra.mxu0 %v5641
    %v5643 = vpop.f32.mrf.mxu0
    %v5644 = vadd.f32 %v5371, %v5643
    %v5645 = vpop.f32.mrf.mxu0
    %v5646 = vand.u32 %v149, 4294901760
    %v5647 = vsub.f32 %v149, %v5646
    %v5648 = vand.u32 %v5647, 4294901760
    %v5649 = vsub.f32 %v5647, %v5648
    %v5650 = vand.u32 %v5649, 4294901760
    %5651 = vmatprep.mubr.f32.mxu0 %v5650
    %v5652 = vand.u32 %v131, 4294901760
    %v5653 = vsub.f32 %v131, %v5652
    %v5654 = vand.u32 %v5653, 4294901760
    %v5655 = vsub.f32 %v5653, %v5654
    %v5656 = vand.u32 %v5655, 4294901760
    %5657 = vmatmul.mubr.f32.gmra.mxu0 %v5656
    %v5658 = vpop.f32.mrf.mxu0
    %v5659 = vadd.f32 %v5378, %v5658
    %v5660 = vpop.f32.mrf.mxu0
    %v5661 = vand.u32 %v150, 4294901760
    %v5662 = vsub.f32 %v150, %v5661
    %v5663 = vand.u32 %v5662, 4294901760
    %v5664 = vsub.f32 %v5662, %v5663
    %v5665 = vand.u32 %v5664, 4294901760
    %5666 = vmatprep.mubr.f32.mxu0 %v5665
    %v5667 = vand.u32 %v132, 4294901760
    %v5668 = vsub.f32 %v132, %v5667
    %v5669 = vand.u32 %v5668, 4294901760
    %v5670 = vsub.f32 %v5668, %v5669
    %v5671 = vand.u32 %v5670, 4294901760
    %5672 = vmatmul.mubr.f32.gmra.mxu0 %v5671
    %v5673 = vpop.f32.mrf.mxu0
    %v5674 = vadd.f32 %v5385, %v5673
    %v5675 = vpop.f32.mrf.mxu0
    %v5676 = vand.u32 %v151, 4294901760
    %v5677 = vsub.f32 %v151, %v5676
    %v5678 = vand.u32 %v5677, 4294901760
    %v5679 = vsub.f32 %v5677, %v5678
    %v5680 = vand.u32 %v5679, 4294901760
    %5681 = vmatprep.mubr.f32.mxu0 %v5680
    %v5682 = vand.u32 %v133, 4294901760
    %v5683 = vsub.f32 %v133, %v5682
    %v5684 = vand.u32 %v5683, 4294901760
    %v5685 = vsub.f32 %v5683, %v5684
    %v5686 = vand.u32 %v5685, 4294901760
    %5687 = vmatmul.mubr.f32.gmra.mxu0 %v5686
    %v5688 = vpop.f32.mrf.mxu0
    %v5689 = vadd.f32 %v5392, %v5688
    %v5690 = vpop.f32.mrf.mxu0
    %v5691 = vand.u32 %v152, 4294901760
    %v5692 = vsub.f32 %v152, %v5691
    %v5693 = vand.u32 %v5692, 4294901760
    %v5694 = vsub.f32 %v5692, %v5693
    %v5695 = vand.u32 %v5694, 4294901760
    %5696 = vmatprep.mubr.f32.mxu0 %v5695
    %v5697 = vand.u32 %v134, 4294901760
    %v5698 = vsub.f32 %v134, %v5697
    %v5699 = vand.u32 %v5698, 4294901760
    %v5700 = vsub.f32 %v5698, %v5699
    %v5701 = vand.u32 %v5700, 4294901760
    %5702 = vmatmul.mubr.f32.gmra.mxu0 %v5701
    %v5703 = vpop.f32.mrf.mxu0
    %v5704 = vadd.f32 %v5399, %v5703
    %v5705 = vpop.f32.mrf.mxu0
    %v5706 = vand.u32 %v153, 4294901760
    %v5707 = vsub.f32 %v153, %v5706
    %v5708 = vand.u32 %v5707, 4294901760
    %v5709 = vsub.f32 %v5707, %v5708
    %v5710 = vand.u32 %v5709, 4294901760
    %5711 = vmatprep.mubr.f32.mxu0 %v5710
    %v5712 = vand.u32 %v135, 4294901760
    %v5713 = vsub.f32 %v135, %v5712
    %v5714 = vand.u32 %v5713, 4294901760
    %v5715 = vsub.f32 %v5713, %v5714
    %v5716 = vand.u32 %v5715, 4294901760
    %5717 = vmatmul.mubr.f32.gmra.mxu0 %v5716
    %v5718 = vpop.f32.mrf.mxu0
    %v5719 = vadd.f32 %v5406, %v5718
    %v5720 = vpop.f32.mrf.mxu0
    %v5721 = vand.u32 %v154, 4294901760
    %v5722 = vsub.f32 %v154, %v5721
    %v5723 = vand.u32 %v5722, 4294901760
    %v5724 = vsub.f32 %v5722, %v5723
    %v5725 = vand.u32 %v5724, 4294901760
    %5726 = vmatprep.mubr.f32.mxu0 %v5725
    %v5727 = vand.u32 %v136, 4294901760
    %v5728 = vsub.f32 %v136, %v5727
    %v5729 = vand.u32 %v5728, 4294901760
    %v5730 = vsub.f32 %v5728, %v5729
    %v5731 = vand.u32 %v5730, 4294901760
    %5732 = vmatmul.mubr.f32.gmra.mxu0 %v5731
    %v5733 = vpop.f32.mrf.mxu0
    %v5734 = vadd.f32 %v5413, %v5733
    %v5735 = vpop.f32.mrf.mxu0
    %v5736 = vand.u32 %v155, 4294901760
    %v5737 = vsub.f32 %v155, %v5736
    %v5738 = vand.u32 %v5737, 4294901760
    %v5739 = vsub.f32 %v5737, %v5738
    %v5740 = vand.u32 %v5739, 4294901760
    %5741 = vmatprep.mubr.f32.mxu0 %v5740
    %v5742 = vand.u32 %v137, 4294901760
    %v5743 = vsub.f32 %v137, %v5742
    %v5744 = vand.u32 %v5743, 4294901760
    %v5745 = vsub.f32 %v5743, %v5744
    %v5746 = vand.u32 %v5745, 4294901760
    %5747 = vmatmul.mubr.f32.gmra.mxu0 %v5746
    %v5748 = vpop.f32.mrf.mxu0
    %v5749 = vadd.f32 %v5420, %v5748
    %v5750 = vpop.f32.mrf.mxu0
    %v5751 = vand.u32 %v156, 4294901760
    %v5752 = vsub.f32 %v156, %v5751
    %v5753 = vand.u32 %v5752, 4294901760
    %v5754 = vsub.f32 %v5752, %v5753
    %v5755 = vand.u32 %v5754, 4294901760
    %5756 = vmatprep.mubr.f32.mxu0 %v5755
    %v5757 = vand.u32 %v138, 4294901760
    %v5758 = vsub.f32 %v138, %v5757
    %v5759 = vand.u32 %v5758, 4294901760
    %v5760 = vsub.f32 %v5758, %v5759
    %v5761 = vand.u32 %v5760, 4294901760
    %5762 = vmatmul.mubr.f32.gmra.mxu0 %v5761
    %v5763 = vpop.f32.mrf.mxu0
    %v5764 = vadd.f32 %v5427, %v5763
    %v5765 = vpop.f32.mrf.mxu0
    %5766 = vdwg.mxu0
    %5767 = vmatprep.subr.mxu0 0.0
    %v5768 = vand.u32 %v284, 4294901760
    %v5769 = vsub.f32 %v284, %v5768
    %v5770 = vand.u32 %v5769, 4294901760
    %v5771 = vsub.f32 %v5769, %v5770
    %v5772 = vand.u32 %v5771, 4294901760
    %5773 = vmatpush1.msra.mxu0 %v5772
    %5774 = vmatprep.subr.mxu0 0.0
    %v5775 = vand.u32 %v283, 4294901760
    %v5776 = vsub.f32 %v283, %v5775
    %v5777 = vand.u32 %v5776, 4294901760
    %v5778 = vsub.f32 %v5776, %v5777
    %v5779 = vand.u32 %v5778, 4294901760
    %5780 = vmatpush1.msra.mxu0 %v5779
    %5781 = vmatprep.subr.mxu0 0.0
    %v5782 = vand.u32 %v282, 4294901760
    %v5783 = vsub.f32 %v282, %v5782
    %v5784 = vand.u32 %v5783, 4294901760
    %v5785 = vsub.f32 %v5783, %v5784
    %v5786 = vand.u32 %v5785, 4294901760
    %5787 = vmatpush1.msra.mxu0 %v5786
    %5788 = vmatprep.subr.mxu0 0.0
    %v5789 = vand.u32 %v281, 4294901760
    %v5790 = vsub.f32 %v281, %v5789
    %v5791 = vand.u32 %v5790, 4294901760
    %v5792 = vsub.f32 %v5790, %v5791
    %v5793 = vand.u32 %v5792, 4294901760
    %5794 = vmatpush1.msra.mxu0 %v5793
    %5795 = vmatprep.subr.mxu0 0.0
    %v5796 = vand.u32 %v280, 4294901760
    %v5797 = vsub.f32 %v280, %v5796
    %v5798 = vand.u32 %v5797, 4294901760
    %v5799 = vsub.f32 %v5797, %v5798
    %v5800 = vand.u32 %v5799, 4294901760
    %5801 = vmatpush1.msra.mxu0 %v5800
    %5802 = vmatprep.subr.mxu0 0.0
    %v5803 = vand.u32 %v279, 4294901760
    %v5804 = vsub.f32 %v279, %v5803
    %v5805 = vand.u32 %v5804, 4294901760
    %v5806 = vsub.f32 %v5804, %v5805
    %v5807 = vand.u32 %v5806, 4294901760
    %5808 = vmatpush1.msra.mxu0 %v5807
    %5809 = vmatprep.subr.mxu0 0.0
    %v5810 = vand.u32 %v278, 4294901760
    %v5811 = vsub.f32 %v278, %v5810
    %v5812 = vand.u32 %v5811, 4294901760
    %v5813 = vsub.f32 %v5811, %v5812
    %v5814 = vand.u32 %v5813, 4294901760
    %5815 = vmatpush1.msra.mxu0 %v5814
    %5816 = vmatprep.subr.mxu0 0.0
    %v5817 = vand.u32 %v277, 4294901760
    %v5818 = vsub.f32 %v277, %v5817
    %v5819 = vand.u32 %v5818, 4294901760
    %v5820 = vsub.f32 %v5818, %v5819
    %v5821 = vand.u32 %v5820, 4294901760
    %5822 = vmatpush1.msra.mxu0 %v5821
    %5823 = vmatprep.subr.mxu0 0.0
    %v5824 = vand.u32 %v276, 4294901760
    %v5825 = vsub.f32 %v276, %v5824
    %v5826 = vand.u32 %v5825, 4294901760
    %v5827 = vsub.f32 %v5825, %v5826
    %v5828 = vand.u32 %v5827, 4294901760
    %5829 = vmatpush1.msra.mxu0 %v5828
    %5830 = vmatprep.subr.mxu0 0.0
    %v5831 = vand.u32 %v275, 4294901760
    %v5832 = vsub.f32 %v275, %v5831
    %v5833 = vand.u32 %v5832, 4294901760
    %v5834 = vsub.f32 %v5832, %v5833
    %v5835 = vand.u32 %v5834, 4294901760
    %5836 = vmatpush1.msra.mxu0 %v5835
    %5837 = vmatprep.subr.mxu0 0.0
    %v5838 = vand.u32 %v274, 4294901760
    %v5839 = vsub.f32 %v274, %v5838
    %v5840 = vand.u32 %v5839, 4294901760
    %v5841 = vsub.f32 %v5839, %v5840
    %v5842 = vand.u32 %v5841, 4294901760
    %5843 = vmatpush1.msra.mxu0 %v5842
    %5844 = vmatprep.subr.mxu0 0.0
    %v5845 = vand.u32 %v273, 4294901760
    %v5846 = vsub.f32 %v273, %v5845
    %v5847 = vand.u32 %v5846, 4294901760
    %v5848 = vsub.f32 %v5846, %v5847
    %v5849 = vand.u32 %v5848, 4294901760
    %5850 = vmatpush1.msra.mxu0 %v5849
    %5851 = vmatprep.subr.mxu0 0.0
    %v5852 = vand.u32 %v272, 4294901760
    %v5853 = vsub.f32 %v272, %v5852
    %v5854 = vand.u32 %v5853, 4294901760
    %v5855 = vsub.f32 %v5853, %v5854
    %v5856 = vand.u32 %v5855, 4294901760
    %5857 = vmatpush1.msra.mxu0 %v5856
    %5858 = vmatprep.subr.mxu0 0.0
    %v5859 = vand.u32 %v271, 4294901760
    %v5860 = vsub.f32 %v271, %v5859
    %v5861 = vand.u32 %v5860, 4294901760
    %v5862 = vsub.f32 %v5860, %v5861
    %v5863 = vand.u32 %v5862, 4294901760
    %5864 = vmatpush1.msra.mxu0 %v5863
    %5865 = vmatprep.subr.mxu0 0.0
    %v5866 = vand.u32 %v270, 4294901760
    %v5867 = vsub.f32 %v270, %v5866
    %v5868 = vand.u32 %v5867, 4294901760
    %v5869 = vsub.f32 %v5867, %v5868
    %v5870 = vand.u32 %v5869, 4294901760
    %5871 = vmatpush1.msra.mxu0 %v5870
    %5872 = vmatprep.subr.mxu0 0.0
    %v5873 = vand.u32 %v269, 4294901760
    %v5874 = vsub.f32 %v269, %v5873
    %v5875 = vand.u32 %v5874, 4294901760
    %v5876 = vsub.f32 %v5874, %v5875
    %v5877 = vand.u32 %v5876, 4294901760
    %5878 = vmatpush1.msra.mxu0 %v5877
    %5879 = vmatprep.subr.mxu0 0.0
    %v5880 = vand.u32 %v300, 4294901760
    %v5881 = vsub.f32 %v300, %v5880
    %v5882 = vand.u32 %v5881, 4294901760
    %v5883 = vsub.f32 %v5881, %v5882
    %v5884 = vand.u32 %v5883, 4294901760
    %5885 = vmatpush2.msra.mxu0 %v5884
    %5886 = vmatprep.subr.mxu0 0.0
    %v5887 = vand.u32 %v299, 4294901760
    %v5888 = vsub.f32 %v299, %v5887
    %v5889 = vand.u32 %v5888, 4294901760
    %v5890 = vsub.f32 %v5888, %v5889
    %v5891 = vand.u32 %v5890, 4294901760
    %5892 = vmatpush2.msra.mxu0 %v5891
    %5893 = vmatprep.subr.mxu0 0.0
    %v5894 = vand.u32 %v298, 4294901760
    %v5895 = vsub.f32 %v298, %v5894
    %v5896 = vand.u32 %v5895, 4294901760
    %v5897 = vsub.f32 %v5895, %v5896
    %v5898 = vand.u32 %v5897, 4294901760
    %5899 = vmatpush2.msra.mxu0 %v5898
    %5900 = vmatprep.subr.mxu0 0.0
    %v5901 = vand.u32 %v297, 4294901760
    %v5902 = vsub.f32 %v297, %v5901
    %v5903 = vand.u32 %v5902, 4294901760
    %v5904 = vsub.f32 %v5902, %v5903
    %v5905 = vand.u32 %v5904, 4294901760
    %5906 = vmatpush2.msra.mxu0 %v5905
    %5907 = vmatprep.subr.mxu0 0.0
    %v5908 = vand.u32 %v296, 4294901760
    %v5909 = vsub.f32 %v296, %v5908
    %v5910 = vand.u32 %v5909, 4294901760
    %v5911 = vsub.f32 %v5909, %v5910
    %v5912 = vand.u32 %v5911, 4294901760
    %5913 = vmatpush2.msra.mxu0 %v5912
    %5914 = vmatprep.subr.mxu0 0.0
    %v5915 = vand.u32 %v295, 4294901760
    %v5916 = vsub.f32 %v295, %v5915
    %v5917 = vand.u32 %v5916, 4294901760
    %v5918 = vsub.f32 %v5916, %v5917
    %v5919 = vand.u32 %v5918, 4294901760
    %5920 = vmatpush2.msra.mxu0 %v5919
    %5921 = vmatprep.subr.mxu0 0.0
    %v5922 = vand.u32 %v294, 4294901760
    %v5923 = vsub.f32 %v294, %v5922
    %v5924 = vand.u32 %v5923, 4294901760
    %v5925 = vsub.f32 %v5923, %v5924
    %v5926 = vand.u32 %v5925, 4294901760
    %5927 = vmatpush2.msra.mxu0 %v5926
    %5928 = vmatprep.subr.mxu0 0.0
    %v5929 = vand.u32 %v293, 4294901760
    %v5930 = vsub.f32 %v293, %v5929
    %v5931 = vand.u32 %v5930, 4294901760
    %v5932 = vsub.f32 %v5930, %v5931
    %v5933 = vand.u32 %v5932, 4294901760
    %5934 = vmatpush2.msra.mxu0 %v5933
    %5935 = vmatprep.subr.mxu0 0.0
    %v5936 = vand.u32 %v292, 4294901760
    %v5937 = vsub.f32 %v292, %v5936
    %v5938 = vand.u32 %v5937, 4294901760
    %v5939 = vsub.f32 %v5937, %v5938
    %v5940 = vand.u32 %v5939, 4294901760
    %5941 = vmatpush2.msra.mxu0 %v5940
    %5942 = vmatprep.subr.mxu0 0.0
    %v5943 = vand.u32 %v291, 4294901760
    %v5944 = vsub.f32 %v291, %v5943
    %v5945 = vand.u32 %v5944, 4294901760
    %v5946 = vsub.f32 %v5944, %v5945
    %v5947 = vand.u32 %v5946, 4294901760
    %5948 = vmatpush2.msra.mxu0 %v5947
    %5949 = vmatprep.subr.mxu0 0.0
    %v5950 = vand.u32 %v290, 4294901760
    %v5951 = vsub.f32 %v290, %v5950
    %v5952 = vand.u32 %v5951, 4294901760
    %v5953 = vsub.f32 %v5951, %v5952
    %v5954 = vand.u32 %v5953, 4294901760
    %5955 = vmatpush2.msra.mxu0 %v5954
    %5956 = vmatprep.subr.mxu0 0.0
    %v5957 = vand.u32 %v289, 4294901760
    %v5958 = vsub.f32 %v289, %v5957
    %v5959 = vand.u32 %v5958, 4294901760
    %v5960 = vsub.f32 %v5958, %v5959
    %v5961 = vand.u32 %v5960, 4294901760
    %5962 = vmatpush2.msra.mxu0 %v5961
    %5963 = vmatprep.subr.mxu0 0.0
    %v5964 = vand.u32 %v288, 4294901760
    %v5965 = vsub.f32 %v288, %v5964
    %v5966 = vand.u32 %v5965, 4294901760
    %v5967 = vsub.f32 %v5965, %v5966
    %v5968 = vand.u32 %v5967, 4294901760
    %5969 = vmatpush2.msra.mxu0 %v5968
    %5970 = vmatprep.subr.mxu0 0.0
    %v5971 = vand.u32 %v287, 4294901760
    %v5972 = vsub.f32 %v287, %v5971
    %v5973 = vand.u32 %v5972, 4294901760
    %v5974 = vsub.f32 %v5972, %v5973
    %v5975 = vand.u32 %v5974, 4294901760
    %5976 = vmatpush2.msra.mxu0 %v5975
    %5977 = vmatprep.subr.mxu0 0.0
    %v5978 = vand.u32 %v286, 4294901760
    %v5979 = vsub.f32 %v286, %v5978
    %v5980 = vand.u32 %v5979, 4294901760
    %v5981 = vsub.f32 %v5979, %v5980
    %v5982 = vand.u32 %v5981, 4294901760
    %5983 = vmatpush2.msra.mxu0 %v5982
    %5984 = vmatprep.subr.mxu0 0.0
    %v5985 = vand.u32 %v285, 4294901760
    %v5986 = vsub.f32 %v285, %v5985
    %v5987 = vand.u32 %v5986, 4294901760
    %v5988 = vsub.f32 %v5986, %v5987
    %v5989 = vand.u32 %v5988, 4294901760
    %5990 = vmatpush2.msra.mxu0 %v5989
    %v5991 = vand.u32 %v141, 4294901760
    %5992 = vmatprep.mubr.f32.mxu0 %v5991
    %v5993 = vand.u32 %v123, 4294901760
    %5994 = vmatmul.mubr.f32.gmra.mxu0 %v5993
    %v5995 = vpop.f32.mrf.mxu0
    %v5996 = vadd.f32 %v5539, %v5995
    %v5997 = vpop.f32.mrf.mxu0
    %v5998 = vand.u32 %v142, 4294901760
    %5999 = vmatprep.mubr.f32.mxu0 %v5998
    %v6000 = vand.u32 %v124, 4294901760
    %6001 = vmatmul.mubr.f32.gmra.mxu0 %v6000
    %v6002 = vpop.f32.mrf.mxu0
    %v6003 = vadd.f32 %v5554, %v6002
    %v6004 = vpop.f32.mrf.mxu0
    %v6005 = vand.u32 %v143, 4294901760
    %6006 = vmatprep.mubr.f32.mxu0 %v6005
    %v6007 = vand.u32 %v125, 4294901760
    %6008 = vmatmul.mubr.f32.gmra.mxu0 %v6007
    %v6009 = vpop.f32.mrf.mxu0
    %v6010 = vadd.f32 %v5569, %v6009
    %v6011 = vpop.f32.mrf.mxu0
    %v6012 = vand.u32 %v144, 4294901760
    %6013 = vmatprep.mubr.f32.mxu0 %v6012
    %v6014 = vand.u32 %v126, 4294901760
    %6015 = vmatmul.mubr.f32.gmra.mxu0 %v6014
    %v6016 = vpop.f32.mrf.mxu0
    %v6017 = vadd.f32 %v5584, %v6016
    %v6018 = vpop.f32.mrf.mxu0
    %v6019 = vand.u32 %v145, 4294901760
    %6020 = vmatprep.mubr.f32.mxu0 %v6019
    %v6021 = vand.u32 %v127, 4294901760
    %6022 = vmatmul.mubr.f32.gmra.mxu0 %v6021
    %v6023 = vpop.f32.mrf.mxu0
    %v6024 = vadd.f32 %v5599, %v6023
    %v6025 = vpop.f32.mrf.mxu0
    %v6026 = vand.u32 %v146, 4294901760
    %6027 = vmatprep.mubr.f32.mxu0 %v6026
    %v6028 = vand.u32 %v128, 4294901760
    %6029 = vmatmul.mubr.f32.gmra.mxu0 %v6028
    %v6030 = vpop.f32.mrf.mxu0
    %v6031 = vadd.f32 %v5614, %v6030
    %v6032 = vpop.f32.mrf.mxu0
    %v6033 = vand.u32 %v147, 4294901760
    %6034 = vmatprep.mubr.f32.mxu0 %v6033
    %v6035 = vand.u32 %v129, 4294901760
    %6036 = vmatmul.mubr.f32.gmra.mxu0 %v6035
    %v6037 = vpop.f32.mrf.mxu0
    %v6038 = vadd.f32 %v5629, %v6037
    %v6039 = vpop.f32.mrf.mxu0
    %v6040 = vand.u32 %v148, 4294901760
    %6041 = vmatprep.mubr.f32.mxu0 %v6040
    %v6042 = vand.u32 %v130, 4294901760
    %6043 = vmatmul.mubr.f32.gmra.mxu0 %v6042
    %v6044 = vpop.f32.mrf.mxu0
    %v6045 = vadd.f32 %v5644, %v6044
    %v6046 = vpop.f32.mrf.mxu0
    %v6047 = vand.u32 %v149, 4294901760
    %6048 = vmatprep.mubr.f32.mxu0 %v6047
    %v6049 = vand.u32 %v131, 4294901760
    %6050 = vmatmul.mubr.f32.gmra.mxu0 %v6049
    %v6051 = vpop.f32.mrf.mxu0
    %v6052 = vadd.f32 %v5659, %v6051
    %v6053 = vpop.f32.mrf.mxu0
    %v6054 = vand.u32 %v150, 4294901760
    %6055 = vmatprep.mubr.f32.mxu0 %v6054
    %v6056 = vand.u32 %v132, 4294901760
    %6057 = vmatmul.mubr.f32.gmra.mxu0 %v6056
    %v6058 = vpop.f32.mrf.mxu0
    %v6059 = vadd.f32 %v5674, %v6058
    %v6060 = vpop.f32.mrf.mxu0
    %v6061 = vand.u32 %v151, 4294901760
    %6062 = vmatprep.mubr.f32.mxu0 %v6061
    %v6063 = vand.u32 %v133, 4294901760
    %6064 = vmatmul.mubr.f32.gmra.mxu0 %v6063
    %v6065 = vpop.f32.mrf.mxu0
    %v6066 = vadd.f32 %v5689, %v6065
    %v6067 = vpop.f32.mrf.mxu0
    %v6068 = vand.u32 %v152, 4294901760
    %6069 = vmatprep.mubr.f32.mxu0 %v6068
    %v6070 = vand.u32 %v134, 4294901760
    %6071 = vmatmul.mubr.f32.gmra.mxu0 %v6070
    %v6072 = vpop.f32.mrf.mxu0
    %v6073 = vadd.f32 %v5704, %v6072
    %v6074 = vpop.f32.mrf.mxu0
    %v6075 = vand.u32 %v153, 4294901760
    %6076 = vmatprep.mubr.f32.mxu0 %v6075
    %v6077 = vand.u32 %v135, 4294901760
    %6078 = vmatmul.mubr.f32.gmra.mxu0 %v6077
    %v6079 = vpop.f32.mrf.mxu0
    %v6080 = vadd.f32 %v5719, %v6079
    %v6081 = vpop.f32.mrf.mxu0
    %v6082 = vand.u32 %v154, 4294901760
    %6083 = vmatprep.mubr.f32.mxu0 %v6082
    %v6084 = vand.u32 %v136, 4294901760
    %6085 = vmatmul.mubr.f32.gmra.mxu0 %v6084
    %v6086 = vpop.f32.mrf.mxu0
    %v6087 = vadd.f32 %v5734, %v6086
    %v6088 = vpop.f32.mrf.mxu0
    %v6089 = vand.u32 %v155, 4294901760
    %6090 = vmatprep.mubr.f32.mxu0 %v6089
    %v6091 = vand.u32 %v137, 4294901760
    %6092 = vmatmul.mubr.f32.gmra.mxu0 %v6091
    %v6093 = vpop.f32.mrf.mxu0
    %v6094 = vadd.f32 %v5749, %v6093
    %v6095 = vpop.f32.mrf.mxu0
    %v6096 = vand.u32 %v156, 4294901760
    %6097 = vmatprep.mubr.f32.mxu0 %v6096
    %v6098 = vand.u32 %v138, 4294901760
    %6099 = vmatmul.mubr.f32.gmra.mxu0 %v6098
    %v6100 = vpop.f32.mrf.mxu0
    %v6101 = vadd.f32 %v5764, %v6100
    %v6102 = vpop.f32.mrf.mxu0
    %6103 = vdwg.mxu0
    %6104 = vmatprep.subr.mxu0 0.0
    %v6105 = vand.u32 %v284, 4294901760
    %v6106 = vsub.f32 %v284, %v6105
    %6107 = vmatpush1.msra.mxu0 %v6106
    %6108 = vmatprep.subr.mxu0 0.0
    %v6109 = vand.u32 %v283, 4294901760
    %v6110 = vsub.f32 %v283, %v6109
    %6111 = vmatpush1.msra.mxu0 %v6110
    %6112 = vmatprep.subr.mxu0 0.0
    %v6113 = vand.u32 %v282, 4294901760
    %v6114 = vsub.f32 %v282, %v6113
    %6115 = vmatpush1.msra.mxu0 %v6114
    %6116 = vmatprep.subr.mxu0 0.0
    %v6117 = vand.u32 %v281, 4294901760
    %v6118 = vsub.f32 %v281, %v6117
    %6119 = vmatpush1.msra.mxu0 %v6118
    %6120 = vmatprep.subr.mxu0 0.0
    %v6121 = vand.u32 %v280, 4294901760
    %v6122 = vsub.f32 %v280, %v6121
    %6123 = vmatpush1.msra.mxu0 %v6122
    %6124 = vmatprep.subr.mxu0 0.0
    %v6125 = vand.u32 %v279, 4294901760
    %v6126 = vsub.f32 %v279, %v6125
    %6127 = vmatpush1.msra.mxu0 %v6126
    %6128 = vmatprep.subr.mxu0 0.0
    %v6129 = vand.u32 %v278, 4294901760
    %v6130 = vsub.f32 %v278, %v6129
    %6131 = vmatpush1.msra.mxu0 %v6130
    %6132 = vmatprep.subr.mxu0 0.0
    %v6133 = vand.u32 %v277, 4294901760
    %v6134 = vsub.f32 %v277, %v6133
    %6135 = vmatpush1.msra.mxu0 %v6134
    %6136 = vmatprep.subr.mxu0 0.0
    %v6137 = vand.u32 %v276, 4294901760
    %v6138 = vsub.f32 %v276, %v6137
    %6139 = vmatpush1.msra.mxu0 %v6138
    %6140 = vmatprep.subr.mxu0 0.0
    %v6141 = vand.u32 %v275, 4294901760
    %v6142 = vsub.f32 %v275, %v6141
    %6143 = vmatpush1.msra.mxu0 %v6142
    %6144 = vmatprep.subr.mxu0 0.0
    %v6145 = vand.u32 %v274, 4294901760
    %v6146 = vsub.f32 %v274, %v6145
    %6147 = vmatpush1.msra.mxu0 %v6146
    %6148 = vmatprep.subr.mxu0 0.0
    %v6149 = vand.u32 %v273, 4294901760
    %v6150 = vsub.f32 %v273, %v6149
    %6151 = vmatpush1.msra.mxu0 %v6150
    %6152 = vmatprep.subr.mxu0 0.0
    %v6153 = vand.u32 %v272, 4294901760
    %v6154 = vsub.f32 %v272, %v6153
    %6155 = vmatpush1.msra.mxu0 %v6154
    %6156 = vmatprep.subr.mxu0 0.0
    %v6157 = vand.u32 %v271, 4294901760
    %v6158 = vsub.f32 %v271, %v6157
    %6159 = vmatpush1.msra.mxu0 %v6158
    %6160 = vmatprep.subr.mxu0 0.0
    %v6161 = vand.u32 %v270, 4294901760
    %v6162 = vsub.f32 %v270, %v6161
    %6163 = vmatpush1.msra.mxu0 %v6162
    %6164 = vmatprep.subr.mxu0 0.0
    %v6165 = vand.u32 %v269, 4294901760
    %v6166 = vsub.f32 %v269, %v6165
    %6167 = vmatpush1.msra.mxu0 %v6166
    %6168 = vmatprep.subr.mxu0 0.0
    %v6169 = vand.u32 %v300, 4294901760
    %v6170 = vsub.f32 %v300, %v6169
    %6171 = vmatpush2.msra.mxu0 %v6170
    %6172 = vmatprep.subr.mxu0 0.0
    %v6173 = vand.u32 %v299, 4294901760
    %v6174 = vsub.f32 %v299, %v6173
    %6175 = vmatpush2.msra.mxu0 %v6174
    %6176 = vmatprep.subr.mxu0 0.0
    %v6177 = vand.u32 %v298, 4294901760
    %v6178 = vsub.f32 %v298, %v6177
    %6179 = vmatpush2.msra.mxu0 %v6178
    %6180 = vmatprep.subr.mxu0 0.0
    %v6181 = vand.u32 %v297, 4294901760
    %v6182 = vsub.f32 %v297, %v6181
    %6183 = vmatpush2.msra.mxu0 %v6182
    %6184 = vmatprep.subr.mxu0 0.0
    %v6185 = vand.u32 %v296, 4294901760
    %v6186 = vsub.f32 %v296, %v6185
    %6187 = vmatpush2.msra.mxu0 %v6186
    %6188 = vmatprep.subr.mxu0 0.0
    %v6189 = vand.u32 %v295, 4294901760
    %v6190 = vsub.f32 %v295, %v6189
    %6191 = vmatpush2.msra.mxu0 %v6190
    %6192 = vmatprep.subr.mxu0 0.0
    %v6193 = vand.u32 %v294, 4294901760
    %v6194 = vsub.f32 %v294, %v6193
    %6195 = vmatpush2.msra.mxu0 %v6194
    %6196 = vmatprep.subr.mxu0 0.0
    %v6197 = vand.u32 %v293, 4294901760
    %v6198 = vsub.f32 %v293, %v6197
    %6199 = vmatpush2.msra.mxu0 %v6198
    %6200 = vmatprep.subr.mxu0 0.0
    %v6201 = vand.u32 %v292, 4294901760
    %v6202 = vsub.f32 %v292, %v6201
    %6203 = vmatpush2.msra.mxu0 %v6202
    %6204 = vmatprep.subr.mxu0 0.0
    %v6205 = vand.u32 %v291, 4294901760
    %v6206 = vsub.f32 %v291, %v6205
    %6207 = vmatpush2.msra.mxu0 %v6206
    %6208 = vmatprep.subr.mxu0 0.0
    %v6209 = vand.u32 %v290, 4294901760
    %v6210 = vsub.f32 %v290, %v6209
    %6211 = vmatpush2.msra.mxu0 %v6210
    %6212 = vmatprep.subr.mxu0 0.0
    %v6213 = vand.u32 %v289, 4294901760
    %v6214 = vsub.f32 %v289, %v6213
    %6215 = vmatpush2.msra.mxu0 %v6214
    %6216 = vmatprep.subr.mxu0 0.0
    %v6217 = vand.u32 %v288, 4294901760
    %v6218 = vsub.f32 %v288, %v6217
    %6219 = vmatpush2.msra.mxu0 %v6218
    %6220 = vmatprep.subr.mxu0 0.0
    %v6221 = vand.u32 %v287, 4294901760
    %v6222 = vsub.f32 %v287, %v6221
    %6223 = vmatpush2.msra.mxu0 %v6222
    %6224 = vmatprep.subr.mxu0 0.0
    %v6225 = vand.u32 %v286, 4294901760
    %v6226 = vsub.f32 %v286, %v6225
    %6227 = vmatpush2.msra.mxu0 %v6226
    %6228 = vmatprep.subr.mxu0 0.0
    %v6229 = vand.u32 %v285, 4294901760
    %v6230 = vsub.f32 %v285, %v6229
    %6231 = vmatpush2.msra.mxu0 %v6230
    %v6232 = vand.u32 %v141, 4294901760
    %v6233 = vsub.f32 %v141, %v6232
    %6234 = vmatprep.mubr.f32.mxu0 %v6233
    %v6235 = vand.u32 %v123, 4294901760
    %v6236 = vsub.f32 %v123, %v6235
    %6237 = vmatmul.mubr.f32.gmra.mxu0 %v6236
    %v6238 = vpop.f32.mrf.mxu0
    %v6239 = vadd.f32 %v5996, %v6238
    %v6240 = vpop.f32.mrf.mxu0
    %v6241 = vand.u32 %v142, 4294901760
    %v6242 = vsub.f32 %v142, %v6241
    %6243 = vmatprep.mubr.f32.mxu0 %v6242
    %v6244 = vand.u32 %v124, 4294901760
    %v6245 = vsub.f32 %v124, %v6244
    %6246 = vmatmul.mubr.f32.gmra.mxu0 %v6245
    %v6247 = vpop.f32.mrf.mxu0
    %v6248 = vadd.f32 %v6003, %v6247
    %v6249 = vpop.f32.mrf.mxu0
    %v6250 = vand.u32 %v143, 4294901760
    %v6251 = vsub.f32 %v143, %v6250
    %6252 = vmatprep.mubr.f32.mxu0 %v6251
    %v6253 = vand.u32 %v125, 4294901760
    %v6254 = vsub.f32 %v125, %v6253
    %6255 = vmatmul.mubr.f32.gmra.mxu0 %v6254
    %v6256 = vpop.f32.mrf.mxu0
    %v6257 = vadd.f32 %v6010, %v6256
    %v6258 = vpop.f32.mrf.mxu0
    %v6259 = vand.u32 %v144, 4294901760
    %v6260 = vsub.f32 %v144, %v6259
    %6261 = vmatprep.mubr.f32.mxu0 %v6260
    %v6262 = vand.u32 %v126, 4294901760
    %v6263 = vsub.f32 %v126, %v6262
    %6264 = vmatmul.mubr.f32.gmra.mxu0 %v6263
    %v6265 = vpop.f32.mrf.mxu0
    %v6266 = vadd.f32 %v6017, %v6265
    %v6267 = vpop.f32.mrf.mxu0
    %v6268 = vand.u32 %v145, 4294901760
    %v6269 = vsub.f32 %v145, %v6268
    %6270 = vmatprep.mubr.f32.mxu0 %v6269
    %v6271 = vand.u32 %v127, 4294901760
    %v6272 = vsub.f32 %v127, %v6271
    %6273 = vmatmul.mubr.f32.gmra.mxu0 %v6272
    %v6274 = vpop.f32.mrf.mxu0
    %v6275 = vadd.f32 %v6024, %v6274
    %v6276 = vpop.f32.mrf.mxu0
    %v6277 = vand.u32 %v146, 4294901760
    %v6278 = vsub.f32 %v146, %v6277
    %6279 = vmatprep.mubr.f32.mxu0 %v6278
    %v6280 = vand.u32 %v128, 4294901760
    %v6281 = vsub.f32 %v128, %v6280
    %6282 = vmatmul.mubr.f32.gmra.mxu0 %v6281
    %v6283 = vpop.f32.mrf.mxu0
    %v6284 = vadd.f32 %v6031, %v6283
    %v6285 = vpop.f32.mrf.mxu0
    %v6286 = vand.u32 %v147, 4294901760
    %v6287 = vsub.f32 %v147, %v6286
    %6288 = vmatprep.mubr.f32.mxu0 %v6287
    %v6289 = vand.u32 %v129, 4294901760
    %v6290 = vsub.f32 %v129, %v6289
    %6291 = vmatmul.mubr.f32.gmra.mxu0 %v6290
    %v6292 = vpop.f32.mrf.mxu0
    %v6293 = vadd.f32 %v6038, %v6292
    %v6294 = vpop.f32.mrf.mxu0
    %v6295 = vand.u32 %v148, 4294901760
    %v6296 = vsub.f32 %v148, %v6295
    %6297 = vmatprep.mubr.f32.mxu0 %v6296
    %v6298 = vand.u32 %v130, 4294901760
    %v6299 = vsub.f32 %v130, %v6298
    %6300 = vmatmul.mubr.f32.gmra.mxu0 %v6299
    %v6301 = vpop.f32.mrf.mxu0
    %v6302 = vadd.f32 %v6045, %v6301
    %v6303 = vpop.f32.mrf.mxu0
    %v6304 = vand.u32 %v149, 4294901760
    %v6305 = vsub.f32 %v149, %v6304
    %6306 = vmatprep.mubr.f32.mxu0 %v6305
    %v6307 = vand.u32 %v131, 4294901760
    %v6308 = vsub.f32 %v131, %v6307
    %6309 = vmatmul.mubr.f32.gmra.mxu0 %v6308
    %v6310 = vpop.f32.mrf.mxu0
    %v6311 = vadd.f32 %v6052, %v6310
    %v6312 = vpop.f32.mrf.mxu0
    %v6313 = vand.u32 %v150, 4294901760
    %v6314 = vsub.f32 %v150, %v6313
    %6315 = vmatprep.mubr.f32.mxu0 %v6314
    %v6316 = vand.u32 %v132, 4294901760
    %v6317 = vsub.f32 %v132, %v6316
    %6318 = vmatmul.mubr.f32.gmra.mxu0 %v6317
    %v6319 = vpop.f32.mrf.mxu0
    %v6320 = vadd.f32 %v6059, %v6319
    %v6321 = vpop.f32.mrf.mxu0
    %v6322 = vand.u32 %v151, 4294901760
    %v6323 = vsub.f32 %v151, %v6322
    %6324 = vmatprep.mubr.f32.mxu0 %v6323
    %v6325 = vand.u32 %v133, 4294901760
    %v6326 = vsub.f32 %v133, %v6325
    %6327 = vmatmul.mubr.f32.gmra.mxu0 %v6326
    %v6328 = vpop.f32.mrf.mxu0
    %v6329 = vadd.f32 %v6066, %v6328
    %v6330 = vpop.f32.mrf.mxu0
    %v6331 = vand.u32 %v152, 4294901760
    %v6332 = vsub.f32 %v152, %v6331
    %6333 = vmatprep.mubr.f32.mxu0 %v6332
    %v6334 = vand.u32 %v134, 4294901760
    %v6335 = vsub.f32 %v134, %v6334
    %6336 = vmatmul.mubr.f32.gmra.mxu0 %v6335
    %v6337 = vpop.f32.mrf.mxu0
    %v6338 = vadd.f32 %v6073, %v6337
    %v6339 = vpop.f32.mrf.mxu0
    %v6340 = vand.u32 %v153, 4294901760
    %v6341 = vsub.f32 %v153, %v6340
    %6342 = vmatprep.mubr.f32.mxu0 %v6341
    %v6343 = vand.u32 %v135, 4294901760
    %v6344 = vsub.f32 %v135, %v6343
    %6345 = vmatmul.mubr.f32.gmra.mxu0 %v6344
    %v6346 = vpop.f32.mrf.mxu0
    %v6347 = vadd.f32 %v6080, %v6346
    %v6348 = vpop.f32.mrf.mxu0
    %v6349 = vand.u32 %v154, 4294901760
    %v6350 = vsub.f32 %v154, %v6349
    %6351 = vmatprep.mubr.f32.mxu0 %v6350
    %v6352 = vand.u32 %v136, 4294901760
    %v6353 = vsub.f32 %v136, %v6352
    %6354 = vmatmul.mubr.f32.gmra.mxu0 %v6353
    %v6355 = vpop.f32.mrf.mxu0
    %v6356 = vadd.f32 %v6087, %v6355
    %v6357 = vpop.f32.mrf.mxu0
    %v6358 = vand.u32 %v155, 4294901760
    %v6359 = vsub.f32 %v155, %v6358
    %6360 = vmatprep.mubr.f32.mxu0 %v6359
    %v6361 = vand.u32 %v137, 4294901760
    %v6362 = vsub.f32 %v137, %v6361
    %6363 = vmatmul.mubr.f32.gmra.mxu0 %v6362
    %v6364 = vpop.f32.mrf.mxu0
    %v6365 = vadd.f32 %v6094, %v6364
    %v6366 = vpop.f32.mrf.mxu0
    %v6367 = vand.u32 %v156, 4294901760
    %v6368 = vsub.f32 %v156, %v6367
    %6369 = vmatprep.mubr.f32.mxu0 %v6368
    %v6370 = vand.u32 %v138, 4294901760
    %v6371 = vsub.f32 %v138, %v6370
    %6372 = vmatmul.mubr.f32.gmra.mxu0 %v6371
    %v6373 = vpop.f32.mrf.mxu0
    %v6374 = vadd.f32 %v6101, %v6373
    %v6375 = vpop.f32.mrf.mxu0
    %6376 = vdwg.mxu0
    %6377 = vmatprep.subr.mxu0 0.0
    %v6378 = vand.u32 %v284, 4294901760
    %6379 = vmatpush1.msra.mxu0 %v6378
    %6380 = vmatprep.subr.mxu0 0.0
    %v6381 = vand.u32 %v283, 4294901760
    %6382 = vmatpush1.msra.mxu0 %v6381
    %6383 = vmatprep.subr.mxu0 0.0
    %v6384 = vand.u32 %v282, 4294901760
    %6385 = vmatpush1.msra.mxu0 %v6384
    %6386 = vmatprep.subr.mxu0 0.0
    %v6387 = vand.u32 %v281, 4294901760
    %6388 = vmatpush1.msra.mxu0 %v6387
    %6389 = vmatprep.subr.mxu0 0.0
    %v6390 = vand.u32 %v280, 4294901760
    %6391 = vmatpush1.msra.mxu0 %v6390
    %6392 = vmatprep.subr.mxu0 0.0
    %v6393 = vand.u32 %v279, 4294901760
    %6394 = vmatpush1.msra.mxu0 %v6393
    %6395 = vmatprep.subr.mxu0 0.0
    %v6396 = vand.u32 %v278, 4294901760
    %6397 = vmatpush1.msra.mxu0 %v6396
    %6398 = vmatprep.subr.mxu0 0.0
    %v6399 = vand.u32 %v277, 4294901760
    %6400 = vmatpush1.msra.mxu0 %v6399
    %6401 = vmatprep.subr.mxu0 0.0
    %v6402 = vand.u32 %v276, 4294901760
    %6403 = vmatpush1.msra.mxu0 %v6402
    %6404 = vmatprep.subr.mxu0 0.0
    %v6405 = vand.u32 %v275, 4294901760
    %6406 = vmatpush1.msra.mxu0 %v6405
    %6407 = vmatprep.subr.mxu0 0.0
    %v6408 = vand.u32 %v274, 4294901760
    %6409 = vmatpush1.msra.mxu0 %v6408
    %6410 = vmatprep.subr.mxu0 0.0
    %v6411 = vand.u32 %v273, 4294901760
    %6412 = vmatpush1.msra.mxu0 %v6411
    %6413 = vmatprep.subr.mxu0 0.0
    %v6414 = vand.u32 %v272, 4294901760
    %6415 = vmatpush1.msra.mxu0 %v6414
    %6416 = vmatprep.subr.mxu0 0.0
    %v6417 = vand.u32 %v271, 4294901760
    %6418 = vmatpush1.msra.mxu0 %v6417
    %6419 = vmatprep.subr.mxu0 0.0
    %v6420 = vand.u32 %v270, 4294901760
    %6421 = vmatpush1.msra.mxu0 %v6420
    %6422 = vmatprep.subr.mxu0 0.0
    %v6423 = vand.u32 %v269, 4294901760
    %6424 = vmatpush1.msra.mxu0 %v6423
    %6425 = vmatprep.subr.mxu0 0.0
    %v6426 = vand.u32 %v300, 4294901760
    %6427 = vmatpush2.msra.mxu0 %v6426
    %6428 = vmatprep.subr.mxu0 0.0
    %v6429 = vand.u32 %v299, 4294901760
    %6430 = vmatpush2.msra.mxu0 %v6429
    %6431 = vmatprep.subr.mxu0 0.0
    %v6432 = vand.u32 %v298, 4294901760
    %6433 = vmatpush2.msra.mxu0 %v6432
    %6434 = vmatprep.subr.mxu0 0.0
    %v6435 = vand.u32 %v297, 4294901760
    %6436 = vmatpush2.msra.mxu0 %v6435
    %6437 = vmatprep.subr.mxu0 0.0
    %v6438 = vand.u32 %v296, 4294901760
    %6439 = vmatpush2.msra.mxu0 %v6438
    %6440 = vmatprep.subr.mxu0 0.0
    %v6441 = vand.u32 %v295, 4294901760
    %6442 = vmatpush2.msra.mxu0 %v6441
    %6443 = vmatprep.subr.mxu0 0.0
    %v6444 = vand.u32 %v294, 4294901760
    %6445 = vmatpush2.msra.mxu0 %v6444
    %6446 = vmatprep.subr.mxu0 0.0
    %v6447 = vand.u32 %v293, 4294901760
    %6448 = vmatpush2.msra.mxu0 %v6447
    %6449 = vmatprep.subr.mxu0 0.0
    %v6450 = vand.u32 %v292, 4294901760
    %6451 = vmatpush2.msra.mxu0 %v6450
    %6452 = vmatprep.subr.mxu0 0.0
    %v6453 = vand.u32 %v291, 4294901760
    %6454 = vmatpush2.msra.mxu0 %v6453
    %6455 = vmatprep.subr.mxu0 0.0
    %v6456 = vand.u32 %v290, 4294901760
    %6457 = vmatpush2.msra.mxu0 %v6456
    %6458 = vmatprep.subr.mxu0 0.0
    %v6459 = vand.u32 %v289, 4294901760
    %6460 = vmatpush2.msra.mxu0 %v6459
    %6461 = vmatprep.subr.mxu0 0.0
    %v6462 = vand.u32 %v288, 4294901760
    %6463 = vmatpush2.msra.mxu0 %v6462
    %6464 = vmatprep.subr.mxu0 0.0
    %v6465 = vand.u32 %v287, 4294901760
    %6466 = vmatpush2.msra.mxu0 %v6465
    %6467 = vmatprep.subr.mxu0 0.0
    %v6468 = vand.u32 %v286, 4294901760
    %6469 = vmatpush2.msra.mxu0 %v6468
    %6470 = vmatprep.subr.mxu0 0.0
    %v6471 = vand.u32 %v285, 4294901760
    %6472 = vmatpush2.msra.mxu0 %v6471
    %v6473 = vand.u32 %v141, 4294901760
    %v6474 = vsub.f32 %v141, %v6473
    %v6475 = vand.u32 %v6474, 4294901760
    %6476 = vmatprep.mubr.f32.mxu0 %v6475
    %v6477 = vand.u32 %v123, 4294901760
    %v6478 = vsub.f32 %v123, %v6477
    %v6479 = vand.u32 %v6478, 4294901760
    %6480 = vmatmul.mubr.f32.gmra.mxu0 %v6479
    %v6481 = vpop.f32.mrf.mxu0
    %v6482 = vadd.f32 %v6239, %v6481
    %v6483 = vpop.f32.mrf.mxu0
    %v6484 = vand.u32 %v142, 4294901760
    %v6485 = vsub.f32 %v142, %v6484
    %v6486 = vand.u32 %v6485, 4294901760
    %6487 = vmatprep.mubr.f32.mxu0 %v6486
    %v6488 = vand.u32 %v124, 4294901760
    %v6489 = vsub.f32 %v124, %v6488
    %v6490 = vand.u32 %v6489, 4294901760
    %6491 = vmatmul.mubr.f32.gmra.mxu0 %v6490
    %v6492 = vpop.f32.mrf.mxu0
    %v6493 = vadd.f32 %v6248, %v6492
    %v6494 = vpop.f32.mrf.mxu0
    %v6495 = vand.u32 %v143, 4294901760
    %v6496 = vsub.f32 %v143, %v6495
    %v6497 = vand.u32 %v6496, 4294901760
    %6498 = vmatprep.mubr.f32.mxu0 %v6497
    %v6499 = vand.u32 %v125, 4294901760
    %v6500 = vsub.f32 %v125, %v6499
    %v6501 = vand.u32 %v6500, 4294901760
    %6502 = vmatmul.mubr.f32.gmra.mxu0 %v6501
    %v6503 = vpop.f32.mrf.mxu0
    %v6504 = vadd.f32 %v6257, %v6503
    %v6505 = vpop.f32.mrf.mxu0
    %v6506 = vand.u32 %v144, 4294901760
    %v6507 = vsub.f32 %v144, %v6506
    %v6508 = vand.u32 %v6507, 4294901760
    %6509 = vmatprep.mubr.f32.mxu0 %v6508
    %v6510 = vand.u32 %v126, 4294901760
    %v6511 = vsub.f32 %v126, %v6510
    %v6512 = vand.u32 %v6511, 4294901760
    %6513 = vmatmul.mubr.f32.gmra.mxu0 %v6512
    %v6514 = vpop.f32.mrf.mxu0
    %v6515 = vadd.f32 %v6266, %v6514
    %v6516 = vpop.f32.mrf.mxu0
    %v6517 = vand.u32 %v145, 4294901760
    %v6518 = vsub.f32 %v145, %v6517
    %v6519 = vand.u32 %v6518, 4294901760
    %6520 = vmatprep.mubr.f32.mxu0 %v6519
    %v6521 = vand.u32 %v127, 4294901760
    %v6522 = vsub.f32 %v127, %v6521
    %v6523 = vand.u32 %v6522, 4294901760
    %6524 = vmatmul.mubr.f32.gmra.mxu0 %v6523
    %v6525 = vpop.f32.mrf.mxu0
    %v6526 = vadd.f32 %v6275, %v6525
    %v6527 = vpop.f32.mrf.mxu0
    %v6528 = vand.u32 %v146, 4294901760
    %v6529 = vsub.f32 %v146, %v6528
    %v6530 = vand.u32 %v6529, 4294901760
    %6531 = vmatprep.mubr.f32.mxu0 %v6530
    %v6532 = vand.u32 %v128, 4294901760
    %v6533 = vsub.f32 %v128, %v6532
    %v6534 = vand.u32 %v6533, 4294901760
    %6535 = vmatmul.mubr.f32.gmra.mxu0 %v6534
    %v6536 = vpop.f32.mrf.mxu0
    %v6537 = vadd.f32 %v6284, %v6536
    %v6538 = vpop.f32.mrf.mxu0
    %v6539 = vand.u32 %v147, 4294901760
    %v6540 = vsub.f32 %v147, %v6539
    %v6541 = vand.u32 %v6540, 4294901760
    %6542 = vmatprep.mubr.f32.mxu0 %v6541
    %v6543 = vand.u32 %v129, 4294901760
    %v6544 = vsub.f32 %v129, %v6543
    %v6545 = vand.u32 %v6544, 4294901760
    %6546 = vmatmul.mubr.f32.gmra.mxu0 %v6545
    %v6547 = vpop.f32.mrf.mxu0
    %v6548 = vadd.f32 %v6293, %v6547
    %v6549 = vpop.f32.mrf.mxu0
    %v6550 = vand.u32 %v148, 4294901760
    %v6551 = vsub.f32 %v148, %v6550
    %v6552 = vand.u32 %v6551, 4294901760
    %6553 = vmatprep.mubr.f32.mxu0 %v6552
    %v6554 = vand.u32 %v130, 4294901760
    %v6555 = vsub.f32 %v130, %v6554
    %v6556 = vand.u32 %v6555, 4294901760
    %6557 = vmatmul.mubr.f32.gmra.mxu0 %v6556
    %v6558 = vpop.f32.mrf.mxu0
    %v6559 = vadd.f32 %v6302, %v6558
    %v6560 = vpop.f32.mrf.mxu0
    %v6561 = vand.u32 %v149, 4294901760
    %v6562 = vsub.f32 %v149, %v6561
    %v6563 = vand.u32 %v6562, 4294901760
    %6564 = vmatprep.mubr.f32.mxu0 %v6563
    %v6565 = vand.u32 %v131, 4294901760
    %v6566 = vsub.f32 %v131, %v6565
    %v6567 = vand.u32 %v6566, 4294901760
    %6568 = vmatmul.mubr.f32.gmra.mxu0 %v6567
    %v6569 = vpop.f32.mrf.mxu0
    %v6570 = vadd.f32 %v6311, %v6569
    %v6571 = vpop.f32.mrf.mxu0
    %v6572 = vand.u32 %v150, 4294901760
    %v6573 = vsub.f32 %v150, %v6572
    %v6574 = vand.u32 %v6573, 4294901760
    %6575 = vmatprep.mubr.f32.mxu0 %v6574
    %v6576 = vand.u32 %v132, 4294901760
    %v6577 = vsub.f32 %v132, %v6576
    %v6578 = vand.u32 %v6577, 4294901760
    %6579 = vmatmul.mubr.f32.gmra.mxu0 %v6578
    %v6580 = vpop.f32.mrf.mxu0
    %v6581 = vadd.f32 %v6320, %v6580
    %v6582 = vpop.f32.mrf.mxu0
    %v6583 = vand.u32 %v151, 4294901760
    %v6584 = vsub.f32 %v151, %v6583
    %v6585 = vand.u32 %v6584, 4294901760
    %6586 = vmatprep.mubr.f32.mxu0 %v6585
    %v6587 = vand.u32 %v133, 4294901760
    %v6588 = vsub.f32 %v133, %v6587
    %v6589 = vand.u32 %v6588, 4294901760
    %6590 = vmatmul.mubr.f32.gmra.mxu0 %v6589
    %v6591 = vpop.f32.mrf.mxu0
    %v6592 = vadd.f32 %v6329, %v6591
    %v6593 = vpop.f32.mrf.mxu0
    %v6594 = vand.u32 %v152, 4294901760
    %v6595 = vsub.f32 %v152, %v6594
    %v6596 = vand.u32 %v6595, 4294901760
    %6597 = vmatprep.mubr.f32.mxu0 %v6596
    %v6598 = vand.u32 %v134, 4294901760
    %v6599 = vsub.f32 %v134, %v6598
    %v6600 = vand.u32 %v6599, 4294901760
    %6601 = vmatmul.mubr.f32.gmra.mxu0 %v6600
    %v6602 = vpop.f32.mrf.mxu0
    %v6603 = vadd.f32 %v6338, %v6602
    %v6604 = vpop.f32.mrf.mxu0
    %v6605 = vand.u32 %v153, 4294901760
    %v6606 = vsub.f32 %v153, %v6605
    %v6607 = vand.u32 %v6606, 4294901760
    %6608 = vmatprep.mubr.f32.mxu0 %v6607
    %v6609 = vand.u32 %v135, 4294901760
    %v6610 = vsub.f32 %v135, %v6609
    %v6611 = vand.u32 %v6610, 4294901760
    %6612 = vmatmul.mubr.f32.gmra.mxu0 %v6611
    %v6613 = vpop.f32.mrf.mxu0
    %v6614 = vadd.f32 %v6347, %v6613
    %v6615 = vpop.f32.mrf.mxu0
    %v6616 = vand.u32 %v154, 4294901760
    %v6617 = vsub.f32 %v154, %v6616
    %v6618 = vand.u32 %v6617, 4294901760
    %6619 = vmatprep.mubr.f32.mxu0 %v6618
    %v6620 = vand.u32 %v136, 4294901760
    %v6621 = vsub.f32 %v136, %v6620
    %v6622 = vand.u32 %v6621, 4294901760
    %6623 = vmatmul.mubr.f32.gmra.mxu0 %v6622
    %v6624 = vpop.f32.mrf.mxu0
    %v6625 = vadd.f32 %v6356, %v6624
    %v6626 = vpop.f32.mrf.mxu0
    %v6627 = vand.u32 %v155, 4294901760
    %v6628 = vsub.f32 %v155, %v6627
    %v6629 = vand.u32 %v6628, 4294901760
    %6630 = vmatprep.mubr.f32.mxu0 %v6629
    %v6631 = vand.u32 %v137, 4294901760
    %v6632 = vsub.f32 %v137, %v6631
    %v6633 = vand.u32 %v6632, 4294901760
    %6634 = vmatmul.mubr.f32.gmra.mxu0 %v6633
    %v6635 = vpop.f32.mrf.mxu0
    %v6636 = vadd.f32 %v6365, %v6635
    %v6637 = vpop.f32.mrf.mxu0
    %v6638 = vand.u32 %v156, 4294901760
    %v6639 = vsub.f32 %v156, %v6638
    %v6640 = vand.u32 %v6639, 4294901760
    %6641 = vmatprep.mubr.f32.mxu0 %v6640
    %v6642 = vand.u32 %v138, 4294901760
    %v6643 = vsub.f32 %v138, %v6642
    %v6644 = vand.u32 %v6643, 4294901760
    %6645 = vmatmul.mubr.f32.gmra.mxu0 %v6644
    %v6646 = vpop.f32.mrf.mxu0
    %v6647 = vadd.f32 %v6374, %v6646
    %v6648 = vpop.f32.mrf.mxu0
    %6649 = vdwg.mxu0
    %6650 = vmatprep.subr.mxu0 0.0
    %v6651 = vand.u32 %v284, 4294901760
    %v6652 = vsub.f32 %v284, %v6651
    %v6653 = vand.u32 %v6652, 4294901760
    %6654 = vmatpush1.msra.mxu0 %v6653
    %6655 = vmatprep.subr.mxu0 0.0
    %v6656 = vand.u32 %v283, 4294901760
    %v6657 = vsub.f32 %v283, %v6656
    %v6658 = vand.u32 %v6657, 4294901760
    %6659 = vmatpush1.msra.mxu0 %v6658
    %6660 = vmatprep.subr.mxu0 0.0
    %v6661 = vand.u32 %v282, 4294901760
    %v6662 = vsub.f32 %v282, %v6661
    %v6663 = vand.u32 %v6662, 4294901760
    %6664 = vmatpush1.msra.mxu0 %v6663
    %6665 = vmatprep.subr.mxu0 0.0
    %v6666 = vand.u32 %v281, 4294901760
    %v6667 = vsub.f32 %v281, %v6666
    %v6668 = vand.u32 %v6667, 4294901760
    %6669 = vmatpush1.msra.mxu0 %v6668
    %6670 = vmatprep.subr.mxu0 0.0
    %v6671 = vand.u32 %v280, 4294901760
    %v6672 = vsub.f32 %v280, %v6671
    %v6673 = vand.u32 %v6672, 4294901760
    %6674 = vmatpush1.msra.mxu0 %v6673
    %6675 = vmatprep.subr.mxu0 0.0
    %v6676 = vand.u32 %v279, 4294901760
    %v6677 = vsub.f32 %v279, %v6676
    %v6678 = vand.u32 %v6677, 4294901760
    %6679 = vmatpush1.msra.mxu0 %v6678
    %6680 = vmatprep.subr.mxu0 0.0
    %v6681 = vand.u32 %v278, 4294901760
    %v6682 = vsub.f32 %v278, %v6681
    %v6683 = vand.u32 %v6682, 4294901760
    %6684 = vmatpush1.msra.mxu0 %v6683
    %6685 = vmatprep.subr.mxu0 0.0
    %v6686 = vand.u32 %v277, 4294901760
    %v6687 = vsub.f32 %v277, %v6686
    %v6688 = vand.u32 %v6687, 4294901760
    %6689 = vmatpush1.msra.mxu0 %v6688
    %6690 = vmatprep.subr.mxu0 0.0
    %v6691 = vand.u32 %v276, 4294901760
    %v6692 = vsub.f32 %v276, %v6691
    %v6693 = vand.u32 %v6692, 4294901760
    %6694 = vmatpush1.msra.mxu0 %v6693
    %6695 = vmatprep.subr.mxu0 0.0
    %v6696 = vand.u32 %v275, 4294901760
    %v6697 = vsub.f32 %v275, %v6696
    %v6698 = vand.u32 %v6697, 4294901760
    %6699 = vmatpush1.msra.mxu0 %v6698
    %6700 = vmatprep.subr.mxu0 0.0
    %v6701 = vand.u32 %v274, 4294901760
    %v6702 = vsub.f32 %v274, %v6701
    %v6703 = vand.u32 %v6702, 4294901760
    %6704 = vmatpush1.msra.mxu0 %v6703
    %6705 = vmatprep.subr.mxu0 0.0
    %v6706 = vand.u32 %v273, 4294901760
    %v6707 = vsub.f32 %v273, %v6706
    %v6708 = vand.u32 %v6707, 4294901760
    %6709 = vmatpush1.msra.mxu0 %v6708
    %6710 = vmatprep.subr.mxu0 0.0
    %v6711 = vand.u32 %v272, 4294901760
    %v6712 = vsub.f32 %v272, %v6711
    %v6713 = vand.u32 %v6712, 4294901760
    %6714 = vmatpush1.msra.mxu0 %v6713
    %6715 = vmatprep.subr.mxu0 0.0
    %v6716 = vand.u32 %v271, 4294901760
    %v6717 = vsub.f32 %v271, %v6716
    %v6718 = vand.u32 %v6717, 4294901760
    %6719 = vmatpush1.msra.mxu0 %v6718
    %6720 = vmatprep.subr.mxu0 0.0
    %v6721 = vand.u32 %v270, 4294901760
    %v6722 = vsub.f32 %v270, %v6721
    %v6723 = vand.u32 %v6722, 4294901760
    %6724 = vmatpush1.msra.mxu0 %v6723
    %6725 = vmatprep.subr.mxu0 0.0
    %v6726 = vand.u32 %v269, 4294901760
    %v6727 = vsub.f32 %v269, %v6726
    %v6728 = vand.u32 %v6727, 4294901760
    %6729 = vmatpush1.msra.mxu0 %v6728
    %6730 = vmatprep.subr.mxu0 0.0
    %v6731 = vand.u32 %v300, 4294901760
    %v6732 = vsub.f32 %v300, %v6731
    %v6733 = vand.u32 %v6732, 4294901760
    %6734 = vmatpush2.msra.mxu0 %v6733
    %6735 = vmatprep.subr.mxu0 0.0
    %v6736 = vand.u32 %v299, 4294901760
    %v6737 = vsub.f32 %v299, %v6736
    %v6738 = vand.u32 %v6737, 4294901760
    %6739 = vmatpush2.msra.mxu0 %v6738
    %6740 = vmatprep.subr.mxu0 0.0
    %v6741 = vand.u32 %v298, 4294901760
    %v6742 = vsub.f32 %v298, %v6741
    %v6743 = vand.u32 %v6742, 4294901760
    %6744 = vmatpush2.msra.mxu0 %v6743
    %6745 = vmatprep.subr.mxu0 0.0
    %v6746 = vand.u32 %v297, 4294901760
    %v6747 = vsub.f32 %v297, %v6746
    %v6748 = vand.u32 %v6747, 4294901760
    %6749 = vmatpush2.msra.mxu0 %v6748
    %6750 = vmatprep.subr.mxu0 0.0
    %v6751 = vand.u32 %v296, 4294901760
    %v6752 = vsub.f32 %v296, %v6751
    %v6753 = vand.u32 %v6752, 4294901760
    %6754 = vmatpush2.msra.mxu0 %v6753
    %6755 = vmatprep.subr.mxu0 0.0
    %v6756 = vand.u32 %v295, 4294901760
    %v6757 = vsub.f32 %v295, %v6756
    %v6758 = vand.u32 %v6757, 4294901760
    %6759 = vmatpush2.msra.mxu0 %v6758
    %6760 = vmatprep.subr.mxu0 0.0
    %v6761 = vand.u32 %v294, 4294901760
    %v6762 = vsub.f32 %v294, %v6761
    %v6763 = vand.u32 %v6762, 4294901760
    %6764 = vmatpush2.msra.mxu0 %v6763
    %6765 = vmatprep.subr.mxu0 0.0
    %v6766 = vand.u32 %v293, 4294901760
    %v6767 = vsub.f32 %v293, %v6766
    %v6768 = vand.u32 %v6767, 4294901760
    %6769 = vmatpush2.msra.mxu0 %v6768
    %6770 = vmatprep.subr.mxu0 0.0
    %v6771 = vand.u32 %v292, 4294901760
    %v6772 = vsub.f32 %v292, %v6771
    %v6773 = vand.u32 %v6772, 4294901760
    %6774 = vmatpush2.msra.mxu0 %v6773
    %6775 = vmatprep.subr.mxu0 0.0
    %v6776 = vand.u32 %v291, 4294901760
    %v6777 = vsub.f32 %v291, %v6776
    %v6778 = vand.u32 %v6777, 4294901760
    %6779 = vmatpush2.msra.mxu0 %v6778
    %6780 = vmatprep.subr.mxu0 0.0
    %v6781 = vand.u32 %v290, 4294901760
    %v6782 = vsub.f32 %v290, %v6781
    %v6783 = vand.u32 %v6782, 4294901760
    %6784 = vmatpush2.msra.mxu0 %v6783
    %6785 = vmatprep.subr.mxu0 0.0
    %v6786 = vand.u32 %v289, 4294901760
    %v6787 = vsub.f32 %v289, %v6786
    %v6788 = vand.u32 %v6787, 4294901760
    %6789 = vmatpush2.msra.mxu0 %v6788
    %6790 = vmatprep.subr.mxu0 0.0
    %v6791 = vand.u32 %v288, 4294901760
    %v6792 = vsub.f32 %v288, %v6791
    %v6793 = vand.u32 %v6792, 4294901760
    %6794 = vmatpush2.msra.mxu0 %v6793
    %6795 = vmatprep.subr.mxu0 0.0
    %v6796 = vand.u32 %v287, 4294901760
    %v6797 = vsub.f32 %v287, %v6796
    %v6798 = vand.u32 %v6797, 4294901760
    %6799 = vmatpush2.msra.mxu0 %v6798
    %6800 = vmatprep.subr.mxu0 0.0
    %v6801 = vand.u32 %v286, 4294901760
    %v6802 = vsub.f32 %v286, %v6801
    %v6803 = vand.u32 %v6802, 4294901760
    %6804 = vmatpush2.msra.mxu0 %v6803
    %6805 = vmatprep.subr.mxu0 0.0
    %v6806 = vand.u32 %v285, 4294901760
    %v6807 = vsub.f32 %v285, %v6806
    %v6808 = vand.u32 %v6807, 4294901760
    %6809 = vmatpush2.msra.mxu0 %v6808
    %v6810 = vand.u32 %v141, 4294901760
    %6811 = vmatprep.mubr.f32.mxu0 %v6810
    %v6812 = vand.u32 %v123, 4294901760
    %6813 = vmatmul.mubr.f32.gmra.mxu0 %v6812
    %v6814 = vpop.f32.mrf.mxu0
    %v6815 = vadd.f32 %v6482, %v6814
    %v6816 = vpop.f32.mrf.mxu0
    %v6817 = vand.u32 %v142, 4294901760
    %6818 = vmatprep.mubr.f32.mxu0 %v6817
    %v6819 = vand.u32 %v124, 4294901760
    %6820 = vmatmul.mubr.f32.gmra.mxu0 %v6819
    %v6821 = vpop.f32.mrf.mxu0
    %v6822 = vadd.f32 %v6493, %v6821
    %v6823 = vpop.f32.mrf.mxu0
    %v6824 = vand.u32 %v143, 4294901760
    %6825 = vmatprep.mubr.f32.mxu0 %v6824
    %v6826 = vand.u32 %v125, 4294901760
    %6827 = vmatmul.mubr.f32.gmra.mxu0 %v6826
    %v6828 = vpop.f32.mrf.mxu0
    %v6829 = vadd.f32 %v6504, %v6828
    %v6830 = vpop.f32.mrf.mxu0
    %v6831 = vand.u32 %v144, 4294901760
    %6832 = vmatprep.mubr.f32.mxu0 %v6831
    %v6833 = vand.u32 %v126, 4294901760
    %6834 = vmatmul.mubr.f32.gmra.mxu0 %v6833
    %v6835 = vpop.f32.mrf.mxu0
    %v6836 = vadd.f32 %v6515, %v6835
    %v6837 = vpop.f32.mrf.mxu0
    %v6838 = vand.u32 %v145, 4294901760
    %6839 = vmatprep.mubr.f32.mxu0 %v6838
    %v6840 = vand.u32 %v127, 4294901760
    %6841 = vmatmul.mubr.f32.gmra.mxu0 %v6840
    %v6842 = vpop.f32.mrf.mxu0
    %v6843 = vadd.f32 %v6526, %v6842
    %v6844 = vpop.f32.mrf.mxu0
    %v6845 = vand.u32 %v146, 4294901760
    %6846 = vmatprep.mubr.f32.mxu0 %v6845
    %v6847 = vand.u32 %v128, 4294901760
    %6848 = vmatmul.mubr.f32.gmra.mxu0 %v6847
    %v6849 = vpop.f32.mrf.mxu0
    %v6850 = vadd.f32 %v6537, %v6849
    %v6851 = vpop.f32.mrf.mxu0
    %v6852 = vand.u32 %v147, 4294901760
    %6853 = vmatprep.mubr.f32.mxu0 %v6852
    %v6854 = vand.u32 %v129, 4294901760
    %6855 = vmatmul.mubr.f32.gmra.mxu0 %v6854
    %v6856 = vpop.f32.mrf.mxu0
    %v6857 = vadd.f32 %v6548, %v6856
    %v6858 = vpop.f32.mrf.mxu0
    %v6859 = vand.u32 %v148, 4294901760
    %6860 = vmatprep.mubr.f32.mxu0 %v6859
    %v6861 = vand.u32 %v130, 4294901760
    %6862 = vmatmul.mubr.f32.gmra.mxu0 %v6861
    %v6863 = vpop.f32.mrf.mxu0
    %v6864 = vadd.f32 %v6559, %v6863
    %v6865 = vpop.f32.mrf.mxu0
    %v6866 = vand.u32 %v149, 4294901760
    %6867 = vmatprep.mubr.f32.mxu0 %v6866
    %v6868 = vand.u32 %v131, 4294901760
    %6869 = vmatmul.mubr.f32.gmra.mxu0 %v6868
    %v6870 = vpop.f32.mrf.mxu0
    %v6871 = vadd.f32 %v6570, %v6870
    %v6872 = vpop.f32.mrf.mxu0
    %v6873 = vand.u32 %v150, 4294901760
    %6874 = vmatprep.mubr.f32.mxu0 %v6873
    %v6875 = vand.u32 %v132, 4294901760
    %6876 = vmatmul.mubr.f32.gmra.mxu0 %v6875
    %v6877 = vpop.f32.mrf.mxu0
    %v6878 = vadd.f32 %v6581, %v6877
    %v6879 = vpop.f32.mrf.mxu0
    %v6880 = vand.u32 %v151, 4294901760
    %6881 = vmatprep.mubr.f32.mxu0 %v6880
    %v6882 = vand.u32 %v133, 4294901760
    %6883 = vmatmul.mubr.f32.gmra.mxu0 %v6882
    %v6884 = vpop.f32.mrf.mxu0
    %v6885 = vadd.f32 %v6592, %v6884
    %v6886 = vpop.f32.mrf.mxu0
    %v6887 = vand.u32 %v152, 4294901760
    %6888 = vmatprep.mubr.f32.mxu0 %v6887
    %v6889 = vand.u32 %v134, 4294901760
    %6890 = vmatmul.mubr.f32.gmra.mxu0 %v6889
    %v6891 = vpop.f32.mrf.mxu0
    %v6892 = vadd.f32 %v6603, %v6891
    %v6893 = vpop.f32.mrf.mxu0
    %v6894 = vand.u32 %v153, 4294901760
    %6895 = vmatprep.mubr.f32.mxu0 %v6894
    %v6896 = vand.u32 %v135, 4294901760
    %6897 = vmatmul.mubr.f32.gmra.mxu0 %v6896
    %v6898 = vpop.f32.mrf.mxu0
    %v6899 = vadd.f32 %v6614, %v6898
    %v6900 = vpop.f32.mrf.mxu0
    %v6901 = vand.u32 %v154, 4294901760
    %6902 = vmatprep.mubr.f32.mxu0 %v6901
    %v6903 = vand.u32 %v136, 4294901760
    %6904 = vmatmul.mubr.f32.gmra.mxu0 %v6903
    %v6905 = vpop.f32.mrf.mxu0
    %v6906 = vadd.f32 %v6625, %v6905
    %v6907 = vpop.f32.mrf.mxu0
    %v6908 = vand.u32 %v155, 4294901760
    %6909 = vmatprep.mubr.f32.mxu0 %v6908
    %v6910 = vand.u32 %v137, 4294901760
    %6911 = vmatmul.mubr.f32.gmra.mxu0 %v6910
    %v6912 = vpop.f32.mrf.mxu0
    %v6913 = vadd.f32 %v6636, %v6912
    %v6914 = vpop.f32.mrf.mxu0
    %v6915 = vand.u32 %v156, 4294901760
    %6916 = vmatprep.mubr.f32.mxu0 %v6915
    %v6917 = vand.u32 %v138, 4294901760
    %6918 = vmatmul.mubr.f32.gmra.mxu0 %v6917
    %v6919 = vpop.f32.mrf.mxu0
    %v6920 = vadd.f32 %v6647, %v6919
    %v6921 = vpop.f32.mrf.mxu0
    %6922 = vdwg.mxu0
    %6923 = vmatprep.subr.mxu0 0.0
    %v6924 = vand.u32 %v284, 4294901760
    %6925 = vmatpush1.msra.mxu0 %v6924
    %6926 = vmatprep.subr.mxu0 0.0
    %v6927 = vand.u32 %v283, 4294901760
    %6928 = vmatpush1.msra.mxu0 %v6927
    %6929 = vmatprep.subr.mxu0 0.0
    %v6930 = vand.u32 %v282, 4294901760
    %6931 = vmatpush1.msra.mxu0 %v6930
    %6932 = vmatprep.subr.mxu0 0.0
    %v6933 = vand.u32 %v281, 4294901760
    %6934 = vmatpush1.msra.mxu0 %v6933
    %6935 = vmatprep.subr.mxu0 0.0
    %v6936 = vand.u32 %v280, 4294901760
    %6937 = vmatpush1.msra.mxu0 %v6936
    %6938 = vmatprep.subr.mxu0 0.0
    %v6939 = vand.u32 %v279, 4294901760
    %6940 = vmatpush1.msra.mxu0 %v6939
    %6941 = vmatprep.subr.mxu0 0.0
    %v6942 = vand.u32 %v278, 4294901760
    %6943 = vmatpush1.msra.mxu0 %v6942
    %6944 = vmatprep.subr.mxu0 0.0
    %v6945 = vand.u32 %v277, 4294901760
    %6946 = vmatpush1.msra.mxu0 %v6945
    %6947 = vmatprep.subr.mxu0 0.0
    %v6948 = vand.u32 %v276, 4294901760
    %6949 = vmatpush1.msra.mxu0 %v6948
    %6950 = vmatprep.subr.mxu0 0.0
    %v6951 = vand.u32 %v275, 4294901760
    %6952 = vmatpush1.msra.mxu0 %v6951
    %6953 = vmatprep.subr.mxu0 0.0
    %v6954 = vand.u32 %v274, 4294901760
    %6955 = vmatpush1.msra.mxu0 %v6954
    %6956 = vmatprep.subr.mxu0 0.0
    %v6957 = vand.u32 %v273, 4294901760
    %6958 = vmatpush1.msra.mxu0 %v6957
    %6959 = vmatprep.subr.mxu0 0.0
    %v6960 = vand.u32 %v272, 4294901760
    %6961 = vmatpush1.msra.mxu0 %v6960
    %6962 = vmatprep.subr.mxu0 0.0
    %v6963 = vand.u32 %v271, 4294901760
    %6964 = vmatpush1.msra.mxu0 %v6963
    %6965 = vmatprep.subr.mxu0 0.0
    %v6966 = vand.u32 %v270, 4294901760
    %6967 = vmatpush1.msra.mxu0 %v6966
    %6968 = vmatprep.subr.mxu0 0.0
    %v6969 = vand.u32 %v269, 4294901760
    %6970 = vmatpush1.msra.mxu0 %v6969
    %6971 = vmatprep.subr.mxu0 0.0
    %v6972 = vand.u32 %v300, 4294901760
    %6973 = vmatpush2.msra.mxu0 %v6972
    %6974 = vmatprep.subr.mxu0 0.0
    %v6975 = vand.u32 %v299, 4294901760
    %6976 = vmatpush2.msra.mxu0 %v6975
    %6977 = vmatprep.subr.mxu0 0.0
    %v6978 = vand.u32 %v298, 4294901760
    %6979 = vmatpush2.msra.mxu0 %v6978
    %6980 = vmatprep.subr.mxu0 0.0
    %v6981 = vand.u32 %v297, 4294901760
    %6982 = vmatpush2.msra.mxu0 %v6981
    %6983 = vmatprep.subr.mxu0 0.0
    %v6984 = vand.u32 %v296, 4294901760
    %6985 = vmatpush2.msra.mxu0 %v6984
    %6986 = vmatprep.subr.mxu0 0.0
    %v6987 = vand.u32 %v295, 4294901760
    %6988 = vmatpush2.msra.mxu0 %v6987
    %6989 = vmatprep.subr.mxu0 0.0
    %v6990 = vand.u32 %v294, 4294901760
    %6991 = vmatpush2.msra.mxu0 %v6990
    %6992 = vmatprep.subr.mxu0 0.0
    %v6993 = vand.u32 %v293, 4294901760
    %6994 = vmatpush2.msra.mxu0 %v6993
    %6995 = vmatprep.subr.mxu0 0.0
    %v6996 = vand.u32 %v292, 4294901760
    %6997 = vmatpush2.msra.mxu0 %v6996
    %6998 = vmatprep.subr.mxu0 0.0
    %v6999 = vand.u32 %v291, 4294901760
    %7000 = vmatpush2.msra.mxu0 %v6999
    %7001 = vmatprep.subr.mxu0 0.0
    %v7002 = vand.u32 %v290, 4294901760
    %7003 = vmatpush2.msra.mxu0 %v7002
    %7004 = vmatprep.subr.mxu0 0.0
    %v7005 = vand.u32 %v289, 4294901760
    %7006 = vmatpush2.msra.mxu0 %v7005
    %7007 = vmatprep.subr.mxu0 0.0
    %v7008 = vand.u32 %v288, 4294901760
    %7009 = vmatpush2.msra.mxu0 %v7008
    %7010 = vmatprep.subr.mxu0 0.0
    %v7011 = vand.u32 %v287, 4294901760
    %7012 = vmatpush2.msra.mxu0 %v7011
    %7013 = vmatprep.subr.mxu0 0.0
    %v7014 = vand.u32 %v286, 4294901760
    %7015 = vmatpush2.msra.mxu0 %v7014
    %7016 = vmatprep.subr.mxu0 0.0
    %v7017 = vand.u32 %v285, 4294901760
    %7018 = vmatpush2.msra.mxu0 %v7017
    %v7019 = vand.u32 %v141, 4294901760
    %7020 = vmatprep.mubr.f32.mxu0 %v7019
    %v7021 = vand.u32 %v123, 4294901760
    %7022 = vmatmul.mubr.f32.gmra.mxu0 %v7021
    %v7023 = vpop.f32.mrf.mxu0
    %v7024 = vadd.f32 %v6815, %v7023
    %v7025 = vpop.f32.mrf.mxu0
    %v7026 = vand.u32 %v142, 4294901760
    %7027 = vmatprep.mubr.f32.mxu0 %v7026
    %v7028 = vand.u32 %v124, 4294901760
    %7029 = vmatmul.mubr.f32.gmra.mxu0 %v7028
    %v7030 = vpop.f32.mrf.mxu0
    %v7031 = vadd.f32 %v6822, %v7030
    %v7032 = vpop.f32.mrf.mxu0
    %v7033 = vand.u32 %v143, 4294901760
    %7034 = vmatprep.mubr.f32.mxu0 %v7033
    %v7035 = vand.u32 %v125, 4294901760
    %7036 = vmatmul.mubr.f32.gmra.mxu0 %v7035
    %v7037 = vpop.f32.mrf.mxu0
    %v7038 = vadd.f32 %v6829, %v7037
    %v7039 = vpop.f32.mrf.mxu0
    %v7040 = vand.u32 %v144, 4294901760
    %7041 = vmatprep.mubr.f32.mxu0 %v7040
    %v7042 = vand.u32 %v126, 4294901760
    %7043 = vmatmul.mubr.f32.gmra.mxu0 %v7042
    %v7044 = vpop.f32.mrf.mxu0
    %v7045 = vadd.f32 %v6836, %v7044
    %v7046 = vpop.f32.mrf.mxu0
    %v7047 = vand.u32 %v145, 4294901760
    %7048 = vmatprep.mubr.f32.mxu0 %v7047
    %v7049 = vand.u32 %v127, 4294901760
    %7050 = vmatmul.mubr.f32.gmra.mxu0 %v7049
    %v7051 = vpop.f32.mrf.mxu0
    %v7052 = vadd.f32 %v6843, %v7051
    %v7053 = vpop.f32.mrf.mxu0
    %v7054 = vand.u32 %v146, 4294901760
    %7055 = vmatprep.mubr.f32.mxu0 %v7054
    %v7056 = vand.u32 %v128, 4294901760
    %7057 = vmatmul.mubr.f32.gmra.mxu0 %v7056
    %v7058 = vpop.f32.mrf.mxu0
    %v7059 = vadd.f32 %v6850, %v7058
    %v7060 = vpop.f32.mrf.mxu0
    %v7061 = vand.u32 %v147, 4294901760
    %7062 = vmatprep.mubr.f32.mxu0 %v7061
    %v7063 = vand.u32 %v129, 4294901760
    %7064 = vmatmul.mubr.f32.gmra.mxu0 %v7063
    %v7065 = vpop.f32.mrf.mxu0
    %v7066 = vadd.f32 %v6857, %v7065
    %v7067 = vpop.f32.mrf.mxu0
    %v7068 = vand.u32 %v148, 4294901760
    %7069 = vmatprep.mubr.f32.mxu0 %v7068
    %v7070 = vand.u32 %v130, 4294901760
    %7071 = vmatmul.mubr.f32.gmra.mxu0 %v7070
    %v7072 = vpop.f32.mrf.mxu0
    %v7073 = vadd.f32 %v6864, %v7072
    %v7074 = vpop.f32.mrf.mxu0
    %v7075 = vand.u32 %v149, 4294901760
    %7076 = vmatprep.mubr.f32.mxu0 %v7075
    %v7077 = vand.u32 %v131, 4294901760
    %7078 = vmatmul.mubr.f32.gmra.mxu0 %v7077
    %v7079 = vpop.f32.mrf.mxu0
    %v7080 = vadd.f32 %v6871, %v7079
    %v7081 = vpop.f32.mrf.mxu0
    %v7082 = vand.u32 %v150, 4294901760
    %7083 = vmatprep.mubr.f32.mxu0 %v7082
    %v7084 = vand.u32 %v132, 4294901760
    %7085 = vmatmul.mubr.f32.gmra.mxu0 %v7084
    %v7086 = vpop.f32.mrf.mxu0
    %v7087 = vadd.f32 %v6878, %v7086
    %v7088 = vpop.f32.mrf.mxu0
    %v7089 = vand.u32 %v151, 4294901760
    %7090 = vmatprep.mubr.f32.mxu0 %v7089
    %v7091 = vand.u32 %v133, 4294901760
    %7092 = vmatmul.mubr.f32.gmra.mxu0 %v7091
    %v7093 = vpop.f32.mrf.mxu0
    %v7094 = vadd.f32 %v6885, %v7093
    %v7095 = vpop.f32.mrf.mxu0
    %v7096 = vand.u32 %v152, 4294901760
    %7097 = vmatprep.mubr.f32.mxu0 %v7096
    %v7098 = vand.u32 %v134, 4294901760
    %7099 = vmatmul.mubr.f32.gmra.mxu0 %v7098
    %v7100 = vpop.f32.mrf.mxu0
    %v7101 = vadd.f32 %v6892, %v7100
    %v7102 = vpop.f32.mrf.mxu0
    %v7103 = vand.u32 %v153, 4294901760
    %7104 = vmatprep.mubr.f32.mxu0 %v7103
    %v7105 = vand.u32 %v135, 4294901760
    %7106 = vmatmul.mubr.f32.gmra.mxu0 %v7105
    %v7107 = vpop.f32.mrf.mxu0
    %v7108 = vadd.f32 %v6899, %v7107
    %v7109 = vpop.f32.mrf.mxu0
    %v7110 = vand.u32 %v154, 4294901760
    %7111 = vmatprep.mubr.f32.mxu0 %v7110
    %v7112 = vand.u32 %v136, 4294901760
    %7113 = vmatmul.mubr.f32.gmra.mxu0 %v7112
    %v7114 = vpop.f32.mrf.mxu0
    %v7115 = vadd.f32 %v6906, %v7114
    %v7116 = vpop.f32.mrf.mxu0
    %v7117 = vand.u32 %v155, 4294901760
    %7118 = vmatprep.mubr.f32.mxu0 %v7117
    %v7119 = vand.u32 %v137, 4294901760
    %7120 = vmatmul.mubr.f32.gmra.mxu0 %v7119
    %v7121 = vpop.f32.mrf.mxu0
    %v7122 = vadd.f32 %v6913, %v7121
    %v7123 = vpop.f32.mrf.mxu0
    %v7124 = vand.u32 %v156, 4294901760
    %7125 = vmatprep.mubr.f32.mxu0 %v7124
    %v7126 = vand.u32 %v138, 4294901760
    %7127 = vmatmul.mubr.f32.gmra.mxu0 %v7126
    %v7128 = vpop.f32.mrf.mxu0
    %v7129 = vadd.f32 %v6920, %v7128
    %v7130 = vpop.f32.mrf.mxu0
    %7131 = vdwg.mxu0
    %7132 = vmatprep.subr.mxu0 0.0
    %v7133 = vand.u32 %v316, 4294901760
    %7134 = vmatpush1.msra.mxu0 %v7133
    %7135 = vmatprep.subr.mxu0 0.0
    %v7136 = vand.u32 %v315, 4294901760
    %7137 = vmatpush1.msra.mxu0 %v7136
    %7138 = vmatprep.subr.mxu0 0.0
    %v7139 = vand.u32 %v314, 4294901760
    %7140 = vmatpush1.msra.mxu0 %v7139
    %7141 = vmatprep.subr.mxu0 0.0
    %v7142 = vand.u32 %v313, 4294901760
    %7143 = vmatpush1.msra.mxu0 %v7142
    %7144 = vmatprep.subr.mxu0 0.0
    %v7145 = vand.u32 %v312, 4294901760
    %7146 = vmatpush1.msra.mxu0 %v7145
    %7147 = vmatprep.subr.mxu0 0.0
    %v7148 = vand.u32 %v311, 4294901760
    %7149 = vmatpush1.msra.mxu0 %v7148
    %7150 = vmatprep.subr.mxu0 0.0
    %v7151 = vand.u32 %v310, 4294901760
    %7152 = vmatpush1.msra.mxu0 %v7151
    %7153 = vmatprep.subr.mxu0 0.0
    %v7154 = vand.u32 %v309, 4294901760
    %7155 = vmatpush1.msra.mxu0 %v7154
    %7156 = vmatprep.subr.mxu0 0.0
    %v7157 = vand.u32 %v308, 4294901760
    %7158 = vmatpush1.msra.mxu0 %v7157
    %7159 = vmatprep.subr.mxu0 0.0
    %v7160 = vand.u32 %v307, 4294901760
    %7161 = vmatpush1.msra.mxu0 %v7160
    %7162 = vmatprep.subr.mxu0 0.0
    %v7163 = vand.u32 %v306, 4294901760
    %7164 = vmatpush1.msra.mxu0 %v7163
    %7165 = vmatprep.subr.mxu0 0.0
    %v7166 = vand.u32 %v305, 4294901760
    %7167 = vmatpush1.msra.mxu0 %v7166
    %7168 = vmatprep.subr.mxu0 0.0
    %v7169 = vand.u32 %v304, 4294901760
    %7170 = vmatpush1.msra.mxu0 %v7169
    %7171 = vmatprep.subr.mxu0 0.0
    %v7172 = vand.u32 %v303, 4294901760
    %7173 = vmatpush1.msra.mxu0 %v7172
    %7174 = vmatprep.subr.mxu0 0.0
    %v7175 = vand.u32 %v302, 4294901760
    %7176 = vmatpush1.msra.mxu0 %v7175
    %7177 = vmatprep.subr.mxu0 0.0
    %v7178 = vand.u32 %v301, 4294901760
    %7179 = vmatpush1.msra.mxu0 %v7178
    %7180 = vmatprep.subr.mxu0 0.0
    %7181 = vmatpush2.msra.mxu0 0.0
    %7182 = vmatprep.subr.mxu0 0.0
    %7183 = vmatpush2.msra.mxu0 0.0
    %7184 = vmatprep.subr.mxu0 0.0
    %7185 = vmatpush2.msra.mxu0 0.0
    %7186 = vmatprep.subr.mxu0 0.0
    %7187 = vmatpush2.msra.mxu0 0.0
    %7188 = vmatprep.subr.mxu0 0.0
    %7189 = vmatpush2.msra.mxu0 0.0
    %7190 = vmatprep.subr.mxu0 0.0
    %7191 = vmatpush2.msra.mxu0 0.0
    %7192 = vmatprep.subr.mxu0 0.0
    %7193 = vmatpush2.msra.mxu0 0.0
    %7194 = vmatprep.subr.mxu0 0.0
    %7195 = vmatpush2.msra.mxu0 0.0
    %7196 = vmatprep.subr.mxu0 0.0
    %7197 = vmatpush2.msra.mxu0 0.0
    %7198 = vmatprep.subr.mxu0 0.0
    %7199 = vmatpush2.msra.mxu0 0.0
    %7200 = vmatprep.subr.mxu0 0.0
    %7201 = vmatpush2.msra.mxu0 0.0
    %7202 = vmatprep.subr.mxu0 0.0
    %7203 = vmatpush2.msra.mxu0 0.0
    %7204 = vmatprep.subr.mxu0 0.0
    %7205 = vmatpush2.msra.mxu0 0.0
    %7206 = vmatprep.subr.mxu0 0.0
    %7207 = vmatpush2.msra.mxu0 0.0
    %7208 = vmatprep.subr.mxu0 0.0
    %7209 = vmatpush2.msra.mxu0 0.0
    %7210 = vmatprep.subr.mxu0 0.0
    %7211 = vmatpush2.msra.mxu0 0.0
    %7212 = vmatprep.mubr.f32.mxu0 0.0
    %v7213 = vand.u32 %v157, 4294901760
    %v7214 = vsub.f32 %v157, %v7213
    %v7215 = vand.u32 %v7214, 4294901760
    %v7216 = vsub.f32 %v7214, %v7215
    %v7217 = vand.u32 %v7216, 4294901760
    %7218 = vmatmul.mubr.f32.gmra.mxu0 %v7217
    %v7219 = vpop.f32.mrf.mxu0
    %v7220 = vadd.f32 %v7024, %v7219
    %v7221 = vpop.f32.mrf.mxu0
    %7222 = vmatprep.mubr.f32.mxu0 0.0
    %v7223 = vand.u32 %v158, 4294901760
    %v7224 = vsub.f32 %v158, %v7223
    %v7225 = vand.u32 %v7224, 4294901760
    %v7226 = vsub.f32 %v7224, %v7225
    %v7227 = vand.u32 %v7226, 4294901760
    %7228 = vmatmul.mubr.f32.gmra.mxu0 %v7227
    %v7229 = vpop.f32.mrf.mxu0
    %v7230 = vadd.f32 %v7031, %v7229
    %v7231 = vpop.f32.mrf.mxu0
    %7232 = vmatprep.mubr.f32.mxu0 0.0
    %v7233 = vand.u32 %v159, 4294901760
    %v7234 = vsub.f32 %v159, %v7233
    %v7235 = vand.u32 %v7234, 4294901760
    %v7236 = vsub.f32 %v7234, %v7235
    %v7237 = vand.u32 %v7236, 4294901760
    %7238 = vmatmul.mubr.f32.gmra.mxu0 %v7237
    %v7239 = vpop.f32.mrf.mxu0
    %v7240 = vadd.f32 %v7038, %v7239
    %v7241 = vpop.f32.mrf.mxu0
    %7242 = vmatprep.mubr.f32.mxu0 0.0
    %v7243 = vand.u32 %v160, 4294901760
    %v7244 = vsub.f32 %v160, %v7243
    %v7245 = vand.u32 %v7244, 4294901760
    %v7246 = vsub.f32 %v7244, %v7245
    %v7247 = vand.u32 %v7246, 4294901760
    %7248 = vmatmul.mubr.f32.gmra.mxu0 %v7247
    %v7249 = vpop.f32.mrf.mxu0
    %v7250 = vadd.f32 %v7045, %v7249
    %v7251 = vpop.f32.mrf.mxu0
    %7252 = vmatprep.mubr.f32.mxu0 0.0
    %v7253 = vand.u32 %v161, 4294901760
    %v7254 = vsub.f32 %v161, %v7253
    %v7255 = vand.u32 %v7254, 4294901760
    %v7256 = vsub.f32 %v7254, %v7255
    %v7257 = vand.u32 %v7256, 4294901760
    %7258 = vmatmul.mubr.f32.gmra.mxu0 %v7257
    %v7259 = vpop.f32.mrf.mxu0
    %v7260 = vadd.f32 %v7052, %v7259
    %v7261 = vpop.f32.mrf.mxu0
    %7262 = vmatprep.mubr.f32.mxu0 0.0
    %v7263 = vand.u32 %v162, 4294901760
    %v7264 = vsub.f32 %v162, %v7263
    %v7265 = vand.u32 %v7264, 4294901760
    %v7266 = vsub.f32 %v7264, %v7265
    %v7267 = vand.u32 %v7266, 4294901760
    %7268 = vmatmul.mubr.f32.gmra.mxu0 %v7267
    %v7269 = vpop.f32.mrf.mxu0
    %v7270 = vadd.f32 %v7059, %v7269
    %v7271 = vpop.f32.mrf.mxu0
    %7272 = vmatprep.mubr.f32.mxu0 0.0
    %v7273 = vand.u32 %v163, 4294901760
    %v7274 = vsub.f32 %v163, %v7273
    %v7275 = vand.u32 %v7274, 4294901760
    %v7276 = vsub.f32 %v7274, %v7275
    %v7277 = vand.u32 %v7276, 4294901760
    %7278 = vmatmul.mubr.f32.gmra.mxu0 %v7277
    %v7279 = vpop.f32.mrf.mxu0
    %v7280 = vadd.f32 %v7066, %v7279
    %v7281 = vpop.f32.mrf.mxu0
    %7282 = vmatprep.mubr.f32.mxu0 0.0
    %v7283 = vand.u32 %v164, 4294901760
    %v7284 = vsub.f32 %v164, %v7283
    %v7285 = vand.u32 %v7284, 4294901760
    %v7286 = vsub.f32 %v7284, %v7285
    %v7287 = vand.u32 %v7286, 4294901760
    %7288 = vmatmul.mubr.f32.gmra.mxu0 %v7287
    %v7289 = vpop.f32.mrf.mxu0
    %v7290 = vadd.f32 %v7073, %v7289
    %v7291 = vpop.f32.mrf.mxu0
    %7292 = vmatprep.mubr.f32.mxu0 0.0
    %v7293 = vand.u32 %v165, 4294901760
    %v7294 = vsub.f32 %v165, %v7293
    %v7295 = vand.u32 %v7294, 4294901760
    %v7296 = vsub.f32 %v7294, %v7295
    %v7297 = vand.u32 %v7296, 4294901760
    %7298 = vmatmul.mubr.f32.gmra.mxu0 %v7297
    %v7299 = vpop.f32.mrf.mxu0
    %v7300 = vadd.f32 %v7080, %v7299
    %v7301 = vpop.f32.mrf.mxu0
    %7302 = vmatprep.mubr.f32.mxu0 0.0
    %v7303 = vand.u32 %v166, 4294901760
    %v7304 = vsub.f32 %v166, %v7303
    %v7305 = vand.u32 %v7304, 4294901760
    %v7306 = vsub.f32 %v7304, %v7305
    %v7307 = vand.u32 %v7306, 4294901760
    %7308 = vmatmul.mubr.f32.gmra.mxu0 %v7307
    %v7309 = vpop.f32.mrf.mxu0
    %v7310 = vadd.f32 %v7087, %v7309
    %v7311 = vpop.f32.mrf.mxu0
    %7312 = vmatprep.mubr.f32.mxu0 0.0
    %v7313 = vand.u32 %v167, 4294901760
    %v7314 = vsub.f32 %v167, %v7313
    %v7315 = vand.u32 %v7314, 4294901760
    %v7316 = vsub.f32 %v7314, %v7315
    %v7317 = vand.u32 %v7316, 4294901760
    %7318 = vmatmul.mubr.f32.gmra.mxu0 %v7317
    %v7319 = vpop.f32.mrf.mxu0
    %v7320 = vadd.f32 %v7094, %v7319
    %v7321 = vpop.f32.mrf.mxu0
    %7322 = vmatprep.mubr.f32.mxu0 0.0
    %v7323 = vand.u32 %v168, 4294901760
    %v7324 = vsub.f32 %v168, %v7323
    %v7325 = vand.u32 %v7324, 4294901760
    %v7326 = vsub.f32 %v7324, %v7325
    %v7327 = vand.u32 %v7326, 4294901760
    %7328 = vmatmul.mubr.f32.gmra.mxu0 %v7327
    %v7329 = vpop.f32.mrf.mxu0
    %v7330 = vadd.f32 %v7101, %v7329
    %v7331 = vpop.f32.mrf.mxu0
    %7332 = vmatprep.mubr.f32.mxu0 0.0
    %v7333 = vand.u32 %v169, 4294901760
    %v7334 = vsub.f32 %v169, %v7333
    %v7335 = vand.u32 %v7334, 4294901760
    %v7336 = vsub.f32 %v7334, %v7335
    %v7337 = vand.u32 %v7336, 4294901760
    %7338 = vmatmul.mubr.f32.gmra.mxu0 %v7337
    %v7339 = vpop.f32.mrf.mxu0
    %v7340 = vadd.f32 %v7108, %v7339
    %v7341 = vpop.f32.mrf.mxu0
    %7342 = vmatprep.mubr.f32.mxu0 0.0
    %v7343 = vand.u32 %v170, 4294901760
    %v7344 = vsub.f32 %v170, %v7343
    %v7345 = vand.u32 %v7344, 4294901760
    %v7346 = vsub.f32 %v7344, %v7345
    %v7347 = vand.u32 %v7346, 4294901760
    %7348 = vmatmul.mubr.f32.gmra.mxu0 %v7347
    %v7349 = vpop.f32.mrf.mxu0
    %v7350 = vadd.f32 %v7115, %v7349
    %v7351 = vpop.f32.mrf.mxu0
    %7352 = vmatprep.mubr.f32.mxu0 0.0
    %v7353 = vand.u32 %v171, 4294901760
    %v7354 = vsub.f32 %v171, %v7353
    %v7355 = vand.u32 %v7354, 4294901760
    %v7356 = vsub.f32 %v7354, %v7355
    %v7357 = vand.u32 %v7356, 4294901760
    %7358 = vmatmul.mubr.f32.gmra.mxu0 %v7357
    %v7359 = vpop.f32.mrf.mxu0
    %v7360 = vadd.f32 %v7122, %v7359
    %v7361 = vpop.f32.mrf.mxu0
    %7362 = vmatprep.mubr.f32.mxu0 0.0
    %v7363 = vand.u32 %v172, 4294901760
    %v7364 = vsub.f32 %v172, %v7363
    %v7365 = vand.u32 %v7364, 4294901760
    %v7366 = vsub.f32 %v7364, %v7365
    %v7367 = vand.u32 %v7366, 4294901760
    %7368 = vmatmul.mubr.f32.gmra.mxu0 %v7367
    %v7369 = vpop.f32.mrf.mxu0
    %v7370 = vadd.f32 %v7129, %v7369
    %v7371 = vpop.f32.mrf.mxu0
    %7372 = vdwg.mxu0
    %7373 = vmatprep.subr.mxu0 0.0
    %v7374 = vand.u32 %v316, 4294901760
    %v7375 = vsub.f32 %v316, %v7374
    %v7376 = vand.u32 %v7375, 4294901760
    %v7377 = vsub.f32 %v7375, %v7376
    %v7378 = vand.u32 %v7377, 4294901760
    %7379 = vmatpush1.msra.mxu0 %v7378
    %7380 = vmatprep.subr.mxu0 0.0
    %v7381 = vand.u32 %v315, 4294901760
    %v7382 = vsub.f32 %v315, %v7381
    %v7383 = vand.u32 %v7382, 4294901760
    %v7384 = vsub.f32 %v7382, %v7383
    %v7385 = vand.u32 %v7384, 4294901760
    %7386 = vmatpush1.msra.mxu0 %v7385
    %7387 = vmatprep.subr.mxu0 0.0
    %v7388 = vand.u32 %v314, 4294901760
    %v7389 = vsub.f32 %v314, %v7388
    %v7390 = vand.u32 %v7389, 4294901760
    %v7391 = vsub.f32 %v7389, %v7390
    %v7392 = vand.u32 %v7391, 4294901760
    %7393 = vmatpush1.msra.mxu0 %v7392
    %7394 = vmatprep.subr.mxu0 0.0
    %v7395 = vand.u32 %v313, 4294901760
    %v7396 = vsub.f32 %v313, %v7395
    %v7397 = vand.u32 %v7396, 4294901760
    %v7398 = vsub.f32 %v7396, %v7397
    %v7399 = vand.u32 %v7398, 4294901760
    %7400 = vmatpush1.msra.mxu0 %v7399
    %7401 = vmatprep.subr.mxu0 0.0
    %v7402 = vand.u32 %v312, 4294901760
    %v7403 = vsub.f32 %v312, %v7402
    %v7404 = vand.u32 %v7403, 4294901760
    %v7405 = vsub.f32 %v7403, %v7404
    %v7406 = vand.u32 %v7405, 4294901760
    %7407 = vmatpush1.msra.mxu0 %v7406
    %7408 = vmatprep.subr.mxu0 0.0
    %v7409 = vand.u32 %v311, 4294901760
    %v7410 = vsub.f32 %v311, %v7409
    %v7411 = vand.u32 %v7410, 4294901760
    %v7412 = vsub.f32 %v7410, %v7411
    %v7413 = vand.u32 %v7412, 4294901760
    %7414 = vmatpush1.msra.mxu0 %v7413
    %7415 = vmatprep.subr.mxu0 0.0
    %v7416 = vand.u32 %v310, 4294901760
    %v7417 = vsub.f32 %v310, %v7416
    %v7418 = vand.u32 %v7417, 4294901760
    %v7419 = vsub.f32 %v7417, %v7418
    %v7420 = vand.u32 %v7419, 4294901760
    %7421 = vmatpush1.msra.mxu0 %v7420
    %7422 = vmatprep.subr.mxu0 0.0
    %v7423 = vand.u32 %v309, 4294901760
    %v7424 = vsub.f32 %v309, %v7423
    %v7425 = vand.u32 %v7424, 4294901760
    %v7426 = vsub.f32 %v7424, %v7425
    %v7427 = vand.u32 %v7426, 4294901760
    %7428 = vmatpush1.msra.mxu0 %v7427
    %7429 = vmatprep.subr.mxu0 0.0
    %v7430 = vand.u32 %v308, 4294901760
    %v7431 = vsub.f32 %v308, %v7430
    %v7432 = vand.u32 %v7431, 4294901760
    %v7433 = vsub.f32 %v7431, %v7432
    %v7434 = vand.u32 %v7433, 4294901760
    %7435 = vmatpush1.msra.mxu0 %v7434
    %7436 = vmatprep.subr.mxu0 0.0
    %v7437 = vand.u32 %v307, 4294901760
    %v7438 = vsub.f32 %v307, %v7437
    %v7439 = vand.u32 %v7438, 4294901760
    %v7440 = vsub.f32 %v7438, %v7439
    %v7441 = vand.u32 %v7440, 4294901760
    %7442 = vmatpush1.msra.mxu0 %v7441
    %7443 = vmatprep.subr.mxu0 0.0
    %v7444 = vand.u32 %v306, 4294901760
    %v7445 = vsub.f32 %v306, %v7444
    %v7446 = vand.u32 %v7445, 4294901760
    %v7447 = vsub.f32 %v7445, %v7446
    %v7448 = vand.u32 %v7447, 4294901760
    %7449 = vmatpush1.msra.mxu0 %v7448
    %7450 = vmatprep.subr.mxu0 0.0
    %v7451 = vand.u32 %v305, 4294901760
    %v7452 = vsub.f32 %v305, %v7451
    %v7453 = vand.u32 %v7452, 4294901760
    %v7454 = vsub.f32 %v7452, %v7453
    %v7455 = vand.u32 %v7454, 4294901760
    %7456 = vmatpush1.msra.mxu0 %v7455
    %7457 = vmatprep.subr.mxu0 0.0
    %v7458 = vand.u32 %v304, 4294901760
    %v7459 = vsub.f32 %v304, %v7458
    %v7460 = vand.u32 %v7459, 4294901760
    %v7461 = vsub.f32 %v7459, %v7460
    %v7462 = vand.u32 %v7461, 4294901760
    %7463 = vmatpush1.msra.mxu0 %v7462
    %7464 = vmatprep.subr.mxu0 0.0
    %v7465 = vand.u32 %v303, 4294901760
    %v7466 = vsub.f32 %v303, %v7465
    %v7467 = vand.u32 %v7466, 4294901760
    %v7468 = vsub.f32 %v7466, %v7467
    %v7469 = vand.u32 %v7468, 4294901760
    %7470 = vmatpush1.msra.mxu0 %v7469
    %7471 = vmatprep.subr.mxu0 0.0
    %v7472 = vand.u32 %v302, 4294901760
    %v7473 = vsub.f32 %v302, %v7472
    %v7474 = vand.u32 %v7473, 4294901760
    %v7475 = vsub.f32 %v7473, %v7474
    %v7476 = vand.u32 %v7475, 4294901760
    %7477 = vmatpush1.msra.mxu0 %v7476
    %7478 = vmatprep.subr.mxu0 0.0
    %v7479 = vand.u32 %v301, 4294901760
    %v7480 = vsub.f32 %v301, %v7479
    %v7481 = vand.u32 %v7480, 4294901760
    %v7482 = vsub.f32 %v7480, %v7481
    %v7483 = vand.u32 %v7482, 4294901760
    %7484 = vmatpush1.msra.mxu0 %v7483
    %7485 = vmatprep.subr.mxu0 0.0
    %7486 = vmatpush2.msra.mxu0 0.0
    %7487 = vmatprep.subr.mxu0 0.0
    %7488 = vmatpush2.msra.mxu0 0.0
    %7489 = vmatprep.subr.mxu0 0.0
    %7490 = vmatpush2.msra.mxu0 0.0
    %7491 = vmatprep.subr.mxu0 0.0
    %7492 = vmatpush2.msra.mxu0 0.0
    %7493 = vmatprep.subr.mxu0 0.0
    %7494 = vmatpush2.msra.mxu0 0.0
    %7495 = vmatprep.subr.mxu0 0.0
    %7496 = vmatpush2.msra.mxu0 0.0
    %7497 = vmatprep.subr.mxu0 0.0
    %7498 = vmatpush2.msra.mxu0 0.0
    %7499 = vmatprep.subr.mxu0 0.0
    %7500 = vmatpush2.msra.mxu0 0.0
    %7501 = vmatprep.subr.mxu0 0.0
    %7502 = vmatpush2.msra.mxu0 0.0
    %7503 = vmatprep.subr.mxu0 0.0
    %7504 = vmatpush2.msra.mxu0 0.0
    %7505 = vmatprep.subr.mxu0 0.0
    %7506 = vmatpush2.msra.mxu0 0.0
    %7507 = vmatprep.subr.mxu0 0.0
    %7508 = vmatpush2.msra.mxu0 0.0
    %7509 = vmatprep.subr.mxu0 0.0
    %7510 = vmatpush2.msra.mxu0 0.0
    %7511 = vmatprep.subr.mxu0 0.0
    %7512 = vmatpush2.msra.mxu0 0.0
    %7513 = vmatprep.subr.mxu0 0.0
    %7514 = vmatpush2.msra.mxu0 0.0
    %7515 = vmatprep.subr.mxu0 0.0
    %7516 = vmatpush2.msra.mxu0 0.0
    %7517 = vmatprep.mubr.f32.mxu0 0.0
    %v7518 = vand.u32 %v157, 4294901760
    %7519 = vmatmul.mubr.f32.gmra.mxu0 %v7518
    %v7520 = vpop.f32.mrf.mxu0
    %v7521 = vadd.f32 %v7220, %v7520
    %v7522 = vpop.f32.mrf.mxu0
    %7523 = vmatprep.mubr.f32.mxu0 0.0
    %v7524 = vand.u32 %v158, 4294901760
    %7525 = vmatmul.mubr.f32.gmra.mxu0 %v7524
    %v7526 = vpop.f32.mrf.mxu0
    %v7527 = vadd.f32 %v7230, %v7526
    %v7528 = vpop.f32.mrf.mxu0
    %7529 = vmatprep.mubr.f32.mxu0 0.0
    %v7530 = vand.u32 %v159, 4294901760
    %7531 = vmatmul.mubr.f32.gmra.mxu0 %v7530
    %v7532 = vpop.f32.mrf.mxu0
    %v7533 = vadd.f32 %v7240, %v7532
    %v7534 = vpop.f32.mrf.mxu0
    %7535 = vmatprep.mubr.f32.mxu0 0.0
    %v7536 = vand.u32 %v160, 4294901760
    %7537 = vmatmul.mubr.f32.gmra.mxu0 %v7536
    %v7538 = vpop.f32.mrf.mxu0
    %v7539 = vadd.f32 %v7250, %v7538
    %v7540 = vpop.f32.mrf.mxu0
    %7541 = vmatprep.mubr.f32.mxu0 0.0
    %v7542 = vand.u32 %v161, 4294901760
    %7543 = vmatmul.mubr.f32.gmra.mxu0 %v7542
    %v7544 = vpop.f32.mrf.mxu0
    %v7545 = vadd.f32 %v7260, %v7544
    %v7546 = vpop.f32.mrf.mxu0
    %7547 = vmatprep.mubr.f32.mxu0 0.0
    %v7548 = vand.u32 %v162, 4294901760
    %7549 = vmatmul.mubr.f32.gmra.mxu0 %v7548
    %v7550 = vpop.f32.mrf.mxu0
    %v7551 = vadd.f32 %v7270, %v7550
    %v7552 = vpop.f32.mrf.mxu0
    %7553 = vmatprep.mubr.f32.mxu0 0.0
    %v7554 = vand.u32 %v163, 4294901760
    %7555 = vmatmul.mubr.f32.gmra.mxu0 %v7554
    %v7556 = vpop.f32.mrf.mxu0
    %v7557 = vadd.f32 %v7280, %v7556
    %v7558 = vpop.f32.mrf.mxu0
    %7559 = vmatprep.mubr.f32.mxu0 0.0
    %v7560 = vand.u32 %v164, 4294901760
    %7561 = vmatmul.mubr.f32.gmra.mxu0 %v7560
    %v7562 = vpop.f32.mrf.mxu0
    %v7563 = vadd.f32 %v7290, %v7562
    %v7564 = vpop.f32.mrf.mxu0
    %7565 = vmatprep.mubr.f32.mxu0 0.0
    %v7566 = vand.u32 %v165, 4294901760
    %7567 = vmatmul.mubr.f32.gmra.mxu0 %v7566
    %v7568 = vpop.f32.mrf.mxu0
    %v7569 = vadd.f32 %v7300, %v7568
    %v7570 = vpop.f32.mrf.mxu0
    %7571 = vmatprep.mubr.f32.mxu0 0.0
    %v7572 = vand.u32 %v166, 4294901760
    %7573 = vmatmul.mubr.f32.gmra.mxu0 %v7572
    %v7574 = vpop.f32.mrf.mxu0
    %v7575 = vadd.f32 %v7310, %v7574
    %v7576 = vpop.f32.mrf.mxu0
    %7577 = vmatprep.mubr.f32.mxu0 0.0
    %v7578 = vand.u32 %v167, 4294901760
    %7579 = vmatmul.mubr.f32.gmra.mxu0 %v7578
    %v7580 = vpop.f32.mrf.mxu0
    %v7581 = vadd.f32 %v7320, %v7580
    %v7582 = vpop.f32.mrf.mxu0
    %7583 = vmatprep.mubr.f32.mxu0 0.0
    %v7584 = vand.u32 %v168, 4294901760
    %7585 = vmatmul.mubr.f32.gmra.mxu0 %v7584
    %v7586 = vpop.f32.mrf.mxu0
    %v7587 = vadd.f32 %v7330, %v7586
    %v7588 = vpop.f32.mrf.mxu0
    %7589 = vmatprep.mubr.f32.mxu0 0.0
    %v7590 = vand.u32 %v169, 4294901760
    %7591 = vmatmul.mubr.f32.gmra.mxu0 %v7590
    %v7592 = vpop.f32.mrf.mxu0
    %v7593 = vadd.f32 %v7340, %v7592
    %v7594 = vpop.f32.mrf.mxu0
    %7595 = vmatprep.mubr.f32.mxu0 0.0
    %v7596 = vand.u32 %v170, 4294901760
    %7597 = vmatmul.mubr.f32.gmra.mxu0 %v7596
    %v7598 = vpop.f32.mrf.mxu0
    %v7599 = vadd.f32 %v7350, %v7598
    %v7600 = vpop.f32.mrf.mxu0
    %7601 = vmatprep.mubr.f32.mxu0 0.0
    %v7602 = vand.u32 %v171, 4294901760
    %7603 = vmatmul.mubr.f32.gmra.mxu0 %v7602
    %v7604 = vpop.f32.mrf.mxu0
    %v7605 = vadd.f32 %v7360, %v7604
    %v7606 = vpop.f32.mrf.mxu0
    %7607 = vmatprep.mubr.f32.mxu0 0.0
    %v7608 = vand.u32 %v172, 4294901760
    %7609 = vmatmul.mubr.f32.gmra.mxu0 %v7608
    %v7610 = vpop.f32.mrf.mxu0
    %v7611 = vadd.f32 %v7370, %v7610
    %v7612 = vpop.f32.mrf.mxu0
    %7613 = vdwg.mxu0
    %7614 = vmatprep.subr.mxu0 0.0
    %v7615 = vand.u32 %v316, 4294901760
    %v7616 = vsub.f32 %v316, %v7615
    %7617 = vmatpush1.msra.mxu0 %v7616
    %7618 = vmatprep.subr.mxu0 0.0
    %v7619 = vand.u32 %v315, 4294901760
    %v7620 = vsub.f32 %v315, %v7619
    %7621 = vmatpush1.msra.mxu0 %v7620
    %7622 = vmatprep.subr.mxu0 0.0
    %v7623 = vand.u32 %v314, 4294901760
    %v7624 = vsub.f32 %v314, %v7623
    %7625 = vmatpush1.msra.mxu0 %v7624
    %7626 = vmatprep.subr.mxu0 0.0
    %v7627 = vand.u32 %v313, 4294901760
    %v7628 = vsub.f32 %v313, %v7627
    %7629 = vmatpush1.msra.mxu0 %v7628
    %7630 = vmatprep.subr.mxu0 0.0
    %v7631 = vand.u32 %v312, 4294901760
    %v7632 = vsub.f32 %v312, %v7631
    %7633 = vmatpush1.msra.mxu0 %v7632
    %7634 = vmatprep.subr.mxu0 0.0
    %v7635 = vand.u32 %v311, 4294901760
    %v7636 = vsub.f32 %v311, %v7635
    %7637 = vmatpush1.msra.mxu0 %v7636
    %7638 = vmatprep.subr.mxu0 0.0
    %v7639 = vand.u32 %v310, 4294901760
    %v7640 = vsub.f32 %v310, %v7639
    %7641 = vmatpush1.msra.mxu0 %v7640
    %7642 = vmatprep.subr.mxu0 0.0
    %v7643 = vand.u32 %v309, 4294901760
    %v7644 = vsub.f32 %v309, %v7643
    %7645 = vmatpush1.msra.mxu0 %v7644
    %7646 = vmatprep.subr.mxu0 0.0
    %v7647 = vand.u32 %v308, 4294901760
    %v7648 = vsub.f32 %v308, %v7647
    %7649 = vmatpush1.msra.mxu0 %v7648
    %7650 = vmatprep.subr.mxu0 0.0
    %v7651 = vand.u32 %v307, 4294901760
    %v7652 = vsub.f32 %v307, %v7651
    %7653 = vmatpush1.msra.mxu0 %v7652
    %7654 = vmatprep.subr.mxu0 0.0
    %v7655 = vand.u32 %v306, 4294901760
    %v7656 = vsub.f32 %v306, %v7655
    %7657 = vmatpush1.msra.mxu0 %v7656
    %7658 = vmatprep.subr.mxu0 0.0
    %v7659 = vand.u32 %v305, 4294901760
    %v7660 = vsub.f32 %v305, %v7659
    %7661 = vmatpush1.msra.mxu0 %v7660
    %7662 = vmatprep.subr.mxu0 0.0
    %v7663 = vand.u32 %v304, 4294901760
    %v7664 = vsub.f32 %v304, %v7663
    %7665 = vmatpush1.msra.mxu0 %v7664
    %7666 = vmatprep.subr.mxu0 0.0
    %v7667 = vand.u32 %v303, 4294901760
    %v7668 = vsub.f32 %v303, %v7667
    %7669 = vmatpush1.msra.mxu0 %v7668
    %7670 = vmatprep.subr.mxu0 0.0
    %v7671 = vand.u32 %v302, 4294901760
    %v7672 = vsub.f32 %v302, %v7671
    %7673 = vmatpush1.msra.mxu0 %v7672
    %7674 = vmatprep.subr.mxu0 0.0
    %v7675 = vand.u32 %v301, 4294901760
    %v7676 = vsub.f32 %v301, %v7675
    %7677 = vmatpush1.msra.mxu0 %v7676
    %7678 = vmatprep.subr.mxu0 0.0
    %7679 = vmatpush2.msra.mxu0 0.0
    %7680 = vmatprep.subr.mxu0 0.0
    %7681 = vmatpush2.msra.mxu0 0.0
    %7682 = vmatprep.subr.mxu0 0.0
    %7683 = vmatpush2.msra.mxu0 0.0
    %7684 = vmatprep.subr.mxu0 0.0
    %7685 = vmatpush2.msra.mxu0 0.0
    %7686 = vmatprep.subr.mxu0 0.0
    %7687 = vmatpush2.msra.mxu0 0.0
    %7688 = vmatprep.subr.mxu0 0.0
    %7689 = vmatpush2.msra.mxu0 0.0
    %7690 = vmatprep.subr.mxu0 0.0
    %7691 = vmatpush2.msra.mxu0 0.0
    %7692 = vmatprep.subr.mxu0 0.0
    %7693 = vmatpush2.msra.mxu0 0.0
    %7694 = vmatprep.subr.mxu0 0.0
    %7695 = vmatpush2.msra.mxu0 0.0
    %7696 = vmatprep.subr.mxu0 0.0
    %7697 = vmatpush2.msra.mxu0 0.0
    %7698 = vmatprep.subr.mxu0 0.0
    %7699 = vmatpush2.msra.mxu0 0.0
    %7700 = vmatprep.subr.mxu0 0.0
    %7701 = vmatpush2.msra.mxu0 0.0
    %7702 = vmatprep.subr.mxu0 0.0
    %7703 = vmatpush2.msra.mxu0 0.0
    %7704 = vmatprep.subr.mxu0 0.0
    %7705 = vmatpush2.msra.mxu0 0.0
    %7706 = vmatprep.subr.mxu0 0.0
    %7707 = vmatpush2.msra.mxu0 0.0
    %7708 = vmatprep.subr.mxu0 0.0
    %7709 = vmatpush2.msra.mxu0 0.0
    %7710 = vmatprep.mubr.f32.mxu0 0.0
    %v7711 = vand.u32 %v157, 4294901760
    %v7712 = vsub.f32 %v157, %v7711
    %7713 = vmatmul.mubr.f32.gmra.mxu0 %v7712
    %v7714 = vpop.f32.mrf.mxu0
    %v7715 = vadd.f32 %v7521, %v7714
    %v7716 = vpop.f32.mrf.mxu0
    %7717 = vmatprep.mubr.f32.mxu0 0.0
    %v7718 = vand.u32 %v158, 4294901760
    %v7719 = vsub.f32 %v158, %v7718
    %7720 = vmatmul.mubr.f32.gmra.mxu0 %v7719
    %v7721 = vpop.f32.mrf.mxu0
    %v7722 = vadd.f32 %v7527, %v7721
    %v7723 = vpop.f32.mrf.mxu0
    %7724 = vmatprep.mubr.f32.mxu0 0.0
    %v7725 = vand.u32 %v159, 4294901760
    %v7726 = vsub.f32 %v159, %v7725
    %7727 = vmatmul.mubr.f32.gmra.mxu0 %v7726
    %v7728 = vpop.f32.mrf.mxu0
    %v7729 = vadd.f32 %v7533, %v7728
    %v7730 = vpop.f32.mrf.mxu0
    %7731 = vmatprep.mubr.f32.mxu0 0.0
    %v7732 = vand.u32 %v160, 4294901760
    %v7733 = vsub.f32 %v160, %v7732
    %7734 = vmatmul.mubr.f32.gmra.mxu0 %v7733
    %v7735 = vpop.f32.mrf.mxu0
    %v7736 = vadd.f32 %v7539, %v7735
    %v7737 = vpop.f32.mrf.mxu0
    %7738 = vmatprep.mubr.f32.mxu0 0.0
    %v7739 = vand.u32 %v161, 4294901760
    %v7740 = vsub.f32 %v161, %v7739
    %7741 = vmatmul.mubr.f32.gmra.mxu0 %v7740
    %v7742 = vpop.f32.mrf.mxu0
    %v7743 = vadd.f32 %v7545, %v7742
    %v7744 = vpop.f32.mrf.mxu0
    %7745 = vmatprep.mubr.f32.mxu0 0.0
    %v7746 = vand.u32 %v162, 4294901760
    %v7747 = vsub.f32 %v162, %v7746
    %7748 = vmatmul.mubr.f32.gmra.mxu0 %v7747
    %v7749 = vpop.f32.mrf.mxu0
    %v7750 = vadd.f32 %v7551, %v7749
    %v7751 = vpop.f32.mrf.mxu0
    %7752 = vmatprep.mubr.f32.mxu0 0.0
    %v7753 = vand.u32 %v163, 4294901760
    %v7754 = vsub.f32 %v163, %v7753
    %7755 = vmatmul.mubr.f32.gmra.mxu0 %v7754
    %v7756 = vpop.f32.mrf.mxu0
    %v7757 = vadd.f32 %v7557, %v7756
    %v7758 = vpop.f32.mrf.mxu0
    %7759 = vmatprep.mubr.f32.mxu0 0.0
    %v7760 = vand.u32 %v164, 4294901760
    %v7761 = vsub.f32 %v164, %v7760
    %7762 = vmatmul.mubr.f32.gmra.mxu0 %v7761
    %v7763 = vpop.f32.mrf.mxu0
    %v7764 = vadd.f32 %v7563, %v7763
    %v7765 = vpop.f32.mrf.mxu0
    %7766 = vmatprep.mubr.f32.mxu0 0.0
    %v7767 = vand.u32 %v165, 4294901760
    %v7768 = vsub.f32 %v165, %v7767
    %7769 = vmatmul.mubr.f32.gmra.mxu0 %v7768
    %v7770 = vpop.f32.mrf.mxu0
    %v7771 = vadd.f32 %v7569, %v7770
    %v7772 = vpop.f32.mrf.mxu0
    %7773 = vmatprep.mubr.f32.mxu0 0.0
    %v7774 = vand.u32 %v166, 4294901760
    %v7775 = vsub.f32 %v166, %v7774
    %7776 = vmatmul.mubr.f32.gmra.mxu0 %v7775
    %v7777 = vpop.f32.mrf.mxu0
    %v7778 = vadd.f32 %v7575, %v7777
    %v7779 = vpop.f32.mrf.mxu0
    %7780 = vmatprep.mubr.f32.mxu0 0.0
    %v7781 = vand.u32 %v167, 4294901760
    %v7782 = vsub.f32 %v167, %v7781
    %7783 = vmatmul.mubr.f32.gmra.mxu0 %v7782
    %v7784 = vpop.f32.mrf.mxu0
    %v7785 = vadd.f32 %v7581, %v7784
    %v7786 = vpop.f32.mrf.mxu0
    %7787 = vmatprep.mubr.f32.mxu0 0.0
    %v7788 = vand.u32 %v168, 4294901760
    %v7789 = vsub.f32 %v168, %v7788
    %7790 = vmatmul.mubr.f32.gmra.mxu0 %v7789
    %v7791 = vpop.f32.mrf.mxu0
    %v7792 = vadd.f32 %v7587, %v7791
    %v7793 = vpop.f32.mrf.mxu0
    %7794 = vmatprep.mubr.f32.mxu0 0.0
    %v7795 = vand.u32 %v169, 4294901760
    %v7796 = vsub.f32 %v169, %v7795
    %7797 = vmatmul.mubr.f32.gmra.mxu0 %v7796
    %v7798 = vpop.f32.mrf.mxu0
    %v7799 = vadd.f32 %v7593, %v7798
    %v7800 = vpop.f32.mrf.mxu0
    %7801 = vmatprep.mubr.f32.mxu0 0.0
    %v7802 = vand.u32 %v170, 4294901760
    %v7803 = vsub.f32 %v170, %v7802
    %7804 = vmatmul.mubr.f32.gmra.mxu0 %v7803
    %v7805 = vpop.f32.mrf.mxu0
    %v7806 = vadd.f32 %v7599, %v7805
    %v7807 = vpop.f32.mrf.mxu0
    %7808 = vmatprep.mubr.f32.mxu0 0.0
    %v7809 = vand.u32 %v171, 4294901760
    %v7810 = vsub.f32 %v171, %v7809
    %7811 = vmatmul.mubr.f32.gmra.mxu0 %v7810
    %v7812 = vpop.f32.mrf.mxu0
    %v7813 = vadd.f32 %v7605, %v7812
    %v7814 = vpop.f32.mrf.mxu0
    %7815 = vmatprep.mubr.f32.mxu0 0.0
    %v7816 = vand.u32 %v172, 4294901760
    %v7817 = vsub.f32 %v172, %v7816
    %7818 = vmatmul.mubr.f32.gmra.mxu0 %v7817
    %v7819 = vpop.f32.mrf.mxu0
    %v7820 = vadd.f32 %v7611, %v7819
    %v7821 = vpop.f32.mrf.mxu0
    %7822 = vdwg.mxu0
    %7823 = vmatprep.subr.mxu0 0.0
    %v7824 = vand.u32 %v316, 4294901760
    %7825 = vmatpush1.msra.mxu0 %v7824
    %7826 = vmatprep.subr.mxu0 0.0
    %v7827 = vand.u32 %v315, 4294901760
    %7828 = vmatpush1.msra.mxu0 %v7827
    %7829 = vmatprep.subr.mxu0 0.0
    %v7830 = vand.u32 %v314, 4294901760
    %7831 = vmatpush1.msra.mxu0 %v7830
    %7832 = vmatprep.subr.mxu0 0.0
    %v7833 = vand.u32 %v313, 4294901760
    %7834 = vmatpush1.msra.mxu0 %v7833
    %7835 = vmatprep.subr.mxu0 0.0
    %v7836 = vand.u32 %v312, 4294901760
    %7837 = vmatpush1.msra.mxu0 %v7836
    %7838 = vmatprep.subr.mxu0 0.0
    %v7839 = vand.u32 %v311, 4294901760
    %7840 = vmatpush1.msra.mxu0 %v7839
    %7841 = vmatprep.subr.mxu0 0.0
    %v7842 = vand.u32 %v310, 4294901760
    %7843 = vmatpush1.msra.mxu0 %v7842
    %7844 = vmatprep.subr.mxu0 0.0
    %v7845 = vand.u32 %v309, 4294901760
    %7846 = vmatpush1.msra.mxu0 %v7845
    %7847 = vmatprep.subr.mxu0 0.0
    %v7848 = vand.u32 %v308, 4294901760
    %7849 = vmatpush1.msra.mxu0 %v7848
    %7850 = vmatprep.subr.mxu0 0.0
    %v7851 = vand.u32 %v307, 4294901760
    %7852 = vmatpush1.msra.mxu0 %v7851
    %7853 = vmatprep.subr.mxu0 0.0
    %v7854 = vand.u32 %v306, 4294901760
    %7855 = vmatpush1.msra.mxu0 %v7854
    %7856 = vmatprep.subr.mxu0 0.0
    %v7857 = vand.u32 %v305, 4294901760
    %7858 = vmatpush1.msra.mxu0 %v7857
    %7859 = vmatprep.subr.mxu0 0.0
    %v7860 = vand.u32 %v304, 4294901760
    %7861 = vmatpush1.msra.mxu0 %v7860
    %7862 = vmatprep.subr.mxu0 0.0
    %v7863 = vand.u32 %v303, 4294901760
    %7864 = vmatpush1.msra.mxu0 %v7863
    %7865 = vmatprep.subr.mxu0 0.0
    %v7866 = vand.u32 %v302, 4294901760
    %7867 = vmatpush1.msra.mxu0 %v7866
    %7868 = vmatprep.subr.mxu0 0.0
    %v7869 = vand.u32 %v301, 4294901760
    %7870 = vmatpush1.msra.mxu0 %v7869
    %7871 = vmatprep.subr.mxu0 0.0
    %7872 = vmatpush2.msra.mxu0 0.0
    %7873 = vmatprep.subr.mxu0 0.0
    %7874 = vmatpush2.msra.mxu0 0.0
    %7875 = vmatprep.subr.mxu0 0.0
    %7876 = vmatpush2.msra.mxu0 0.0
    %7877 = vmatprep.subr.mxu0 0.0
    %7878 = vmatpush2.msra.mxu0 0.0
    %7879 = vmatprep.subr.mxu0 0.0
    %7880 = vmatpush2.msra.mxu0 0.0
    %7881 = vmatprep.subr.mxu0 0.0
    %7882 = vmatpush2.msra.mxu0 0.0
    %7883 = vmatprep.subr.mxu0 0.0
    %7884 = vmatpush2.msra.mxu0 0.0
    %7885 = vmatprep.subr.mxu0 0.0
    %7886 = vmatpush2.msra.mxu0 0.0
    %7887 = vmatprep.subr.mxu0 0.0
    %7888 = vmatpush2.msra.mxu0 0.0
    %7889 = vmatprep.subr.mxu0 0.0
    %7890 = vmatpush2.msra.mxu0 0.0
    %7891 = vmatprep.subr.mxu0 0.0
    %7892 = vmatpush2.msra.mxu0 0.0
    %7893 = vmatprep.subr.mxu0 0.0
    %7894 = vmatpush2.msra.mxu0 0.0
    %7895 = vmatprep.subr.mxu0 0.0
    %7896 = vmatpush2.msra.mxu0 0.0
    %7897 = vmatprep.subr.mxu0 0.0
    %7898 = vmatpush2.msra.mxu0 0.0
    %7899 = vmatprep.subr.mxu0 0.0
    %7900 = vmatpush2.msra.mxu0 0.0
    %7901 = vmatprep.subr.mxu0 0.0
    %7902 = vmatpush2.msra.mxu0 0.0
    %7903 = vmatprep.mubr.f32.mxu0 0.0
    %v7904 = vand.u32 %v157, 4294901760
    %v7905 = vsub.f32 %v157, %v7904
    %v7906 = vand.u32 %v7905, 4294901760
    %7907 = vmatmul.mubr.f32.gmra.mxu0 %v7906
    %v7908 = vpop.f32.mrf.mxu0
    %v7909 = vadd.f32 %v7715, %v7908
    %v7910 = vpop.f32.mrf.mxu0
    %7911 = vmatprep.mubr.f32.mxu0 0.0
    %v7912 = vand.u32 %v158, 4294901760
    %v7913 = vsub.f32 %v158, %v7912
    %v7914 = vand.u32 %v7913, 4294901760
    %7915 = vmatmul.mubr.f32.gmra.mxu0 %v7914
    %v7916 = vpop.f32.mrf.mxu0
    %v7917 = vadd.f32 %v7722, %v7916
    %v7918 = vpop.f32.mrf.mxu0
    %7919 = vmatprep.mubr.f32.mxu0 0.0
    %v7920 = vand.u32 %v159, 4294901760
    %v7921 = vsub.f32 %v159, %v7920
    %v7922 = vand.u32 %v7921, 4294901760
    %7923 = vmatmul.mubr.f32.gmra.mxu0 %v7922
    %v7924 = vpop.f32.mrf.mxu0
    %v7925 = vadd.f32 %v7729, %v7924
    %v7926 = vpop.f32.mrf.mxu0
    %7927 = vmatprep.mubr.f32.mxu0 0.0
    %v7928 = vand.u32 %v160, 4294901760
    %v7929 = vsub.f32 %v160, %v7928
    %v7930 = vand.u32 %v7929, 4294901760
    %7931 = vmatmul.mubr.f32.gmra.mxu0 %v7930
    %v7932 = vpop.f32.mrf.mxu0
    %v7933 = vadd.f32 %v7736, %v7932
    %v7934 = vpop.f32.mrf.mxu0
    %7935 = vmatprep.mubr.f32.mxu0 0.0
    %v7936 = vand.u32 %v161, 4294901760
    %v7937 = vsub.f32 %v161, %v7936
    %v7938 = vand.u32 %v7937, 4294901760
    %7939 = vmatmul.mubr.f32.gmra.mxu0 %v7938
    %v7940 = vpop.f32.mrf.mxu0
    %v7941 = vadd.f32 %v7743, %v7940
    %v7942 = vpop.f32.mrf.mxu0
    %7943 = vmatprep.mubr.f32.mxu0 0.0
    %v7944 = vand.u32 %v162, 4294901760
    %v7945 = vsub.f32 %v162, %v7944
    %v7946 = vand.u32 %v7945, 4294901760
    %7947 = vmatmul.mubr.f32.gmra.mxu0 %v7946
    %v7948 = vpop.f32.mrf.mxu0
    %v7949 = vadd.f32 %v7750, %v7948
    %v7950 = vpop.f32.mrf.mxu0
    %7951 = vmatprep.mubr.f32.mxu0 0.0
    %v7952 = vand.u32 %v163, 4294901760
    %v7953 = vsub.f32 %v163, %v7952
    %v7954 = vand.u32 %v7953, 4294901760
    %7955 = vmatmul.mubr.f32.gmra.mxu0 %v7954
    %v7956 = vpop.f32.mrf.mxu0
    %v7957 = vadd.f32 %v7757, %v7956
    %v7958 = vpop.f32.mrf.mxu0
    %7959 = vmatprep.mubr.f32.mxu0 0.0
    %v7960 = vand.u32 %v164, 4294901760
    %v7961 = vsub.f32 %v164, %v7960
    %v7962 = vand.u32 %v7961, 4294901760
    %7963 = vmatmul.mubr.f32.gmra.mxu0 %v7962
    %v7964 = vpop.f32.mrf.mxu0
    %v7965 = vadd.f32 %v7764, %v7964
    %v7966 = vpop.f32.mrf.mxu0
    %7967 = vmatprep.mubr.f32.mxu0 0.0
    %v7968 = vand.u32 %v165, 4294901760
    %v7969 = vsub.f32 %v165, %v7968
    %v7970 = vand.u32 %v7969, 4294901760
    %7971 = vmatmul.mubr.f32.gmra.mxu0 %v7970
    %v7972 = vpop.f32.mrf.mxu0
    %v7973 = vadd.f32 %v7771, %v7972
    %v7974 = vpop.f32.mrf.mxu0
    %7975 = vmatprep.mubr.f32.mxu0 0.0
    %v7976 = vand.u32 %v166, 4294901760
    %v7977 = vsub.f32 %v166, %v7976
    %v7978 = vand.u32 %v7977, 4294901760
    %7979 = vmatmul.mubr.f32.gmra.mxu0 %v7978
    %v7980 = vpop.f32.mrf.mxu0
    %v7981 = vadd.f32 %v7778, %v7980
    %v7982 = vpop.f32.mrf.mxu0
    %7983 = vmatprep.mubr.f32.mxu0 0.0
    %v7984 = vand.u32 %v167, 4294901760
    %v7985 = vsub.f32 %v167, %v7984
    %v7986 = vand.u32 %v7985, 4294901760
    %7987 = vmatmul.mubr.f32.gmra.mxu0 %v7986
    %v7988 = vpop.f32.mrf.mxu0
    %v7989 = vadd.f32 %v7785, %v7988
    %v7990 = vpop.f32.mrf.mxu0
    %7991 = vmatprep.mubr.f32.mxu0 0.0
    %v7992 = vand.u32 %v168, 4294901760
    %v7993 = vsub.f32 %v168, %v7992
    %v7994 = vand.u32 %v7993, 4294901760
    %7995 = vmatmul.mubr.f32.gmra.mxu0 %v7994
    %v7996 = vpop.f32.mrf.mxu0
    %v7997 = vadd.f32 %v7792, %v7996
    %v7998 = vpop.f32.mrf.mxu0
    %7999 = vmatprep.mubr.f32.mxu0 0.0
    %v8000 = vand.u32 %v169, 4294901760
    %v8001 = vsub.f32 %v169, %v8000
    %v8002 = vand.u32 %v8001, 4294901760
    %8003 = vmatmul.mubr.f32.gmra.mxu0 %v8002
    %v8004 = vpop.f32.mrf.mxu0
    %v8005 = vadd.f32 %v7799, %v8004
    %v8006 = vpop.f32.mrf.mxu0
    %8007 = vmatprep.mubr.f32.mxu0 0.0
    %v8008 = vand.u32 %v170, 4294901760
    %v8009 = vsub.f32 %v170, %v8008
    %v8010 = vand.u32 %v8009, 4294901760
    %8011 = vmatmul.mubr.f32.gmra.mxu0 %v8010
    %v8012 = vpop.f32.mrf.mxu0
    %v8013 = vadd.f32 %v7806, %v8012
    %v8014 = vpop.f32.mrf.mxu0
    %8015 = vmatprep.mubr.f32.mxu0 0.0
    %v8016 = vand.u32 %v171, 4294901760
    %v8017 = vsub.f32 %v171, %v8016
    %v8018 = vand.u32 %v8017, 4294901760
    %8019 = vmatmul.mubr.f32.gmra.mxu0 %v8018
    %v8020 = vpop.f32.mrf.mxu0
    %v8021 = vadd.f32 %v7813, %v8020
    %v8022 = vpop.f32.mrf.mxu0
    %8023 = vmatprep.mubr.f32.mxu0 0.0
    %v8024 = vand.u32 %v172, 4294901760
    %v8025 = vsub.f32 %v172, %v8024
    %v8026 = vand.u32 %v8025, 4294901760
    %8027 = vmatmul.mubr.f32.gmra.mxu0 %v8026
    %v8028 = vpop.f32.mrf.mxu0
    %v8029 = vadd.f32 %v7820, %v8028
    %v8030 = vpop.f32.mrf.mxu0
    %8031 = vdwg.mxu0
    %8032 = vmatprep.subr.mxu0 0.0
    %v8033 = vand.u32 %v316, 4294901760
    %v8034 = vsub.f32 %v316, %v8033
    %v8035 = vand.u32 %v8034, 4294901760
    %8036 = vmatpush1.msra.mxu0 %v8035
    %8037 = vmatprep.subr.mxu0 0.0
    %v8038 = vand.u32 %v315, 4294901760
    %v8039 = vsub.f32 %v315, %v8038
    %v8040 = vand.u32 %v8039, 4294901760
    %8041 = vmatpush1.msra.mxu0 %v8040
    %8042 = vmatprep.subr.mxu0 0.0
    %v8043 = vand.u32 %v314, 4294901760
    %v8044 = vsub.f32 %v314, %v8043
    %v8045 = vand.u32 %v8044, 4294901760
    %8046 = vmatpush1.msra.mxu0 %v8045
    %8047 = vmatprep.subr.mxu0 0.0
    %v8048 = vand.u32 %v313, 4294901760
    %v8049 = vsub.f32 %v313, %v8048
    %v8050 = vand.u32 %v8049, 4294901760
    %8051 = vmatpush1.msra.mxu0 %v8050
    %8052 = vmatprep.subr.mxu0 0.0
    %v8053 = vand.u32 %v312, 4294901760
    %v8054 = vsub.f32 %v312, %v8053
    %v8055 = vand.u32 %v8054, 4294901760
    %8056 = vmatpush1.msra.mxu0 %v8055
    %8057 = vmatprep.subr.mxu0 0.0
    %v8058 = vand.u32 %v311, 4294901760
    %v8059 = vsub.f32 %v311, %v8058
    %v8060 = vand.u32 %v8059, 4294901760
    %8061 = vmatpush1.msra.mxu0 %v8060
    %8062 = vmatprep.subr.mxu0 0.0
    %v8063 = vand.u32 %v310, 4294901760
    %v8064 = vsub.f32 %v310, %v8063
    %v8065 = vand.u32 %v8064, 4294901760
    %8066 = vmatpush1.msra.mxu0 %v8065
    %8067 = vmatprep.subr.mxu0 0.0
    %v8068 = vand.u32 %v309, 4294901760
    %v8069 = vsub.f32 %v309, %v8068
    %v8070 = vand.u32 %v8069, 4294901760
    %8071 = vmatpush1.msra.mxu0 %v8070
    %8072 = vmatprep.subr.mxu0 0.0
    %v8073 = vand.u32 %v308, 4294901760
    %v8074 = vsub.f32 %v308, %v8073
    %v8075 = vand.u32 %v8074, 4294901760
    %8076 = vmatpush1.msra.mxu0 %v8075
    %8077 = vmatprep.subr.mxu0 0.0
    %v8078 = vand.u32 %v307, 4294901760
    %v8079 = vsub.f32 %v307, %v8078
    %v8080 = vand.u32 %v8079, 4294901760
    %8081 = vmatpush1.msra.mxu0 %v8080
    %8082 = vmatprep.subr.mxu0 0.0
    %v8083 = vand.u32 %v306, 4294901760
    %v8084 = vsub.f32 %v306, %v8083
    %v8085 = vand.u32 %v8084, 4294901760
    %8086 = vmatpush1.msra.mxu0 %v8085
    %8087 = vmatprep.subr.mxu0 0.0
    %v8088 = vand.u32 %v305, 4294901760
    %v8089 = vsub.f32 %v305, %v8088
    %v8090 = vand.u32 %v8089, 4294901760
    %8091 = vmatpush1.msra.mxu0 %v8090
    %8092 = vmatprep.subr.mxu0 0.0
    %v8093 = vand.u32 %v304, 4294901760
    %v8094 = vsub.f32 %v304, %v8093
    %v8095 = vand.u32 %v8094, 4294901760
    %8096 = vmatpush1.msra.mxu0 %v8095
    %8097 = vmatprep.subr.mxu0 0.0
    %v8098 = vand.u32 %v303, 4294901760
    %v8099 = vsub.f32 %v303, %v8098
    %v8100 = vand.u32 %v8099, 4294901760
    %8101 = vmatpush1.msra.mxu0 %v8100
    %8102 = vmatprep.subr.mxu0 0.0
    %v8103 = vand.u32 %v302, 4294901760
    %v8104 = vsub.f32 %v302, %v8103
    %v8105 = vand.u32 %v8104, 4294901760
    %8106 = vmatpush1.msra.mxu0 %v8105
    %8107 = vmatprep.subr.mxu0 0.0
    %v8108 = vand.u32 %v301, 4294901760
    %v8109 = vsub.f32 %v301, %v8108
    %v8110 = vand.u32 %v8109, 4294901760
    %8111 = vmatpush1.msra.mxu0 %v8110
    %8112 = vmatprep.subr.mxu0 0.0
    %8113 = vmatpush2.msra.mxu0 0.0
    %8114 = vmatprep.subr.mxu0 0.0
    %8115 = vmatpush2.msra.mxu0 0.0
    %8116 = vmatprep.subr.mxu0 0.0
    %8117 = vmatpush2.msra.mxu0 0.0
    %8118 = vmatprep.subr.mxu0 0.0
    %8119 = vmatpush2.msra.mxu0 0.0
    %8120 = vmatprep.subr.mxu0 0.0
    %8121 = vmatpush2.msra.mxu0 0.0
    %8122 = vmatprep.subr.mxu0 0.0
    %8123 = vmatpush2.msra.mxu0 0.0
    %8124 = vmatprep.subr.mxu0 0.0
    %8125 = vmatpush2.msra.mxu0 0.0
    %8126 = vmatprep.subr.mxu0 0.0
    %8127 = vmatpush2.msra.mxu0 0.0
    %8128 = vmatprep.subr.mxu0 0.0
    %8129 = vmatpush2.msra.mxu0 0.0
    %8130 = vmatprep.subr.mxu0 0.0
    %8131 = vmatpush2.msra.mxu0 0.0
    %8132 = vmatprep.subr.mxu0 0.0
    %8133 = vmatpush2.msra.mxu0 0.0
    %8134 = vmatprep.subr.mxu0 0.0
    %8135 = vmatpush2.msra.mxu0 0.0
    %8136 = vmatprep.subr.mxu0 0.0
    %8137 = vmatpush2.msra.mxu0 0.0
    %8138 = vmatprep.subr.mxu0 0.0
    %8139 = vmatpush2.msra.mxu0 0.0
    %8140 = vmatprep.subr.mxu0 0.0
    %8141 = vmatpush2.msra.mxu0 0.0
    %8142 = vmatprep.subr.mxu0 0.0
    %8143 = vmatpush2.msra.mxu0 0.0
    %8144 = vmatprep.mubr.f32.mxu0 0.0
    %v8145 = vand.u32 %v157, 4294901760
    %8146 = vmatmul.mubr.f32.gmra.mxu0 %v8145
    %v8147 = vpop.f32.mrf.mxu0
    %v8148 = vadd.f32 %v7909, %v8147
    %v8149 = vpop.f32.mrf.mxu0
    %8150 = vmatprep.mubr.f32.mxu0 0.0
    %v8151 = vand.u32 %v158, 4294901760
    %8152 = vmatmul.mubr.f32.gmra.mxu0 %v8151
    %v8153 = vpop.f32.mrf.mxu0
    %v8154 = vadd.f32 %v7917, %v8153
    %v8155 = vpop.f32.mrf.mxu0
    %8156 = vmatprep.mubr.f32.mxu0 0.0
    %v8157 = vand.u32 %v159, 4294901760
    %8158 = vmatmul.mubr.f32.gmra.mxu0 %v8157
    %v8159 = vpop.f32.mrf.mxu0
    %v8160 = vadd.f32 %v7925, %v8159
    %v8161 = vpop.f32.mrf.mxu0
    %8162 = vmatprep.mubr.f32.mxu0 0.0
    %v8163 = vand.u32 %v160, 4294901760
    %8164 = vmatmul.mubr.f32.gmra.mxu0 %v8163
    %v8165 = vpop.f32.mrf.mxu0
    %v8166 = vadd.f32 %v7933, %v8165
    %v8167 = vpop.f32.mrf.mxu0
    %8168 = vmatprep.mubr.f32.mxu0 0.0
    %v8169 = vand.u32 %v161, 4294901760
    %8170 = vmatmul.mubr.f32.gmra.mxu0 %v8169
    %v8171 = vpop.f32.mrf.mxu0
    %v8172 = vadd.f32 %v7941, %v8171
    %v8173 = vpop.f32.mrf.mxu0
    %8174 = vmatprep.mubr.f32.mxu0 0.0
    %v8175 = vand.u32 %v162, 4294901760
    %8176 = vmatmul.mubr.f32.gmra.mxu0 %v8175
    %v8177 = vpop.f32.mrf.mxu0
    %v8178 = vadd.f32 %v7949, %v8177
    %v8179 = vpop.f32.mrf.mxu0
    %8180 = vmatprep.mubr.f32.mxu0 0.0
    %v8181 = vand.u32 %v163, 4294901760
    %8182 = vmatmul.mubr.f32.gmra.mxu0 %v8181
    %v8183 = vpop.f32.mrf.mxu0
    %v8184 = vadd.f32 %v7957, %v8183
    %v8185 = vpop.f32.mrf.mxu0
    %8186 = vmatprep.mubr.f32.mxu0 0.0
    %v8187 = vand.u32 %v164, 4294901760
    %8188 = vmatmul.mubr.f32.gmra.mxu0 %v8187
    %v8189 = vpop.f32.mrf.mxu0
    %v8190 = vadd.f32 %v7965, %v8189
    %v8191 = vpop.f32.mrf.mxu0
    %8192 = vmatprep.mubr.f32.mxu0 0.0
    %v8193 = vand.u32 %v165, 4294901760
    %8194 = vmatmul.mubr.f32.gmra.mxu0 %v8193
    %v8195 = vpop.f32.mrf.mxu0
    %v8196 = vadd.f32 %v7973, %v8195
    %v8197 = vpop.f32.mrf.mxu0
    %8198 = vmatprep.mubr.f32.mxu0 0.0
    %v8199 = vand.u32 %v166, 4294901760
    %8200 = vmatmul.mubr.f32.gmra.mxu0 %v8199
    %v8201 = vpop.f32.mrf.mxu0
    %v8202 = vadd.f32 %v7981, %v8201
    %v8203 = vpop.f32.mrf.mxu0
    %8204 = vmatprep.mubr.f32.mxu0 0.0
    %v8205 = vand.u32 %v167, 4294901760
    %8206 = vmatmul.mubr.f32.gmra.mxu0 %v8205
    %v8207 = vpop.f32.mrf.mxu0
    %v8208 = vadd.f32 %v7989, %v8207
    %v8209 = vpop.f32.mrf.mxu0
    %8210 = vmatprep.mubr.f32.mxu0 0.0
    %v8211 = vand.u32 %v168, 4294901760
    %8212 = vmatmul.mubr.f32.gmra.mxu0 %v8211
    %v8213 = vpop.f32.mrf.mxu0
    %v8214 = vadd.f32 %v7997, %v8213
    %v8215 = vpop.f32.mrf.mxu0
    %8216 = vmatprep.mubr.f32.mxu0 0.0
    %v8217 = vand.u32 %v169, 4294901760
    %8218 = vmatmul.mubr.f32.gmra.mxu0 %v8217
    %v8219 = vpop.f32.mrf.mxu0
    %v8220 = vadd.f32 %v8005, %v8219
    %v8221 = vpop.f32.mrf.mxu0
    %8222 = vmatprep.mubr.f32.mxu0 0.0
    %v8223 = vand.u32 %v170, 4294901760
    %8224 = vmatmul.mubr.f32.gmra.mxu0 %v8223
    %v8225 = vpop.f32.mrf.mxu0
    %v8226 = vadd.f32 %v8013, %v8225
    %v8227 = vpop.f32.mrf.mxu0
    %8228 = vmatprep.mubr.f32.mxu0 0.0
    %v8229 = vand.u32 %v171, 4294901760
    %8230 = vmatmul.mubr.f32.gmra.mxu0 %v8229
    %v8231 = vpop.f32.mrf.mxu0
    %v8232 = vadd.f32 %v8021, %v8231
    %v8233 = vpop.f32.mrf.mxu0
    %8234 = vmatprep.mubr.f32.mxu0 0.0
    %v8235 = vand.u32 %v172, 4294901760
    %8236 = vmatmul.mubr.f32.gmra.mxu0 %v8235
    %v8237 = vpop.f32.mrf.mxu0
    %v8238 = vadd.f32 %v8029, %v8237
    %v8239 = vpop.f32.mrf.mxu0
    %8240 = vdwg.mxu0
    %8241 = vmatprep.subr.mxu0 0.0
    %v8242 = vand.u32 %v316, 4294901760
    %8243 = vmatpush1.msra.mxu0 %v8242
    %8244 = vmatprep.subr.mxu0 0.0
    %v8245 = vand.u32 %v315, 4294901760
    %8246 = vmatpush1.msra.mxu0 %v8245
    %8247 = vmatprep.subr.mxu0 0.0
    %v8248 = vand.u32 %v314, 4294901760
    %8249 = vmatpush1.msra.mxu0 %v8248
    %8250 = vmatprep.subr.mxu0 0.0
    %v8251 = vand.u32 %v313, 4294901760
    %8252 = vmatpush1.msra.mxu0 %v8251
    %8253 = vmatprep.subr.mxu0 0.0
    %v8254 = vand.u32 %v312, 4294901760
    %8255 = vmatpush1.msra.mxu0 %v8254
    %8256 = vmatprep.subr.mxu0 0.0
    %v8257 = vand.u32 %v311, 4294901760
    %8258 = vmatpush1.msra.mxu0 %v8257
    %8259 = vmatprep.subr.mxu0 0.0
    %v8260 = vand.u32 %v310, 4294901760
    %8261 = vmatpush1.msra.mxu0 %v8260
    %8262 = vmatprep.subr.mxu0 0.0
    %v8263 = vand.u32 %v309, 4294901760
    %8264 = vmatpush1.msra.mxu0 %v8263
    %8265 = vmatprep.subr.mxu0 0.0
    %v8266 = vand.u32 %v308, 4294901760
    %8267 = vmatpush1.msra.mxu0 %v8266
    %8268 = vmatprep.subr.mxu0 0.0
    %v8269 = vand.u32 %v307, 4294901760
    %8270 = vmatpush1.msra.mxu0 %v8269
    %8271 = vmatprep.subr.mxu0 0.0
    %v8272 = vand.u32 %v306, 4294901760
    %8273 = vmatpush1.msra.mxu0 %v8272
    %8274 = vmatprep.subr.mxu0 0.0
    %v8275 = vand.u32 %v305, 4294901760
    %8276 = vmatpush1.msra.mxu0 %v8275
    %8277 = vmatprep.subr.mxu0 0.0
    %v8278 = vand.u32 %v304, 4294901760
    %8279 = vmatpush1.msra.mxu0 %v8278
    %8280 = vmatprep.subr.mxu0 0.0
    %v8281 = vand.u32 %v303, 4294901760
    %8282 = vmatpush1.msra.mxu0 %v8281
    %8283 = vmatprep.subr.mxu0 0.0
    %v8284 = vand.u32 %v302, 4294901760
    %8285 = vmatpush1.msra.mxu0 %v8284
    %8286 = vmatprep.subr.mxu0 0.0
    %v8287 = vand.u32 %v301, 4294901760
    %8288 = vmatpush1.msra.mxu0 %v8287
    %8289 = vmatprep.subr.mxu0 0.0
    %8290 = vmatpush2.msra.mxu0 0.0
    %8291 = vmatprep.subr.mxu0 0.0
    %8292 = vmatpush2.msra.mxu0 0.0
    %8293 = vmatprep.subr.mxu0 0.0
    %8294 = vmatpush2.msra.mxu0 0.0
    %8295 = vmatprep.subr.mxu0 0.0
    %8296 = vmatpush2.msra.mxu0 0.0
    %8297 = vmatprep.subr.mxu0 0.0
    %8298 = vmatpush2.msra.mxu0 0.0
    %8299 = vmatprep.subr.mxu0 0.0
    %8300 = vmatpush2.msra.mxu0 0.0
    %8301 = vmatprep.subr.mxu0 0.0
    %8302 = vmatpush2.msra.mxu0 0.0
    %8303 = vmatprep.subr.mxu0 0.0
    %8304 = vmatpush2.msra.mxu0 0.0
    %8305 = vmatprep.subr.mxu0 0.0
    %8306 = vmatpush2.msra.mxu0 0.0
    %8307 = vmatprep.subr.mxu0 0.0
    %8308 = vmatpush2.msra.mxu0 0.0
    %8309 = vmatprep.subr.mxu0 0.0
    %8310 = vmatpush2.msra.mxu0 0.0
    %8311 = vmatprep.subr.mxu0 0.0
    %8312 = vmatpush2.msra.mxu0 0.0
    %8313 = vmatprep.subr.mxu0 0.0
    %8314 = vmatpush2.msra.mxu0 0.0
    %8315 = vmatprep.subr.mxu0 0.0
    %8316 = vmatpush2.msra.mxu0 0.0
    %8317 = vmatprep.subr.mxu0 0.0
    %8318 = vmatpush2.msra.mxu0 0.0
    %8319 = vmatprep.subr.mxu0 0.0
    %8320 = vmatpush2.msra.mxu0 0.0
    %8321 = vmatprep.mubr.f32.mxu0 0.0
    %v8322 = vand.u32 %v157, 4294901760
    %8323 = vmatmul.mubr.f32.gmra.mxu0 %v8322
    %v8324 = vpop.f32.mrf.mxu0
    %v8325 = vadd.f32 %v8148, %v8324
    %v8326 = vpop.f32.mrf.mxu0
    %8327 = vmatprep.mubr.f32.mxu0 0.0
    %v8328 = vand.u32 %v158, 4294901760
    %8329 = vmatmul.mubr.f32.gmra.mxu0 %v8328
    %v8330 = vpop.f32.mrf.mxu0
    %v8331 = vadd.f32 %v8154, %v8330
    %v8332 = vpop.f32.mrf.mxu0
    %8333 = vmatprep.mubr.f32.mxu0 0.0
    %v8334 = vand.u32 %v159, 4294901760
    %8335 = vmatmul.mubr.f32.gmra.mxu0 %v8334
    %v8336 = vpop.f32.mrf.mxu0
    %v8337 = vadd.f32 %v8160, %v8336
    %v8338 = vpop.f32.mrf.mxu0
    %8339 = vmatprep.mubr.f32.mxu0 0.0
    %v8340 = vand.u32 %v160, 4294901760
    %8341 = vmatmul.mubr.f32.gmra.mxu0 %v8340
    %v8342 = vpop.f32.mrf.mxu0
    %v8343 = vadd.f32 %v8166, %v8342
    %v8344 = vpop.f32.mrf.mxu0
    %8345 = vmatprep.mubr.f32.mxu0 0.0
    %v8346 = vand.u32 %v161, 4294901760
    %8347 = vmatmul.mubr.f32.gmra.mxu0 %v8346
    %v8348 = vpop.f32.mrf.mxu0
    %v8349 = vadd.f32 %v8172, %v8348
    %v8350 = vpop.f32.mrf.mxu0
    %8351 = vmatprep.mubr.f32.mxu0 0.0
    %v8352 = vand.u32 %v162, 4294901760
    %8353 = vmatmul.mubr.f32.gmra.mxu0 %v8352
    %v8354 = vpop.f32.mrf.mxu0
    %v8355 = vadd.f32 %v8178, %v8354
    %v8356 = vpop.f32.mrf.mxu0
    %8357 = vmatprep.mubr.f32.mxu0 0.0
    %v8358 = vand.u32 %v163, 4294901760
    %8359 = vmatmul.mubr.f32.gmra.mxu0 %v8358
    %v8360 = vpop.f32.mrf.mxu0
    %v8361 = vadd.f32 %v8184, %v8360
    %v8362 = vpop.f32.mrf.mxu0
    %8363 = vmatprep.mubr.f32.mxu0 0.0
    %v8364 = vand.u32 %v164, 4294901760
    %8365 = vmatmul.mubr.f32.gmra.mxu0 %v8364
    %v8366 = vpop.f32.mrf.mxu0
    %v8367 = vadd.f32 %v8190, %v8366
    %v8368 = vpop.f32.mrf.mxu0
    %8369 = vmatprep.mubr.f32.mxu0 0.0
    %v8370 = vand.u32 %v165, 4294901760
    %8371 = vmatmul.mubr.f32.gmra.mxu0 %v8370
    %v8372 = vpop.f32.mrf.mxu0
    %v8373 = vadd.f32 %v8196, %v8372
    %v8374 = vpop.f32.mrf.mxu0
    %8375 = vmatprep.mubr.f32.mxu0 0.0
    %v8376 = vand.u32 %v166, 4294901760
    %8377 = vmatmul.mubr.f32.gmra.mxu0 %v8376
    %v8378 = vpop.f32.mrf.mxu0
    %v8379 = vadd.f32 %v8202, %v8378
    %v8380 = vpop.f32.mrf.mxu0
    %8381 = vmatprep.mubr.f32.mxu0 0.0
    %v8382 = vand.u32 %v167, 4294901760
    %8383 = vmatmul.mubr.f32.gmra.mxu0 %v8382
    %v8384 = vpop.f32.mrf.mxu0
    %v8385 = vadd.f32 %v8208, %v8384
    %v8386 = vpop.f32.mrf.mxu0
    %8387 = vmatprep.mubr.f32.mxu0 0.0
    %v8388 = vand.u32 %v168, 4294901760
    %8389 = vmatmul.mubr.f32.gmra.mxu0 %v8388
    %v8390 = vpop.f32.mrf.mxu0
    %v8391 = vadd.f32 %v8214, %v8390
    %v8392 = vpop.f32.mrf.mxu0
    %8393 = vmatprep.mubr.f32.mxu0 0.0
    %v8394 = vand.u32 %v169, 4294901760
    %8395 = vmatmul.mubr.f32.gmra.mxu0 %v8394
    %v8396 = vpop.f32.mrf.mxu0
    %v8397 = vadd.f32 %v8220, %v8396
    %v8398 = vpop.f32.mrf.mxu0
    %8399 = vmatprep.mubr.f32.mxu0 0.0
    %v8400 = vand.u32 %v170, 4294901760
    %8401 = vmatmul.mubr.f32.gmra.mxu0 %v8400
    %v8402 = vpop.f32.mrf.mxu0
    %v8403 = vadd.f32 %v8226, %v8402
    %v8404 = vpop.f32.mrf.mxu0
    %8405 = vmatprep.mubr.f32.mxu0 0.0
    %v8406 = vand.u32 %v171, 4294901760
    %8407 = vmatmul.mubr.f32.gmra.mxu0 %v8406
    %v8408 = vpop.f32.mrf.mxu0
    %v8409 = vadd.f32 %v8232, %v8408
    %v8410 = vpop.f32.mrf.mxu0
    %8411 = vmatprep.mubr.f32.mxu0 0.0
    %v8412 = vand.u32 %v172, 4294901760
    %8413 = vmatmul.mubr.f32.gmra.mxu0 %v8412
    %v8414 = vpop.f32.mrf.mxu0
    %v8415 = vadd.f32 %v8238, %v8414
    %v8416 = vpop.f32.mrf.mxu0
    %8417 = vdwg.mxu0
    %8418 = vst [vmem:[#allocation2] sm:$0xff] %v8325
    %8419 = vst [vmem:[#allocation2 + $0x8] sm:$0xff] %v8331
    %8420 = vst [vmem:[#allocation2 + $0x10] sm:$0xff] %v8337
    %8421 = vst [vmem:[#allocation2 + $0x18] sm:$0xff] %v8343
    %8422 = vst [vmem:[#allocation2 + $0x20] sm:$0xff] %v8349
    %8423 = vst [vmem:[#allocation2 + $0x28] sm:$0xff] %v8355
    %8424 = vst [vmem:[#allocation2 + $0x30] sm:$0xff] %v8361
    %8425 = vst [vmem:[#allocation2 + $0x38] sm:$0xff] %v8367
    %8426 = vst [vmem:[#allocation2 + $0x40] sm:$0xff] %v8373
    %8427 = vst [vmem:[#allocation2 + $0x48] sm:$0xff] %v8379
    %8428 = vst [vmem:[#allocation2 + $0x50] sm:$0xff] %v8385
    %8429 = vst [vmem:[#allocation2 + $0x58] sm:$0xff] %v8391
    %8430 = vst [vmem:[#allocation2 + $0x60] sm:$0xff] %v8397
    %8431 = vst [vmem:[#allocation2 + $0x68] sm:$0xff] %v8403
    %8432 = vst [vmem:[#allocation2 + $0x70] sm:$0xff] %v8409
    %8433 = vst [vmem:[#allocation2 + $0x78] sm:$0xff] %v8415
    // Predicated region
    $region14: #{downsample_forward.1} parent=1 // pred_check
      _
    $region15: #{downsample_forward.1} parent=1 // pred_check_branch
      %8435 = sbr.rel (0) target = $region17
    $region16: #{downsample_forward.1} parent=1 // pred_region
      %s8437 = ssub.s32 2048, 2048
      %8438 = vsyncadd [#allocation3], %s8437
      %s8439 = sshll.u32 [#allocation2], 4
      %s8440 = int_to_ptr.vmem [resolvable:$true] %s8439
      %8445 = dma.vmem_to_hbm [thread:$0]  %s8440, 2048, %s3, [#allocation3], 128, 128, 8
    $region17: #{downsample_forward.1} parent=1 // pred_fallthru
      _
    // Predicated region
    $region18: #{downsample_forward.1} parent=1 // pred_check
      _
    $region19: #{downsample_forward.1} parent=1 // pred_check_branch
      %8447 = sbr.rel (0) target = $region21
    $region20: #{downsample_forward.1} parent=1 // pred_region
      %8448 = dma.done [#allocation3], 2048
    $region21: #{downsample_forward.1} parent=1 // pred_fallthru
      _
    %8449 = vsyncpa [#allocation3], 1

</llo_original>
